<compile_context>
chip_gen: v7x
topology: tpu7x:2x2x1
jax: 0.10.0
libtpu: 0.0.40
codegen_flags: <defaults>
</compile_context>

<pallas_src>
import functools

import jax
import jax.numpy as jnp
from jax import lax
from jax.experimental import pallas as pl
from jax.experimental.pallas import tpu as pltpu

LANE = 128
N_CLASSES = 10


def _round_up(x, m):
    return (x + m - 1) // m * m


# ----------------------------------------------------------------------------
# Fused kernel: conv1(im2col matmul) + ReLU -> conv2(9 accumulating dots) +
# ReLU -> global-avg-pool -> Linear head. One grid step handles BM batch
# elements; only the (BM, 1, Np) lane-dense logits block is written to HBM.
# ----------------------------------------------------------------------------
def _fused_classifier_kernel(patch_ref, w1_ref, b1_ref, w2_ref, b2_ref,
                             wh_ref, bh_ref, o_ref, hp_ref,
                             *, BM, H, W, C1, C2, Np):
    # patch_ref: (BM, H*W, K1p) bf16   conv1 im2col patches (lane-padded K)
    # w1_ref   : (K1p, C1)      bf16
    # b1_ref   : (1, C1)        f32
    # w2_ref   : (9*C1, C2)     bf16
    # b2_ref   : (1, C2)        f32
    # wh_ref   : (C2, Np)       bf16   head weight (zero padded)
    # bh_ref   : (1, Np)        f32    head bias   (zero padded)
    # o_ref    : (BM, 1, Np)    f32    padded logits
    # hp_ref   : (H+2, W+2, C1) bf16   VMEM scratch: conv1 act with zero halo

    # Zero ONLY the 1-wide halo border (interior fully overwritten per batch
    # element below) instead of the whole scratch -> far fewer stores.
    hp_ref[0:1, :, :] = jnp.zeros((1, W + 2, C1), jnp.bfloat16)
    hp_ref[H + 1:H + 2, :, :] = jnp.zeros((1, W + 2, C1), jnp.bfloat16)
    hp_ref[:, 0:1, :] = jnp.zeros((H + 2, 1, C1), jnp.bfloat16)
    hp_ref[:, W + 1:W + 2, :] = jnp.zeros((H + 2, 1, C1), jnp.bfloat16)

    # --- conv1 + bias + ReLU: one tall (BM*H*W, K1p) x (K1p, C1) MXU matmul --
    M = BM * H * W
    K1p = patch_ref.shape[-1]
    h_all = jnp.dot(patch_ref[...].reshape(M, K1p), w1_ref[...],
                    preferred_element_type=jnp.float32)
    h_all = jnp.maximum(h_all + b1_ref[...], 0.0).astype(jnp.bfloat16)  # (M,C1)

    inv_hw = 1.0 / float(H * W)
    for b in range(BM):                                 # static unroll, BM<=2
        # Stage this batch element's conv1 activation into the halo scratch.
        hp_ref[1:H + 1, 1:W + 1, :] = (
            h_all[b * H * W:(b + 1) * H * W, :].reshape(H, W, C1))

        # --- conv2 + bias + ReLU: 9 accumulating dots, K = C1 = 128 each ----
        acc = jnp.zeros((H * W, C2), jnp.float32)
        for k in range(9):
            kh, kw = k // 3, k % 3
            window = hp_ref[kh:kh + H, kw:kw + W, :].reshape(H * W, C1)
            acc = acc + jnp.dot(window, w2_ref[k * C1:(k + 1) * C1, :],
                                preferred_element_type=jnp.float32)
        feat = jnp.maximum(acc + b2_ref[...], 0.0)                  # (H*W, C2)

        # --- global average pool + Linear head (bf16 dot, f32 epilogue) -----
        pooled = jnp.sum(feat, axis=0, keepdims=True) * inv_hw      # (1, C2)
        logits = jnp.dot(pooled.astype(jnp.bfloat16), wh_ref[...],
                         preferred_element_type=jnp.float32) + bh_ref[...]
        o_ref[b, :, :] = logits                                     # (1, Np)


def fused_classifier(patch, w1, b1, w2, b2, wh, bh, *, H, W, batch_block):
    """patch: (B, H*W, K1p) bf16. Returns padded logits (B, 1, Np) f32."""
    B, HW, K1p = patch.shape
    C1 = w1.shape[1]
    C2 = w2.shape[1]
    Np = wh.shape[1]
    BM = batch_block
    assert B % BM == 0
    kernel = functools.partial(_fused_classifier_kernel,
                               BM=BM, H=H, W=W, C1=C1, C2=C2, Np=Np)
    return pl.pallas_call(
        kernel,
        out_shape=jax.ShapeDtypeStruct((B, 1, Np), jnp.float32),
        grid_spec=pltpu.PrefetchScalarGridSpec(
            num_scalar_prefetch=0,
            grid=(B // BM,),
            in_specs=[
                pl.BlockSpec((BM, HW, K1p), lambda b: (b, 0, 0)),
                pl.BlockSpec((K1p, C1), lambda b: (0, 0)),
                pl.BlockSpec((1, C1), lambda b: (0, 0)),
                pl.BlockSpec((9 * C1, C2), lambda b: (0, 0)),
                pl.BlockSpec((1, C2), lambda b: (0, 0)),
                pl.BlockSpec((C2, Np), lambda b: (0, 0)),
                pl.BlockSpec((1, Np), lambda b: (0, 0)),
            ],
            out_specs=pl.BlockSpec((BM, 1, Np), lambda b: (b, 0, 0)),
            scratch_shapes=[pltpu.VMEM((H + 2, W + 2, C1), jnp.bfloat16)],
        ),
        compiler_params=pltpu.CompilerParams(
            dimension_semantics=("parallel",),          # megacore on v7x
            vmem_limit_bytes=32 * 1024 * 1024,          # fine on all gens
        ),
    )(patch, w1, b1, w2, b2, wh, bh)


# ----------------------------------------------------------------------------
# Wrapper-side im2col for conv1 (tiny lane-sparse input; do it in XLA once).
# ----------------------------------------------------------------------------
def _im2col_3x3(x_nhwc):
    B, H, W, Cin = x_nhwc.shape
    xp = jnp.pad(x_nhwc, ((0, 0), (1, 1), (1, 1), (0, 0)))
    cols = [xp[:, kh:kh + H, kw:kw + W, :]
            for kh in range(3) for kw in range(3)]
    return jnp.concatenate(cols, axis=-1).reshape(B, H * W, 9 * Cin)


# ----------------------------------------------------------------------------
# Parameters: PyTorch-like f32 params + one-time packing (pad/reshape/cast).
# ----------------------------------------------------------------------------
def init_params(key, cin=4, c1=32, c2=32, n_classes=10):
    k1, k2, k3 = jax.random.split(key, 3)
    s1 = (2.0 / (9 * cin)) ** 0.5
    s2 = (2.0 / (9 * c1)) ** 0.5
    s3 = (1.0 / c2) ** 0.5
    return {
        "conv1_w": jax.random.normal(k1, (3, 3, cin, c1), jnp.float32) * s1,
        "conv1_b": jnp.zeros((c1,), jnp.float32),
        "conv2_w": jax.random.normal(k2, (3, 3, c1, c2), jnp.float32) * s2,
        "conv2_b": jnp.zeros((c2,), jnp.float32),
        "head_w": jax.random.normal(k3, (c2, n_classes), jnp.float32) * s3,
        "head_b": jnp.zeros((n_classes,), jnp.float32),
    }


def pack_params(p, cin=4, c1=32, c2=32, n_classes=10):
    """Pad channels to the 128-lane width and pre-reshape conv weights to
    im2col (9*Cin, Cout) matrices. Done once; the forward only runs kernels."""
    C1p = _round_up(c1, LANE)
    C2p = _round_up(c2, LANE)
    Np = _round_up(n_classes, LANE)
    K1 = 9 * cin
    K1p = _round_up(K1, LANE)

    w1 = p["conv1_w"].reshape(K1, c1)
    w1p = jnp.zeros((K1p, C1p), jnp.float32).at[:K1, :c1].set(w1)
    b1p = jnp.zeros((1, C1p), jnp.float32).at[0, :c1].set(p["conv1_b"])

    # conv2 consumes the lane-padded conv1 activation (C1p in-channels).
    w2_full = jnp.zeros((3, 3, C1p, C2p), jnp.float32)
    w2_full = w2_full.at[:, :, :c1, :c2].set(p["conv2_w"])
    w2p = w2_full.reshape(9 * C1p, C2p)
    b2p = jnp.zeros((1, C2p), jnp.float32).at[0, :c2].set(p["conv2_b"])

    whp = jnp.zeros((C2p, Np), jnp.float32).at[:c2, :n_classes].set(p["head_w"])
    bhp = jnp.zeros((1, Np), jnp.float32).at[0, :n_classes].set(p["head_b"])

    return {
        "w1": w1p.astype(jnp.bfloat16), "b1": b1p,
        "w2": w2p.astype(jnp.bfloat16), "b2": b2p,
        # head weight bf16 (MXU operand); tiny bias stays f32 for the epilogue.
        "wh": whp.astype(jnp.bfloat16), "bh": bhp,
    }


def _default_batch_block(batch):
    """Fold the batch into one block on single-TensorCore chips (v5e/v6e,
    one grid step, taller MXU M); keep the per-batch parallel grid on v7x so
    the two batch elements shard across its two TensorCores."""
    try:
        kind = jax.devices()[0].device_kind.lower()
    except Exception:
        kind = ""
    multi_core_tc = ("v7" in kind) or ("7x" in kind)
    return 1 if multi_core_tc else batch


# ----------------------------------------------------------------------------
# DSClassifier forward: head(backbone(x))
# ----------------------------------------------------------------------------
@functools.partial(jax.jit, static_argnames=("batch_block",))
def ds_classifier_forward(x_nchw, packed, batch_block):
    # NCHW (PyTorch) -> NHWC; conv1 im2col done here (lane-sparse Cin=4 input),
    # cast once to bf16; all remaining work runs inside the fused kernel.
    x = jnp.transpose(x_nchw, (0, 2, 3, 1)).astype(jnp.float32)
    B, H, W, Cin = x.shape
    K1p = packed["w1"].shape[0]
    patch = _im2col_3x3(x)                                      # (B,H*W,9*Cin)
    patch = jnp.pad(patch, ((0, 0), (0, 0), (0, K1p - 9 * Cin)))
    patch = patch.astype(jnp.bfloat16)                          # (B,H*W,K1p)
    logits_p = fused_classifier(patch, packed["w1"], packed["b1"],
                                packed["w2"], packed["b2"],
                                packed["wh"], packed["bh"],
                                H=H, W=W, batch_block=batch_block)
    return logits_p[:, 0, :N_CLASSES]                           # (B, n_classes)


# Pure-JAX f32 reference of the synthesized backbone + head (for a sanity
# check with a relaxed tolerance; kernel uses bf16 MXU operands).
def _reference_forward(x_nchw, params):
    x = jnp.transpose(x_nchw, (0, 2, 3, 1)).astype(jnp.float32)
    h = lax.conv_general_dilated(
        x, params["conv1_w"], (1, 1), "SAME",
        dimension_numbers=("NHWC", "HWIO", "NHWC"),
        precision=lax.Precision.HIGHEST)
    h = jax.nn.relu(h + params["conv1_b"])
    h = lax.conv_general_dilated(
        h, params["conv2_w"], (1, 1), "SAME",
        dimension_numbers=("NHWC", "HWIO", "NHWC"),
        precision=lax.Precision.HIGHEST)
    h = jax.nn.relu(h + params["conv2_b"])
    pooled = jnp.mean(h, axis=(1, 2))
    return jnp.dot(pooled, params["head_w"],
                   precision=lax.Precision.HIGHEST) + params["head_b"]


if __name__ == "__main__":
    key = jax.random.PRNGKey(0)
    kx, kp = jax.random.split(key)
    x = jax.random.normal(kx, (2, 4, 16, 16), jnp.float32)      # NCHW input
    params = init_params(kp, cin=4, c1=32, c2=32, n_classes=N_CLASSES)
    packed = pack_params(params, cin=4, c1=32, c2=32, n_classes=N_CLASSES)

    bm = _default_batch_block(x.shape[0])
    logits = ds_classifier_forward(x, packed, batch_block=bm)
    jax.block_until_ready(logits)

    assert logits.shape == (2, N_CLASSES)
    assert bool(jnp.all(jnp.isfinite(logits)))
    ref = _reference_forward(x, params)
    err = float(jnp.max(jnp.abs(logits.astype(jnp.float32) - ref)))
    assert err < 1e-1, f"mismatch vs f32 reference: max abs err {err:.4f}"
    print("KERNEL_OK")
</pallas_src>

<mosaic_0001>
module attributes {stable_mosaic.version = 11 : i64} {
  func.func @_fused_classifier_kernel(%arg0: i32, %arg1: memref<2x256x128xbf16, #tpu.memory_space<vmem>>, %arg2: memref<128x128xbf16, #tpu.memory_space<vmem>>, %arg3: memref<1x128xf32, #tpu.memory_space<vmem>>, %arg4: memref<1152x128xbf16, #tpu.memory_space<vmem>>, %arg5: memref<1x128xf32, #tpu.memory_space<vmem>>, %arg6: memref<128x128xbf16, #tpu.memory_space<vmem>>, %arg7: memref<1x128xf32, #tpu.memory_space<vmem>>, %arg8: memref<2x1x128xf32, #tpu.memory_space<vmem>>, %arg9: memref<18x18x128xbf16, #tpu.memory_space<vmem>>) attributes {dimension_semantics = [#tpu.dimension_semantics<parallel>], iteration_bounds = array<i64: 1>, scalar_prefetch = 0 : i64, scratch_operands = 1 : i64, tpu.core_type = #tpu.core_type<tc>, window_params = [{transform_indices = @transform_0, window_bounds = array<i64: 2, 256, 128>}, {pipeline_mode = #tpu.pipeline_mode<synchronous>, transform_indices = @transform_1, window_bounds = array<i64: 128, 128>}, {pipeline_mode = #tpu.pipeline_mode<synchronous>, transform_indices = @transform_2, window_bounds = array<i64: 1, 128>}, {pipeline_mode = #tpu.pipeline_mode<synchronous>, transform_indices = @transform_3, window_bounds = array<i64: 1152, 128>}, {pipeline_mode = #tpu.pipeline_mode<synchronous>, transform_indices = @transform_4, window_bounds = array<i64: 1, 128>}, {pipeline_mode = #tpu.pipeline_mode<synchronous>, transform_indices = @transform_5, window_bounds = array<i64: 128, 128>}, {pipeline_mode = #tpu.pipeline_mode<synchronous>, transform_indices = @transform_6, window_bounds = array<i64: 1, 128>}, {transform_indices = @transform_7, window_bounds = array<i64: 2, 1, 128>}]} {
    %cst = arith.constant 0.000000e+00 : bf16
    %0 = vector.broadcast %cst : bf16 to vector<1x18x128xbf16>
    %c0 = arith.constant 0 : index
    %c0_0 = arith.constant 0 : index
    %c0_1 = arith.constant 0 : index
    %1 = vector.load %arg9[%c0, %c0_0, %c0_1] : memref<18x18x128xbf16, #tpu.memory_space<vmem>>, vector<1x18x128xbf16>
    tpu.vector_store %arg9[%c0, %c0_0, %c0_1], %0 {strides = array<i32>} : memref<18x18x128xbf16, #tpu.memory_space<vmem>>, vector<1x18x128xbf16>,
    %cst_2 = arith.constant 0.000000e+00 : bf16
    %2 = vector.broadcast %cst_2 : bf16 to vector<1x18x128xbf16>
    %c17 = arith.constant 17 : index
    %c0_3 = arith.constant 0 : index
    %c0_4 = arith.constant 0 : index
    %3 = vector.load %arg9[%c17, %c0_3, %c0_4] : memref<18x18x128xbf16, #tpu.memory_space<vmem>>, vector<1x18x128xbf16>
    tpu.vector_store %arg9[%c17, %c0_3, %c0_4], %2 {strides = array<i32>} : memref<18x18x128xbf16, #tpu.memory_space<vmem>>, vector<1x18x128xbf16>,
    %cst_5 = arith.constant 0.000000e+00 : bf16
    %4 = vector.broadcast %cst_5 : bf16 to vector<18x1x128xbf16>
    %c0_6 = arith.constant 0 : index
    %c0_7 = arith.constant 0 : index
    %c0_8 = arith.constant 0 : index
    %5 = vector.load %arg9[%c0_6, %c0_7, %c0_8] : memref<18x18x128xbf16, #tpu.memory_space<vmem>>, vector<18x1x128xbf16>
    tpu.vector_store %arg9[%c0_6, %c0_7, %c0_8], %4 {strides = array<i32>} : memref<18x18x128xbf16, #tpu.memory_space<vmem>>, vector<18x1x128xbf16>,
    %cst_9 = arith.constant 0.000000e+00 : bf16
    %6 = vector.broadcast %cst_9 : bf16 to vector<18x1x128xbf16>
    %c0_10 = arith.constant 0 : index
    %c17_11 = arith.constant 17 : index
    %c0_12 = arith.constant 0 : index
    %7 = vector.load %arg9[%c0_10, %c17_11, %c0_12] : memref<18x18x128xbf16, #tpu.memory_space<vmem>>, vector<18x1x128xbf16>
    tpu.vector_store %arg9[%c0_10, %c17_11, %c0_12], %6 {strides = array<i32>} : memref<18x18x128xbf16, #tpu.memory_space<vmem>>, vector<18x1x128xbf16>,
    %c0_13 = arith.constant 0 : index
    %c0_14 = arith.constant 0 : index
    %c0_15 = arith.constant 0 : index
    %8 = vector.load %arg1[%c0_13, %c0_14, %c0_15] : memref<2x256x128xbf16, #tpu.memory_space<vmem>>, vector<2x256x128xbf16>
    %9 = vector.shape_cast %8 : vector<2x256x128xbf16> to vector<512x128xbf16>
    %c0_16 = arith.constant 0 : index
    %c0_17 = arith.constant 0 : index
    %10 = vector.load %arg2[%c0_16, %c0_17] : memref<128x128xbf16, #tpu.memory_space<vmem>>, vector<128x128xbf16>
    %cst_18 = arith.constant dense<0.000000e+00> : vector<512x128xf32>
    %11 = tpu.matmul %9, %10, %cst_18 {dimension_numbers = #tpu.dot_dimension_numbers<[1], [0], [0], [1], [0, 0, 1, 1], [], []>} : vector<512x128xbf16>, vector<128x128xbf16>, vector<512x128xf32> -> vector<512x128xf32>
    %c0_19 = arith.constant 0 : index
    %c0_20 = arith.constant 0 : index
    %12 = vector.load %arg3[%c0_19, %c0_20] : memref<1x128xf32, #tpu.memory_space<vmem>>, vector<1x128xf32>
    %13 = vector.broadcast %12 : vector<1x128xf32> to vector<512x128xf32>
    %14 = arith.addf %11, %13 : vector<512x128xf32>
    %cst_21 = arith.constant 0.000000e+00 : f32
    %15 = vector.broadcast %cst_21 : f32 to vector<512x128xf32>
    %16 = arith.maximumf %14, %15 : vector<512x128xf32>
    %17 = arith.truncf %16 : vector<512x128xf32> to vector<512x128xbf16>
    %18 = vector.extract_strided_slice %17 {offsets = [0, 0], sizes = [256, 128], strides = [1, 1]} : vector<512x128xbf16> to vector<256x128xbf16>
    %19 = vector.shape_cast %18 : vector<256x128xbf16> to vector<16x16x128xbf16>
    %c1 = arith.constant 1 : index
    %c1_22 = arith.constant 1 : index
    %c0_23 = arith.constant 0 : index
    %20 = vector.load %arg9[%c1, %c1_22, %c0_23] : memref<18x18x128xbf16, #tpu.memory_space<vmem>>, vector<16x16x128xbf16>
    tpu.vector_store %arg9[%c1, %c1_22, %c0_23], %19 {strides = array<i32>} : memref<18x18x128xbf16, #tpu.memory_space<vmem>>, vector<16x16x128xbf16>,
    %cst_24 = arith.constant 0.000000e+00 : f32
    %21 = vector.broadcast %cst_24 : f32 to vector<256x128xf32>
    %c0_25 = arith.constant 0 : index
    %c0_26 = arith.constant 0 : index
    %c0_27 = arith.constant 0 : index
    %22 = vector.load %arg9[%c0_25, %c0_26, %c0_27] : memref<18x18x128xbf16, #tpu.memory_space<vmem>>, vector<16x16x128xbf16>
    %23 = vector.shape_cast %22 : vector<16x16x128xbf16> to vector<256x128xbf16>
    %c0_28 = arith.constant 0 : index
    %c0_29 = arith.constant 0 : index
    %24 = vector.load %arg4[%c0_28, %c0_29] : memref<1152x128xbf16, #tpu.memory_space<vmem>>, vector<128x128xbf16>
    %cst_30 = arith.constant dense<0.000000e+00> : vector<256x128xf32>
    %25 = tpu.matmul %23, %24, %cst_30 {dimension_numbers = #tpu.dot_dimension_numbers<[1], [0], [0], [1], [0, 0, 1, 1], [], []>} : vector<256x128xbf16>, vector<128x128xbf16>, vector<256x128xf32> -> vector<256x128xf32>
    %26 = arith.addf %21, %25 : vector<256x128xf32>
    %c0_31 = arith.constant 0 : index
    %c1_32 = arith.constant 1 : index
    %c0_33 = arith.constant 0 : index
    %27 = vector.load %arg9[%c0_31, %c1_32, %c0_33] : memref<18x18x128xbf16, #tpu.memory_space<vmem>>, vector<16x16x128xbf16>
    %28 = vector.shape_cast %27 : vector<16x16x128xbf16> to vector<256x128xbf16>
    %c128 = arith.constant 128 : index
    %c0_34 = arith.constant 0 : index
    %29 = vector.load %arg4[%c128, %c0_34] : memref<1152x128xbf16, #tpu.memory_space<vmem>>, vector<128x128xbf16>
    %cst_35 = arith.constant dense<0.000000e+00> : vector<256x128xf32>
    %30 = tpu.matmul %28, %29, %cst_35 {dimension_numbers = #tpu.dot_dimension_numbers<[1], [0], [0], [1], [0, 0, 1, 1], [], []>} : vector<256x128xbf16>, vector<128x128xbf16>, vector<256x128xf32> -> vector<256x128xf32>
    %31 = arith.addf %26, %30 : vector<256x128xf32>
    %c0_36 = arith.constant 0 : index
    %c2 = arith.constant 2 : index
    %c0_37 = arith.constant 0 : index
    %32 = vector.load %arg9[%c0_36, %c2, %c0_37] : memref<18x18x128xbf16, #tpu.memory_space<vmem>>, vector<16x16x128xbf16>
    %33 = vector.shape_cast %32 : vector<16x16x128xbf16> to vector<256x128xbf16>
    %c256 = arith.constant 256 : index
    %c0_38 = arith.constant 0 : index
    %34 = vector.load %arg4[%c256, %c0_38] : memref<1152x128xbf16, #tpu.memory_space<vmem>>, vector<128x128xbf16>
    %cst_39 = arith.constant dense<0.000000e+00> : vector<256x128xf32>
    %35 = tpu.matmul %33, %34, %cst_39 {dimension_numbers = #tpu.dot_dimension_numbers<[1], [0], [0], [1], [0, 0, 1, 1], [], []>} : vector<256x128xbf16>, vector<128x128xbf16>, vector<256x128xf32> -> vector<256x128xf32>
    %36 = arith.addf %31, %35 : vector<256x128xf32>
    %c1_40 = arith.constant 1 : index
    %c0_41 = arith.constant 0 : index
    %c0_42 = arith.constant 0 : index
    %37 = vector.load %arg9[%c1_40, %c0_41, %c0_42] : memref<18x18x128xbf16, #tpu.memory_space<vmem>>, vector<16x16x128xbf16>
    %38 = vector.shape_cast %37 : vector<16x16x128xbf16> to vector<256x128xbf16>
    %c384 = arith.constant 384 : index
    %c0_43 = arith.constant 0 : index
    %39 = vector.load %arg4[%c384, %c0_43] : memref<1152x128xbf16, #tpu.memory_space<vmem>>, vector<128x128xbf16>
    %cst_44 = arith.constant dense<0.000000e+00> : vector<256x128xf32>
    %40 = tpu.matmul %38, %39, %cst_44 {dimension_numbers = #tpu.dot_dimension_numbers<[1], [0], [0], [1], [0, 0, 1, 1], [], []>} : vector<256x128xbf16>, vector<128x128xbf16>, vector<256x128xf32> -> vector<256x128xf32>
    %41 = arith.addf %36, %40 : vector<256x128xf32>
    %c1_45 = arith.constant 1 : index
    %c1_46 = arith.constant 1 : index
    %c0_47 = arith.constant 0 : index
    %42 = vector.load %arg9[%c1_45, %c1_46, %c0_47] : memref<18x18x128xbf16, #tpu.memory_space<vmem>>, vector<16x16x128xbf16>
    %43 = vector.shape_cast %42 : vector<16x16x128xbf16> to vector<256x128xbf16>
    %c512 = arith.constant 512 : index
    %c0_48 = arith.constant 0 : index
    %44 = vector.load %arg4[%c512, %c0_48] : memref<1152x128xbf16, #tpu.memory_space<vmem>>, vector<128x128xbf16>
    %cst_49 = arith.constant dense<0.000000e+00> : vector<256x128xf32>
    %45 = tpu.matmul %43, %44, %cst_49 {dimension_numbers = #tpu.dot_dimension_numbers<[1], [0], [0], [1], [0, 0, 1, 1], [], []>} : vector<256x128xbf16>, vector<128x128xbf16>, vector<256x128xf32> -> vector<256x128xf32>
    %46 = arith.addf %41, %45 : vector<256x128xf32>
    %c1_50 = arith.constant 1 : index
    %c2_51 = arith.constant 2 : index
    %c0_52 = arith.constant 0 : index
    %47 = vector.load %arg9[%c1_50, %c2_51, %c0_52] : memref<18x18x128xbf16, #tpu.memory_space<vmem>>, vector<16x16x128xbf16>
    %48 = vector.shape_cast %47 : vector<16x16x128xbf16> to vector<256x128xbf16>
    %c640 = arith.constant 640 : index
    %c0_53 = arith.constant 0 : index
    %49 = vector.load %arg4[%c640, %c0_53] : memref<1152x128xbf16, #tpu.memory_space<vmem>>, vector<128x128xbf16>
    %cst_54 = arith.constant dense<0.000000e+00> : vector<256x128xf32>
    %50 = tpu.matmul %48, %49, %cst_54 {dimension_numbers = #tpu.dot_dimension_numbers<[1], [0], [0], [1], [0, 0, 1, 1], [], []>} : vector<256x128xbf16>, vector<128x128xbf16>, vector<256x128xf32> -> vector<256x128xf32>
    %51 = arith.addf %46, %50 : vector<256x128xf32>
    %c2_55 = arith.constant 2 : index
    %c0_56 = arith.constant 0 : index
    %c0_57 = arith.constant 0 : index
    %52 = vector.load %arg9[%c2_55, %c0_56, %c0_57] : memref<18x18x128xbf16, #tpu.memory_space<vmem>>, vector<16x16x128xbf16>
    %53 = vector.shape_cast %52 : vector<16x16x128xbf16> to vector<256x128xbf16>
    %c768 = arith.constant 768 : index
    %c0_58 = arith.constant 0 : index
    %54 = vector.load %arg4[%c768, %c0_58] : memref<1152x128xbf16, #tpu.memory_space<vmem>>, vector<128x128xbf16>
    %cst_59 = arith.constant dense<0.000000e+00> : vector<256x128xf32>
    %55 = tpu.matmul %53, %54, %cst_59 {dimension_numbers = #tpu.dot_dimension_numbers<[1], [0], [0], [1], [0, 0, 1, 1], [], []>} : vector<256x128xbf16>, vector<128x128xbf16>, vector<256x128xf32> -> vector<256x128xf32>
    %56 = arith.addf %51, %55 : vector<256x128xf32>
    %c2_60 = arith.constant 2 : index
    %c1_61 = arith.constant 1 : index
    %c0_62 = arith.constant 0 : index
    %57 = vector.load %arg9[%c2_60, %c1_61, %c0_62] : memref<18x18x128xbf16, #tpu.memory_space<vmem>>, vector<16x16x128xbf16>
    %58 = vector.shape_cast %57 : vector<16x16x128xbf16> to vector<256x128xbf16>
    %c896 = arith.constant 896 : index
    %c0_63 = arith.constant 0 : index
    %59 = vector.load %arg4[%c896, %c0_63] : memref<1152x128xbf16, #tpu.memory_space<vmem>>, vector<128x128xbf16>
    %cst_64 = arith.constant dense<0.000000e+00> : vector<256x128xf32>
    %60 = tpu.matmul %58, %59, %cst_64 {dimension_numbers = #tpu.dot_dimension_numbers<[1], [0], [0], [1], [0, 0, 1, 1], [], []>} : vector<256x128xbf16>, vector<128x128xbf16>, vector<256x128xf32> -> vector<256x128xf32>
    %61 = arith.addf %56, %60 : vector<256x128xf32>
    %c2_65 = arith.constant 2 : index
    %c2_66 = arith.constant 2 : index
    %c0_67 = arith.constant 0 : index
    %62 = vector.load %arg9[%c2_65, %c2_66, %c0_67] : memref<18x18x128xbf16, #tpu.memory_space<vmem>>, vector<16x16x128xbf16>
    %63 = vector.shape_cast %62 : vector<16x16x128xbf16> to vector<256x128xbf16>
    %c1024 = arith.constant 1024 : index
    %c0_68 = arith.constant 0 : index
    %64 = vector.load %arg4[%c1024, %c0_68] : memref<1152x128xbf16, #tpu.memory_space<vmem>>, vector<128x128xbf16>
    %cst_69 = arith.constant dense<0.000000e+00> : vector<256x128xf32>
    %65 = tpu.matmul %63, %64, %cst_69 {dimension_numbers = #tpu.dot_dimension_numbers<[1], [0], [0], [1], [0, 0, 1, 1], [], []>} : vector<256x128xbf16>, vector<128x128xbf16>, vector<256x128xf32> -> vector<256x128xf32>
    %66 = arith.addf %61, %65 : vector<256x128xf32>
    %c0_70 = arith.constant 0 : index
    %c0_71 = arith.constant 0 : index
    %67 = vector.load %arg5[%c0_70, %c0_71] : memref<1x128xf32, #tpu.memory_space<vmem>>, vector<1x128xf32>
    %68 = vector.broadcast %67 : vector<1x128xf32> to vector<256x128xf32>
    %69 = arith.addf %66, %68 : vector<256x128xf32>
    %cst_72 = arith.constant 0.000000e+00 : f32
    %70 = vector.broadcast %cst_72 : f32 to vector<256x128xf32>
    %71 = arith.maximumf %69, %70 : vector<256x128xf32>
    %cst_73 = arith.constant dense<0.000000e+00> : vector<128xf32>
    %72 = vector.multi_reduction <add>, %71, %cst_73 [0] : vector<256x128xf32> to vector<128xf32>
    %73 = vector.shape_cast %72 : vector<128xf32> to vector<1x128xf32>
    %cst_74 = arith.constant 3.906250e-03 : f32
    %74 = vector.broadcast %cst_74 : f32 to vector<1x128xf32>
    %75 = arith.mulf %73, %74 : vector<1x128xf32>
    %76 = arith.truncf %75 : vector<1x128xf32> to vector<1x128xbf16>
    %c0_75 = arith.constant 0 : index
    %c0_76 = arith.constant 0 : index
    %77 = vector.load %arg6[%c0_75, %c0_76] : memref<128x128xbf16, #tpu.memory_space<vmem>>, vector<128x128xbf16>
    %cst_77 = arith.constant dense<0.000000e+00> : vector<1x128xf32>
    %78 = tpu.matmul %76, %77, %cst_77 {dimension_numbers = #tpu.dot_dimension_numbers<[1], [0], [0], [1], [0, 0, 1, 1], [], []>} : vector<1x128xbf16>, vector<128x128xbf16>, vector<1x128xf32> -> vector<1x128xf32>
    %c0_78 = arith.constant 0 : index
    %c0_79 = arith.constant 0 : index
    %79 = vector.load %arg7[%c0_78, %c0_79] : memref<1x128xf32, #tpu.memory_space<vmem>>, vector<1x128xf32>
    %80 = arith.addf %78, %79 : vector<1x128xf32>
    %c0_80 = arith.constant 0 : index
    %c0_81 = arith.constant 0 : index
    %c0_82 = arith.constant 0 : index
    %81 = vector.load %arg8[%c0_80, %c0_81, %c0_82] : memref<2x1x128xf32, #tpu.memory_space<vmem>>, vector<1x1x128xf32>
    %82 = vector.shape_cast %81 : vector<1x1x128xf32> to vector<1x128xf32>
    %83 = vector.shape_cast %80 : vector<1x128xf32> to vector<1x1x128xf32>
    tpu.vector_store %arg8[%c0_80, %c0_81, %c0_82], %83 {strides = array<i32>} : memref<2x1x128xf32, #tpu.memory_space<vmem>>, vector<1x1x128xf32>,
    %84 = vector.extract_strided_slice %17 {offsets = [256, 0], sizes = [256, 128], strides = [1, 1]} : vector<512x128xbf16> to vector<256x128xbf16>
    %85 = vector.shape_cast %84 : vector<256x128xbf16> to vector<16x16x128xbf16>
    %c1_83 = arith.constant 1 : index
    %c1_84 = arith.constant 1 : index
    %c0_85 = arith.constant 0 : index
    %86 = vector.load %arg9[%c1_83, %c1_84, %c0_85] : memref<18x18x128xbf16, #tpu.memory_space<vmem>>, vector<16x16x128xbf16>
    tpu.vector_store %arg9[%c1_83, %c1_84, %c0_85], %85 {strides = array<i32>} : memref<18x18x128xbf16, #tpu.memory_space<vmem>>, vector<16x16x128xbf16>,
    %cst_86 = arith.constant 0.000000e+00 : f32
    %87 = vector.broadcast %cst_86 : f32 to vector<256x128xf32>
    %c0_87 = arith.constant 0 : index
    %c0_88 = arith.constant 0 : index
    %c0_89 = arith.constant 0 : index
    %88 = vector.load %arg9[%c0_87, %c0_88, %c0_89] : memref<18x18x128xbf16, #tpu.memory_space<vmem>>, vector<16x16x128xbf16>
    %89 = vector.shape_cast %88 : vector<16x16x128xbf16> to vector<256x128xbf16>
    %c0_90 = arith.constant 0 : index
    %c0_91 = arith.constant 0 : index
    %90 = vector.load %arg4[%c0_90, %c0_91] : memref<1152x128xbf16, #tpu.memory_space<vmem>>, vector<128x128xbf16>
    %cst_92 = arith.constant dense<0.000000e+00> : vector<256x128xf32>
    %91 = tpu.matmul %89, %90, %cst_92 {dimension_numbers = #tpu.dot_dimension_numbers<[1], [0], [0], [1], [0, 0, 1, 1], [], []>} : vector<256x128xbf16>, vector<128x128xbf16>, vector<256x128xf32> -> vector<256x128xf32>
    %92 = arith.addf %87, %91 : vector<256x128xf32>
    %c0_93 = arith.constant 0 : index
    %c1_94 = arith.constant 1 : index
    %c0_95 = arith.constant 0 : index
    %93 = vector.load %arg9[%c0_93, %c1_94, %c0_95] : memref<18x18x128xbf16, #tpu.memory_space<vmem>>, vector<16x16x128xbf16>
    %94 = vector.shape_cast %93 : vector<16x16x128xbf16> to vector<256x128xbf16>
    %c128_96 = arith.constant 128 : index
    %c0_97 = arith.constant 0 : index
    %95 = vector.load %arg4[%c128_96, %c0_97] : memref<1152x128xbf16, #tpu.memory_space<vmem>>, vector<128x128xbf16>
    %cst_98 = arith.constant dense<0.000000e+00> : vector<256x128xf32>
    %96 = tpu.matmul %94, %95, %cst_98 {dimension_numbers = #tpu.dot_dimension_numbers<[1], [0], [0], [1], [0, 0, 1, 1], [], []>} : vector<256x128xbf16>, vector<128x128xbf16>, vector<256x128xf32> -> vector<256x128xf32>
    %97 = arith.addf %92, %96 : vector<256x128xf32>
    %c0_99 = arith.constant 0 : index
    %c2_100 = arith.constant 2 : index
    %c0_101 = arith.constant 0 : index
    %98 = vector.load %arg9[%c0_99, %c2_100, %c0_101] : memref<18x18x128xbf16, #tpu.memory_space<vmem>>, vector<16x16x128xbf16>
    %99 = vector.shape_cast %98 : vector<16x16x128xbf16> to vector<256x128xbf16>
    %c256_102 = arith.constant 256 : index
    %c0_103 = arith.constant 0 : index
    %100 = vector.load %arg4[%c256_102, %c0_103] : memref<1152x128xbf16, #tpu.memory_space<vmem>>, vector<128x128xbf16>
    %cst_104 = arith.constant dense<0.000000e+00> : vector<256x128xf32>
    %101 = tpu.matmul %99, %100, %cst_104 {dimension_numbers = #tpu.dot_dimension_numbers<[1], [0], [0], [1], [0, 0, 1, 1], [], []>} : vector<256x128xbf16>, vector<128x128xbf16>, vector<256x128xf32> -> vector<256x128xf32>
    %102 = arith.addf %97, %101 : vector<256x128xf32>
    %c1_105 = arith.constant 1 : index
    %c0_106 = arith.constant 0 : index
    %c0_107 = arith.constant 0 : index
    %103 = vector.load %arg9[%c1_105, %c0_106, %c0_107] : memref<18x18x128xbf16, #tpu.memory_space<vmem>>, vector<16x16x128xbf16>
    %104 = vector.shape_cast %103 : vector<16x16x128xbf16> to vector<256x128xbf16>
    %c384_108 = arith.constant 384 : index
    %c0_109 = arith.constant 0 : index
    %105 = vector.load %arg4[%c384_108, %c0_109] : memref<1152x128xbf16, #tpu.memory_space<vmem>>, vector<128x128xbf16>
    %cst_110 = arith.constant dense<0.000000e+00> : vector<256x128xf32>
    %106 = tpu.matmul %104, %105, %cst_110 {dimension_numbers = #tpu.dot_dimension_numbers<[1], [0], [0], [1], [0, 0, 1, 1], [], []>} : vector<256x128xbf16>, vector<128x128xbf16>, vector<256x128xf32> -> vector<256x128xf32>
    %107 = arith.addf %102, %106 : vector<256x128xf32>
    %c1_111 = arith.constant 1 : index
    %c1_112 = arith.constant 1 : index
    %c0_113 = arith.constant 0 : index
    %108 = vector.load %arg9[%c1_111, %c1_112, %c0_113] : memref<18x18x128xbf16, #tpu.memory_space<vmem>>, vector<16x16x128xbf16>
    %109 = vector.shape_cast %108 : vector<16x16x128xbf16> to vector<256x128xbf16>
    %c512_114 = arith.constant 512 : index
    %c0_115 = arith.constant 0 : index
    %110 = vector.load %arg4[%c512_114, %c0_115] : memref<1152x128xbf16, #tpu.memory_space<vmem>>, vector<128x128xbf16>
    %cst_116 = arith.constant dense<0.000000e+00> : vector<256x128xf32>
    %111 = tpu.matmul %109, %110, %cst_116 {dimension_numbers = #tpu.dot_dimension_numbers<[1], [0], [0], [1], [0, 0, 1, 1], [], []>} : vector<256x128xbf16>, vector<128x128xbf16>, vector<256x128xf32> -> vector<256x128xf32>
    %112 = arith.addf %107, %111 : vector<256x128xf32>
    %c1_117 = arith.constant 1 : index
    %c2_118 = arith.constant 2 : index
    %c0_119 = arith.constant 0 : index
    %113 = vector.load %arg9[%c1_117, %c2_118, %c0_119] : memref<18x18x128xbf16, #tpu.memory_space<vmem>>, vector<16x16x128xbf16>
    %114 = vector.shape_cast %113 : vector<16x16x128xbf16> to vector<256x128xbf16>
    %c640_120 = arith.constant 640 : index
    %c0_121 = arith.constant 0 : index
    %115 = vector.load %arg4[%c640_120, %c0_121] : memref<1152x128xbf16, #tpu.memory_space<vmem>>, vector<128x128xbf16>
    %cst_122 = arith.constant dense<0.000000e+00> : vector<256x128xf32>
    %116 = tpu.matmul %114, %115, %cst_122 {dimension_numbers = #tpu.dot_dimension_numbers<[1], [0], [0], [1], [0, 0, 1, 1], [], []>} : vector<256x128xbf16>, vector<128x128xbf16>, vector<256x128xf32> -> vector<256x128xf32>
    %117 = arith.addf %112, %116 : vector<256x128xf32>
    %c2_123 = arith.constant 2 : index
    %c0_124 = arith.constant 0 : index
    %c0_125 = arith.constant 0 : index
    %118 = vector.load %arg9[%c2_123, %c0_124, %c0_125] : memref<18x18x128xbf16, #tpu.memory_space<vmem>>, vector<16x16x128xbf16>
    %119 = vector.shape_cast %118 : vector<16x16x128xbf16> to vector<256x128xbf16>
    %c768_126 = arith.constant 768 : index
    %c0_127 = arith.constant 0 : index
    %120 = vector.load %arg4[%c768_126, %c0_127] : memref<1152x128xbf16, #tpu.memory_space<vmem>>, vector<128x128xbf16>
    %cst_128 = arith.constant dense<0.000000e+00> : vector<256x128xf32>
    %121 = tpu.matmul %119, %120, %cst_128 {dimension_numbers = #tpu.dot_dimension_numbers<[1], [0], [0], [1], [0, 0, 1, 1], [], []>} : vector<256x128xbf16>, vector<128x128xbf16>, vector<256x128xf32> -> vector<256x128xf32>
    %122 = arith.addf %117, %121 : vector<256x128xf32>
    %c2_129 = arith.constant 2 : index
    %c1_130 = arith.constant 1 : index
    %c0_131 = arith.constant 0 : index
    %123 = vector.load %arg9[%c2_129, %c1_130, %c0_131] : memref<18x18x128xbf16, #tpu.memory_space<vmem>>, vector<16x16x128xbf16>
    %124 = vector.shape_cast %123 : vector<16x16x128xbf16> to vector<256x128xbf16>
    %c896_132 = arith.constant 896 : index
    %c0_133 = arith.constant 0 : index
    %125 = vector.load %arg4[%c896_132, %c0_133] : memref<1152x128xbf16, #tpu.memory_space<vmem>>, vector<128x128xbf16>
    %cst_134 = arith.constant dense<0.000000e+00> : vector<256x128xf32>
    %126 = tpu.matmul %124, %125, %cst_134 {dimension_numbers = #tpu.dot_dimension_numbers<[1], [0], [0], [1], [0, 0, 1, 1], [], []>} : vector<256x128xbf16>, vector<128x128xbf16>, vector<256x128xf32> -> vector<256x128xf32>
    %127 = arith.addf %122, %126 : vector<256x128xf32>
    %c2_135 = arith.constant 2 : index
    %c2_136 = arith.constant 2 : index
    %c0_137 = arith.constant 0 : index
    %128 = vector.load %arg9[%c2_135, %c2_136, %c0_137] : memref<18x18x128xbf16, #tpu.memory_space<vmem>>, vector<16x16x128xbf16>
    %129 = vector.shape_cast %128 : vector<16x16x128xbf16> to vector<256x128xbf16>
    %c1024_138 = arith.constant 1024 : index
    %c0_139 = arith.constant 0 : index
    %130 = vector.load %arg4[%c1024_138, %c0_139] : memref<1152x128xbf16, #tpu.memory_space<vmem>>, vector<128x128xbf16>
    %cst_140 = arith.constant dense<0.000000e+00> : vector<256x128xf32>
    %131 = tpu.matmul %129, %130, %cst_140 {dimension_numbers = #tpu.dot_dimension_numbers<[1], [0], [0], [1], [0, 0, 1, 1], [], []>} : vector<256x128xbf16>, vector<128x128xbf16>, vector<256x128xf32> -> vector<256x128xf32>
    %132 = arith.addf %127, %131 : vector<256x128xf32>
    %c0_141 = arith.constant 0 : index
    %c0_142 = arith.constant 0 : index
    %133 = vector.load %arg5[%c0_141, %c0_142] : memref<1x128xf32, #tpu.memory_space<vmem>>, vector<1x128xf32>
    %134 = vector.broadcast %133 : vector<1x128xf32> to vector<256x128xf32>
    %135 = arith.addf %132, %134 : vector<256x128xf32>
    %cst_143 = arith.constant 0.000000e+00 : f32
    %136 = vector.broadcast %cst_143 : f32 to vector<256x128xf32>
    %137 = arith.maximumf %135, %136 : vector<256x128xf32>
    %cst_144 = arith.constant dense<0.000000e+00> : vector<128xf32>
    %138 = vector.multi_reduction <add>, %137, %cst_144 [0] : vector<256x128xf32> to vector<128xf32>
    %139 = vector.shape_cast %138 : vector<128xf32> to vector<1x128xf32>
    %cst_145 = arith.constant 3.906250e-03 : f32
    %140 = vector.broadcast %cst_145 : f32 to vector<1x128xf32>
    %141 = arith.mulf %139, %140 : vector<1x128xf32>
    %142 = arith.truncf %141 : vector<1x128xf32> to vector<1x128xbf16>
    %c0_146 = arith.constant 0 : index
    %c0_147 = arith.constant 0 : index
    %143 = vector.load %arg6[%c0_146, %c0_147] : memref<128x128xbf16, #tpu.memory_space<vmem>>, vector<128x128xbf16>
    %cst_148 = arith.constant dense<0.000000e+00> : vector<1x128xf32>
    %144 = tpu.matmul %142, %143, %cst_148 {dimension_numbers = #tpu.dot_dimension_numbers<[1], [0], [0], [1], [0, 0, 1, 1], [], []>} : vector<1x128xbf16>, vector<128x128xbf16>, vector<1x128xf32> -> vector<1x128xf32>
    %c0_149 = arith.constant 0 : index
    %c0_150 = arith.constant 0 : index
    %145 = vector.load %arg7[%c0_149, %c0_150] : memref<1x128xf32, #tpu.memory_space<vmem>>, vector<1x128xf32>
    %146 = arith.addf %144, %145 : vector<1x128xf32>
    %c1_151 = arith.constant 1 : index
    %c0_152 = arith.constant 0 : index
    %c0_153 = arith.constant 0 : index
    %147 = vector.load %arg8[%c1_151, %c0_152, %c0_153] : memref<2x1x128xf32, #tpu.memory_space<vmem>>, vector<1x1x128xf32>
    %148 = vector.shape_cast %147 : vector<1x1x128xf32> to vector<1x128xf32>
    %149 = vector.shape_cast %146 : vector<1x128xf32> to vector<1x1x128xf32>
    tpu.vector_store %arg8[%c1_151, %c0_152, %c0_153], %149 {strides = array<i32>} : memref<2x1x128xf32, #tpu.memory_space<vmem>>, vector<1x1x128xf32>,
    return
  }
  func.func @transform_0(%arg0: i32) -> (i32, i32, i32) {
    %c0_i32 = arith.constant 0 : i32
    %c0_i32_0 = arith.constant 0 : i32
    %c0_i32_1 = arith.constant 0 : i32
    return %arg0, %c0_i32, %c0_i32_0 : i32, i32, i32
  }
  func.func @transform_1(%arg0: i32) -> (i32, i32) {
    %c0_i32 = arith.constant 0 : i32
    %c0_i32_0 = arith.constant 0 : i32
    %c0_i32_1 = arith.constant 0 : i32
    return %c0_i32, %c0_i32_0 : i32, i32
  }
  func.func @transform_2(%arg0: i32) -> (i32, i32) {
    %c0_i32 = arith.constant 0 : i32
    %c0_i32_0 = arith.constant 0 : i32
    %c0_i32_1 = arith.constant 0 : i32
    return %c0_i32, %c0_i32_0 : i32, i32
  }
  func.func @transform_3(%arg0: i32) -> (i32, i32) {
    %c0_i32 = arith.constant 0 : i32
    %c0_i32_0 = arith.constant 0 : i32
    %c0_i32_1 = arith.constant 0 : i32
    return %c0_i32, %c0_i32_0 : i32, i32
  }
  func.func @transform_4(%arg0: i32) -> (i32, i32) {
    %c0_i32 = arith.constant 0 : i32
    %c0_i32_0 = arith.constant 0 : i32
    %c0_i32_1 = arith.constant 0 : i32
    return %c0_i32, %c0_i32_0 : i32, i32
  }
  func.func @transform_5(%arg0: i32) -> (i32, i32) {
    %c0_i32 = arith.constant 0 : i32
    %c0_i32_0 = arith.constant 0 : i32
    %c0_i32_1 = arith.constant 0 : i32
    return %c0_i32, %c0_i32_0 : i32, i32
  }
  func.func @transform_6(%arg0: i32) -> (i32, i32) {
    %c0_i32 = arith.constant 0 : i32
    %c0_i32_0 = arith.constant 0 : i32
    %c0_i32_1 = arith.constant 0 : i32
    return %c0_i32, %c0_i32_0 : i32, i32
  }
  func.func @transform_7(%arg0: i32) -> (i32, i32, i32) {
    %c0_i32 = arith.constant 0 : i32
    %c0_i32_0 = arith.constant 0 : i32
    %c0_i32_1 = arith.constant 0 : i32
    return %arg0, %c0_i32, %c0_i32_0 : i32, i32, i32
  }
}

</mosaic_0001>

<llo_original>
// kernel: ds_classifier_forward.1
$region0: #{ds_classifier_forward.1}
  #allocation0 [shape = 'u32[]', space=smem, size = 0x4, offset = 0x4, fixed_abs, tag = 'smem constant byte address 0x4 - core index']
  #allocation1 [shape = 'u32[144,128]{1,0:T(1,128)}', space=vmem, size = 0x12000, scoped, tag = 'internal scratch']
  #allocation2 [shape = 'bf16[18,18,128]{2,1,0:T(8,128)(2,1)}', space=vmem, size = 0x1b000, scoped, tag = 'scratch operand']
  %s0 = inlined_call_operand.vmem [shape: bf16[2,256,128], index: 0, kind: input, shape index: {}]
  %s1 = inlined_call_operand.vmem [shape: bf16[128,128], index: 1, kind: input, shape index: {}]
  %s2 = inlined_call_operand.vmem [shape: f32[1,128], index: 2, kind: input, shape index: {}]
  %s3 = inlined_call_operand.vmem [shape: bf16[1152,128], index: 3, kind: input, shape index: {}]
  %s4 = inlined_call_operand.vmem [shape: f32[1,128], index: 4, kind: input, shape index: {}]
  %s5 = inlined_call_operand.vmem [shape: bf16[128,128], index: 5, kind: input, shape index: {}]
  %s6 = inlined_call_operand.vmem [shape: f32[1,128], index: 6, kind: input, shape index: {}]
  %s7 = inlined_call_operand.hbm [shape: f32[2,1,128], index: 7, kind: output, shape index: {}]
  %s8 = sld [smem:[#allocation0]]
  $region38: #{ds_classifier_forward.1} parent=0
    _
  %s10 = ssub.s32 1, %s8
  %s11 = scalar_select 0, %s10, %s8
  $region1: #{ds_classifier_forward.1} parent=0
    #allocation3 [shape = 'u8[1024]{0}', space=vmem, size = 0x400, scoped, tag = 'output window, operand 0, single buffered']
    #allocation4 [shape = 's32[1]{0}', space=sflag, size = 0x4, scoped, tag = 'scoped memory for ds_classifier_forward.1']
    %12 = vsyncpa [#allocation4], 0
    // Predicated region
    $region2: #{ds_classifier_forward.1} parent=1 // pred_check
      _
    $region3: #{ds_classifier_forward.1} parent=1 // pred_check_branch
      %14 = sbr.rel (0) target = $region5
    $region4: #{ds_classifier_forward.1} parent=1 // pred_region
      _
    $region5: #{ds_classifier_forward.1} parent=1 // pred_fallthru
      _
    // Predicated region
    $region6: #{ds_classifier_forward.1} parent=1 // pred_check
      _
    $region7: #{ds_classifier_forward.1} parent=1 // pred_check_branch
      %16 = sbr.rel (0) target = $region9
    $region8: #{ds_classifier_forward.1} parent=1 // pred_region
      _
    $region9: #{ds_classifier_forward.1} parent=1 // pred_fallthru
      _
    // Predicated region
    $region10: #{ds_classifier_forward.1} parent=1 // pred_check
      _
    $region11: #{ds_classifier_forward.1} parent=1 // pred_check_branch
      %18 = sbr.rel (0) target = $region13
    $region12: #{ds_classifier_forward.1} parent=1 // pred_region
      _
    $region13: #{ds_classifier_forward.1} parent=1 // pred_fallthru
      _
    // Predicated region
    $region14: #{ds_classifier_forward.1} parent=1 // pred_check
      _
    $region15: #{ds_classifier_forward.1} parent=1 // pred_check_branch
      %20 = sbr.rel (0) target = $region17
    $region16: #{ds_classifier_forward.1} parent=1 // pred_region
      _
    $region17: #{ds_classifier_forward.1} parent=1 // pred_fallthru
      _
    // Predicated region
    $region18: #{ds_classifier_forward.1} parent=1 // pred_check
      _
    $region19: #{ds_classifier_forward.1} parent=1 // pred_check_branch
      %22 = sbr.rel (0) target = $region21
    $region20: #{ds_classifier_forward.1} parent=1 // pred_region
      _
    $region21: #{ds_classifier_forward.1} parent=1 // pred_fallthru
      _
    // Predicated region
    $region22: #{ds_classifier_forward.1} parent=1 // pred_check
      _
    $region23: #{ds_classifier_forward.1} parent=1 // pred_check_branch
      %24 = sbr.rel (0) target = $region25
    $region24: #{ds_classifier_forward.1} parent=1 // pred_region
      _
    $region25: #{ds_classifier_forward.1} parent=1 // pred_fallthru
      _
    // Predicated region
    $region26: #{ds_classifier_forward.1} parent=1 // pred_check
      _
    $region27: #{ds_classifier_forward.1} parent=1 // pred_check_branch
      %26 = sbr.rel (0) target = $region29
    $region28: #{ds_classifier_forward.1} parent=1 // pred_region
      _
    $region29: #{ds_classifier_forward.1} parent=1 // pred_fallthru
      _
    %28 = vst [vmem:[#allocation2] sm:$0xf] 0
    %29 = vst [vmem:[#allocation2 + $0x4] sm:$0xf] 0
    %30 = vst [vmem:[#allocation2 + $0x8] sm:$0x1] 0
    %s31 = scalar_lea.vmem [#allocation2], 204
    %32 = vst [vmem:[%s31] sm:$0xf] 0
    %33 = vst [vmem:[%s31 + $0x4] sm:$0xf] 0
    %34 = vst [vmem:[%s31 + $0x8] sm:$0x1] 0
    %vm35 = vcmask 1040384
    %vm36 = vsmask.f32 256
    %vm37 = vmand %vm35, %vm36
    %v38 = vld [vmem:[#allocation2] sm:$0x1]
    %v39 = vsel %vm37, 0, %v38
    %40 = vst [vmem:[#allocation2] sm:$0x1] %v39
    %v41 = vld [vmem:[#allocation2 + $0xc] sm:$0x1]
    %v42 = vsel %vm37, 0, %v41
    %43 = vst [vmem:[#allocation2 + $0xc] sm:$0x1] %v42
    %v44 = vld [vmem:[#allocation2 + $0x18] sm:$0x1]
    %v45 = vsel %vm37, 0, %v44
    %46 = vst [vmem:[#allocation2 + $0x18] sm:$0x1] %v45
    %v47 = vld [vmem:[#allocation2 + $0x24] sm:$0x1]
    %v48 = vsel %vm37, 0, %v47
    %49 = vst [vmem:[#allocation2 + $0x24] sm:$0x1] %v48
    %v50 = vld [vmem:[#allocation2 + $0x30] sm:$0x1]
    %v51 = vsel %vm37, 0, %v50
    %52 = vst [vmem:[#allocation2 + $0x30] sm:$0x1] %v51
    %v53 = vld [vmem:[#allocation2 + $0x3c] sm:$0x1]
    %v54 = vsel %vm37, 0, %v53
    %55 = vst [vmem:[#allocation2 + $0x3c] sm:$0x1] %v54
    %v56 = vld [vmem:[#allocation2 + $0x48] sm:$0x1]
    %v57 = vsel %vm37, 0, %v56
    %58 = vst [vmem:[#allocation2 + $0x48] sm:$0x1] %v57
    %v59 = vld [vmem:[#allocation2 + $0x54] sm:$0x1]
    %v60 = vsel %vm37, 0, %v59
    %61 = vst [vmem:[#allocation2 + $0x54] sm:$0x1] %v60
    %v62 = vld [vmem:[#allocation2 + $0x60] sm:$0x1]
    %v63 = vsel %vm37, 0, %v62
    %64 = vst [vmem:[#allocation2 + $0x60] sm:$0x1] %v63
    %v65 = vld [vmem:[#allocation2 + $0x6c] sm:$0x1]
    %v66 = vsel %vm37, 0, %v65
    %67 = vst [vmem:[#allocation2 + $0x6c] sm:$0x1] %v66
    %v68 = vld [vmem:[#allocation2 + $0x78] sm:$0x1]
    %v69 = vsel %vm37, 0, %v68
    %70 = vst [vmem:[#allocation2 + $0x78] sm:$0x1] %v69
    %v71 = vld [vmem:[#allocation2 + $0x84] sm:$0x1]
    %v72 = vsel %vm37, 0, %v71
    %73 = vst [vmem:[#allocation2 + $0x84] sm:$0x1] %v72
    %v74 = vld [vmem:[#allocation2 + $0x90] sm:$0x1]
    %v75 = vsel %vm37, 0, %v74
    %76 = vst [vmem:[#allocation2 + $0x90] sm:$0x1] %v75
    %v77 = vld [vmem:[#allocation2 + $0x9c] sm:$0x1]
    %v78 = vsel %vm37, 0, %v77
    %79 = vst [vmem:[#allocation2 + $0x9c] sm:$0x1] %v78
    %v80 = vld [vmem:[#allocation2 + $0xa8] sm:$0x1]
    %v81 = vsel %vm37, 0, %v80
    %82 = vst [vmem:[#allocation2 + $0xa8] sm:$0x1] %v81
    %v83 = vld [vmem:[#allocation2 + $0xb4] sm:$0x1]
    %v84 = vsel %vm37, 0, %v83
    %85 = vst [vmem:[#allocation2 + $0xb4] sm:$0x1] %v84
    %v86 = vld [vmem:[#allocation2 + $0xc0] sm:$0x1]
    %v87 = vsel %vm37, 0, %v86
    %88 = vst [vmem:[#allocation2 + $0xc0] sm:$0x1] %v87
    %v89 = vld [vmem:[#allocation2 + $0xcc] sm:$0x1]
    %v90 = vsel %vm37, 0, %v89
    %91 = vst [vmem:[#allocation2 + $0xcc] sm:$0x1] %v90
    %vm92 = vsmask.f32 7938
    %vm93 = vmand %vm35, %vm92
    %v94 = vld [vmem:[#allocation2 + $0x8] sm:$0x1]
    %v95 = vsel %vm93, 0, %v94
    %96 = vst [vmem:[#allocation2 + $0x8] sm:$0x1] %v95
    %v97 = vld [vmem:[#allocation2 + $0x14] sm:$0x1]
    %v98 = vsel %vm93, 0, %v97
    %99 = vst [vmem:[#allocation2 + $0x14] sm:$0x1] %v98
    %v100 = vld [vmem:[#allocation2 + $0x20] sm:$0x1]
    %v101 = vsel %vm93, 0, %v100
    %102 = vst [vmem:[#allocation2 + $0x20] sm:$0x1] %v101
    %v103 = vld [vmem:[#allocation2 + $0x2c] sm:$0x1]
    %v104 = vsel %vm93, 0, %v103
    %105 = vst [vmem:[#allocation2 + $0x2c] sm:$0x1] %v104
    %v106 = vld [vmem:[#allocation2 + $0x38] sm:$0x1]
    %v107 = vsel %vm93, 0, %v106
    %108 = vst [vmem:[#allocation2 + $0x38] sm:$0x1] %v107
    %v109 = vld [vmem:[#allocation2 + $0x44] sm:$0x1]
    %v110 = vsel %vm93, 0, %v109
    %111 = vst [vmem:[#allocation2 + $0x44] sm:$0x1] %v110
    %v112 = vld [vmem:[#allocation2 + $0x50] sm:$0x1]
    %v113 = vsel %vm93, 0, %v112
    %114 = vst [vmem:[#allocation2 + $0x50] sm:$0x1] %v113
    %v115 = vld [vmem:[#allocation2 + $0x5c] sm:$0x1]
    %v116 = vsel %vm93, 0, %v115
    %117 = vst [vmem:[#allocation2 + $0x5c] sm:$0x1] %v116
    %v118 = vld [vmem:[#allocation2 + $0x68] sm:$0x1]
    %v119 = vsel %vm93, 0, %v118
    %120 = vst [vmem:[#allocation2 + $0x68] sm:$0x1] %v119
    %v121 = vld [vmem:[#allocation2 + $0x74] sm:$0x1]
    %v122 = vsel %vm93, 0, %v121
    %123 = vst [vmem:[#allocation2 + $0x74] sm:$0x1] %v122
    %v124 = vld [vmem:[#allocation2 + $0x80] sm:$0x1]
    %v125 = vsel %vm93, 0, %v124
    %126 = vst [vmem:[#allocation2 + $0x80] sm:$0x1] %v125
    %v127 = vld [vmem:[#allocation2 + $0x8c] sm:$0x1]
    %v128 = vsel %vm93, 0, %v127
    %129 = vst [vmem:[#allocation2 + $0x8c] sm:$0x1] %v128
    %v130 = vld [vmem:[#allocation2 + $0x98] sm:$0x1]
    %v131 = vsel %vm93, 0, %v130
    %132 = vst [vmem:[#allocation2 + $0x98] sm:$0x1] %v131
    %v133 = vld [vmem:[#allocation2 + $0xa4] sm:$0x1]
    %v134 = vsel %vm93, 0, %v133
    %135 = vst [vmem:[#allocation2 + $0xa4] sm:$0x1] %v134
    %v136 = vld [vmem:[#allocation2 + $0xb0] sm:$0x1]
    %v137 = vsel %vm93, 0, %v136
    %138 = vst [vmem:[#allocation2 + $0xb0] sm:$0x1] %v137
    %v139 = vld [vmem:[#allocation2 + $0xbc] sm:$0x1]
    %v140 = vsel %vm93, 0, %v139
    %141 = vst [vmem:[#allocation2 + $0xbc] sm:$0x1] %v140
    %v142 = vld [vmem:[#allocation2 + $0xc8] sm:$0x1]
    %v143 = vsel %vm93, 0, %v142
    %144 = vst [vmem:[#allocation2 + $0xc8] sm:$0x1] %v143
    %v145 = vld [vmem:[#allocation2 + $0xd4] sm:$0x1]
    %v146 = vsel %vm93, 0, %v145
    %147 = vst [vmem:[#allocation2 + $0xd4] sm:$0x1] %v146
    %v148 = vld [vmem:[%s0] sm:$0xf]
    %v149 = vld [vmem:[%s0 + $0x4] sm:$0xf]
    %v150 = vld [vmem:[%s0 + $0x8] sm:$0xf]
    %v151 = vld [vmem:[%s0 + $0xc] sm:$0xf]
    %v152 = vld [vmem:[%s0 + $0x10] sm:$0xf]
    %v153 = vld [vmem:[%s0 + $0x14] sm:$0xf]
    %v154 = vld [vmem:[%s0 + $0x18] sm:$0xf]
    %v155 = vld [vmem:[%s0 + $0x1c] sm:$0xf]
    %v156 = vld [vmem:[%s0 + $0x20] sm:$0xf]
    %v157 = vld [vmem:[%s0 + $0x24] sm:$0xf]
    %v158 = vld [vmem:[%s0 + $0x28] sm:$0xf]
    %v159 = vld [vmem:[%s0 + $0x2c] sm:$0xf]
    %v160 = vld [vmem:[%s0 + $0x30] sm:$0xf]
    %v161 = vld [vmem:[%s0 + $0x34] sm:$0xf]
    %v162 = vld [vmem:[%s0 + $0x38] sm:$0xf]
    %v163 = vld [vmem:[%s0 + $0x3c] sm:$0xf]
    %v164 = vld [vmem:[%s0 + $0x40] sm:$0xf]
    %v165 = vld [vmem:[%s0 + $0x44] sm:$0xf]
    %v166 = vld [vmem:[%s0 + $0x48] sm:$0xf]
    %v167 = vld [vmem:[%s0 + $0x4c] sm:$0xf]
    %v168 = vld [vmem:[%s0 + $0x50] sm:$0xf]
    %v169 = vld [vmem:[%s0 + $0x54] sm:$0xf]
    %v170 = vld [vmem:[%s0 + $0x58] sm:$0xf]
    %v171 = vld [vmem:[%s0 + $0x5c] sm:$0xf]
    %v172 = vld [vmem:[%s0 + $0x60] sm:$0xf]
    %v173 = vld [vmem:[%s0 + $0x64] sm:$0xf]
    %v174 = vld [vmem:[%s0 + $0x68] sm:$0xf]
    %v175 = vld [vmem:[%s0 + $0x6c] sm:$0xf]
    %v176 = vld [vmem:[%s0 + $0x70] sm:$0xf]
    %v177 = vld [vmem:[%s0 + $0x74] sm:$0xf]
    %v178 = vld [vmem:[%s0 + $0x78] sm:$0xf]
    %v179 = vld [vmem:[%s0 + $0x7c] sm:$0xf]
    %v180 = vld [vmem:[%s0 + $0x80] sm:$0xf]
    %v181 = vld [vmem:[%s0 + $0x84] sm:$0xf]
    %v182 = vld [vmem:[%s0 + $0x88] sm:$0xf]
    %v183 = vld [vmem:[%s0 + $0x8c] sm:$0xf]
    %v184 = vld [vmem:[%s0 + $0x90] sm:$0xf]
    %v185 = vld [vmem:[%s0 + $0x94] sm:$0xf]
    %v186 = vld [vmem:[%s0 + $0x98] sm:$0xf]
    %v187 = vld [vmem:[%s0 + $0x9c] sm:$0xf]
    %v188 = vld [vmem:[%s0 + $0xa0] sm:$0xf]
    %v189 = vld [vmem:[%s0 + $0xa4] sm:$0xf]
    %v190 = vld [vmem:[%s0 + $0xa8] sm:$0xf]
    %v191 = vld [vmem:[%s0 + $0xac] sm:$0xf]
    %v192 = vld [vmem:[%s0 + $0xb0] sm:$0xf]
    %v193 = vld [vmem:[%s0 + $0xb4] sm:$0xf]
    %v194 = vld [vmem:[%s0 + $0xb8] sm:$0xf]
    %v195 = vld [vmem:[%s0 + $0xbc] sm:$0xf]
    %v196 = vld [vmem:[%s0 + $0xc0] sm:$0xf]
    %v197 = vld [vmem:[%s0 + $0xc4] sm:$0xf]
    %v198 = vld [vmem:[%s0 + $0xc8] sm:$0xf]
    %v199 = vld [vmem:[%s0 + $0xcc] sm:$0xf]
    %v200 = vld [vmem:[%s0 + $0xd0] sm:$0xf]
    %v201 = vld [vmem:[%s0 + $0xd4] sm:$0xf]
    %v202 = vld [vmem:[%s0 + $0xd8] sm:$0xf]
    %v203 = vld [vmem:[%s0 + $0xdc] sm:$0xf]
    %v204 = vld [vmem:[%s0 + $0xe0] sm:$0xf]
    %v205 = vld [vmem:[%s0 + $0xe4] sm:$0xf]
    %v206 = vld [vmem:[%s0 + $0xe8] sm:$0xf]
    %v207 = vld [vmem:[%s0 + $0xec] sm:$0xf]
    %v208 = vld [vmem:[%s0 + $0xf0] sm:$0xf]
    %v209 = vld [vmem:[%s0 + $0xf4] sm:$0xf]
    %v210 = vld [vmem:[%s0 + $0xf8] sm:$0xf]
    %v211 = vld [vmem:[%s0 + $0xfc] sm:$0xf]
    %v212 = vld [vmem:[%s1] sm:$0xf]
    %v213 = vld [vmem:[%s1 + $0x4] sm:$0xf]
    %v214 = vld [vmem:[%s1 + $0x8] sm:$0xf]
    %v215 = vld [vmem:[%s1 + $0xc] sm:$0xf]
    %v216 = vld [vmem:[%s1 + $0x10] sm:$0xf]
    %v217 = vld [vmem:[%s1 + $0x14] sm:$0xf]
    %v218 = vld [vmem:[%s1 + $0x18] sm:$0xf]
    %v219 = vld [vmem:[%s1 + $0x1c] sm:$0xf]
    %v220 = vld [vmem:[%s1 + $0x20] sm:$0xf]
    %v221 = vld [vmem:[%s1 + $0x24] sm:$0xf]
    %v222 = vld [vmem:[%s1 + $0x28] sm:$0xf]
    %v223 = vld [vmem:[%s1 + $0x2c] sm:$0xf]
    %v224 = vld [vmem:[%s1 + $0x30] sm:$0xf]
    %v225 = vld [vmem:[%s1 + $0x34] sm:$0xf]
    %v226 = vld [vmem:[%s1 + $0x38] sm:$0xf]
    %v227 = vld [vmem:[%s1 + $0x3c] sm:$0xf]
    %v228 = vld [vmem:[%s2] sm:$0x1]
    %v230 = vlaneseq
    %v231 = vshrl.u32 %v230, 7
    %v232 = vsub.s32 0, %v231
    %v233 = vrot.slane %v228, %v232
    %v299 = vunpack.c.l.b16 %v148
    %v300 = vunpack.c.l.b16 %v149
    %v301 = vunpack.c.l.b16 %v150
    %v302 = vunpack.c.l.b16 %v151
    %v303 = vunpack.c.l.b16 %v152
    %v304 = vunpack.c.l.b16 %v153
    %v305 = vunpack.c.l.b16 %v154
    %v306 = vunpack.c.l.b16 %v155
    %v307 = vunpack.c.l.b16 %v156
    %v308 = vunpack.c.l.b16 %v157
    %v309 = vunpack.c.l.b16 %v158
    %v310 = vunpack.c.l.b16 %v159
    %v311 = vunpack.c.l.b16 %v160
    %v312 = vunpack.c.l.b16 %v161
    %v313 = vunpack.c.l.b16 %v162
    %v314 = vunpack.c.l.b16 %v163
    %v315 = vunpack.c.l.b16 %v164
    %v316 = vunpack.c.l.b16 %v165
    %v317 = vunpack.c.l.b16 %v166
    %v318 = vunpack.c.l.b16 %v167
    %v319 = vunpack.c.l.b16 %v168
    %v320 = vunpack.c.l.b16 %v169
    %v321 = vunpack.c.l.b16 %v170
    %v322 = vunpack.c.l.b16 %v171
    %v323 = vunpack.c.l.b16 %v172
    %v324 = vunpack.c.l.b16 %v173
    %v325 = vunpack.c.l.b16 %v174
    %v326 = vunpack.c.l.b16 %v175
    %v327 = vunpack.c.l.b16 %v176
    %v328 = vunpack.c.l.b16 %v177
    %v329 = vunpack.c.l.b16 %v178
    %v330 = vunpack.c.l.b16 %v179
    %v331 = vunpack.c.l.b16 %v180
    %v332 = vunpack.c.l.b16 %v181
    %v333 = vunpack.c.l.b16 %v182
    %v334 = vunpack.c.l.b16 %v183
    %v335 = vunpack.c.l.b16 %v184
    %v336 = vunpack.c.l.b16 %v185
    %v337 = vunpack.c.l.b16 %v186
    %v338 = vunpack.c.l.b16 %v187
    %v339 = vunpack.c.l.b16 %v188
    %v340 = vunpack.c.l.b16 %v189
    %v341 = vunpack.c.l.b16 %v190
    %v342 = vunpack.c.l.b16 %v191
    %v343 = vunpack.c.l.b16 %v192
    %v344 = vunpack.c.l.b16 %v193
    %v345 = vunpack.c.l.b16 %v194
    %v346 = vunpack.c.l.b16 %v195
    %v347 = vunpack.c.l.b16 %v196
    %v348 = vunpack.c.l.b16 %v197
    %v349 = vunpack.c.l.b16 %v198
    %v350 = vunpack.c.l.b16 %v199
    %v351 = vunpack.c.l.b16 %v200
    %v352 = vunpack.c.l.b16 %v201
    %v353 = vunpack.c.l.b16 %v202
    %v354 = vunpack.c.l.b16 %v203
    %v355 = vunpack.c.l.b16 %v204
    %v356 = vunpack.c.l.b16 %v205
    %v357 = vunpack.c.l.b16 %v206
    %v358 = vunpack.c.l.b16 %v207
    %v359 = vunpack.c.l.b16 %v208
    %v360 = vunpack.c.l.b16 %v209
    %v361 = vunpack.c.l.b16 %v210
    %v362 = vunpack.c.l.b16 %v211
    %v363 = vpack.c.b16 %v300, %v299
    %v364 = vpack.c.b16 %v302, %v301
    %v365 = vpack.c.b16 %v304, %v303
    %v366 = vpack.c.b16 %v306, %v305
    %v367 = vpack.c.b16 %v308, %v307
    %v368 = vpack.c.b16 %v310, %v309
    %v369 = vpack.c.b16 %v312, %v311
    %v370 = vpack.c.b16 %v314, %v313
    %v371 = vpack.c.b16 %v316, %v315
    %v372 = vpack.c.b16 %v318, %v317
    %v373 = vpack.c.b16 %v320, %v319
    %v374 = vpack.c.b16 %v322, %v321
    %v375 = vpack.c.b16 %v324, %v323
    %v376 = vpack.c.b16 %v326, %v325
    %v377 = vpack.c.b16 %v328, %v327
    %v378 = vpack.c.b16 %v330, %v329
    %v379 = vpack.c.b16 %v332, %v331
    %v380 = vpack.c.b16 %v334, %v333
    %v381 = vpack.c.b16 %v336, %v335
    %v382 = vpack.c.b16 %v338, %v337
    %v383 = vpack.c.b16 %v340, %v339
    %v384 = vpack.c.b16 %v342, %v341
    %v385 = vpack.c.b16 %v344, %v343
    %v386 = vpack.c.b16 %v346, %v345
    %v387 = vpack.c.b16 %v348, %v347
    %v388 = vpack.c.b16 %v350, %v349
    %v389 = vpack.c.b16 %v352, %v351
    %v390 = vpack.c.b16 %v354, %v353
    %v391 = vpack.c.b16 %v356, %v355
    %v392 = vpack.c.b16 %v358, %v357
    %v393 = vpack.c.b16 %v360, %v359
    %v394 = vpack.c.b16 %v362, %v361
    %v443 = vunpack.c.l.b16 %v212
    %v444 = vunpack.c.l.b16 %v213
    %v445 = vunpack.c.l.b16 %v214
    %v446 = vunpack.c.l.b16 %v215
    %v447 = vunpack.c.l.b16 %v216
    %v448 = vunpack.c.l.b16 %v217
    %v449 = vunpack.c.l.b16 %v218
    %v450 = vunpack.c.l.b16 %v219
    %v451 = vunpack.c.l.b16 %v220
    %v452 = vunpack.c.l.b16 %v221
    %v453 = vunpack.c.l.b16 %v222
    %v454 = vunpack.c.l.b16 %v223
    %v455 = vunpack.c.l.b16 %v224
    %v456 = vunpack.c.l.b16 %v225
    %v457 = vunpack.c.l.b16 %v226
    %v458 = vunpack.c.l.b16 %v227
    %v459 = vpack.c.b16 %v444, %v443
    %v460 = vpack.c.b16 %v446, %v445
    %v461 = vpack.c.b16 %v448, %v447
    %v462 = vpack.c.b16 %v450, %v449
    %v463 = vpack.c.b16 %v452, %v451
    %v464 = vpack.c.b16 %v454, %v453
    %v465 = vpack.c.b16 %v456, %v455
    %v466 = vpack.c.b16 %v458, %v457
    %475 = vmatprep.subr.bf16.mxu0 0
    %476 = vmatpush1.bf16.msra.mxu0 %v459
    %477 = vmatprep.subr.bf16.mxu0 0
    %478 = vmatpush1.bf16.msra.mxu0 %v460
    %479 = vmatprep.subr.bf16.mxu0 0
    %480 = vmatpush1.bf16.msra.mxu0 %v461
    %481 = vmatprep.subr.bf16.mxu0 0
    %482 = vmatpush1.bf16.msra.mxu0 %v462
    %483 = vmatprep.subr.bf16.mxu0 0
    %484 = vmatpush1.bf16.msra.mxu0 %v463
    %485 = vmatprep.subr.bf16.mxu0 0
    %486 = vmatpush1.bf16.msra.mxu0 %v464
    %487 = vmatprep.subr.bf16.mxu0 0
    %488 = vmatpush1.bf16.msra.mxu0 %v465
    %489 = vmatprep.subr.bf16.mxu0 0
    %490 = vmatpush1.bf16.msra.mxu0 %v466
    %491 = vmatprep.subr.bf16.mxu0 0
    %492 = vmatpush1.bf16.msra.mxu0 0
    %493 = vmatprep.subr.bf16.mxu0 0
    %494 = vmatpush1.bf16.msra.mxu0 0
    %495 = vmatprep.subr.bf16.mxu0 0
    %496 = vmatpush1.bf16.msra.mxu0 0
    %497 = vmatprep.subr.bf16.mxu0 0
    %498 = vmatpush1.bf16.msra.mxu0 0
    %499 = vmatprep.subr.bf16.mxu0 0
    %500 = vmatpush1.bf16.msra.mxu0 0
    %501 = vmatprep.subr.bf16.mxu0 0
    %502 = vmatpush1.bf16.msra.mxu0 0
    %503 = vmatprep.subr.bf16.mxu0 0
    %504 = vmatpush1.bf16.msra.mxu0 0
    %505 = vmatprep.subr.bf16.mxu0 0
    %506 = vmatpush1.bf16.msra.mxu0 0
    %507 = vmatprep.mubr.bf16.mxu0 0
    %508 = vmatmul.mubr.bf16.gmra.mrb[0].mxu0 %v363
    %v509 = vpop.f32.mrb[0].mxu0
    %v510 = vadd.f32 %v233, %v509
    %v511 = vpop.f32.mrb[0].mxu0
    %v512 = vpop.f32.mrb[0].mxu0
    %v513 = vadd.f32 %v233, %v512
    %v514 = vpop.f32.mrb[0].mxu0
    %515 = vmatprep.mubr.bf16.mxu0 0
    %516 = vmatmul.mubr.bf16.gmra.mrb[0].mxu0 %v364
    %v517 = vpop.f32.mrb[0].mxu0
    %v518 = vadd.f32 %v233, %v517
    %v519 = vpop.f32.mrb[0].mxu0
    %v520 = vpop.f32.mrb[0].mxu0
    %v521 = vadd.f32 %v233, %v520
    %v522 = vpop.f32.mrb[0].mxu0
    %523 = vmatprep.mubr.bf16.mxu0 0
    %524 = vmatmul.mubr.bf16.gmra.mrb[0].mxu0 %v365
    %v525 = vpop.f32.mrb[0].mxu0
    %v526 = vadd.f32 %v233, %v525
    %v527 = vpop.f32.mrb[0].mxu0
    %v528 = vpop.f32.mrb[0].mxu0
    %v529 = vadd.f32 %v233, %v528
    %v530 = vpop.f32.mrb[0].mxu0
    %531 = vmatprep.mubr.bf16.mxu0 0
    %532 = vmatmul.mubr.bf16.gmra.mrb[0].mxu0 %v366
    %v533 = vpop.f32.mrb[0].mxu0
    %v534 = vadd.f32 %v233, %v533
    %v535 = vpop.f32.mrb[0].mxu0
    %v536 = vpop.f32.mrb[0].mxu0
    %v537 = vadd.f32 %v233, %v536
    %v538 = vpop.f32.mrb[0].mxu0
    %539 = vmatprep.mubr.bf16.mxu0 0
    %540 = vmatmul.mubr.bf16.gmra.mrb[0].mxu0 %v367
    %v541 = vpop.f32.mrb[0].mxu0
    %v542 = vadd.f32 %v233, %v541
    %v543 = vpop.f32.mrb[0].mxu0
    %v544 = vpop.f32.mrb[0].mxu0
    %v545 = vadd.f32 %v233, %v544
    %v546 = vpop.f32.mrb[0].mxu0
    %547 = vmatprep.mubr.bf16.mxu0 0
    %548 = vmatmul.mubr.bf16.gmra.mrb[0].mxu0 %v368
    %v549 = vpop.f32.mrb[0].mxu0
    %v550 = vadd.f32 %v233, %v549
    %v551 = vpop.f32.mrb[0].mxu0
    %v552 = vpop.f32.mrb[0].mxu0
    %v553 = vadd.f32 %v233, %v552
    %v554 = vpop.f32.mrb[0].mxu0
    %555 = vmatprep.mubr.bf16.mxu0 0
    %556 = vmatmul.mubr.bf16.gmra.mrb[0].mxu0 %v369
    %v557 = vpop.f32.mrb[0].mxu0
    %v558 = vadd.f32 %v233, %v557
    %v559 = vpop.f32.mrb[0].mxu0
    %v560 = vpop.f32.mrb[0].mxu0
    %v561 = vadd.f32 %v233, %v560
    %v562 = vpop.f32.mrb[0].mxu0
    %563 = vmatprep.mubr.bf16.mxu0 0
    %564 = vmatmul.mubr.bf16.gmra.mrb[0].mxu0 %v370
    %v565 = vpop.f32.mrb[0].mxu0
    %v566 = vadd.f32 %v233, %v565
    %v567 = vpop.f32.mrb[0].mxu0
    %v568 = vpop.f32.mrb[0].mxu0
    %v569 = vadd.f32 %v233, %v568
    %v570 = vpop.f32.mrb[0].mxu0
    %571 = vmatprep.mubr.bf16.mxu0 0
    %572 = vmatmul.mubr.bf16.gmra.mrb[0].mxu0 %v371
    %v573 = vpop.f32.mrb[0].mxu0
    %v574 = vadd.f32 %v233, %v573
    %v575 = vpop.f32.mrb[0].mxu0
    %v576 = vpop.f32.mrb[0].mxu0
    %v577 = vadd.f32 %v233, %v576
    %v578 = vpop.f32.mrb[0].mxu0
    %579 = vmatprep.mubr.bf16.mxu0 0
    %580 = vmatmul.mubr.bf16.gmra.mrb[0].mxu0 %v372
    %v581 = vpop.f32.mrb[0].mxu0
    %v582 = vadd.f32 %v233, %v581
    %v583 = vpop.f32.mrb[0].mxu0
    %v584 = vpop.f32.mrb[0].mxu0
    %v585 = vadd.f32 %v233, %v584
    %v586 = vpop.f32.mrb[0].mxu0
    %587 = vmatprep.mubr.bf16.mxu0 0
    %588 = vmatmul.mubr.bf16.gmra.mrb[0].mxu0 %v373
    %v589 = vpop.f32.mrb[0].mxu0
    %v590 = vadd.f32 %v233, %v589
    %v591 = vpop.f32.mrb[0].mxu0
    %v592 = vpop.f32.mrb[0].mxu0
    %v593 = vadd.f32 %v233, %v592
    %v594 = vpop.f32.mrb[0].mxu0
    %595 = vmatprep.mubr.bf16.mxu0 0
    %596 = vmatmul.mubr.bf16.gmra.mrb[0].mxu0 %v374
    %v597 = vpop.f32.mrb[0].mxu0
    %v598 = vadd.f32 %v233, %v597
    %v599 = vpop.f32.mrb[0].mxu0
    %v600 = vpop.f32.mrb[0].mxu0
    %v601 = vadd.f32 %v233, %v600
    %v602 = vpop.f32.mrb[0].mxu0
    %603 = vmatprep.mubr.bf16.mxu0 0
    %604 = vmatmul.mubr.bf16.gmra.mrb[0].mxu0 %v375
    %v605 = vpop.f32.mrb[0].mxu0
    %v606 = vadd.f32 %v233, %v605
    %v607 = vpop.f32.mrb[0].mxu0
    %v608 = vpop.f32.mrb[0].mxu0
    %v609 = vadd.f32 %v233, %v608
    %v610 = vpop.f32.mrb[0].mxu0
    %611 = vmatprep.mubr.bf16.mxu0 0
    %612 = vmatmul.mubr.bf16.gmra.mrb[0].mxu0 %v376
    %v613 = vpop.f32.mrb[0].mxu0
    %v614 = vadd.f32 %v233, %v613
    %v615 = vpop.f32.mrb[0].mxu0
    %v616 = vpop.f32.mrb[0].mxu0
    %v617 = vadd.f32 %v233, %v616
    %v618 = vpop.f32.mrb[0].mxu0
    %619 = vmatprep.mubr.bf16.mxu0 0
    %620 = vmatmul.mubr.bf16.gmra.mrb[0].mxu0 %v377
    %v621 = vpop.f32.mrb[0].mxu0
    %v622 = vadd.f32 %v233, %v621
    %v623 = vpop.f32.mrb[0].mxu0
    %v624 = vpop.f32.mrb[0].mxu0
    %v625 = vadd.f32 %v233, %v624
    %v626 = vpop.f32.mrb[0].mxu0
    %627 = vmatprep.mubr.bf16.mxu0 0
    %628 = vmatmul.mubr.bf16.gmra.mrb[0].mxu0 %v378
    %v629 = vpop.f32.mrb[0].mxu0
    %v630 = vadd.f32 %v233, %v629
    %v631 = vpop.f32.mrb[0].mxu0
    %v632 = vpop.f32.mrb[0].mxu0
    %v633 = vadd.f32 %v233, %v632
    %v634 = vpop.f32.mrb[0].mxu0
    %635 = vmatprep.mubr.bf16.mxu0 0
    %636 = vmatmul.mubr.bf16.gmra.mrb[0].mxu0 %v379
    %v637 = vpop.f32.mrb[0].mxu0
    %v638 = vadd.f32 %v233, %v637
    %v639 = vpop.f32.mrb[0].mxu0
    %v640 = vpop.f32.mrb[0].mxu0
    %v641 = vadd.f32 %v233, %v640
    %v642 = vpop.f32.mrb[0].mxu0
    %643 = vmatprep.mubr.bf16.mxu0 0
    %644 = vmatmul.mubr.bf16.gmra.mrb[0].mxu0 %v380
    %v645 = vpop.f32.mrb[0].mxu0
    %v646 = vadd.f32 %v233, %v645
    %v647 = vpop.f32.mrb[0].mxu0
    %v648 = vpop.f32.mrb[0].mxu0
    %v649 = vadd.f32 %v233, %v648
    %v650 = vpop.f32.mrb[0].mxu0
    %651 = vmatprep.mubr.bf16.mxu0 0
    %652 = vmatmul.mubr.bf16.gmra.mrb[0].mxu0 %v381
    %v653 = vpop.f32.mrb[0].mxu0
    %v654 = vadd.f32 %v233, %v653
    %v655 = vpop.f32.mrb[0].mxu0
    %v656 = vpop.f32.mrb[0].mxu0
    %v657 = vadd.f32 %v233, %v656
    %v658 = vpop.f32.mrb[0].mxu0
    %659 = vmatprep.mubr.bf16.mxu0 0
    %660 = vmatmul.mubr.bf16.gmra.mrb[0].mxu0 %v382
    %v661 = vpop.f32.mrb[0].mxu0
    %v662 = vadd.f32 %v233, %v661
    %v663 = vpop.f32.mrb[0].mxu0
    %v664 = vpop.f32.mrb[0].mxu0
    %v665 = vadd.f32 %v233, %v664
    %v666 = vpop.f32.mrb[0].mxu0
    %667 = vmatprep.mubr.bf16.mxu0 0
    %668 = vmatmul.mubr.bf16.gmra.mrb[0].mxu0 %v383
    %v669 = vpop.f32.mrb[0].mxu0
    %v670 = vadd.f32 %v233, %v669
    %v671 = vpop.f32.mrb[0].mxu0
    %v672 = vpop.f32.mrb[0].mxu0
    %v673 = vadd.f32 %v233, %v672
    %v674 = vpop.f32.mrb[0].mxu0
    %675 = vmatprep.mubr.bf16.mxu0 0
    %676 = vmatmul.mubr.bf16.gmra.mrb[0].mxu0 %v384
    %v677 = vpop.f32.mrb[0].mxu0
    %v678 = vadd.f32 %v233, %v677
    %v679 = vpop.f32.mrb[0].mxu0
    %v680 = vpop.f32.mrb[0].mxu0
    %v681 = vadd.f32 %v233, %v680
    %v682 = vpop.f32.mrb[0].mxu0
    %683 = vmatprep.mubr.bf16.mxu0 0
    %684 = vmatmul.mubr.bf16.gmra.mrb[0].mxu0 %v385
    %v685 = vpop.f32.mrb[0].mxu0
    %v686 = vadd.f32 %v233, %v685
    %v687 = vpop.f32.mrb[0].mxu0
    %v688 = vpop.f32.mrb[0].mxu0
    %v689 = vadd.f32 %v233, %v688
    %v690 = vpop.f32.mrb[0].mxu0
    %691 = vmatprep.mubr.bf16.mxu0 0
    %692 = vmatmul.mubr.bf16.gmra.mrb[0].mxu0 %v386
    %v693 = vpop.f32.mrb[0].mxu0
    %v694 = vadd.f32 %v233, %v693
    %v695 = vpop.f32.mrb[0].mxu0
    %v696 = vpop.f32.mrb[0].mxu0
    %v697 = vadd.f32 %v233, %v696
    %v698 = vpop.f32.mrb[0].mxu0
    %699 = vmatprep.mubr.bf16.mxu0 0
    %700 = vmatmul.mubr.bf16.gmra.mrb[0].mxu0 %v387
    %v701 = vpop.f32.mrb[0].mxu0
    %v702 = vadd.f32 %v233, %v701
    %v703 = vpop.f32.mrb[0].mxu0
    %v704 = vpop.f32.mrb[0].mxu0
    %v705 = vadd.f32 %v233, %v704
    %v706 = vpop.f32.mrb[0].mxu0
    %707 = vmatprep.mubr.bf16.mxu0 0
    %708 = vmatmul.mubr.bf16.gmra.mrb[0].mxu0 %v388
    %v709 = vpop.f32.mrb[0].mxu0
    %v710 = vadd.f32 %v233, %v709
    %v711 = vpop.f32.mrb[0].mxu0
    %v712 = vpop.f32.mrb[0].mxu0
    %v713 = vadd.f32 %v233, %v712
    %v714 = vpop.f32.mrb[0].mxu0
    %715 = vmatprep.mubr.bf16.mxu0 0
    %716 = vmatmul.mubr.bf16.gmra.mrb[0].mxu0 %v389
    %v717 = vpop.f32.mrb[0].mxu0
    %v718 = vadd.f32 %v233, %v717
    %v719 = vpop.f32.mrb[0].mxu0
    %v720 = vpop.f32.mrb[0].mxu0
    %v721 = vadd.f32 %v233, %v720
    %v722 = vpop.f32.mrb[0].mxu0
    %723 = vmatprep.mubr.bf16.mxu0 0
    %724 = vmatmul.mubr.bf16.gmra.mrb[0].mxu0 %v390
    %v725 = vpop.f32.mrb[0].mxu0
    %v726 = vadd.f32 %v233, %v725
    %v727 = vpop.f32.mrb[0].mxu0
    %v728 = vpop.f32.mrb[0].mxu0
    %v729 = vadd.f32 %v233, %v728
    %v730 = vpop.f32.mrb[0].mxu0
    %731 = vmatprep.mubr.bf16.mxu0 0
    %732 = vmatmul.mubr.bf16.gmra.mrb[0].mxu0 %v391
    %v733 = vpop.f32.mrb[0].mxu0
    %v734 = vadd.f32 %v233, %v733
    %v735 = vpop.f32.mrb[0].mxu0
    %v736 = vpop.f32.mrb[0].mxu0
    %v737 = vadd.f32 %v233, %v736
    %v738 = vpop.f32.mrb[0].mxu0
    %739 = vmatprep.mubr.bf16.mxu0 0
    %740 = vmatmul.mubr.bf16.gmra.mrb[0].mxu0 %v392
    %v741 = vpop.f32.mrb[0].mxu0
    %v742 = vadd.f32 %v233, %v741
    %v743 = vpop.f32.mrb[0].mxu0
    %v744 = vpop.f32.mrb[0].mxu0
    %v745 = vadd.f32 %v233, %v744
    %v746 = vpop.f32.mrb[0].mxu0
    %747 = vmatprep.mubr.bf16.mxu0 0
    %748 = vmatmul.mubr.bf16.gmra.mrb[0].mxu0 %v393
    %v749 = vpop.f32.mrb[0].mxu0
    %v750 = vadd.f32 %v233, %v749
    %v751 = vpop.f32.mrb[0].mxu0
    %v752 = vpop.f32.mrb[0].mxu0
    %v753 = vadd.f32 %v233, %v752
    %v754 = vpop.f32.mrb[0].mxu0
    %755 = vmatprep.mubr.bf16.mxu0 0
    %756 = vmatmul.mubr.bf16.gmra.mrb[0].mxu0 %v394
    %v757 = vpop.f32.mrb[0].mxu0
    %v758 = vadd.f32 %v233, %v757
    %v759 = vpop.f32.mrb[0].mxu0
    %v760 = vpop.f32.mrb[0].mxu0
    %v761 = vadd.f32 %v233, %v760
    %v762 = vpop.f32.mrb[0].mxu0
    %763 = vdwg.mxu0
    %v764 = vmax.f32 %v510, 0.0
    %v765 = vmax.f32 %v513, 0.0
    %v766 = vmax.f32 %v518, 0.0
    %v767 = vmax.f32 %v521, 0.0
    %v768 = vmax.f32 %v526, 0.0
    %v769 = vmax.f32 %v529, 0.0
    %v770 = vmax.f32 %v534, 0.0
    %v771 = vmax.f32 %v537, 0.0
    %v772 = vmax.f32 %v542, 0.0
    %v773 = vmax.f32 %v545, 0.0
    %v774 = vmax.f32 %v550, 0.0
    %v775 = vmax.f32 %v553, 0.0
    %v776 = vmax.f32 %v558, 0.0
    %v777 = vmax.f32 %v561, 0.0
    %v778 = vmax.f32 %v566, 0.0
    %v779 = vmax.f32 %v569, 0.0
    %v780 = vmax.f32 %v574, 0.0
    %v781 = vmax.f32 %v577, 0.0
    %v782 = vmax.f32 %v582, 0.0
    %v783 = vmax.f32 %v585, 0.0
    %v784 = vmax.f32 %v590, 0.0
    %v785 = vmax.f32 %v593, 0.0
    %v786 = vmax.f32 %v598, 0.0
    %v787 = vmax.f32 %v601, 0.0
    %v788 = vmax.f32 %v606, 0.0
    %v789 = vmax.f32 %v609, 0.0
    %v790 = vmax.f32 %v614, 0.0
    %v791 = vmax.f32 %v617, 0.0
    %v792 = vmax.f32 %v622, 0.0
    %v793 = vmax.f32 %v625, 0.0
    %v794 = vmax.f32 %v630, 0.0
    %v795 = vmax.f32 %v633, 0.0
    %v796 = vmax.f32 %v638, 0.0
    %v797 = vmax.f32 %v641, 0.0
    %v798 = vmax.f32 %v646, 0.0
    %v799 = vmax.f32 %v649, 0.0
    %v800 = vmax.f32 %v654, 0.0
    %v801 = vmax.f32 %v657, 0.0
    %v802 = vmax.f32 %v662, 0.0
    %v803 = vmax.f32 %v665, 0.0
    %v804 = vmax.f32 %v670, 0.0
    %v805 = vmax.f32 %v673, 0.0
    %v806 = vmax.f32 %v678, 0.0
    %v807 = vmax.f32 %v681, 0.0
    %v808 = vmax.f32 %v686, 0.0
    %v809 = vmax.f32 %v689, 0.0
    %v810 = vmax.f32 %v694, 0.0
    %v811 = vmax.f32 %v697, 0.0
    %v812 = vmax.f32 %v702, 0.0
    %v813 = vmax.f32 %v705, 0.0
    %v814 = vmax.f32 %v710, 0.0
    %v815 = vmax.f32 %v713, 0.0
    %v816 = vmax.f32 %v718, 0.0
    %v817 = vmax.f32 %v721, 0.0
    %v818 = vmax.f32 %v726, 0.0
    %v819 = vmax.f32 %v729, 0.0
    %v820 = vmax.f32 %v734, 0.0
    %v821 = vmax.f32 %v737, 0.0
    %v822 = vmax.f32 %v742, 0.0
    %v823 = vmax.f32 %v745, 0.0
    %v824 = vmax.f32 %v750, 0.0
    %v825 = vmax.f32 %v753, 0.0
    %v826 = vmax.f32 %v758, 0.0
    %v827 = vmax.f32 %v761, 0.0
    %v828 = vpack.c.bf16 %v765, %v764
    %v829 = vpack.c.bf16 %v767, %v766
    %v830 = vpack.c.bf16 %v769, %v768
    %v831 = vpack.c.bf16 %v771, %v770
    %v832 = vpack.c.bf16 %v773, %v772
    %v833 = vpack.c.bf16 %v775, %v774
    %v834 = vpack.c.bf16 %v777, %v776
    %v835 = vpack.c.bf16 %v779, %v778
    %v836 = vpack.c.bf16 %v781, %v780
    %v837 = vpack.c.bf16 %v783, %v782
    %v838 = vpack.c.bf16 %v785, %v784
    %v839 = vpack.c.bf16 %v787, %v786
    %v840 = vpack.c.bf16 %v789, %v788
    %v841 = vpack.c.bf16 %v791, %v790
    %v842 = vpack.c.bf16 %v793, %v792
    %v843 = vpack.c.bf16 %v795, %v794
    %v844 = vpack.c.bf16 %v797, %v796
    %v845 = vpack.c.bf16 %v799, %v798
    %v846 = vpack.c.bf16 %v801, %v800
    %v847 = vpack.c.bf16 %v803, %v802
    %v848 = vpack.c.bf16 %v805, %v804
    %v849 = vpack.c.bf16 %v807, %v806
    %v850 = vpack.c.bf16 %v809, %v808
    %v851 = vpack.c.bf16 %v811, %v810
    %v852 = vpack.c.bf16 %v813, %v812
    %v853 = vpack.c.bf16 %v815, %v814
    %v854 = vpack.c.bf16 %v817, %v816
    %v855 = vpack.c.bf16 %v819, %v818
    %v856 = vpack.c.bf16 %v821, %v820
    %v857 = vpack.c.bf16 %v823, %v822
    %v858 = vpack.c.bf16 %v825, %v824
    %v859 = vpack.c.bf16 %v827, %v826
    %v876 = vunpack.c.l.b16 %v828
    %v877 = vunpack.c.h.b16 %v828
    %v878 = vunpack.c.l.b16 %v829
    %v879 = vunpack.c.h.b16 %v829
    %v880 = vunpack.c.l.b16 %v830
    %v881 = vunpack.c.h.b16 %v830
    %v882 = vunpack.c.l.b16 %v831
    %v883 = vunpack.c.h.b16 %v831
    %v884 = vunpack.c.l.b16 %v832
    %v885 = vunpack.c.h.b16 %v832
    %v886 = vunpack.c.l.b16 %v833
    %v887 = vunpack.c.h.b16 %v833
    %v888 = vunpack.c.l.b16 %v834
    %v889 = vunpack.c.h.b16 %v834
    %v890 = vunpack.c.l.b16 %v835
    %v891 = vunpack.c.h.b16 %v835
    %v892 = vunpack.c.l.b16 %v836
    %v893 = vunpack.c.h.b16 %v836
    %v894 = vunpack.c.l.b16 %v837
    %v895 = vunpack.c.h.b16 %v837
    %v896 = vunpack.c.l.b16 %v838
    %v897 = vunpack.c.h.b16 %v838
    %v898 = vunpack.c.l.b16 %v839
    %v899 = vunpack.c.h.b16 %v839
    %v900 = vunpack.c.l.b16 %v840
    %v901 = vunpack.c.h.b16 %v840
    %v902 = vunpack.c.l.b16 %v841
    %v903 = vunpack.c.h.b16 %v841
    %v904 = vunpack.c.l.b16 %v842
    %v905 = vunpack.c.h.b16 %v842
    %v906 = vunpack.c.l.b16 %v843
    %v907 = vunpack.c.h.b16 %v843
    %v908 = vpack.c.b16 %v876, %v876
    %v909 = vpack.c.b16 %v877, %v877
    %v910 = vpack.c.b16 %v878, %v878
    %v911 = vpack.c.b16 %v879, %v879
    %v912 = vpack.c.b16 %v880, %v880
    %v913 = vpack.c.b16 %v881, %v881
    %v914 = vpack.c.b16 %v882, %v882
    %v915 = vpack.c.b16 %v883, %v883
    %v916 = vpack.c.b16 %v884, %v884
    %v917 = vpack.c.b16 %v885, %v885
    %v918 = vpack.c.b16 %v886, %v886
    %v919 = vpack.c.b16 %v887, %v887
    %v920 = vpack.c.b16 %v888, %v888
    %v921 = vpack.c.b16 %v889, %v889
    %v922 = vpack.c.b16 %v890, %v890
    %v923 = vpack.c.b16 %v891, %v891
    %v924 = vpack.c.b16 %v892, %v892
    %v925 = vpack.c.b16 %v893, %v893
    %v926 = vpack.c.b16 %v894, %v894
    %v927 = vpack.c.b16 %v895, %v895
    %v928 = vpack.c.b16 %v896, %v896
    %v929 = vpack.c.b16 %v897, %v897
    %v930 = vpack.c.b16 %v898, %v898
    %v931 = vpack.c.b16 %v899, %v899
    %v932 = vpack.c.b16 %v900, %v900
    %v933 = vpack.c.b16 %v901, %v901
    %v934 = vpack.c.b16 %v902, %v902
    %v935 = vpack.c.b16 %v903, %v903
    %v936 = vpack.c.b16 %v904, %v904
    %v937 = vpack.c.b16 %v905, %v905
    %v938 = vpack.c.b16 %v906, %v906
    %v939 = vpack.c.b16 %v907, %v907
    %vm940 = vsmask.f32 4368
    %vm941 = vmor %vm36, %vm940
    %v943 = vshrl.u32 %v908, 16
    %v945 = vrot.slane %v943, 7
    %v946 = vshll.u32 %v908, 16
    %v948 = vor.u32 %v945, %v946
    %v949 = vrot.slane %v945, 4
    %v951 = vshrl.u32 %v909, 16
    %v953 = vrot.slane %v951, 7
    %v954 = vshll.u32 %v909, 16
    %v956 = vor.u32 %v953, %v954
    %v957 = vsel %vm941, %v949, %v956
    %v958 = vrot.slane %v953, 4
    %v960 = vshrl.u32 %v910, 16
    %v962 = vrot.slane %v960, 7
    %v963 = vshll.u32 %v910, 16
    %v965 = vor.u32 %v962, %v963
    %v966 = vrot.slane %v962, 4
    %v968 = vshrl.u32 %v911, 16
    %v970 = vrot.slane %v968, 7
    %v971 = vshll.u32 %v911, 16
    %v973 = vor.u32 %v970, %v971
    %v974 = vsel %vm941, %v966, %v973
    %v975 = vrot.slane %v970, 4
    %v977 = vshrl.u32 %v912, 16
    %v979 = vrot.slane %v977, 7
    %v980 = vshll.u32 %v912, 16
    %v982 = vor.u32 %v979, %v980
    %v983 = vrot.slane %v979, 4
    %v985 = vshrl.u32 %v913, 16
    %v987 = vrot.slane %v985, 7
    %v988 = vshll.u32 %v913, 16
    %v990 = vor.u32 %v987, %v988
    %v991 = vsel %vm941, %v983, %v990
    %v992 = vrot.slane %v987, 4
    %v994 = vshrl.u32 %v914, 16
    %v996 = vrot.slane %v994, 7
    %v997 = vshll.u32 %v914, 16
    %v999 = vor.u32 %v996, %v997
    %v1000 = vrot.slane %v996, 4
    %v1002 = vshrl.u32 %v915, 16
    %v1004 = vrot.slane %v1002, 7
    %v1005 = vshll.u32 %v915, 16
    %v1007 = vor.u32 %v1004, %v1005
    %v1008 = vsel %vm941, %v1000, %v1007
    %v1009 = vrot.slane %v1004, 4
    %v1011 = vshrl.u32 %v916, 16
    %v1013 = vrot.slane %v1011, 7
    %v1014 = vshll.u32 %v916, 16
    %v1016 = vor.u32 %v1013, %v1014
    %v1017 = vrot.slane %v1013, 4
    %v1019 = vshrl.u32 %v917, 16
    %v1021 = vrot.slane %v1019, 7
    %v1022 = vshll.u32 %v917, 16
    %v1024 = vor.u32 %v1021, %v1022
    %v1025 = vsel %vm941, %v1017, %v1024
    %v1026 = vrot.slane %v1021, 4
    %v1028 = vshrl.u32 %v918, 16
    %v1030 = vrot.slane %v1028, 7
    %v1031 = vshll.u32 %v918, 16
    %v1033 = vor.u32 %v1030, %v1031
    %v1034 = vrot.slane %v1030, 4
    %v1036 = vshrl.u32 %v919, 16
    %v1038 = vrot.slane %v1036, 7
    %v1039 = vshll.u32 %v919, 16
    %v1041 = vor.u32 %v1038, %v1039
    %v1042 = vsel %vm941, %v1034, %v1041
    %v1043 = vrot.slane %v1038, 4
    %v1045 = vshrl.u32 %v920, 16
    %v1047 = vrot.slane %v1045, 7
    %v1048 = vshll.u32 %v920, 16
    %v1050 = vor.u32 %v1047, %v1048
    %v1051 = vrot.slane %v1047, 4
    %v1053 = vshrl.u32 %v921, 16
    %v1055 = vrot.slane %v1053, 7
    %v1056 = vshll.u32 %v921, 16
    %v1058 = vor.u32 %v1055, %v1056
    %v1059 = vsel %vm941, %v1051, %v1058
    %v1060 = vrot.slane %v1055, 4
    %v1062 = vshrl.u32 %v922, 16
    %v1064 = vrot.slane %v1062, 7
    %v1065 = vshll.u32 %v922, 16
    %v1067 = vor.u32 %v1064, %v1065
    %v1068 = vrot.slane %v1064, 4
    %v1070 = vshrl.u32 %v923, 16
    %v1072 = vrot.slane %v1070, 7
    %v1073 = vshll.u32 %v923, 16
    %v1075 = vor.u32 %v1072, %v1073
    %v1076 = vsel %vm941, %v1068, %v1075
    %v1077 = vrot.slane %v1072, 4
    %v1079 = vshrl.u32 %v924, 16
    %v1081 = vrot.slane %v1079, 7
    %v1082 = vshll.u32 %v924, 16
    %v1084 = vor.u32 %v1081, %v1082
    %v1085 = vrot.slane %v1081, 4
    %v1087 = vshrl.u32 %v925, 16
    %v1089 = vrot.slane %v1087, 7
    %v1090 = vshll.u32 %v925, 16
    %v1092 = vor.u32 %v1089, %v1090
    %v1093 = vsel %vm941, %v1085, %v1092
    %v1094 = vrot.slane %v1089, 4
    %v1096 = vshrl.u32 %v926, 16
    %v1098 = vrot.slane %v1096, 7
    %v1099 = vshll.u32 %v926, 16
    %v1101 = vor.u32 %v1098, %v1099
    %v1102 = vrot.slane %v1098, 4
    %v1104 = vshrl.u32 %v927, 16
    %v1106 = vrot.slane %v1104, 7
    %v1107 = vshll.u32 %v927, 16
    %v1109 = vor.u32 %v1106, %v1107
    %v1110 = vsel %vm941, %v1102, %v1109
    %v1111 = vrot.slane %v1106, 4
    %v1113 = vshrl.u32 %v928, 16
    %v1115 = vrot.slane %v1113, 7
    %v1116 = vshll.u32 %v928, 16
    %v1118 = vor.u32 %v1115, %v1116
    %v1119 = vrot.slane %v1115, 4
    %v1121 = vshrl.u32 %v929, 16
    %v1123 = vrot.slane %v1121, 7
    %v1124 = vshll.u32 %v929, 16
    %v1126 = vor.u32 %v1123, %v1124
    %v1127 = vsel %vm941, %v1119, %v1126
    %v1128 = vrot.slane %v1123, 4
    %v1130 = vshrl.u32 %v930, 16
    %v1132 = vrot.slane %v1130, 7
    %v1133 = vshll.u32 %v930, 16
    %v1135 = vor.u32 %v1132, %v1133
    %v1136 = vrot.slane %v1132, 4
    %v1138 = vshrl.u32 %v931, 16
    %v1140 = vrot.slane %v1138, 7
    %v1141 = vshll.u32 %v931, 16
    %v1143 = vor.u32 %v1140, %v1141
    %v1144 = vsel %vm941, %v1136, %v1143
    %v1145 = vrot.slane %v1140, 4
    %v1147 = vshrl.u32 %v932, 16
    %v1149 = vrot.slane %v1147, 7
    %v1150 = vshll.u32 %v932, 16
    %v1152 = vor.u32 %v1149, %v1150
    %v1153 = vrot.slane %v1149, 4
    %v1155 = vshrl.u32 %v933, 16
    %v1157 = vrot.slane %v1155, 7
    %v1158 = vshll.u32 %v933, 16
    %v1160 = vor.u32 %v1157, %v1158
    %v1161 = vsel %vm941, %v1153, %v1160
    %v1162 = vrot.slane %v1157, 4
    %v1164 = vshrl.u32 %v934, 16
    %v1166 = vrot.slane %v1164, 7
    %v1167 = vshll.u32 %v934, 16
    %v1169 = vor.u32 %v1166, %v1167
    %v1170 = vrot.slane %v1166, 4
    %v1172 = vshrl.u32 %v935, 16
    %v1174 = vrot.slane %v1172, 7
    %v1175 = vshll.u32 %v935, 16
    %v1177 = vor.u32 %v1174, %v1175
    %v1178 = vsel %vm941, %v1170, %v1177
    %v1179 = vrot.slane %v1174, 4
    %v1181 = vshrl.u32 %v936, 16
    %v1183 = vrot.slane %v1181, 7
    %v1184 = vshll.u32 %v936, 16
    %v1186 = vor.u32 %v1183, %v1184
    %v1187 = vrot.slane %v1183, 4
    %v1189 = vshrl.u32 %v937, 16
    %v1191 = vrot.slane %v1189, 7
    %v1192 = vshll.u32 %v937, 16
    %v1194 = vor.u32 %v1191, %v1192
    %v1195 = vsel %vm941, %v1187, %v1194
    %v1196 = vrot.slane %v1191, 4
    %v1198 = vshrl.u32 %v938, 16
    %v1200 = vrot.slane %v1198, 7
    %v1201 = vshll.u32 %v938, 16
    %v1203 = vor.u32 %v1200, %v1201
    %v1204 = vrot.slane %v1200, 4
    %v1206 = vshrl.u32 %v939, 16
    %v1208 = vrot.slane %v1206, 7
    %v1209 = vshll.u32 %v939, 16
    %v1211 = vor.u32 %v1208, %v1209
    %v1212 = vsel %vm941, %v1204, %v1211
    %v1213 = vrot.slane %v1208, 4
    %s1262 = scalar_lea.vmem [#allocation2], 12
    %vm1263 = vcmask 1043456
    %vm1264 = vmand %vm1263, %vm92
    %v1265 = vld [vmem:[%s1262] sm:$0xf]
    %v1266 = vsel %vm1264, %v948, %v1265
    %1267 = vst [vmem:[%s1262] sm:$0xf] %v1266
    %1268 = vst [vmem:[%s1262 + $0x4] sm:$0xf] %v957
    %v1269 = vld [vmem:[%s1262 + $0x8] sm:$0x1]
    %v1270 = vsel %vm37, %v958, %v1269
    %1271 = vst [vmem:[%s1262 + $0x8] sm:$0x1] %v1270
    %v1272 = vld [vmem:[%s1262 + $0xc] sm:$0xf]
    %v1273 = vsel %vm1264, %v965, %v1272
    %1274 = vst [vmem:[%s1262 + $0xc] sm:$0xf] %v1273
    %1275 = vst [vmem:[%s1262 + $0x10] sm:$0xf] %v974
    %v1276 = vld [vmem:[%s1262 + $0x14] sm:$0x1]
    %v1277 = vsel %vm37, %v975, %v1276
    %1278 = vst [vmem:[%s1262 + $0x14] sm:$0x1] %v1277
    %v1279 = vld [vmem:[%s1262 + $0x18] sm:$0xf]
    %v1280 = vsel %vm1264, %v982, %v1279
    %1281 = vst [vmem:[%s1262 + $0x18] sm:$0xf] %v1280
    %1282 = vst [vmem:[%s1262 + $0x1c] sm:$0xf] %v991
    %v1283 = vld [vmem:[%s1262 + $0x20] sm:$0x1]
    %v1284 = vsel %vm37, %v992, %v1283
    %1285 = vst [vmem:[%s1262 + $0x20] sm:$0x1] %v1284
    %v1286 = vld [vmem:[%s1262 + $0x24] sm:$0xf]
    %v1287 = vsel %vm1264, %v999, %v1286
    %1288 = vst [vmem:[%s1262 + $0x24] sm:$0xf] %v1287
    %1289 = vst [vmem:[%s1262 + $0x28] sm:$0xf] %v1008
    %v1290 = vld [vmem:[%s1262 + $0x2c] sm:$0x1]
    %v1291 = vsel %vm37, %v1009, %v1290
    %1292 = vst [vmem:[%s1262 + $0x2c] sm:$0x1] %v1291
    %v1293 = vld [vmem:[%s1262 + $0x30] sm:$0xf]
    %v1294 = vsel %vm1264, %v1016, %v1293
    %1295 = vst [vmem:[%s1262 + $0x30] sm:$0xf] %v1294
    %1296 = vst [vmem:[%s1262 + $0x34] sm:$0xf] %v1025
    %v1297 = vld [vmem:[%s1262 + $0x38] sm:$0x1]
    %v1298 = vsel %vm37, %v1026, %v1297
    %1299 = vst [vmem:[%s1262 + $0x38] sm:$0x1] %v1298
    %v1300 = vld [vmem:[%s1262 + $0x3c] sm:$0xf]
    %v1301 = vsel %vm1264, %v1033, %v1300
    %1302 = vst [vmem:[%s1262 + $0x3c] sm:$0xf] %v1301
    %1303 = vst [vmem:[%s1262 + $0x40] sm:$0xf] %v1042
    %v1304 = vld [vmem:[%s1262 + $0x44] sm:$0x1]
    %v1305 = vsel %vm37, %v1043, %v1304
    %1306 = vst [vmem:[%s1262 + $0x44] sm:$0x1] %v1305
    %v1307 = vld [vmem:[%s1262 + $0x48] sm:$0xf]
    %v1308 = vsel %vm1264, %v1050, %v1307
    %1309 = vst [vmem:[%s1262 + $0x48] sm:$0xf] %v1308
    %1310 = vst [vmem:[%s1262 + $0x4c] sm:$0xf] %v1059
    %v1311 = vld [vmem:[%s1262 + $0x50] sm:$0x1]
    %v1312 = vsel %vm37, %v1060, %v1311
    %1313 = vst [vmem:[%s1262 + $0x50] sm:$0x1] %v1312
    %v1314 = vld [vmem:[%s1262 + $0x54] sm:$0xf]
    %v1315 = vsel %vm1264, %v1067, %v1314
    %1316 = vst [vmem:[%s1262 + $0x54] sm:$0xf] %v1315
    %1317 = vst [vmem:[%s1262 + $0x58] sm:$0xf] %v1076
    %v1318 = vld [vmem:[%s1262 + $0x5c] sm:$0x1]
    %v1319 = vsel %vm37, %v1077, %v1318
    %1320 = vst [vmem:[%s1262 + $0x5c] sm:$0x1] %v1319
    %v1321 = vld [vmem:[%s1262 + $0x60] sm:$0xf]
    %v1322 = vsel %vm1264, %v1084, %v1321
    %1323 = vst [vmem:[%s1262 + $0x60] sm:$0xf] %v1322
    %1324 = vst [vmem:[%s1262 + $0x64] sm:$0xf] %v1093
    %v1325 = vld [vmem:[%s1262 + $0x68] sm:$0x1]
    %v1326 = vsel %vm37, %v1094, %v1325
    %1327 = vst [vmem:[%s1262 + $0x68] sm:$0x1] %v1326
    %v1328 = vld [vmem:[%s1262 + $0x6c] sm:$0xf]
    %v1329 = vsel %vm1264, %v1101, %v1328
    %1330 = vst [vmem:[%s1262 + $0x6c] sm:$0xf] %v1329
    %1331 = vst [vmem:[%s1262 + $0x70] sm:$0xf] %v1110
    %v1332 = vld [vmem:[%s1262 + $0x74] sm:$0x1]
    %v1333 = vsel %vm37, %v1111, %v1332
    %1334 = vst [vmem:[%s1262 + $0x74] sm:$0x1] %v1333
    %v1335 = vld [vmem:[%s1262 + $0x78] sm:$0xf]
    %v1336 = vsel %vm1264, %v1118, %v1335
    %1337 = vst [vmem:[%s1262 + $0x78] sm:$0xf] %v1336
    %1338 = vst [vmem:[%s1262 + $0x7c] sm:$0xf] %v1127
    %v1339 = vld [vmem:[%s1262 + $0x80] sm:$0x1]
    %v1340 = vsel %vm37, %v1128, %v1339
    %1341 = vst [vmem:[%s1262 + $0x80] sm:$0x1] %v1340
    %v1342 = vld [vmem:[%s1262 + $0x84] sm:$0xf]
    %v1343 = vsel %vm1264, %v1135, %v1342
    %1344 = vst [vmem:[%s1262 + $0x84] sm:$0xf] %v1343
    %1345 = vst [vmem:[%s1262 + $0x88] sm:$0xf] %v1144
    %v1346 = vld [vmem:[%s1262 + $0x8c] sm:$0x1]
    %v1347 = vsel %vm37, %v1145, %v1346
    %1348 = vst [vmem:[%s1262 + $0x8c] sm:$0x1] %v1347
    %v1349 = vld [vmem:[%s1262 + $0x90] sm:$0xf]
    %v1350 = vsel %vm1264, %v1152, %v1349
    %1351 = vst [vmem:[%s1262 + $0x90] sm:$0xf] %v1350
    %1352 = vst [vmem:[%s1262 + $0x94] sm:$0xf] %v1161
    %v1353 = vld [vmem:[%s1262 + $0x98] sm:$0x1]
    %v1354 = vsel %vm37, %v1162, %v1353
    %1355 = vst [vmem:[%s1262 + $0x98] sm:$0x1] %v1354
    %v1356 = vld [vmem:[%s1262 + $0x9c] sm:$0xf]
    %v1357 = vsel %vm1264, %v1169, %v1356
    %1358 = vst [vmem:[%s1262 + $0x9c] sm:$0xf] %v1357
    %1359 = vst [vmem:[%s1262 + $0xa0] sm:$0xf] %v1178
    %v1360 = vld [vmem:[%s1262 + $0xa4] sm:$0x1]
    %v1361 = vsel %vm37, %v1179, %v1360
    %1362 = vst [vmem:[%s1262 + $0xa4] sm:$0x1] %v1361
    %v1363 = vld [vmem:[%s1262 + $0xa8] sm:$0xf]
    %v1364 = vsel %vm1264, %v1186, %v1363
    %1365 = vst [vmem:[%s1262 + $0xa8] sm:$0xf] %v1364
    %1366 = vst [vmem:[%s1262 + $0xac] sm:$0xf] %v1195
    %v1367 = vld [vmem:[%s1262 + $0xb0] sm:$0x1]
    %v1368 = vsel %vm37, %v1196, %v1367
    %1369 = vst [vmem:[%s1262 + $0xb0] sm:$0x1] %v1368
    %v1370 = vld [vmem:[%s1262 + $0xb4] sm:$0xf]
    %v1371 = vsel %vm1264, %v1203, %v1370
    %1372 = vst [vmem:[%s1262 + $0xb4] sm:$0xf] %v1371
    %1373 = vst [vmem:[%s1262 + $0xb8] sm:$0xf] %v1212
    %v1374 = vld [vmem:[%s1262 + $0xbc] sm:$0x1]
    %v1375 = vsel %vm37, %v1213, %v1374
    %1376 = vst [vmem:[%s1262 + $0xbc] sm:$0x1] %v1375
    %v1377 = vld [vmem:[#allocation2] sm:$0xf]
    %v1378 = vld [vmem:[#allocation2 + $0x4] sm:$0xf]
    %v1379 = vld [vmem:[#allocation2 + $0xc] sm:$0xf]
    %v1380 = vld [vmem:[#allocation2 + $0x10] sm:$0xf]
    %v1381 = vld [vmem:[#allocation2 + $0x18] sm:$0xf]
    %v1382 = vld [vmem:[#allocation2 + $0x1c] sm:$0xf]
    %v1383 = vld [vmem:[#allocation2 + $0x24] sm:$0xf]
    %v1384 = vld [vmem:[#allocation2 + $0x28] sm:$0xf]
    %v1385 = vld [vmem:[#allocation2 + $0x30] sm:$0xf]
    %v1386 = vld [vmem:[#allocation2 + $0x34] sm:$0xf]
    %v1387 = vld [vmem:[#allocation2 + $0x3c] sm:$0xf]
    %v1388 = vld [vmem:[#allocation2 + $0x40] sm:$0xf]
    %v1389 = vld [vmem:[#allocation2 + $0x48] sm:$0xf]
    %v1390 = vld [vmem:[#allocation2 + $0x4c] sm:$0xf]
    %v1391 = vld [vmem:[#allocation2 + $0x54] sm:$0xf]
    %v1392 = vld [vmem:[#allocation2 + $0x58] sm:$0xf]
    %v1393 = vld [vmem:[#allocation2 + $0x60] sm:$0xf]
    %v1394 = vld [vmem:[#allocation2 + $0x64] sm:$0xf]
    %v1395 = vld [vmem:[#allocation2 + $0x6c] sm:$0xf]
    %v1396 = vld [vmem:[#allocation2 + $0x70] sm:$0xf]
    %v1397 = vld [vmem:[#allocation2 + $0x78] sm:$0xf]
    %v1398 = vld [vmem:[#allocation2 + $0x7c] sm:$0xf]
    %v1399 = vld [vmem:[#allocation2 + $0x84] sm:$0xf]
    %v1400 = vld [vmem:[#allocation2 + $0x88] sm:$0xf]
    %v1401 = vld [vmem:[#allocation2 + $0x90] sm:$0xf]
    %v1402 = vld [vmem:[#allocation2 + $0x94] sm:$0xf]
    %v1403 = vld [vmem:[#allocation2 + $0x9c] sm:$0xf]
    %v1404 = vld [vmem:[#allocation2 + $0xa0] sm:$0xf]
    %v1405 = vld [vmem:[#allocation2 + $0xa8] sm:$0xf]
    %v1406 = vld [vmem:[#allocation2 + $0xac] sm:$0xf]
    %v1407 = vld [vmem:[#allocation2 + $0xb4] sm:$0xf]
    %v1408 = vld [vmem:[#allocation2 + $0xb8] sm:$0xf]
    %v1409 = vld [vmem:[%s3] sm:$0xf]
    %v1410 = vld [vmem:[%s3 + $0x4] sm:$0xf]
    %v1411 = vld [vmem:[%s3 + $0x8] sm:$0xf]
    %v1412 = vld [vmem:[%s3 + $0xc] sm:$0xf]
    %v1413 = vld [vmem:[%s3 + $0x10] sm:$0xf]
    %v1414 = vld [vmem:[%s3 + $0x14] sm:$0xf]
    %v1415 = vld [vmem:[%s3 + $0x18] sm:$0xf]
    %v1416 = vld [vmem:[%s3 + $0x1c] sm:$0xf]
    %v1417 = vld [vmem:[%s3 + $0x20] sm:$0xf]
    %v1418 = vld [vmem:[%s3 + $0x24] sm:$0xf]
    %v1419 = vld [vmem:[%s3 + $0x28] sm:$0xf]
    %v1420 = vld [vmem:[%s3 + $0x2c] sm:$0xf]
    %v1421 = vld [vmem:[%s3 + $0x30] sm:$0xf]
    %v1422 = vld [vmem:[%s3 + $0x34] sm:$0xf]
    %v1423 = vld [vmem:[%s3 + $0x38] sm:$0xf]
    %v1424 = vld [vmem:[%s3 + $0x3c] sm:$0xf]
    %v1425 = vld [vmem:[#allocation2 + $0x8] sm:$0x1]
    %v1426 = vld [vmem:[#allocation2 + $0x14] sm:$0x1]
    %v1427 = vld [vmem:[#allocation2 + $0x20] sm:$0x1]
    %v1428 = vld [vmem:[#allocation2 + $0x2c] sm:$0x1]
    %v1429 = vld [vmem:[#allocation2 + $0x38] sm:$0x1]
    %v1430 = vld [vmem:[#allocation2 + $0x44] sm:$0x1]
    %v1431 = vld [vmem:[#allocation2 + $0x50] sm:$0x1]
    %v1432 = vld [vmem:[#allocation2 + $0x5c] sm:$0x1]
    %v1433 = vld [vmem:[#allocation2 + $0x68] sm:$0x1]
    %v1434 = vld [vmem:[#allocation2 + $0x74] sm:$0x1]
    %v1435 = vld [vmem:[#allocation2 + $0x80] sm:$0x1]
    %v1436 = vld [vmem:[#allocation2 + $0x8c] sm:$0x1]
    %v1437 = vld [vmem:[#allocation2 + $0x98] sm:$0x1]
    %v1438 = vld [vmem:[#allocation2 + $0xa4] sm:$0x1]
    %v1439 = vld [vmem:[#allocation2 + $0xb0] sm:$0x1]
    %v1440 = vld [vmem:[#allocation2 + $0xbc] sm:$0x1]
    %vm1441 = vsmask.f32 3328
    %vm1442 = vsmask.f32 7440
    %vm1443 = vmor %vm1441, %vm1442
    %v1445 = vshrl.u32 %v1377, 16
    %v1447 = vrot.slane %v1445, 4
    %v1448 = vshll.u32 %v1377, 16
    %v1450 = vrot.slane %v1448, 5
    %v1451 = vor.u32 %v1447, %v1450
    %v1452 = vrot.slane %v1451, 4
    %v1454 = vshll.u32 %v1378, 16
    %v1456 = vrot.slane %v1454, 5
    %v1457 = vsel %vm1443, %v1452, %v1456
    %v1458 = vshrl.u32 %v1378, 16
    %v1460 = vrot.slane %v1458, 4
    %v1461 = vor.u32 %v1460, %v1456
    %v1462 = vrot.slane %v1461, 4
    %v1464 = vshll.u32 %v1425, 16
    %v1466 = vrot.slane %v1464, 5
    %v1467 = vsel %vm1443, %v1462, %v1466
    %v1469 = vshrl.u32 %v1379, 16
    %v1471 = vrot.slane %v1469, 4
    %v1472 = vshll.u32 %v1379, 16
    %v1474 = vrot.slane %v1472, 5
    %v1475 = vor.u32 %v1471, %v1474
    %v1476 = vrot.slane %v1475, 4
    %v1478 = vshll.u32 %v1380, 16
    %v1480 = vrot.slane %v1478, 5
    %v1481 = vsel %vm1443, %v1476, %v1480
    %v1482 = vshrl.u32 %v1380, 16
    %v1484 = vrot.slane %v1482, 4
    %v1485 = vor.u32 %v1484, %v1480
    %v1486 = vrot.slane %v1485, 4
    %v1488 = vshll.u32 %v1426, 16
    %v1490 = vrot.slane %v1488, 5
    %v1491 = vsel %vm1443, %v1486, %v1490
    %v1493 = vshrl.u32 %v1381, 16
    %v1495 = vrot.slane %v1493, 4
    %v1496 = vshll.u32 %v1381, 16
    %v1498 = vrot.slane %v1496, 5
    %v1499 = vor.u32 %v1495, %v1498
    %v1500 = vrot.slane %v1499, 4
    %v1502 = vshll.u32 %v1382, 16
    %v1504 = vrot.slane %v1502, 5
    %v1505 = vsel %vm1443, %v1500, %v1504
    %v1506 = vshrl.u32 %v1382, 16
    %v1508 = vrot.slane %v1506, 4
    %v1509 = vor.u32 %v1508, %v1504
    %v1510 = vrot.slane %v1509, 4
    %v1512 = vshll.u32 %v1427, 16
    %v1514 = vrot.slane %v1512, 5
    %v1515 = vsel %vm1443, %v1510, %v1514
    %v1517 = vshrl.u32 %v1383, 16
    %v1519 = vrot.slane %v1517, 4
    %v1520 = vshll.u32 %v1383, 16
    %v1522 = vrot.slane %v1520, 5
    %v1523 = vor.u32 %v1519, %v1522
    %v1524 = vrot.slane %v1523, 4
    %v1526 = vshll.u32 %v1384, 16
    %v1528 = vrot.slane %v1526, 5
    %v1529 = vsel %vm1443, %v1524, %v1528
    %v1530 = vshrl.u32 %v1384, 16
    %v1532 = vrot.slane %v1530, 4
    %v1533 = vor.u32 %v1532, %v1528
    %v1534 = vrot.slane %v1533, 4
    %v1536 = vshll.u32 %v1428, 16
    %v1538 = vrot.slane %v1536, 5
    %v1539 = vsel %vm1443, %v1534, %v1538
    %v1541 = vshrl.u32 %v1385, 16
    %v1543 = vrot.slane %v1541, 4
    %v1544 = vshll.u32 %v1385, 16
    %v1546 = vrot.slane %v1544, 5
    %v1547 = vor.u32 %v1543, %v1546
    %v1548 = vrot.slane %v1547, 4
    %v1550 = vshll.u32 %v1386, 16
    %v1552 = vrot.slane %v1550, 5
    %v1553 = vsel %vm1443, %v1548, %v1552
    %v1554 = vshrl.u32 %v1386, 16
    %v1556 = vrot.slane %v1554, 4
    %v1557 = vor.u32 %v1556, %v1552
    %v1558 = vrot.slane %v1557, 4
    %v1560 = vshll.u32 %v1429, 16
    %v1562 = vrot.slane %v1560, 5
    %v1563 = vsel %vm1443, %v1558, %v1562
    %v1565 = vshrl.u32 %v1387, 16
    %v1567 = vrot.slane %v1565, 4
    %v1568 = vshll.u32 %v1387, 16
    %v1570 = vrot.slane %v1568, 5
    %v1571 = vor.u32 %v1567, %v1570
    %v1572 = vrot.slane %v1571, 4
    %v1574 = vshll.u32 %v1388, 16
    %v1576 = vrot.slane %v1574, 5
    %v1577 = vsel %vm1443, %v1572, %v1576
    %v1578 = vshrl.u32 %v1388, 16
    %v1580 = vrot.slane %v1578, 4
    %v1581 = vor.u32 %v1580, %v1576
    %v1582 = vrot.slane %v1581, 4
    %v1584 = vshll.u32 %v1430, 16
    %v1586 = vrot.slane %v1584, 5
    %v1587 = vsel %vm1443, %v1582, %v1586
    %v1589 = vshrl.u32 %v1389, 16
    %v1591 = vrot.slane %v1589, 4
    %v1592 = vshll.u32 %v1389, 16
    %v1594 = vrot.slane %v1592, 5
    %v1595 = vor.u32 %v1591, %v1594
    %v1596 = vrot.slane %v1595, 4
    %v1598 = vshll.u32 %v1390, 16
    %v1600 = vrot.slane %v1598, 5
    %v1601 = vsel %vm1443, %v1596, %v1600
    %v1602 = vshrl.u32 %v1390, 16
    %v1604 = vrot.slane %v1602, 4
    %v1605 = vor.u32 %v1604, %v1600
    %v1606 = vrot.slane %v1605, 4
    %v1608 = vshll.u32 %v1431, 16
    %v1610 = vrot.slane %v1608, 5
    %v1611 = vsel %vm1443, %v1606, %v1610
    %v1613 = vshrl.u32 %v1391, 16
    %v1615 = vrot.slane %v1613, 4
    %v1616 = vshll.u32 %v1391, 16
    %v1618 = vrot.slane %v1616, 5
    %v1619 = vor.u32 %v1615, %v1618
    %v1620 = vrot.slane %v1619, 4
    %v1622 = vshll.u32 %v1392, 16
    %v1624 = vrot.slane %v1622, 5
    %v1625 = vsel %vm1443, %v1620, %v1624
    %v1626 = vshrl.u32 %v1392, 16
    %v1628 = vrot.slane %v1626, 4
    %v1629 = vor.u32 %v1628, %v1624
    %v1630 = vrot.slane %v1629, 4
    %v1632 = vshll.u32 %v1432, 16
    %v1634 = vrot.slane %v1632, 5
    %v1635 = vsel %vm1443, %v1630, %v1634
    %v1637 = vshrl.u32 %v1393, 16
    %v1639 = vrot.slane %v1637, 4
    %v1640 = vshll.u32 %v1393, 16
    %v1642 = vrot.slane %v1640, 5
    %v1643 = vor.u32 %v1639, %v1642
    %v1644 = vrot.slane %v1643, 4
    %v1646 = vshll.u32 %v1394, 16
    %v1648 = vrot.slane %v1646, 5
    %v1649 = vsel %vm1443, %v1644, %v1648
    %v1650 = vshrl.u32 %v1394, 16
    %v1652 = vrot.slane %v1650, 4
    %v1653 = vor.u32 %v1652, %v1648
    %v1654 = vrot.slane %v1653, 4
    %v1656 = vshll.u32 %v1433, 16
    %v1658 = vrot.slane %v1656, 5
    %v1659 = vsel %vm1443, %v1654, %v1658
    %v1661 = vshrl.u32 %v1395, 16
    %v1663 = vrot.slane %v1661, 4
    %v1664 = vshll.u32 %v1395, 16
    %v1666 = vrot.slane %v1664, 5
    %v1667 = vor.u32 %v1663, %v1666
    %v1668 = vrot.slane %v1667, 4
    %v1670 = vshll.u32 %v1396, 16
    %v1672 = vrot.slane %v1670, 5
    %v1673 = vsel %vm1443, %v1668, %v1672
    %v1674 = vshrl.u32 %v1396, 16
    %v1676 = vrot.slane %v1674, 4
    %v1677 = vor.u32 %v1676, %v1672
    %v1678 = vrot.slane %v1677, 4
    %v1680 = vshll.u32 %v1434, 16
    %v1682 = vrot.slane %v1680, 5
    %v1683 = vsel %vm1443, %v1678, %v1682
    %v1685 = vshrl.u32 %v1397, 16
    %v1687 = vrot.slane %v1685, 4
    %v1688 = vshll.u32 %v1397, 16
    %v1690 = vrot.slane %v1688, 5
    %v1691 = vor.u32 %v1687, %v1690
    %v1692 = vrot.slane %v1691, 4
    %v1694 = vshll.u32 %v1398, 16
    %v1696 = vrot.slane %v1694, 5
    %v1697 = vsel %vm1443, %v1692, %v1696
    %v1698 = vshrl.u32 %v1398, 16
    %v1700 = vrot.slane %v1698, 4
    %v1701 = vor.u32 %v1700, %v1696
    %v1702 = vrot.slane %v1701, 4
    %v1704 = vshll.u32 %v1435, 16
    %v1706 = vrot.slane %v1704, 5
    %v1707 = vsel %vm1443, %v1702, %v1706
    %v1709 = vshrl.u32 %v1399, 16
    %v1711 = vrot.slane %v1709, 4
    %v1712 = vshll.u32 %v1399, 16
    %v1714 = vrot.slane %v1712, 5
    %v1715 = vor.u32 %v1711, %v1714
    %v1716 = vrot.slane %v1715, 4
    %v1718 = vshll.u32 %v1400, 16
    %v1720 = vrot.slane %v1718, 5
    %v1721 = vsel %vm1443, %v1716, %v1720
    %v1722 = vshrl.u32 %v1400, 16
    %v1724 = vrot.slane %v1722, 4
    %v1725 = vor.u32 %v1724, %v1720
    %v1726 = vrot.slane %v1725, 4
    %v1728 = vshll.u32 %v1436, 16
    %v1730 = vrot.slane %v1728, 5
    %v1731 = vsel %vm1443, %v1726, %v1730
    %v1733 = vshrl.u32 %v1401, 16
    %v1735 = vrot.slane %v1733, 4
    %v1736 = vshll.u32 %v1401, 16
    %v1738 = vrot.slane %v1736, 5
    %v1739 = vor.u32 %v1735, %v1738
    %v1740 = vrot.slane %v1739, 4
    %v1742 = vshll.u32 %v1402, 16
    %v1744 = vrot.slane %v1742, 5
    %v1745 = vsel %vm1443, %v1740, %v1744
    %v1746 = vshrl.u32 %v1402, 16
    %v1748 = vrot.slane %v1746, 4
    %v1749 = vor.u32 %v1748, %v1744
    %v1750 = vrot.slane %v1749, 4
    %v1752 = vshll.u32 %v1437, 16
    %v1754 = vrot.slane %v1752, 5
    %v1755 = vsel %vm1443, %v1750, %v1754
    %v1757 = vshrl.u32 %v1403, 16
    %v1759 = vrot.slane %v1757, 4
    %v1760 = vshll.u32 %v1403, 16
    %v1762 = vrot.slane %v1760, 5
    %v1763 = vor.u32 %v1759, %v1762
    %v1764 = vrot.slane %v1763, 4
    %v1766 = vshll.u32 %v1404, 16
    %v1768 = vrot.slane %v1766, 5
    %v1769 = vsel %vm1443, %v1764, %v1768
    %v1770 = vshrl.u32 %v1404, 16
    %v1772 = vrot.slane %v1770, 4
    %v1773 = vor.u32 %v1772, %v1768
    %v1774 = vrot.slane %v1773, 4
    %v1776 = vshll.u32 %v1438, 16
    %v1778 = vrot.slane %v1776, 5
    %v1779 = vsel %vm1443, %v1774, %v1778
    %v1781 = vshrl.u32 %v1405, 16
    %v1783 = vrot.slane %v1781, 4
    %v1784 = vshll.u32 %v1405, 16
    %v1786 = vrot.slane %v1784, 5
    %v1787 = vor.u32 %v1783, %v1786
    %v1788 = vrot.slane %v1787, 4
    %v1790 = vshll.u32 %v1406, 16
    %v1792 = vrot.slane %v1790, 5
    %v1793 = vsel %vm1443, %v1788, %v1792
    %v1794 = vshrl.u32 %v1406, 16
    %v1796 = vrot.slane %v1794, 4
    %v1797 = vor.u32 %v1796, %v1792
    %v1798 = vrot.slane %v1797, 4
    %v1800 = vshll.u32 %v1439, 16
    %v1802 = vrot.slane %v1800, 5
    %v1803 = vsel %vm1443, %v1798, %v1802
    %v1805 = vshrl.u32 %v1407, 16
    %v1807 = vrot.slane %v1805, 4
    %v1808 = vshll.u32 %v1407, 16
    %v1810 = vrot.slane %v1808, 5
    %v1811 = vor.u32 %v1807, %v1810
    %v1812 = vrot.slane %v1811, 4
    %v1814 = vshll.u32 %v1408, 16
    %v1816 = vrot.slane %v1814, 5
    %v1817 = vsel %vm1443, %v1812, %v1816
    %v1818 = vshrl.u32 %v1408, 16
    %v1820 = vrot.slane %v1818, 4
    %v1821 = vor.u32 %v1820, %v1816
    %v1822 = vrot.slane %v1821, 4
    %v1824 = vshll.u32 %v1440, 16
    %v1826 = vrot.slane %v1824, 5
    %v1827 = vsel %vm1443, %v1822, %v1826
    %v1828 = vld [vmem:[%s3 + $0x40] sm:$0xf]
    %v1829 = vld [vmem:[%s3 + $0x44] sm:$0xf]
    %v1830 = vld [vmem:[%s3 + $0x48] sm:$0xf]
    %v1831 = vld [vmem:[%s3 + $0x4c] sm:$0xf]
    %v1832 = vld [vmem:[%s3 + $0x50] sm:$0xf]
    %v1833 = vld [vmem:[%s3 + $0x54] sm:$0xf]
    %v1834 = vld [vmem:[%s3 + $0x58] sm:$0xf]
    %v1835 = vld [vmem:[%s3 + $0x5c] sm:$0xf]
    %v1836 = vld [vmem:[%s3 + $0x60] sm:$0xf]
    %v1837 = vld [vmem:[%s3 + $0x64] sm:$0xf]
    %v1838 = vld [vmem:[%s3 + $0x68] sm:$0xf]
    %v1839 = vld [vmem:[%s3 + $0x6c] sm:$0xf]
    %v1840 = vld [vmem:[%s3 + $0x70] sm:$0xf]
    %v1841 = vld [vmem:[%s3 + $0x74] sm:$0xf]
    %v1842 = vld [vmem:[%s3 + $0x78] sm:$0xf]
    %v1843 = vld [vmem:[%s3 + $0x7c] sm:$0xf]
    %v1844 = vunpack.c.l.b16 %v1457
    %v1845 = vunpack.c.l.b16 %v1467
    %v1846 = vunpack.c.l.b16 %v1481
    %v1847 = vunpack.c.l.b16 %v1491
    %v1848 = vunpack.c.l.b16 %v1505
    %v1849 = vunpack.c.l.b16 %v1515
    %v1850 = vunpack.c.l.b16 %v1529
    %v1851 = vunpack.c.l.b16 %v1539
    %v1852 = vunpack.c.l.b16 %v1553
    %v1853 = vunpack.c.l.b16 %v1563
    %v1854 = vunpack.c.l.b16 %v1577
    %v1855 = vunpack.c.l.b16 %v1587
    %v1856 = vunpack.c.l.b16 %v1601
    %v1857 = vunpack.c.l.b16 %v1611
    %v1858 = vunpack.c.l.b16 %v1625
    %v1859 = vunpack.c.l.b16 %v1635
    %v1860 = vunpack.c.l.b16 %v1649
    %v1861 = vunpack.c.l.b16 %v1659
    %v1862 = vunpack.c.l.b16 %v1673
    %v1863 = vunpack.c.l.b16 %v1683
    %v1864 = vunpack.c.l.b16 %v1697
    %v1865 = vunpack.c.l.b16 %v1707
    %v1866 = vunpack.c.l.b16 %v1721
    %v1867 = vunpack.c.l.b16 %v1731
    %v1868 = vunpack.c.l.b16 %v1745
    %v1869 = vunpack.c.l.b16 %v1755
    %v1870 = vunpack.c.l.b16 %v1769
    %v1871 = vunpack.c.l.b16 %v1779
    %v1872 = vunpack.c.l.b16 %v1793
    %v1873 = vunpack.c.l.b16 %v1803
    %v1874 = vunpack.c.l.b16 %v1817
    %v1875 = vunpack.c.l.b16 %v1827
    %v1876 = vpack.c.b16 %v1845, %v1844
    %v1877 = vpack.c.b16 %v1847, %v1846
    %v1878 = vpack.c.b16 %v1849, %v1848
    %v1879 = vpack.c.b16 %v1851, %v1850
    %v1880 = vpack.c.b16 %v1853, %v1852
    %v1881 = vpack.c.b16 %v1855, %v1854
    %v1882 = vpack.c.b16 %v1857, %v1856
    %v1883 = vpack.c.b16 %v1859, %v1858
    %v1884 = vpack.c.b16 %v1861, %v1860
    %v1885 = vpack.c.b16 %v1863, %v1862
    %v1886 = vpack.c.b16 %v1865, %v1864
    %v1887 = vpack.c.b16 %v1867, %v1866
    %v1888 = vpack.c.b16 %v1869, %v1868
    %v1889 = vpack.c.b16 %v1871, %v1870
    %v1890 = vpack.c.b16 %v1873, %v1872
    %v1891 = vpack.c.b16 %v1875, %v1874
    %v1924 = vunpack.c.l.b16 %v1828
    %v1925 = vunpack.c.l.b16 %v1829
    %v1926 = vunpack.c.l.b16 %v1830
    %v1927 = vunpack.c.l.b16 %v1831
    %v1928 = vunpack.c.l.b16 %v1832
    %v1929 = vunpack.c.l.b16 %v1833
    %v1930 = vunpack.c.l.b16 %v1834
    %v1931 = vunpack.c.l.b16 %v1835
    %v1932 = vunpack.c.l.b16 %v1836
    %v1933 = vunpack.c.l.b16 %v1837
    %v1934 = vunpack.c.l.b16 %v1838
    %v1935 = vunpack.c.l.b16 %v1839
    %v1936 = vunpack.c.l.b16 %v1840
    %v1937 = vunpack.c.l.b16 %v1841
    %v1938 = vunpack.c.l.b16 %v1842
    %v1939 = vunpack.c.l.b16 %v1843
    %v1940 = vpack.c.b16 %v1925, %v1924
    %v1941 = vpack.c.b16 %v1927, %v1926
    %v1942 = vpack.c.b16 %v1929, %v1928
    %v1943 = vpack.c.b16 %v1931, %v1930
    %v1944 = vpack.c.b16 %v1933, %v1932
    %v1945 = vpack.c.b16 %v1935, %v1934
    %v1946 = vpack.c.b16 %v1937, %v1936
    %v1947 = vpack.c.b16 %v1939, %v1938
    %1956 = vmatprep.subr.bf16.mxu0 0
    %1957 = vmatpush1.bf16.msra.mxu0 %v1940
    %1958 = vmatprep.subr.bf16.mxu0 0
    %1959 = vmatpush1.bf16.msra.mxu0 %v1941
    %1960 = vmatprep.subr.bf16.mxu0 0
    %1961 = vmatpush1.bf16.msra.mxu0 %v1942
    %1962 = vmatprep.subr.bf16.mxu0 0
    %1963 = vmatpush1.bf16.msra.mxu0 %v1943
    %1964 = vmatprep.subr.bf16.mxu0 0
    %1965 = vmatpush1.bf16.msra.mxu0 %v1944
    %1966 = vmatprep.subr.bf16.mxu0 0
    %1967 = vmatpush1.bf16.msra.mxu0 %v1945
    %1968 = vmatprep.subr.bf16.mxu0 0
    %1969 = vmatpush1.bf16.msra.mxu0 %v1946
    %1970 = vmatprep.subr.bf16.mxu0 0
    %1971 = vmatpush1.bf16.msra.mxu0 %v1947
    %1972 = vmatprep.subr.bf16.mxu0 0
    %1973 = vmatpush1.bf16.msra.mxu0 0
    %1974 = vmatprep.subr.bf16.mxu0 0
    %1975 = vmatpush1.bf16.msra.mxu0 0
    %1976 = vmatprep.subr.bf16.mxu0 0
    %1977 = vmatpush1.bf16.msra.mxu0 0
    %1978 = vmatprep.subr.bf16.mxu0 0
    %1979 = vmatpush1.bf16.msra.mxu0 0
    %1980 = vmatprep.subr.bf16.mxu0 0
    %1981 = vmatpush1.bf16.msra.mxu0 0
    %1982 = vmatprep.subr.bf16.mxu0 0
    %1983 = vmatpush1.bf16.msra.mxu0 0
    %1984 = vmatprep.subr.bf16.mxu0 0
    %1985 = vmatpush1.bf16.msra.mxu0 0
    %1986 = vmatprep.subr.bf16.mxu0 0
    %1987 = vmatpush1.bf16.msra.mxu0 0
    %1988 = vmatprep.mubr.bf16.mxu0 0
    %1989 = vmatmul.mubr.bf16.gmra.mrb[0].mxu0 %v1876
    %v1990 = vpop.f32.mrb[0].mxu0
    %v1991 = vadd.f32 0.0, %v1990
    %v1992 = vpop.f32.mrb[0].mxu0
    %v1993 = vpop.f32.mrb[0].mxu0
    %v1994 = vadd.f32 0.0, %v1993
    %v1995 = vpop.f32.mrb[0].mxu0
    %1996 = vmatprep.mubr.bf16.mxu0 0
    %1997 = vmatmul.mubr.bf16.gmra.mrb[0].mxu0 %v1877
    %v1998 = vpop.f32.mrb[0].mxu0
    %v1999 = vadd.f32 0.0, %v1998
    %v2000 = vpop.f32.mrb[0].mxu0
    %v2001 = vpop.f32.mrb[0].mxu0
    %v2002 = vadd.f32 0.0, %v2001
    %v2003 = vpop.f32.mrb[0].mxu0
    %2004 = vmatprep.mubr.bf16.mxu0 0
    %2005 = vmatmul.mubr.bf16.gmra.mrb[0].mxu0 %v1878
    %v2006 = vpop.f32.mrb[0].mxu0
    %v2007 = vadd.f32 0.0, %v2006
    %v2008 = vpop.f32.mrb[0].mxu0
    %v2009 = vpop.f32.mrb[0].mxu0
    %v2010 = vadd.f32 0.0, %v2009
    %v2011 = vpop.f32.mrb[0].mxu0
    %2012 = vmatprep.mubr.bf16.mxu0 0
    %2013 = vmatmul.mubr.bf16.gmra.mrb[0].mxu0 %v1879
    %v2014 = vpop.f32.mrb[0].mxu0
    %v2015 = vadd.f32 0.0, %v2014
    %v2016 = vpop.f32.mrb[0].mxu0
    %v2017 = vpop.f32.mrb[0].mxu0
    %v2018 = vadd.f32 0.0, %v2017
    %v2019 = vpop.f32.mrb[0].mxu0
    %2020 = vmatprep.mubr.bf16.mxu0 0
    %2021 = vmatmul.mubr.bf16.gmra.mrb[0].mxu0 %v1880
    %v2022 = vpop.f32.mrb[0].mxu0
    %v2023 = vadd.f32 0.0, %v2022
    %v2024 = vpop.f32.mrb[0].mxu0
    %v2025 = vpop.f32.mrb[0].mxu0
    %v2026 = vadd.f32 0.0, %v2025
    %v2027 = vpop.f32.mrb[0].mxu0
    %2028 = vmatprep.mubr.bf16.mxu0 0
    %2029 = vmatmul.mubr.bf16.gmra.mrb[0].mxu0 %v1881
    %v2030 = vpop.f32.mrb[0].mxu0
    %v2031 = vadd.f32 0.0, %v2030
    %v2032 = vpop.f32.mrb[0].mxu0
    %v2033 = vpop.f32.mrb[0].mxu0
    %v2034 = vadd.f32 0.0, %v2033
    %v2035 = vpop.f32.mrb[0].mxu0
    %2036 = vmatprep.mubr.bf16.mxu0 0
    %2037 = vmatmul.mubr.bf16.gmra.mrb[0].mxu0 %v1882
    %v2038 = vpop.f32.mrb[0].mxu0
    %v2039 = vadd.f32 0.0, %v2038
    %v2040 = vpop.f32.mrb[0].mxu0
    %v2041 = vpop.f32.mrb[0].mxu0
    %v2042 = vadd.f32 0.0, %v2041
    %v2043 = vpop.f32.mrb[0].mxu0
    %2044 = vmatprep.mubr.bf16.mxu0 0
    %2045 = vmatmul.mubr.bf16.gmra.mrb[0].mxu0 %v1883
    %v2046 = vpop.f32.mrb[0].mxu0
    %v2047 = vadd.f32 0.0, %v2046
    %v2048 = vpop.f32.mrb[0].mxu0
    %v2049 = vpop.f32.mrb[0].mxu0
    %v2050 = vadd.f32 0.0, %v2049
    %v2051 = vpop.f32.mrb[0].mxu0
    %2052 = vmatprep.mubr.bf16.mxu0 0
    %2053 = vmatmul.mubr.bf16.gmra.mrb[0].mxu0 %v1884
    %v2054 = vpop.f32.mrb[0].mxu0
    %v2055 = vadd.f32 0.0, %v2054
    %v2056 = vpop.f32.mrb[0].mxu0
    %v2057 = vpop.f32.mrb[0].mxu0
    %v2058 = vadd.f32 0.0, %v2057
    %v2059 = vpop.f32.mrb[0].mxu0
    %2060 = vmatprep.mubr.bf16.mxu0 0
    %2061 = vmatmul.mubr.bf16.gmra.mrb[0].mxu0 %v1885
    %v2062 = vpop.f32.mrb[0].mxu0
    %v2063 = vadd.f32 0.0, %v2062
    %v2064 = vpop.f32.mrb[0].mxu0
    %v2065 = vpop.f32.mrb[0].mxu0
    %v2066 = vadd.f32 0.0, %v2065
    %v2067 = vpop.f32.mrb[0].mxu0
    %2068 = vmatprep.mubr.bf16.mxu0 0
    %2069 = vmatmul.mubr.bf16.gmra.mrb[0].mxu0 %v1886
    %v2070 = vpop.f32.mrb[0].mxu0
    %v2071 = vadd.f32 0.0, %v2070
    %v2072 = vpop.f32.mrb[0].mxu0
    %v2073 = vpop.f32.mrb[0].mxu0
    %v2074 = vadd.f32 0.0, %v2073
    %v2075 = vpop.f32.mrb[0].mxu0
    %2076 = vmatprep.mubr.bf16.mxu0 0
    %2077 = vmatmul.mubr.bf16.gmra.mrb[0].mxu0 %v1887
    %v2078 = vpop.f32.mrb[0].mxu0
    %v2079 = vadd.f32 0.0, %v2078
    %v2080 = vpop.f32.mrb[0].mxu0
    %v2081 = vpop.f32.mrb[0].mxu0
    %v2082 = vadd.f32 0.0, %v2081
    %v2083 = vpop.f32.mrb[0].mxu0
    %2084 = vmatprep.mubr.bf16.mxu0 0
    %2085 = vmatmul.mubr.bf16.gmra.mrb[0].mxu0 %v1888
    %v2086 = vpop.f32.mrb[0].mxu0
    %v2087 = vadd.f32 0.0, %v2086
    %v2088 = vpop.f32.mrb[0].mxu0
    %v2089 = vpop.f32.mrb[0].mxu0
    %v2090 = vadd.f32 0.0, %v2089
    %v2091 = vpop.f32.mrb[0].mxu0
    %2092 = vmatprep.mubr.bf16.mxu0 0
    %2093 = vmatmul.mubr.bf16.gmra.mrb[0].mxu0 %v1889
    %v2094 = vpop.f32.mrb[0].mxu0
    %v2095 = vadd.f32 0.0, %v2094
    %v2096 = vpop.f32.mrb[0].mxu0
    %v2097 = vpop.f32.mrb[0].mxu0
    %v2098 = vadd.f32 0.0, %v2097
    %v2099 = vpop.f32.mrb[0].mxu0
    %2100 = vmatprep.mubr.bf16.mxu0 0
    %2101 = vmatmul.mubr.bf16.gmra.mrb[0].mxu0 %v1890
    %v2102 = vpop.f32.mrb[0].mxu0
    %v2103 = vadd.f32 0.0, %v2102
    %v2104 = vpop.f32.mrb[0].mxu0
    %v2105 = vpop.f32.mrb[0].mxu0
    %v2106 = vadd.f32 0.0, %v2105
    %v2107 = vpop.f32.mrb[0].mxu0
    %2108 = vmatprep.mubr.bf16.mxu0 0
    %2109 = vmatmul.mubr.bf16.gmra.mrb[0].mxu0 %v1891
    %v2110 = vpop.f32.mrb[0].mxu0
    %v2111 = vadd.f32 0.0, %v2110
    %v2112 = vpop.f32.mrb[0].mxu0
    %v2113 = vpop.f32.mrb[0].mxu0
    %v2114 = vadd.f32 0.0, %v2113
    %v2115 = vpop.f32.mrb[0].mxu0
    %2116 = vdwg.mxu0
    %v2149 = vunpack.c.l.b16 %v1377
    %v2150 = vunpack.c.l.b16 %v1378
    %v2151 = vunpack.c.l.b16 %v1379
    %v2152 = vunpack.c.l.b16 %v1380
    %v2153 = vunpack.c.l.b16 %v1381
    %v2154 = vunpack.c.l.b16 %v1382
    %v2155 = vunpack.c.l.b16 %v1383
    %v2156 = vunpack.c.l.b16 %v1384
    %v2157 = vunpack.c.l.b16 %v1385
    %v2158 = vunpack.c.l.b16 %v1386
    %v2159 = vunpack.c.l.b16 %v1387
    %v2160 = vunpack.c.l.b16 %v1388
    %v2161 = vunpack.c.l.b16 %v1389
    %v2162 = vunpack.c.l.b16 %v1390
    %v2163 = vunpack.c.l.b16 %v1391
    %v2164 = vunpack.c.l.b16 %v1392
    %v2165 = vunpack.c.l.b16 %v1393
    %v2166 = vunpack.c.l.b16 %v1394
    %v2167 = vunpack.c.l.b16 %v1395
    %v2168 = vunpack.c.l.b16 %v1396
    %v2169 = vunpack.c.l.b16 %v1397
    %v2170 = vunpack.c.l.b16 %v1398
    %v2171 = vunpack.c.l.b16 %v1399
    %v2172 = vunpack.c.l.b16 %v1400
    %v2173 = vunpack.c.l.b16 %v1401
    %v2174 = vunpack.c.l.b16 %v1402
    %v2175 = vunpack.c.l.b16 %v1403
    %v2176 = vunpack.c.l.b16 %v1404
    %v2177 = vunpack.c.l.b16 %v1405
    %v2178 = vunpack.c.l.b16 %v1406
    %v2179 = vunpack.c.l.b16 %v1407
    %v2180 = vunpack.c.l.b16 %v1408
    %v2181 = vpack.c.b16 %v2150, %v2149
    %v2182 = vpack.c.b16 %v2152, %v2151
    %v2183 = vpack.c.b16 %v2154, %v2153
    %v2184 = vpack.c.b16 %v2156, %v2155
    %v2185 = vpack.c.b16 %v2158, %v2157
    %v2186 = vpack.c.b16 %v2160, %v2159
    %v2187 = vpack.c.b16 %v2162, %v2161
    %v2188 = vpack.c.b16 %v2164, %v2163
    %v2189 = vpack.c.b16 %v2166, %v2165
    %v2190 = vpack.c.b16 %v2168, %v2167
    %v2191 = vpack.c.b16 %v2170, %v2169
    %v2192 = vpack.c.b16 %v2172, %v2171
    %v2193 = vpack.c.b16 %v2174, %v2173
    %v2194 = vpack.c.b16 %v2176, %v2175
    %v2195 = vpack.c.b16 %v2178, %v2177
    %v2196 = vpack.c.b16 %v2180, %v2179
    %v2229 = vunpack.c.l.b16 %v1409
    %v2230 = vunpack.c.l.b16 %v1410
    %v2231 = vunpack.c.l.b16 %v1411
    %v2232 = vunpack.c.l.b16 %v1412
    %v2233 = vunpack.c.l.b16 %v1413
    %v2234 = vunpack.c.l.b16 %v1414
    %v2235 = vunpack.c.l.b16 %v1415
    %v2236 = vunpack.c.l.b16 %v1416
    %v2237 = vunpack.c.l.b16 %v1417
    %v2238 = vunpack.c.l.b16 %v1418
    %v2239 = vunpack.c.l.b16 %v1419
    %v2240 = vunpack.c.l.b16 %v1420
    %v2241 = vunpack.c.l.b16 %v1421
    %v2242 = vunpack.c.l.b16 %v1422
    %v2243 = vunpack.c.l.b16 %v1423
    %v2244 = vunpack.c.l.b16 %v1424
    %v2245 = vpack.c.b16 %v2230, %v2229
    %v2246 = vpack.c.b16 %v2232, %v2231
    %v2247 = vpack.c.b16 %v2234, %v2233
    %v2248 = vpack.c.b16 %v2236, %v2235
    %v2249 = vpack.c.b16 %v2238, %v2237
    %v2250 = vpack.c.b16 %v2240, %v2239
    %v2251 = vpack.c.b16 %v2242, %v2241
    %v2252 = vpack.c.b16 %v2244, %v2243
    %2261 = vmatprep.subr.bf16.mxu0 0
    %2262 = vmatpush1.bf16.msra.mxu0 %v2245
    %2263 = vmatprep.subr.bf16.mxu0 0
    %2264 = vmatpush1.bf16.msra.mxu0 %v2246
    %2265 = vmatprep.subr.bf16.mxu0 0
    %2266 = vmatpush1.bf16.msra.mxu0 %v2247
    %2267 = vmatprep.subr.bf16.mxu0 0
    %2268 = vmatpush1.bf16.msra.mxu0 %v2248
    %2269 = vmatprep.subr.bf16.mxu0 0
    %2270 = vmatpush1.bf16.msra.mxu0 %v2249
    %2271 = vmatprep.subr.bf16.mxu0 0
    %2272 = vmatpush1.bf16.msra.mxu0 %v2250
    %2273 = vmatprep.subr.bf16.mxu0 0
    %2274 = vmatpush1.bf16.msra.mxu0 %v2251
    %2275 = vmatprep.subr.bf16.mxu0 0
    %2276 = vmatpush1.bf16.msra.mxu0 %v2252
    %2277 = vmatprep.subr.bf16.mxu0 0
    %2278 = vmatpush1.bf16.msra.mxu0 0
    %2279 = vmatprep.subr.bf16.mxu0 0
    %2280 = vmatpush1.bf16.msra.mxu0 0
    %2281 = vmatprep.subr.bf16.mxu0 0
    %2282 = vmatpush1.bf16.msra.mxu0 0
    %2283 = vmatprep.subr.bf16.mxu0 0
    %2284 = vmatpush1.bf16.msra.mxu0 0
    %2285 = vmatprep.subr.bf16.mxu0 0
    %2286 = vmatpush1.bf16.msra.mxu0 0
    %2287 = vmatprep.subr.bf16.mxu0 0
    %2288 = vmatpush1.bf16.msra.mxu0 0
    %2289 = vmatprep.subr.bf16.mxu0 0
    %2290 = vmatpush1.bf16.msra.mxu0 0
    %2291 = vmatprep.subr.bf16.mxu0 0
    %2292 = vmatpush1.bf16.msra.mxu0 0
    %2293 = vmatprep.mubr.bf16.mxu0 0
    %2294 = vmatmul.mubr.bf16.gmra.mrb[0].mxu0 %v2181
    %v2295 = vpop.f32.mrb[0].mxu0
    %v2296 = vadd.f32 %v1991, %v2295
    %v2297 = vpop.f32.mrb[0].mxu0
    %v2298 = vpop.f32.mrb[0].mxu0
    %v2299 = vadd.f32 %v1994, %v2298
    %v2300 = vpop.f32.mrb[0].mxu0
    %2301 = vmatprep.mubr.bf16.mxu0 0
    %2302 = vmatmul.mubr.bf16.gmra.mrb[0].mxu0 %v2182
    %v2303 = vpop.f32.mrb[0].mxu0
    %v2304 = vadd.f32 %v1999, %v2303
    %v2305 = vpop.f32.mrb[0].mxu0
    %v2306 = vpop.f32.mrb[0].mxu0
    %v2307 = vadd.f32 %v2002, %v2306
    %v2308 = vpop.f32.mrb[0].mxu0
    %2309 = vmatprep.mubr.bf16.mxu0 0
    %2310 = vmatmul.mubr.bf16.gmra.mrb[0].mxu0 %v2183
    %v2311 = vpop.f32.mrb[0].mxu0
    %v2312 = vadd.f32 %v2007, %v2311
    %v2313 = vpop.f32.mrb[0].mxu0
    %v2314 = vpop.f32.mrb[0].mxu0
    %v2315 = vadd.f32 %v2010, %v2314
    %v2316 = vpop.f32.mrb[0].mxu0
    %2317 = vmatprep.mubr.bf16.mxu0 0
    %2318 = vmatmul.mubr.bf16.gmra.mrb[0].mxu0 %v2184
    %v2319 = vpop.f32.mrb[0].mxu0
    %v2320 = vadd.f32 %v2015, %v2319
    %v2321 = vpop.f32.mrb[0].mxu0
    %v2322 = vpop.f32.mrb[0].mxu0
    %v2323 = vadd.f32 %v2018, %v2322
    %v2324 = vpop.f32.mrb[0].mxu0
    %2325 = vmatprep.mubr.bf16.mxu0 0
    %2326 = vmatmul.mubr.bf16.gmra.mrb[0].mxu0 %v2185
    %v2327 = vpop.f32.mrb[0].mxu0
    %v2328 = vadd.f32 %v2023, %v2327
    %v2329 = vpop.f32.mrb[0].mxu0
    %v2330 = vpop.f32.mrb[0].mxu0
    %v2331 = vadd.f32 %v2026, %v2330
    %v2332 = vpop.f32.mrb[0].mxu0
    %2333 = vmatprep.mubr.bf16.mxu0 0
    %2334 = vmatmul.mubr.bf16.gmra.mrb[0].mxu0 %v2186
    %v2335 = vpop.f32.mrb[0].mxu0
    %v2336 = vadd.f32 %v2031, %v2335
    %v2337 = vpop.f32.mrb[0].mxu0
    %v2338 = vpop.f32.mrb[0].mxu0
    %v2339 = vadd.f32 %v2034, %v2338
    %v2340 = vpop.f32.mrb[0].mxu0
    %2341 = vmatprep.mubr.bf16.mxu0 0
    %2342 = vmatmul.mubr.bf16.gmra.mrb[0].mxu0 %v2187
    %v2343 = vpop.f32.mrb[0].mxu0
    %v2344 = vadd.f32 %v2039, %v2343
    %v2345 = vpop.f32.mrb[0].mxu0
    %v2346 = vpop.f32.mrb[0].mxu0
    %v2347 = vadd.f32 %v2042, %v2346
    %v2348 = vpop.f32.mrb[0].mxu0
    %2349 = vmatprep.mubr.bf16.mxu0 0
    %2350 = vmatmul.mubr.bf16.gmra.mrb[0].mxu0 %v2188
    %v2351 = vpop.f32.mrb[0].mxu0
    %v2352 = vadd.f32 %v2047, %v2351
    %v2353 = vpop.f32.mrb[0].mxu0
    %v2354 = vpop.f32.mrb[0].mxu0
    %v2355 = vadd.f32 %v2050, %v2354
    %v2356 = vpop.f32.mrb[0].mxu0
    %2357 = vmatprep.mubr.bf16.mxu0 0
    %2358 = vmatmul.mubr.bf16.gmra.mrb[0].mxu0 %v2189
    %v2359 = vpop.f32.mrb[0].mxu0
    %v2360 = vadd.f32 %v2055, %v2359
    %v2361 = vpop.f32.mrb[0].mxu0
    %v2362 = vpop.f32.mrb[0].mxu0
    %v2363 = vadd.f32 %v2058, %v2362
    %v2364 = vpop.f32.mrb[0].mxu0
    %2365 = vmatprep.mubr.bf16.mxu0 0
    %2366 = vmatmul.mubr.bf16.gmra.mrb[0].mxu0 %v2190
    %v2367 = vpop.f32.mrb[0].mxu0
    %v2368 = vadd.f32 %v2063, %v2367
    %v2369 = vpop.f32.mrb[0].mxu0
    %v2370 = vpop.f32.mrb[0].mxu0
    %v2371 = vadd.f32 %v2066, %v2370
    %v2372 = vpop.f32.mrb[0].mxu0
    %2373 = vmatprep.mubr.bf16.mxu0 0
    %2374 = vmatmul.mubr.bf16.gmra.mrb[0].mxu0 %v2191
    %v2375 = vpop.f32.mrb[0].mxu0
    %v2376 = vadd.f32 %v2071, %v2375
    %v2377 = vpop.f32.mrb[0].mxu0
    %v2378 = vpop.f32.mrb[0].mxu0
    %v2379 = vadd.f32 %v2074, %v2378
    %v2380 = vpop.f32.mrb[0].mxu0
    %2381 = vmatprep.mubr.bf16.mxu0 0
    %2382 = vmatmul.mubr.bf16.gmra.mrb[0].mxu0 %v2192
    %v2383 = vpop.f32.mrb[0].mxu0
    %v2384 = vadd.f32 %v2079, %v2383
    %v2385 = vpop.f32.mrb[0].mxu0
    %v2386 = vpop.f32.mrb[0].mxu0
    %v2387 = vadd.f32 %v2082, %v2386
    %v2388 = vpop.f32.mrb[0].mxu0
    %2389 = vmatprep.mubr.bf16.mxu0 0
    %2390 = vmatmul.mubr.bf16.gmra.mrb[0].mxu0 %v2193
    %v2391 = vpop.f32.mrb[0].mxu0
    %v2392 = vadd.f32 %v2087, %v2391
    %v2393 = vpop.f32.mrb[0].mxu0
    %v2394 = vpop.f32.mrb[0].mxu0
    %v2395 = vadd.f32 %v2090, %v2394
    %v2396 = vpop.f32.mrb[0].mxu0
    %2397 = vmatprep.mubr.bf16.mxu0 0
    %2398 = vmatmul.mubr.bf16.gmra.mrb[0].mxu0 %v2194
    %v2399 = vpop.f32.mrb[0].mxu0
    %v2400 = vadd.f32 %v2095, %v2399
    %v2401 = vpop.f32.mrb[0].mxu0
    %v2402 = vpop.f32.mrb[0].mxu0
    %v2403 = vadd.f32 %v2098, %v2402
    %v2404 = vpop.f32.mrb[0].mxu0
    %2405 = vmatprep.mubr.bf16.mxu0 0
    %2406 = vmatmul.mubr.bf16.gmra.mrb[0].mxu0 %v2195
    %v2407 = vpop.f32.mrb[0].mxu0
    %v2408 = vadd.f32 %v2103, %v2407
    %v2409 = vpop.f32.mrb[0].mxu0
    %v2410 = vpop.f32.mrb[0].mxu0
    %v2411 = vadd.f32 %v2106, %v2410
    %v2412 = vpop.f32.mrb[0].mxu0
    %2413 = vmatprep.mubr.bf16.mxu0 0
    %2414 = vmatmul.mubr.bf16.gmra.mrb[0].mxu0 %v2196
    %v2415 = vpop.f32.mrb[0].mxu0
    %v2416 = vadd.f32 %v2111, %v2415
    %v2417 = vpop.f32.mrb[0].mxu0
    %v2418 = vpop.f32.mrb[0].mxu0
    %v2419 = vadd.f32 %v2114, %v2418
    %v2420 = vpop.f32.mrb[0].mxu0
    %2421 = vdwg.mxu0
    %v2422 = vld [vmem:[#allocation2] sm:$0xe]
    %v2423 = vld [vmem:[#allocation2 + $0xc] sm:$0xe]
    %v2424 = vld [vmem:[#allocation2 + $0x18] sm:$0xe]
    %v2425 = vld [vmem:[#allocation2 + $0x24] sm:$0xe]
    %v2426 = vld [vmem:[#allocation2 + $0x30] sm:$0xe]
    %v2427 = vld [vmem:[#allocation2 + $0x3c] sm:$0xe]
    %v2428 = vld [vmem:[#allocation2 + $0x48] sm:$0xe]
    %v2429 = vld [vmem:[#allocation2 + $0x54] sm:$0xe]
    %v2430 = vld [vmem:[#allocation2 + $0x60] sm:$0xe]
    %v2431 = vld [vmem:[#allocation2 + $0x6c] sm:$0xe]
    %v2432 = vld [vmem:[#allocation2 + $0x78] sm:$0xe]
    %v2433 = vld [vmem:[#allocation2 + $0x84] sm:$0xe]
    %v2434 = vld [vmem:[#allocation2 + $0x90] sm:$0xe]
    %v2435 = vld [vmem:[#allocation2 + $0x9c] sm:$0xe]
    %v2436 = vld [vmem:[#allocation2 + $0xa8] sm:$0xe]
    %v2437 = vld [vmem:[#allocation2 + $0xb4] sm:$0xe]
    %vm2470 = vcmask 1042432
    %vm2471 = vcmask 1046532
    %vm2472 = vmor %vm2470, %vm2471
    %v2473 = vrot.slane %v2422, 5
    %v2474 = vrot.slane %v2473, 4
    %v2475 = vrot.slane %v1378, 5
    %v2476 = vsel %vm2472, %v2474, %v2475
    %v2477 = vrot.slane %v2475, 4
    %v2478 = vrot.slane %v1425, 5
    %v2479 = vsel %vm2472, %v2477, %v2478
    %v2480 = vrot.slane %v2423, 5
    %v2481 = vrot.slane %v2480, 4
    %v2482 = vrot.slane %v1380, 5
    %v2483 = vsel %vm2472, %v2481, %v2482
    %v2484 = vrot.slane %v2482, 4
    %v2485 = vrot.slane %v1426, 5
    %v2486 = vsel %vm2472, %v2484, %v2485
    %v2487 = vrot.slane %v2424, 5
    %v2488 = vrot.slane %v2487, 4
    %v2489 = vrot.slane %v1382, 5
    %v2490 = vsel %vm2472, %v2488, %v2489
    %v2491 = vrot.slane %v2489, 4
    %v2492 = vrot.slane %v1427, 5
    %v2493 = vsel %vm2472, %v2491, %v2492
    %v2494 = vrot.slane %v2425, 5
    %v2495 = vrot.slane %v2494, 4
    %v2496 = vrot.slane %v1384, 5
    %v2497 = vsel %vm2472, %v2495, %v2496
    %v2498 = vrot.slane %v2496, 4
    %v2499 = vrot.slane %v1428, 5
    %v2500 = vsel %vm2472, %v2498, %v2499
    %v2501 = vrot.slane %v2426, 5
    %v2502 = vrot.slane %v2501, 4
    %v2503 = vrot.slane %v1386, 5
    %v2504 = vsel %vm2472, %v2502, %v2503
    %v2505 = vrot.slane %v2503, 4
    %v2506 = vrot.slane %v1429, 5
    %v2507 = vsel %vm2472, %v2505, %v2506
    %v2508 = vrot.slane %v2427, 5
    %v2509 = vrot.slane %v2508, 4
    %v2510 = vrot.slane %v1388, 5
    %v2511 = vsel %vm2472, %v2509, %v2510
    %v2512 = vrot.slane %v2510, 4
    %v2513 = vrot.slane %v1430, 5
    %v2514 = vsel %vm2472, %v2512, %v2513
    %v2515 = vrot.slane %v2428, 5
    %v2516 = vrot.slane %v2515, 4
    %v2517 = vrot.slane %v1390, 5
    %v2518 = vsel %vm2472, %v2516, %v2517
    %v2519 = vrot.slane %v2517, 4
    %v2520 = vrot.slane %v1431, 5
    %v2521 = vsel %vm2472, %v2519, %v2520
    %v2522 = vrot.slane %v2429, 5
    %v2523 = vrot.slane %v2522, 4
    %v2524 = vrot.slane %v1392, 5
    %v2525 = vsel %vm2472, %v2523, %v2524
    %v2526 = vrot.slane %v2524, 4
    %v2527 = vrot.slane %v1432, 5
    %v2528 = vsel %vm2472, %v2526, %v2527
    %v2529 = vrot.slane %v2430, 5
    %v2530 = vrot.slane %v2529, 4
    %v2531 = vrot.slane %v1394, 5
    %v2532 = vsel %vm2472, %v2530, %v2531
    %v2533 = vrot.slane %v2531, 4
    %v2534 = vrot.slane %v1433, 5
    %v2535 = vsel %vm2472, %v2533, %v2534
    %v2536 = vrot.slane %v2431, 5
    %v2537 = vrot.slane %v2536, 4
    %v2538 = vrot.slane %v1396, 5
    %v2539 = vsel %vm2472, %v2537, %v2538
    %v2540 = vrot.slane %v2538, 4
    %v2541 = vrot.slane %v1434, 5
    %v2542 = vsel %vm2472, %v2540, %v2541
    %v2543 = vrot.slane %v2432, 5
    %v2544 = vrot.slane %v2543, 4
    %v2545 = vrot.slane %v1398, 5
    %v2546 = vsel %vm2472, %v2544, %v2545
    %v2547 = vrot.slane %v2545, 4
    %v2548 = vrot.slane %v1435, 5
    %v2549 = vsel %vm2472, %v2547, %v2548
    %v2550 = vrot.slane %v2433, 5
    %v2551 = vrot.slane %v2550, 4
    %v2552 = vrot.slane %v1400, 5
    %v2553 = vsel %vm2472, %v2551, %v2552
    %v2554 = vrot.slane %v2552, 4
    %v2555 = vrot.slane %v1436, 5
    %v2556 = vsel %vm2472, %v2554, %v2555
    %v2557 = vrot.slane %v2434, 5
    %v2558 = vrot.slane %v2557, 4
    %v2559 = vrot.slane %v1402, 5
    %v2560 = vsel %vm2472, %v2558, %v2559
    %v2561 = vrot.slane %v2559, 4
    %v2562 = vrot.slane %v1437, 5
    %v2563 = vsel %vm2472, %v2561, %v2562
    %v2564 = vrot.slane %v2435, 5
    %v2565 = vrot.slane %v2564, 4
    %v2566 = vrot.slane %v1404, 5
    %v2567 = vsel %vm2472, %v2565, %v2566
    %v2568 = vrot.slane %v2566, 4
    %v2569 = vrot.slane %v1438, 5
    %v2570 = vsel %vm2472, %v2568, %v2569
    %v2571 = vrot.slane %v2436, 5
    %v2572 = vrot.slane %v2571, 4
    %v2573 = vrot.slane %v1406, 5
    %v2574 = vsel %vm2472, %v2572, %v2573
    %v2575 = vrot.slane %v2573, 4
    %v2576 = vrot.slane %v1439, 5
    %v2577 = vsel %vm2472, %v2575, %v2576
    %v2578 = vrot.slane %v2437, 5
    %v2579 = vrot.slane %v2578, 4
    %v2580 = vrot.slane %v1408, 5
    %v2581 = vsel %vm2472, %v2579, %v2580
    %v2582 = vrot.slane %v2580, 4
    %v2583 = vrot.slane %v1440, 5
    %v2584 = vsel %vm2472, %v2582, %v2583
    %v2585 = vld [vmem:[%s3 + $0x80] sm:$0xf]
    %v2586 = vld [vmem:[%s3 + $0x84] sm:$0xf]
    %v2587 = vld [vmem:[%s3 + $0x88] sm:$0xf]
    %v2588 = vld [vmem:[%s3 + $0x8c] sm:$0xf]
    %v2589 = vld [vmem:[%s3 + $0x90] sm:$0xf]
    %v2590 = vld [vmem:[%s3 + $0x94] sm:$0xf]
    %v2591 = vld [vmem:[%s3 + $0x98] sm:$0xf]
    %v2592 = vld [vmem:[%s3 + $0x9c] sm:$0xf]
    %v2593 = vld [vmem:[%s3 + $0xa0] sm:$0xf]
    %v2594 = vld [vmem:[%s3 + $0xa4] sm:$0xf]
    %v2595 = vld [vmem:[%s3 + $0xa8] sm:$0xf]
    %v2596 = vld [vmem:[%s3 + $0xac] sm:$0xf]
    %v2597 = vld [vmem:[%s3 + $0xb0] sm:$0xf]
    %v2598 = vld [vmem:[%s3 + $0xb4] sm:$0xf]
    %v2599 = vld [vmem:[%s3 + $0xb8] sm:$0xf]
    %v2600 = vld [vmem:[%s3 + $0xbc] sm:$0xf]
    %v2601 = vunpack.c.l.b16 %v2476
    %v2602 = vunpack.c.l.b16 %v2479
    %v2603 = vunpack.c.l.b16 %v2483
    %v2604 = vunpack.c.l.b16 %v2486
    %v2605 = vunpack.c.l.b16 %v2490
    %v2606 = vunpack.c.l.b16 %v2493
    %v2607 = vunpack.c.l.b16 %v2497
    %v2608 = vunpack.c.l.b16 %v2500
    %v2609 = vunpack.c.l.b16 %v2504
    %v2610 = vunpack.c.l.b16 %v2507
    %v2611 = vunpack.c.l.b16 %v2511
    %v2612 = vunpack.c.l.b16 %v2514
    %v2613 = vunpack.c.l.b16 %v2518
    %v2614 = vunpack.c.l.b16 %v2521
    %v2615 = vunpack.c.l.b16 %v2525
    %v2616 = vunpack.c.l.b16 %v2528
    %v2617 = vunpack.c.l.b16 %v2532
    %v2618 = vunpack.c.l.b16 %v2535
    %v2619 = vunpack.c.l.b16 %v2539
    %v2620 = vunpack.c.l.b16 %v2542
    %v2621 = vunpack.c.l.b16 %v2546
    %v2622 = vunpack.c.l.b16 %v2549
    %v2623 = vunpack.c.l.b16 %v2553
    %v2624 = vunpack.c.l.b16 %v2556
    %v2625 = vunpack.c.l.b16 %v2560
    %v2626 = vunpack.c.l.b16 %v2563
    %v2627 = vunpack.c.l.b16 %v2567
    %v2628 = vunpack.c.l.b16 %v2570
    %v2629 = vunpack.c.l.b16 %v2574
    %v2630 = vunpack.c.l.b16 %v2577
    %v2631 = vunpack.c.l.b16 %v2581
    %v2632 = vunpack.c.l.b16 %v2584
    %v2633 = vpack.c.b16 %v2602, %v2601
    %v2634 = vpack.c.b16 %v2604, %v2603
    %v2635 = vpack.c.b16 %v2606, %v2605
    %v2636 = vpack.c.b16 %v2608, %v2607
    %v2637 = vpack.c.b16 %v2610, %v2609
    %v2638 = vpack.c.b16 %v2612, %v2611
    %v2639 = vpack.c.b16 %v2614, %v2613
    %v2640 = vpack.c.b16 %v2616, %v2615
    %v2641 = vpack.c.b16 %v2618, %v2617
    %v2642 = vpack.c.b16 %v2620, %v2619
    %v2643 = vpack.c.b16 %v2622, %v2621
    %v2644 = vpack.c.b16 %v2624, %v2623
    %v2645 = vpack.c.b16 %v2626, %v2625
    %v2646 = vpack.c.b16 %v2628, %v2627
    %v2647 = vpack.c.b16 %v2630, %v2629
    %v2648 = vpack.c.b16 %v2632, %v2631
    %v2681 = vunpack.c.l.b16 %v2585
    %v2682 = vunpack.c.l.b16 %v2586
    %v2683 = vunpack.c.l.b16 %v2587
    %v2684 = vunpack.c.l.b16 %v2588
    %v2685 = vunpack.c.l.b16 %v2589
    %v2686 = vunpack.c.l.b16 %v2590
    %v2687 = vunpack.c.l.b16 %v2591
    %v2688 = vunpack.c.l.b16 %v2592
    %v2689 = vunpack.c.l.b16 %v2593
    %v2690 = vunpack.c.l.b16 %v2594
    %v2691 = vunpack.c.l.b16 %v2595
    %v2692 = vunpack.c.l.b16 %v2596
    %v2693 = vunpack.c.l.b16 %v2597
    %v2694 = vunpack.c.l.b16 %v2598
    %v2695 = vunpack.c.l.b16 %v2599
    %v2696 = vunpack.c.l.b16 %v2600
    %v2697 = vpack.c.b16 %v2682, %v2681
    %v2698 = vpack.c.b16 %v2684, %v2683
    %v2699 = vpack.c.b16 %v2686, %v2685
    %v2700 = vpack.c.b16 %v2688, %v2687
    %v2701 = vpack.c.b16 %v2690, %v2689
    %v2702 = vpack.c.b16 %v2692, %v2691
    %v2703 = vpack.c.b16 %v2694, %v2693
    %v2704 = vpack.c.b16 %v2696, %v2695
    %2713 = vmatprep.subr.bf16.mxu0 0
    %2714 = vmatpush1.bf16.msra.mxu0 %v2697
    %2715 = vmatprep.subr.bf16.mxu0 0
    %2716 = vmatpush1.bf16.msra.mxu0 %v2698
    %2717 = vmatprep.subr.bf16.mxu0 0
    %2718 = vmatpush1.bf16.msra.mxu0 %v2699
    %2719 = vmatprep.subr.bf16.mxu0 0
    %2720 = vmatpush1.bf16.msra.mxu0 %v2700
    %2721 = vmatprep.subr.bf16.mxu0 0
    %2722 = vmatpush1.bf16.msra.mxu0 %v2701
    %2723 = vmatprep.subr.bf16.mxu0 0
    %2724 = vmatpush1.bf16.msra.mxu0 %v2702
    %2725 = vmatprep.subr.bf16.mxu0 0
    %2726 = vmatpush1.bf16.msra.mxu0 %v2703
    %2727 = vmatprep.subr.bf16.mxu0 0
    %2728 = vmatpush1.bf16.msra.mxu0 %v2704
    %2729 = vmatprep.subr.bf16.mxu0 0
    %2730 = vmatpush1.bf16.msra.mxu0 0
    %2731 = vmatprep.subr.bf16.mxu0 0
    %2732 = vmatpush1.bf16.msra.mxu0 0
    %2733 = vmatprep.subr.bf16.mxu0 0
    %2734 = vmatpush1.bf16.msra.mxu0 0
    %2735 = vmatprep.subr.bf16.mxu0 0
    %2736 = vmatpush1.bf16.msra.mxu0 0
    %2737 = vmatprep.subr.bf16.mxu0 0
    %2738 = vmatpush1.bf16.msra.mxu0 0
    %2739 = vmatprep.subr.bf16.mxu0 0
    %2740 = vmatpush1.bf16.msra.mxu0 0
    %2741 = vmatprep.subr.bf16.mxu0 0
    %2742 = vmatpush1.bf16.msra.mxu0 0
    %2743 = vmatprep.subr.bf16.mxu0 0
    %2744 = vmatpush1.bf16.msra.mxu0 0
    %2745 = vmatprep.mubr.bf16.mxu0 0
    %2746 = vmatmul.mubr.bf16.gmra.mrb[0].mxu0 %v2633
    %v2747 = vpop.f32.mrb[0].mxu0
    %v2748 = vadd.f32 0.0, %v2747
    %v2749 = vpop.f32.mrb[0].mxu0
    %v2750 = vpop.f32.mrb[0].mxu0
    %v2751 = vadd.f32 0.0, %v2750
    %v2752 = vpop.f32.mrb[0].mxu0
    %2753 = vmatprep.mubr.bf16.mxu0 0
    %2754 = vmatmul.mubr.bf16.gmra.mrb[0].mxu0 %v2634
    %v2755 = vpop.f32.mrb[0].mxu0
    %v2756 = vadd.f32 0.0, %v2755
    %v2757 = vpop.f32.mrb[0].mxu0
    %v2758 = vpop.f32.mrb[0].mxu0
    %v2759 = vadd.f32 0.0, %v2758
    %v2760 = vpop.f32.mrb[0].mxu0
    %2761 = vmatprep.mubr.bf16.mxu0 0
    %2762 = vmatmul.mubr.bf16.gmra.mrb[0].mxu0 %v2635
    %v2763 = vpop.f32.mrb[0].mxu0
    %v2764 = vadd.f32 0.0, %v2763
    %v2765 = vpop.f32.mrb[0].mxu0
    %v2766 = vpop.f32.mrb[0].mxu0
    %v2767 = vadd.f32 0.0, %v2766
    %v2768 = vpop.f32.mrb[0].mxu0
    %2769 = vmatprep.mubr.bf16.mxu0 0
    %2770 = vmatmul.mubr.bf16.gmra.mrb[0].mxu0 %v2636
    %v2771 = vpop.f32.mrb[0].mxu0
    %v2772 = vadd.f32 0.0, %v2771
    %v2773 = vpop.f32.mrb[0].mxu0
    %v2774 = vpop.f32.mrb[0].mxu0
    %v2775 = vadd.f32 0.0, %v2774
    %v2776 = vpop.f32.mrb[0].mxu0
    %2777 = vmatprep.mubr.bf16.mxu0 0
    %2778 = vmatmul.mubr.bf16.gmra.mrb[0].mxu0 %v2637
    %v2779 = vpop.f32.mrb[0].mxu0
    %v2780 = vadd.f32 0.0, %v2779
    %v2781 = vpop.f32.mrb[0].mxu0
    %v2782 = vpop.f32.mrb[0].mxu0
    %v2783 = vadd.f32 0.0, %v2782
    %v2784 = vpop.f32.mrb[0].mxu0
    %2785 = vmatprep.mubr.bf16.mxu0 0
    %2786 = vmatmul.mubr.bf16.gmra.mrb[0].mxu0 %v2638
    %v2787 = vpop.f32.mrb[0].mxu0
    %v2788 = vadd.f32 0.0, %v2787
    %v2789 = vpop.f32.mrb[0].mxu0
    %v2790 = vpop.f32.mrb[0].mxu0
    %v2791 = vadd.f32 0.0, %v2790
    %v2792 = vpop.f32.mrb[0].mxu0
    %2793 = vmatprep.mubr.bf16.mxu0 0
    %2794 = vmatmul.mubr.bf16.gmra.mrb[0].mxu0 %v2639
    %v2795 = vpop.f32.mrb[0].mxu0
    %v2796 = vadd.f32 0.0, %v2795
    %v2797 = vpop.f32.mrb[0].mxu0
    %v2798 = vpop.f32.mrb[0].mxu0
    %v2799 = vadd.f32 0.0, %v2798
    %v2800 = vpop.f32.mrb[0].mxu0
    %2801 = vmatprep.mubr.bf16.mxu0 0
    %2802 = vmatmul.mubr.bf16.gmra.mrb[0].mxu0 %v2640
    %v2803 = vpop.f32.mrb[0].mxu0
    %v2804 = vadd.f32 0.0, %v2803
    %v2805 = vpop.f32.mrb[0].mxu0
    %v2806 = vpop.f32.mrb[0].mxu0
    %v2807 = vadd.f32 0.0, %v2806
    %v2808 = vpop.f32.mrb[0].mxu0
    %2809 = vmatprep.mubr.bf16.mxu0 0
    %2810 = vmatmul.mubr.bf16.gmra.mrb[0].mxu0 %v2641
    %v2811 = vpop.f32.mrb[0].mxu0
    %v2812 = vadd.f32 0.0, %v2811
    %v2813 = vpop.f32.mrb[0].mxu0
    %v2814 = vpop.f32.mrb[0].mxu0
    %v2815 = vadd.f32 0.0, %v2814
    %v2816 = vpop.f32.mrb[0].mxu0
    %2817 = vmatprep.mubr.bf16.mxu0 0
    %2818 = vmatmul.mubr.bf16.gmra.mrb[0].mxu0 %v2642
    %v2819 = vpop.f32.mrb[0].mxu0
    %v2820 = vadd.f32 0.0, %v2819
    %v2821 = vpop.f32.mrb[0].mxu0
    %v2822 = vpop.f32.mrb[0].mxu0
    %v2823 = vadd.f32 0.0, %v2822
    %v2824 = vpop.f32.mrb[0].mxu0
    %2825 = vmatprep.mubr.bf16.mxu0 0
    %2826 = vmatmul.mubr.bf16.gmra.mrb[0].mxu0 %v2643
    %v2827 = vpop.f32.mrb[0].mxu0
    %v2828 = vadd.f32 0.0, %v2827
    %v2829 = vpop.f32.mrb[0].mxu0
    %v2830 = vpop.f32.mrb[0].mxu0
    %v2831 = vadd.f32 0.0, %v2830
    %v2832 = vpop.f32.mrb[0].mxu0
    %2833 = vmatprep.mubr.bf16.mxu0 0
    %2834 = vmatmul.mubr.bf16.gmra.mrb[0].mxu0 %v2644
    %v2835 = vpop.f32.mrb[0].mxu0
    %v2836 = vadd.f32 0.0, %v2835
    %v2837 = vpop.f32.mrb[0].mxu0
    %v2838 = vpop.f32.mrb[0].mxu0
    %v2839 = vadd.f32 0.0, %v2838
    %v2840 = vpop.f32.mrb[0].mxu0
    %2841 = vmatprep.mubr.bf16.mxu0 0
    %2842 = vmatmul.mubr.bf16.gmra.mrb[0].mxu0 %v2645
    %v2843 = vpop.f32.mrb[0].mxu0
    %v2844 = vadd.f32 0.0, %v2843
    %v2845 = vpop.f32.mrb[0].mxu0
    %v2846 = vpop.f32.mrb[0].mxu0
    %v2847 = vadd.f32 0.0, %v2846
    %v2848 = vpop.f32.mrb[0].mxu0
    %2849 = vmatprep.mubr.bf16.mxu0 0
    %2850 = vmatmul.mubr.bf16.gmra.mrb[0].mxu0 %v2646
    %v2851 = vpop.f32.mrb[0].mxu0
    %v2852 = vadd.f32 0.0, %v2851
    %v2853 = vpop.f32.mrb[0].mxu0
    %v2854 = vpop.f32.mrb[0].mxu0
    %v2855 = vadd.f32 0.0, %v2854
    %v2856 = vpop.f32.mrb[0].mxu0
    %2857 = vmatprep.mubr.bf16.mxu0 0
    %2858 = vmatmul.mubr.bf16.gmra.mrb[0].mxu0 %v2647
    %v2859 = vpop.f32.mrb[0].mxu0
    %v2860 = vadd.f32 0.0, %v2859
    %v2861 = vpop.f32.mrb[0].mxu0
    %v2862 = vpop.f32.mrb[0].mxu0
    %v2863 = vadd.f32 0.0, %v2862
    %v2864 = vpop.f32.mrb[0].mxu0
    %2865 = vmatprep.mubr.bf16.mxu0 0
    %2866 = vmatmul.mubr.bf16.gmra.mrb[0].mxu0 %v2648
    %v2867 = vpop.f32.mrb[0].mxu0
    %v2868 = vadd.f32 0.0, %v2867
    %v2869 = vpop.f32.mrb[0].mxu0
    %v2870 = vpop.f32.mrb[0].mxu0
    %v2871 = vadd.f32 0.0, %v2870
    %v2872 = vpop.f32.mrb[0].mxu0
    %2873 = vdwg.mxu0
    %v2874 = vadd.f32 %v2296, %v2748
    %v2875 = vadd.f32 %v2299, %v2751
    %v2876 = vadd.f32 %v2304, %v2756
    %v2877 = vadd.f32 %v2307, %v2759
    %v2878 = vadd.f32 %v2312, %v2764
    %v2879 = vadd.f32 %v2315, %v2767
    %v2880 = vadd.f32 %v2320, %v2772
    %v2881 = vadd.f32 %v2323, %v2775
    %v2882 = vadd.f32 %v2328, %v2780
    %v2883 = vadd.f32 %v2331, %v2783
    %v2884 = vadd.f32 %v2336, %v2788
    %v2885 = vadd.f32 %v2339, %v2791
    %v2886 = vadd.f32 %v2344, %v2796
    %v2887 = vadd.f32 %v2347, %v2799
    %v2888 = vadd.f32 %v2352, %v2804
    %v2889 = vadd.f32 %v2355, %v2807
    %v2890 = vadd.f32 %v2360, %v2812
    %v2891 = vadd.f32 %v2363, %v2815
    %v2892 = vadd.f32 %v2368, %v2820
    %v2893 = vadd.f32 %v2371, %v2823
    %v2894 = vadd.f32 %v2376, %v2828
    %v2895 = vadd.f32 %v2379, %v2831
    %v2896 = vadd.f32 %v2384, %v2836
    %v2897 = vadd.f32 %v2387, %v2839
    %v2898 = vadd.f32 %v2392, %v2844
    %v2899 = vadd.f32 %v2395, %v2847
    %v2900 = vadd.f32 %v2400, %v2852
    %v2901 = vadd.f32 %v2403, %v2855
    %v2902 = vadd.f32 %v2408, %v2860
    %v2903 = vadd.f32 %v2411, %v2863
    %v2904 = vadd.f32 %v2416, %v2868
    %v2905 = vadd.f32 %v2419, %v2871
    %v2906 = vld [vmem:[%s1262] sm:$0xf]
    %v2907 = vld [vmem:[%s1262 + $0x4] sm:$0xf]
    %v2908 = vld [vmem:[%s1262 + $0xc] sm:$0xf]
    %v2909 = vld [vmem:[%s1262 + $0x10] sm:$0xf]
    %v2910 = vld [vmem:[%s1262 + $0x18] sm:$0xf]
    %v2911 = vld [vmem:[%s1262 + $0x1c] sm:$0xf]
    %v2912 = vld [vmem:[%s1262 + $0x24] sm:$0xf]
    %v2913 = vld [vmem:[%s1262 + $0x28] sm:$0xf]
    %v2914 = vld [vmem:[%s1262 + $0x30] sm:$0xf]
    %v2915 = vld [vmem:[%s1262 + $0x34] sm:$0xf]
    %v2916 = vld [vmem:[%s1262 + $0x3c] sm:$0xf]
    %v2917 = vld [vmem:[%s1262 + $0x40] sm:$0xf]
    %v2918 = vld [vmem:[%s1262 + $0x48] sm:$0xf]
    %v2919 = vld [vmem:[%s1262 + $0x4c] sm:$0xf]
    %v2920 = vld [vmem:[%s1262 + $0x54] sm:$0xf]
    %v2921 = vld [vmem:[%s1262 + $0x58] sm:$0xf]
    %v2922 = vld [vmem:[%s1262 + $0x60] sm:$0xf]
    %v2923 = vld [vmem:[%s1262 + $0x64] sm:$0xf]
    %v2924 = vld [vmem:[%s1262 + $0x6c] sm:$0xf]
    %v2925 = vld [vmem:[%s1262 + $0x70] sm:$0xf]
    %v2926 = vld [vmem:[%s1262 + $0x78] sm:$0xf]
    %v2927 = vld [vmem:[%s1262 + $0x7c] sm:$0xf]
    %v2928 = vld [vmem:[%s1262 + $0x84] sm:$0xf]
    %v2929 = vld [vmem:[%s1262 + $0x88] sm:$0xf]
    %v2930 = vld [vmem:[%s1262 + $0x90] sm:$0xf]
    %v2931 = vld [vmem:[%s1262 + $0x94] sm:$0xf]
    %v2932 = vld [vmem:[%s1262 + $0x9c] sm:$0xf]
    %v2933 = vld [vmem:[%s1262 + $0xa0] sm:$0xf]
    %v2934 = vld [vmem:[%s1262 + $0xa8] sm:$0xf]
    %v2935 = vld [vmem:[%s1262 + $0xac] sm:$0xf]
    %v2936 = vld [vmem:[%s1262 + $0xb4] sm:$0xf]
    %v2937 = vld [vmem:[%s1262 + $0xb8] sm:$0xf]
    %v2938 = vld [vmem:[%s3 + $0xc0] sm:$0xf]
    %v2939 = vld [vmem:[%s3 + $0xc4] sm:$0xf]
    %v2940 = vld [vmem:[%s3 + $0xc8] sm:$0xf]
    %v2941 = vld [vmem:[%s3 + $0xcc] sm:$0xf]
    %v2942 = vld [vmem:[%s3 + $0xd0] sm:$0xf]
    %v2943 = vld [vmem:[%s3 + $0xd4] sm:$0xf]
    %v2944 = vld [vmem:[%s3 + $0xd8] sm:$0xf]
    %v2945 = vld [vmem:[%s3 + $0xdc] sm:$0xf]
    %v2946 = vld [vmem:[%s3 + $0xe0] sm:$0xf]
    %v2947 = vld [vmem:[%s3 + $0xe4] sm:$0xf]
    %v2948 = vld [vmem:[%s3 + $0xe8] sm:$0xf]
    %v2949 = vld [vmem:[%s3 + $0xec] sm:$0xf]
    %v2950 = vld [vmem:[%s3 + $0xf0] sm:$0xf]
    %v2951 = vld [vmem:[%s3 + $0xf4] sm:$0xf]
    %v2952 = vld [vmem:[%s3 + $0xf8] sm:$0xf]
    %v2953 = vld [vmem:[%s3 + $0xfc] sm:$0xf]
    %v2986 = vunpack.c.l.b16 %v2906
    %v2987 = vunpack.c.l.b16 %v2907
    %v2988 = vunpack.c.l.b16 %v2908
    %v2989 = vunpack.c.l.b16 %v2909
    %v2990 = vunpack.c.l.b16 %v2910
    %v2991 = vunpack.c.l.b16 %v2911
    %v2992 = vunpack.c.l.b16 %v2912
    %v2993 = vunpack.c.l.b16 %v2913
    %v2994 = vunpack.c.l.b16 %v2914
    %v2995 = vunpack.c.l.b16 %v2915
    %v2996 = vunpack.c.l.b16 %v2916
    %v2997 = vunpack.c.l.b16 %v2917
    %v2998 = vunpack.c.l.b16 %v2918
    %v2999 = vunpack.c.l.b16 %v2919
    %v3000 = vunpack.c.l.b16 %v2920
    %v3001 = vunpack.c.l.b16 %v2921
    %v3002 = vunpack.c.l.b16 %v2922
    %v3003 = vunpack.c.l.b16 %v2923
    %v3004 = vunpack.c.l.b16 %v2924
    %v3005 = vunpack.c.l.b16 %v2925
    %v3006 = vunpack.c.l.b16 %v2926
    %v3007 = vunpack.c.l.b16 %v2927
    %v3008 = vunpack.c.l.b16 %v2928
    %v3009 = vunpack.c.l.b16 %v2929
    %v3010 = vunpack.c.l.b16 %v2930
    %v3011 = vunpack.c.l.b16 %v2931
    %v3012 = vunpack.c.l.b16 %v2932
    %v3013 = vunpack.c.l.b16 %v2933
    %v3014 = vunpack.c.l.b16 %v2934
    %v3015 = vunpack.c.l.b16 %v2935
    %v3016 = vunpack.c.l.b16 %v2936
    %v3017 = vunpack.c.l.b16 %v2937
    %v3018 = vpack.c.b16 %v2987, %v2986
    %v3019 = vpack.c.b16 %v2989, %v2988
    %v3020 = vpack.c.b16 %v2991, %v2990
    %v3021 = vpack.c.b16 %v2993, %v2992
    %v3022 = vpack.c.b16 %v2995, %v2994
    %v3023 = vpack.c.b16 %v2997, %v2996
    %v3024 = vpack.c.b16 %v2999, %v2998
    %v3025 = vpack.c.b16 %v3001, %v3000
    %v3026 = vpack.c.b16 %v3003, %v3002
    %v3027 = vpack.c.b16 %v3005, %v3004
    %v3028 = vpack.c.b16 %v3007, %v3006
    %v3029 = vpack.c.b16 %v3009, %v3008
    %v3030 = vpack.c.b16 %v3011, %v3010
    %v3031 = vpack.c.b16 %v3013, %v3012
    %v3032 = vpack.c.b16 %v3015, %v3014
    %v3033 = vpack.c.b16 %v3017, %v3016
    %v3066 = vunpack.c.l.b16 %v2938
    %v3067 = vunpack.c.l.b16 %v2939
    %v3068 = vunpack.c.l.b16 %v2940
    %v3069 = vunpack.c.l.b16 %v2941
    %v3070 = vunpack.c.l.b16 %v2942
    %v3071 = vunpack.c.l.b16 %v2943
    %v3072 = vunpack.c.l.b16 %v2944
    %v3073 = vunpack.c.l.b16 %v2945
    %v3074 = vunpack.c.l.b16 %v2946
    %v3075 = vunpack.c.l.b16 %v2947
    %v3076 = vunpack.c.l.b16 %v2948
    %v3077 = vunpack.c.l.b16 %v2949
    %v3078 = vunpack.c.l.b16 %v2950
    %v3079 = vunpack.c.l.b16 %v2951
    %v3080 = vunpack.c.l.b16 %v2952
    %v3081 = vunpack.c.l.b16 %v2953
    %v3082 = vpack.c.b16 %v3067, %v3066
    %v3083 = vpack.c.b16 %v3069, %v3068
    %v3084 = vpack.c.b16 %v3071, %v3070
    %v3085 = vpack.c.b16 %v3073, %v3072
    %v3086 = vpack.c.b16 %v3075, %v3074
    %v3087 = vpack.c.b16 %v3077, %v3076
    %v3088 = vpack.c.b16 %v3079, %v3078
    %v3089 = vpack.c.b16 %v3081, %v3080
    %3098 = vmatprep.subr.bf16.mxu0 0
    %3099 = vmatpush1.bf16.msra.mxu0 %v3082
    %3100 = vmatprep.subr.bf16.mxu0 0
    %3101 = vmatpush1.bf16.msra.mxu0 %v3083
    %3102 = vmatprep.subr.bf16.mxu0 0
    %3103 = vmatpush1.bf16.msra.mxu0 %v3084
    %3104 = vmatprep.subr.bf16.mxu0 0
    %3105 = vmatpush1.bf16.msra.mxu0 %v3085
    %3106 = vmatprep.subr.bf16.mxu0 0
    %3107 = vmatpush1.bf16.msra.mxu0 %v3086
    %3108 = vmatprep.subr.bf16.mxu0 0
    %3109 = vmatpush1.bf16.msra.mxu0 %v3087
    %3110 = vmatprep.subr.bf16.mxu0 0
    %3111 = vmatpush1.bf16.msra.mxu0 %v3088
    %3112 = vmatprep.subr.bf16.mxu0 0
    %3113 = vmatpush1.bf16.msra.mxu0 %v3089
    %3114 = vmatprep.subr.bf16.mxu0 0
    %3115 = vmatpush1.bf16.msra.mxu0 0
    %3116 = vmatprep.subr.bf16.mxu0 0
    %3117 = vmatpush1.bf16.msra.mxu0 0
    %3118 = vmatprep.subr.bf16.mxu0 0
    %3119 = vmatpush1.bf16.msra.mxu0 0
    %3120 = vmatprep.subr.bf16.mxu0 0
    %3121 = vmatpush1.bf16.msra.mxu0 0
    %3122 = vmatprep.subr.bf16.mxu0 0
    %3123 = vmatpush1.bf16.msra.mxu0 0
    %3124 = vmatprep.subr.bf16.mxu0 0
    %3125 = vmatpush1.bf16.msra.mxu0 0
    %3126 = vmatprep.subr.bf16.mxu0 0
    %3127 = vmatpush1.bf16.msra.mxu0 0
    %3128 = vmatprep.subr.bf16.mxu0 0
    %3129 = vmatpush1.bf16.msra.mxu0 0
    %3130 = vmatprep.mubr.bf16.mxu0 0
    %3131 = vmatmul.mubr.bf16.gmra.mrb[0].mxu0 %v3018
    %v3132 = vpop.f32.mrb[0].mxu0
    %v3133 = vadd.f32 0.0, %v3132
    %v3134 = vpop.f32.mrb[0].mxu0
    %v3135 = vpop.f32.mrb[0].mxu0
    %v3136 = vadd.f32 0.0, %v3135
    %v3137 = vpop.f32.mrb[0].mxu0
    %3138 = vmatprep.mubr.bf16.mxu0 0
    %3139 = vmatmul.mubr.bf16.gmra.mrb[0].mxu0 %v3019
    %v3140 = vpop.f32.mrb[0].mxu0
    %v3141 = vadd.f32 0.0, %v3140
    %v3142 = vpop.f32.mrb[0].mxu0
    %v3143 = vpop.f32.mrb[0].mxu0
    %v3144 = vadd.f32 0.0, %v3143
    %v3145 = vpop.f32.mrb[0].mxu0
    %3146 = vmatprep.mubr.bf16.mxu0 0
    %3147 = vmatmul.mubr.bf16.gmra.mrb[0].mxu0 %v3020
    %v3148 = vpop.f32.mrb[0].mxu0
    %v3149 = vadd.f32 0.0, %v3148
    %v3150 = vpop.f32.mrb[0].mxu0
    %v3151 = vpop.f32.mrb[0].mxu0
    %v3152 = vadd.f32 0.0, %v3151
    %v3153 = vpop.f32.mrb[0].mxu0
    %3154 = vmatprep.mubr.bf16.mxu0 0
    %3155 = vmatmul.mubr.bf16.gmra.mrb[0].mxu0 %v3021
    %v3156 = vpop.f32.mrb[0].mxu0
    %v3157 = vadd.f32 0.0, %v3156
    %v3158 = vpop.f32.mrb[0].mxu0
    %v3159 = vpop.f32.mrb[0].mxu0
    %v3160 = vadd.f32 0.0, %v3159
    %v3161 = vpop.f32.mrb[0].mxu0
    %3162 = vmatprep.mubr.bf16.mxu0 0
    %3163 = vmatmul.mubr.bf16.gmra.mrb[0].mxu0 %v3022
    %v3164 = vpop.f32.mrb[0].mxu0
    %v3165 = vadd.f32 0.0, %v3164
    %v3166 = vpop.f32.mrb[0].mxu0
    %v3167 = vpop.f32.mrb[0].mxu0
    %v3168 = vadd.f32 0.0, %v3167
    %v3169 = vpop.f32.mrb[0].mxu0
    %3170 = vmatprep.mubr.bf16.mxu0 0
    %3171 = vmatmul.mubr.bf16.gmra.mrb[0].mxu0 %v3023
    %v3172 = vpop.f32.mrb[0].mxu0
    %v3173 = vadd.f32 0.0, %v3172
    %v3174 = vpop.f32.mrb[0].mxu0
    %v3175 = vpop.f32.mrb[0].mxu0
    %v3176 = vadd.f32 0.0, %v3175
    %v3177 = vpop.f32.mrb[0].mxu0
    %3178 = vmatprep.mubr.bf16.mxu0 0
    %3179 = vmatmul.mubr.bf16.gmra.mrb[0].mxu0 %v3024
    %v3180 = vpop.f32.mrb[0].mxu0
    %v3181 = vadd.f32 0.0, %v3180
    %v3182 = vpop.f32.mrb[0].mxu0
    %v3183 = vpop.f32.mrb[0].mxu0
    %v3184 = vadd.f32 0.0, %v3183
    %v3185 = vpop.f32.mrb[0].mxu0
    %3186 = vmatprep.mubr.bf16.mxu0 0
    %3187 = vmatmul.mubr.bf16.gmra.mrb[0].mxu0 %v3025
    %v3188 = vpop.f32.mrb[0].mxu0
    %v3189 = vadd.f32 0.0, %v3188
    %v3190 = vpop.f32.mrb[0].mxu0
    %v3191 = vpop.f32.mrb[0].mxu0
    %v3192 = vadd.f32 0.0, %v3191
    %v3193 = vpop.f32.mrb[0].mxu0
    %3194 = vmatprep.mubr.bf16.mxu0 0
    %3195 = vmatmul.mubr.bf16.gmra.mrb[0].mxu0 %v3026
    %v3196 = vpop.f32.mrb[0].mxu0
    %v3197 = vadd.f32 0.0, %v3196
    %v3198 = vpop.f32.mrb[0].mxu0
    %v3199 = vpop.f32.mrb[0].mxu0
    %v3200 = vadd.f32 0.0, %v3199
    %v3201 = vpop.f32.mrb[0].mxu0
    %3202 = vmatprep.mubr.bf16.mxu0 0
    %3203 = vmatmul.mubr.bf16.gmra.mrb[0].mxu0 %v3027
    %v3204 = vpop.f32.mrb[0].mxu0
    %v3205 = vadd.f32 0.0, %v3204
    %v3206 = vpop.f32.mrb[0].mxu0
    %v3207 = vpop.f32.mrb[0].mxu0
    %v3208 = vadd.f32 0.0, %v3207
    %v3209 = vpop.f32.mrb[0].mxu0
    %3210 = vmatprep.mubr.bf16.mxu0 0
    %3211 = vmatmul.mubr.bf16.gmra.mrb[0].mxu0 %v3028
    %v3212 = vpop.f32.mrb[0].mxu0
    %v3213 = vadd.f32 0.0, %v3212
    %v3214 = vpop.f32.mrb[0].mxu0
    %v3215 = vpop.f32.mrb[0].mxu0
    %v3216 = vadd.f32 0.0, %v3215
    %v3217 = vpop.f32.mrb[0].mxu0
    %3218 = vmatprep.mubr.bf16.mxu0 0
    %3219 = vmatmul.mubr.bf16.gmra.mrb[0].mxu0 %v3029
    %v3220 = vpop.f32.mrb[0].mxu0
    %v3221 = vadd.f32 0.0, %v3220
    %v3222 = vpop.f32.mrb[0].mxu0
    %v3223 = vpop.f32.mrb[0].mxu0
    %v3224 = vadd.f32 0.0, %v3223
    %v3225 = vpop.f32.mrb[0].mxu0
    %3226 = vmatprep.mubr.bf16.mxu0 0
    %3227 = vmatmul.mubr.bf16.gmra.mrb[0].mxu0 %v3030
    %v3228 = vpop.f32.mrb[0].mxu0
    %v3229 = vadd.f32 0.0, %v3228
    %v3230 = vpop.f32.mrb[0].mxu0
    %v3231 = vpop.f32.mrb[0].mxu0
    %v3232 = vadd.f32 0.0, %v3231
    %v3233 = vpop.f32.mrb[0].mxu0
    %3234 = vmatprep.mubr.bf16.mxu0 0
    %3235 = vmatmul.mubr.bf16.gmra.mrb[0].mxu0 %v3031
    %v3236 = vpop.f32.mrb[0].mxu0
    %v3237 = vadd.f32 0.0, %v3236
    %v3238 = vpop.f32.mrb[0].mxu0
    %v3239 = vpop.f32.mrb[0].mxu0
    %v3240 = vadd.f32 0.0, %v3239
    %v3241 = vpop.f32.mrb[0].mxu0
    %3242 = vmatprep.mubr.bf16.mxu0 0
    %3243 = vmatmul.mubr.bf16.gmra.mrb[0].mxu0 %v3032
    %v3244 = vpop.f32.mrb[0].mxu0
    %v3245 = vadd.f32 0.0, %v3244
    %v3246 = vpop.f32.mrb[0].mxu0
    %v3247 = vpop.f32.mrb[0].mxu0
    %v3248 = vadd.f32 0.0, %v3247
    %v3249 = vpop.f32.mrb[0].mxu0
    %3250 = vmatprep.mubr.bf16.mxu0 0
    %3251 = vmatmul.mubr.bf16.gmra.mrb[0].mxu0 %v3033
    %v3252 = vpop.f32.mrb[0].mxu0
    %v3253 = vadd.f32 0.0, %v3252
    %v3254 = vpop.f32.mrb[0].mxu0
    %v3255 = vpop.f32.mrb[0].mxu0
    %v3256 = vadd.f32 0.0, %v3255
    %v3257 = vpop.f32.mrb[0].mxu0
    %3258 = vdwg.mxu0
    %v3259 = vadd.f32 %v2874, %v3133
    %v3260 = vadd.f32 %v2875, %v3136
    %v3261 = vadd.f32 %v2876, %v3141
    %v3262 = vadd.f32 %v2877, %v3144
    %v3263 = vadd.f32 %v2878, %v3149
    %v3264 = vadd.f32 %v2879, %v3152
    %v3265 = vadd.f32 %v2880, %v3157
    %v3266 = vadd.f32 %v2881, %v3160
    %v3267 = vadd.f32 %v2882, %v3165
    %v3268 = vadd.f32 %v2883, %v3168
    %v3269 = vadd.f32 %v2884, %v3173
    %v3270 = vadd.f32 %v2885, %v3176
    %v3271 = vadd.f32 %v2886, %v3181
    %v3272 = vadd.f32 %v2887, %v3184
    %v3273 = vadd.f32 %v2888, %v3189
    %v3274 = vadd.f32 %v2889, %v3192
    %v3275 = vadd.f32 %v2890, %v3197
    %v3276 = vadd.f32 %v2891, %v3200
    %v3277 = vadd.f32 %v2892, %v3205
    %v3278 = vadd.f32 %v2893, %v3208
    %v3279 = vadd.f32 %v2894, %v3213
    %v3280 = vadd.f32 %v2895, %v3216
    %v3281 = vadd.f32 %v2896, %v3221
    %v3282 = vadd.f32 %v2897, %v3224
    %v3283 = vadd.f32 %v2898, %v3229
    %v3284 = vadd.f32 %v2899, %v3232
    %v3285 = vadd.f32 %v2900, %v3237
    %v3286 = vadd.f32 %v2901, %v3240
    %v3287 = vadd.f32 %v2902, %v3245
    %v3288 = vadd.f32 %v2903, %v3248
    %v3289 = vadd.f32 %v2904, %v3253
    %v3290 = vadd.f32 %v2905, %v3256
    %v3291 = vld [vmem:[%s1262] sm:$0xf]
    %v3292 = vld [vmem:[%s1262 + $0x4] sm:$0xf]
    %v3293 = vld [vmem:[%s1262 + $0x8] sm:$0x1]
    %v3294 = vld [vmem:[%s1262 + $0xc] sm:$0xf]
    %v3295 = vld [vmem:[%s1262 + $0x10] sm:$0xf]
    %v3296 = vld [vmem:[%s1262 + $0x14] sm:$0x1]
    %v3297 = vld [vmem:[%s1262 + $0x18] sm:$0xf]
    %v3298 = vld [vmem:[%s1262 + $0x1c] sm:$0xf]
    %v3299 = vld [vmem:[%s1262 + $0x20] sm:$0x1]
    %v3300 = vld [vmem:[%s1262 + $0x24] sm:$0xf]
    %v3301 = vld [vmem:[%s1262 + $0x28] sm:$0xf]
    %v3302 = vld [vmem:[%s1262 + $0x2c] sm:$0x1]
    %v3303 = vld [vmem:[%s1262 + $0x30] sm:$0xf]
    %v3304 = vld [vmem:[%s1262 + $0x34] sm:$0xf]
    %v3305 = vld [vmem:[%s1262 + $0x38] sm:$0x1]
    %v3306 = vld [vmem:[%s1262 + $0x3c] sm:$0xf]
    %v3307 = vld [vmem:[%s1262 + $0x40] sm:$0xf]
    %v3308 = vld [vmem:[%s1262 + $0x44] sm:$0x1]
    %v3309 = vld [vmem:[%s1262 + $0x48] sm:$0xf]
    %v3310 = vld [vmem:[%s1262 + $0x4c] sm:$0xf]
    %v3311 = vld [vmem:[%s1262 + $0x50] sm:$0x1]
    %v3312 = vld [vmem:[%s1262 + $0x54] sm:$0xf]
    %v3313 = vld [vmem:[%s1262 + $0x58] sm:$0xf]
    %v3314 = vld [vmem:[%s1262 + $0x5c] sm:$0x1]
    %v3315 = vld [vmem:[%s1262 + $0x60] sm:$0xf]
    %v3316 = vld [vmem:[%s1262 + $0x64] sm:$0xf]
    %v3317 = vld [vmem:[%s1262 + $0x68] sm:$0x1]
    %v3318 = vld [vmem:[%s1262 + $0x6c] sm:$0xf]
    %v3319 = vld [vmem:[%s1262 + $0x70] sm:$0xf]
    %v3320 = vld [vmem:[%s1262 + $0x74] sm:$0x1]
    %v3321 = vld [vmem:[%s1262 + $0x78] sm:$0xf]
    %v3322 = vld [vmem:[%s1262 + $0x7c] sm:$0xf]
    %v3323 = vld [vmem:[%s1262 + $0x80] sm:$0x1]
    %v3324 = vld [vmem:[%s1262 + $0x84] sm:$0xf]
    %v3325 = vld [vmem:[%s1262 + $0x88] sm:$0xf]
    %v3326 = vld [vmem:[%s1262 + $0x8c] sm:$0x1]
    %v3327 = vld [vmem:[%s1262 + $0x90] sm:$0xf]
    %v3328 = vld [vmem:[%s1262 + $0x94] sm:$0xf]
    %v3329 = vld [vmem:[%s1262 + $0x98] sm:$0x1]
    %v3330 = vld [vmem:[%s1262 + $0x9c] sm:$0xf]
    %v3331 = vld [vmem:[%s1262 + $0xa0] sm:$0xf]
    %v3332 = vld [vmem:[%s1262 + $0xa4] sm:$0x1]
    %v3333 = vld [vmem:[%s1262 + $0xa8] sm:$0xf]
    %v3334 = vld [vmem:[%s1262 + $0xac] sm:$0xf]
    %v3335 = vld [vmem:[%s1262 + $0xb0] sm:$0x1]
    %v3336 = vld [vmem:[%s1262 + $0xb4] sm:$0xf]
    %v3337 = vld [vmem:[%s1262 + $0xb8] sm:$0xf]
    %v3338 = vld [vmem:[%s1262 + $0xbc] sm:$0x1]
    %v3340 = vshrl.u32 %v3291, 16
    %v3342 = vrot.slane %v3340, 4
    %v3343 = vshll.u32 %v3291, 16
    %v3345 = vrot.slane %v3343, 5
    %v3346 = vor.u32 %v3342, %v3345
    %v3347 = vrot.slane %v3346, 4
    %v3349 = vshll.u32 %v3292, 16
    %v3351 = vrot.slane %v3349, 5
    %v3352 = vsel %vm1443, %v3347, %v3351
    %v3353 = vshrl.u32 %v3292, 16
    %v3355 = vrot.slane %v3353, 4
    %v3356 = vor.u32 %v3355, %v3351
    %v3357 = vrot.slane %v3356, 4
    %v3359 = vshll.u32 %v3293, 16
    %v3361 = vrot.slane %v3359, 5
    %v3362 = vsel %vm1443, %v3357, %v3361
    %v3364 = vshrl.u32 %v3294, 16
    %v3366 = vrot.slane %v3364, 4
    %v3367 = vshll.u32 %v3294, 16
    %v3369 = vrot.slane %v3367, 5
    %v3370 = vor.u32 %v3366, %v3369
    %v3371 = vrot.slane %v3370, 4
    %v3373 = vshll.u32 %v3295, 16
    %v3375 = vrot.slane %v3373, 5
    %v3376 = vsel %vm1443, %v3371, %v3375
    %v3377 = vshrl.u32 %v3295, 16
    %v3379 = vrot.slane %v3377, 4
    %v3380 = vor.u32 %v3379, %v3375
    %v3381 = vrot.slane %v3380, 4
    %v3383 = vshll.u32 %v3296, 16
    %v3385 = vrot.slane %v3383, 5
    %v3386 = vsel %vm1443, %v3381, %v3385
    %v3388 = vshrl.u32 %v3297, 16
    %v3390 = vrot.slane %v3388, 4
    %v3391 = vshll.u32 %v3297, 16
    %v3393 = vrot.slane %v3391, 5
    %v3394 = vor.u32 %v3390, %v3393
    %v3395 = vrot.slane %v3394, 4
    %v3397 = vshll.u32 %v3298, 16
    %v3399 = vrot.slane %v3397, 5
    %v3400 = vsel %vm1443, %v3395, %v3399
    %v3401 = vshrl.u32 %v3298, 16
    %v3403 = vrot.slane %v3401, 4
    %v3404 = vor.u32 %v3403, %v3399
    %v3405 = vrot.slane %v3404, 4
    %v3407 = vshll.u32 %v3299, 16
    %v3409 = vrot.slane %v3407, 5
    %v3410 = vsel %vm1443, %v3405, %v3409
    %v3412 = vshrl.u32 %v3300, 16
    %v3414 = vrot.slane %v3412, 4
    %v3415 = vshll.u32 %v3300, 16
    %v3417 = vrot.slane %v3415, 5
    %v3418 = vor.u32 %v3414, %v3417
    %v3419 = vrot.slane %v3418, 4
    %v3421 = vshll.u32 %v3301, 16
    %v3423 = vrot.slane %v3421, 5
    %v3424 = vsel %vm1443, %v3419, %v3423
    %v3425 = vshrl.u32 %v3301, 16
    %v3427 = vrot.slane %v3425, 4
    %v3428 = vor.u32 %v3427, %v3423
    %v3429 = vrot.slane %v3428, 4
    %v3431 = vshll.u32 %v3302, 16
    %v3433 = vrot.slane %v3431, 5
    %v3434 = vsel %vm1443, %v3429, %v3433
    %v3436 = vshrl.u32 %v3303, 16
    %v3438 = vrot.slane %v3436, 4
    %v3439 = vshll.u32 %v3303, 16
    %v3441 = vrot.slane %v3439, 5
    %v3442 = vor.u32 %v3438, %v3441
    %v3443 = vrot.slane %v3442, 4
    %v3445 = vshll.u32 %v3304, 16
    %v3447 = vrot.slane %v3445, 5
    %v3448 = vsel %vm1443, %v3443, %v3447
    %v3449 = vshrl.u32 %v3304, 16
    %v3451 = vrot.slane %v3449, 4
    %v3452 = vor.u32 %v3451, %v3447
    %v3453 = vrot.slane %v3452, 4
    %v3455 = vshll.u32 %v3305, 16
    %v3457 = vrot.slane %v3455, 5
    %v3458 = vsel %vm1443, %v3453, %v3457
    %v3460 = vshrl.u32 %v3306, 16
    %v3462 = vrot.slane %v3460, 4
    %v3463 = vshll.u32 %v3306, 16
    %v3465 = vrot.slane %v3463, 5
    %v3466 = vor.u32 %v3462, %v3465
    %v3467 = vrot.slane %v3466, 4
    %v3469 = vshll.u32 %v3307, 16
    %v3471 = vrot.slane %v3469, 5
    %v3472 = vsel %vm1443, %v3467, %v3471
    %v3473 = vshrl.u32 %v3307, 16
    %v3475 = vrot.slane %v3473, 4
    %v3476 = vor.u32 %v3475, %v3471
    %v3477 = vrot.slane %v3476, 4
    %v3479 = vshll.u32 %v3308, 16
    %v3481 = vrot.slane %v3479, 5
    %v3482 = vsel %vm1443, %v3477, %v3481
    %v3484 = vshrl.u32 %v3309, 16
    %v3486 = vrot.slane %v3484, 4
    %v3487 = vshll.u32 %v3309, 16
    %v3489 = vrot.slane %v3487, 5
    %v3490 = vor.u32 %v3486, %v3489
    %v3491 = vrot.slane %v3490, 4
    %v3493 = vshll.u32 %v3310, 16
    %v3495 = vrot.slane %v3493, 5
    %v3496 = vsel %vm1443, %v3491, %v3495
    %v3497 = vshrl.u32 %v3310, 16
    %v3499 = vrot.slane %v3497, 4
    %v3500 = vor.u32 %v3499, %v3495
    %v3501 = vrot.slane %v3500, 4
    %v3503 = vshll.u32 %v3311, 16
    %v3505 = vrot.slane %v3503, 5
    %v3506 = vsel %vm1443, %v3501, %v3505
    %v3508 = vshrl.u32 %v3312, 16
    %v3510 = vrot.slane %v3508, 4
    %v3511 = vshll.u32 %v3312, 16
    %v3513 = vrot.slane %v3511, 5
    %v3514 = vor.u32 %v3510, %v3513
    %v3515 = vrot.slane %v3514, 4
    %v3517 = vshll.u32 %v3313, 16
    %v3519 = vrot.slane %v3517, 5
    %v3520 = vsel %vm1443, %v3515, %v3519
    %v3521 = vshrl.u32 %v3313, 16
    %v3523 = vrot.slane %v3521, 4
    %v3524 = vor.u32 %v3523, %v3519
    %v3525 = vrot.slane %v3524, 4
    %v3527 = vshll.u32 %v3314, 16
    %v3529 = vrot.slane %v3527, 5
    %v3530 = vsel %vm1443, %v3525, %v3529
    %v3532 = vshrl.u32 %v3315, 16
    %v3534 = vrot.slane %v3532, 4
    %v3535 = vshll.u32 %v3315, 16
    %v3537 = vrot.slane %v3535, 5
    %v3538 = vor.u32 %v3534, %v3537
    %v3539 = vrot.slane %v3538, 4
    %v3541 = vshll.u32 %v3316, 16
    %v3543 = vrot.slane %v3541, 5
    %v3544 = vsel %vm1443, %v3539, %v3543
    %v3545 = vshrl.u32 %v3316, 16
    %v3547 = vrot.slane %v3545, 4
    %v3548 = vor.u32 %v3547, %v3543
    %v3549 = vrot.slane %v3548, 4
    %v3551 = vshll.u32 %v3317, 16
    %v3553 = vrot.slane %v3551, 5
    %v3554 = vsel %vm1443, %v3549, %v3553
    %v3556 = vshrl.u32 %v3318, 16
    %v3558 = vrot.slane %v3556, 4
    %v3559 = vshll.u32 %v3318, 16
    %v3561 = vrot.slane %v3559, 5
    %v3562 = vor.u32 %v3558, %v3561
    %v3563 = vrot.slane %v3562, 4
    %v3565 = vshll.u32 %v3319, 16
    %v3567 = vrot.slane %v3565, 5
    %v3568 = vsel %vm1443, %v3563, %v3567
    %v3569 = vshrl.u32 %v3319, 16
    %v3571 = vrot.slane %v3569, 4
    %v3572 = vor.u32 %v3571, %v3567
    %v3573 = vrot.slane %v3572, 4
    %v3575 = vshll.u32 %v3320, 16
    %v3577 = vrot.slane %v3575, 5
    %v3578 = vsel %vm1443, %v3573, %v3577
    %v3580 = vshrl.u32 %v3321, 16
    %v3582 = vrot.slane %v3580, 4
    %v3583 = vshll.u32 %v3321, 16
    %v3585 = vrot.slane %v3583, 5
    %v3586 = vor.u32 %v3582, %v3585
    %v3587 = vrot.slane %v3586, 4
    %v3589 = vshll.u32 %v3322, 16
    %v3591 = vrot.slane %v3589, 5
    %v3592 = vsel %vm1443, %v3587, %v3591
    %v3593 = vshrl.u32 %v3322, 16
    %v3595 = vrot.slane %v3593, 4
    %v3596 = vor.u32 %v3595, %v3591
    %v3597 = vrot.slane %v3596, 4
    %v3599 = vshll.u32 %v3323, 16
    %v3601 = vrot.slane %v3599, 5
    %v3602 = vsel %vm1443, %v3597, %v3601
    %v3604 = vshrl.u32 %v3324, 16
    %v3606 = vrot.slane %v3604, 4
    %v3607 = vshll.u32 %v3324, 16
    %v3609 = vrot.slane %v3607, 5
    %v3610 = vor.u32 %v3606, %v3609
    %v3611 = vrot.slane %v3610, 4
    %v3613 = vshll.u32 %v3325, 16
    %v3615 = vrot.slane %v3613, 5
    %v3616 = vsel %vm1443, %v3611, %v3615
    %v3617 = vshrl.u32 %v3325, 16
    %v3619 = vrot.slane %v3617, 4
    %v3620 = vor.u32 %v3619, %v3615
    %v3621 = vrot.slane %v3620, 4
    %v3623 = vshll.u32 %v3326, 16
    %v3625 = vrot.slane %v3623, 5
    %v3626 = vsel %vm1443, %v3621, %v3625
    %v3628 = vshrl.u32 %v3327, 16
    %v3630 = vrot.slane %v3628, 4
    %v3631 = vshll.u32 %v3327, 16
    %v3633 = vrot.slane %v3631, 5
    %v3634 = vor.u32 %v3630, %v3633
    %v3635 = vrot.slane %v3634, 4
    %v3637 = vshll.u32 %v3328, 16
    %v3639 = vrot.slane %v3637, 5
    %v3640 = vsel %vm1443, %v3635, %v3639
    %v3641 = vshrl.u32 %v3328, 16
    %v3643 = vrot.slane %v3641, 4
    %v3644 = vor.u32 %v3643, %v3639
    %v3645 = vrot.slane %v3644, 4
    %v3647 = vshll.u32 %v3329, 16
    %v3649 = vrot.slane %v3647, 5
    %v3650 = vsel %vm1443, %v3645, %v3649
    %v3652 = vshrl.u32 %v3330, 16
    %v3654 = vrot.slane %v3652, 4
    %v3655 = vshll.u32 %v3330, 16
    %v3657 = vrot.slane %v3655, 5
    %v3658 = vor.u32 %v3654, %v3657
    %v3659 = vrot.slane %v3658, 4
    %v3661 = vshll.u32 %v3331, 16
    %v3663 = vrot.slane %v3661, 5
    %v3664 = vsel %vm1443, %v3659, %v3663
    %v3665 = vshrl.u32 %v3331, 16
    %v3667 = vrot.slane %v3665, 4
    %v3668 = vor.u32 %v3667, %v3663
    %v3669 = vrot.slane %v3668, 4
    %v3671 = vshll.u32 %v3332, 16
    %v3673 = vrot.slane %v3671, 5
    %v3674 = vsel %vm1443, %v3669, %v3673
    %v3676 = vshrl.u32 %v3333, 16
    %v3678 = vrot.slane %v3676, 4
    %v3679 = vshll.u32 %v3333, 16
    %v3681 = vrot.slane %v3679, 5
    %v3682 = vor.u32 %v3678, %v3681
    %v3683 = vrot.slane %v3682, 4
    %v3685 = vshll.u32 %v3334, 16
    %v3687 = vrot.slane %v3685, 5
    %v3688 = vsel %vm1443, %v3683, %v3687
    %v3689 = vshrl.u32 %v3334, 16
    %v3691 = vrot.slane %v3689, 4
    %v3692 = vor.u32 %v3691, %v3687
    %v3693 = vrot.slane %v3692, 4
    %v3695 = vshll.u32 %v3335, 16
    %v3697 = vrot.slane %v3695, 5
    %v3698 = vsel %vm1443, %v3693, %v3697
    %v3700 = vshrl.u32 %v3336, 16
    %v3702 = vrot.slane %v3700, 4
    %v3703 = vshll.u32 %v3336, 16
    %v3705 = vrot.slane %v3703, 5
    %v3706 = vor.u32 %v3702, %v3705
    %v3707 = vrot.slane %v3706, 4
    %v3709 = vshll.u32 %v3337, 16
    %v3711 = vrot.slane %v3709, 5
    %v3712 = vsel %vm1443, %v3707, %v3711
    %v3713 = vshrl.u32 %v3337, 16
    %v3715 = vrot.slane %v3713, 4
    %v3716 = vor.u32 %v3715, %v3711
    %v3717 = vrot.slane %v3716, 4
    %v3719 = vshll.u32 %v3338, 16
    %v3721 = vrot.slane %v3719, 5
    %v3722 = vsel %vm1443, %v3717, %v3721
    %v3723 = vld [vmem:[%s3 + $0x100] sm:$0xf]
    %v3724 = vld [vmem:[%s3 + $0x104] sm:$0xf]
    %v3725 = vld [vmem:[%s3 + $0x108] sm:$0xf]
    %v3726 = vld [vmem:[%s3 + $0x10c] sm:$0xf]
    %v3727 = vld [vmem:[%s3 + $0x110] sm:$0xf]
    %v3728 = vld [vmem:[%s3 + $0x114] sm:$0xf]
    %v3729 = vld [vmem:[%s3 + $0x118] sm:$0xf]
    %v3730 = vld [vmem:[%s3 + $0x11c] sm:$0xf]
    %v3731 = vld [vmem:[%s3 + $0x120] sm:$0xf]
    %v3732 = vld [vmem:[%s3 + $0x124] sm:$0xf]
    %v3733 = vld [vmem:[%s3 + $0x128] sm:$0xf]
    %v3734 = vld [vmem:[%s3 + $0x12c] sm:$0xf]
    %v3735 = vld [vmem:[%s3 + $0x130] sm:$0xf]
    %v3736 = vld [vmem:[%s3 + $0x134] sm:$0xf]
    %v3737 = vld [vmem:[%s3 + $0x138] sm:$0xf]
    %v3738 = vld [vmem:[%s3 + $0x13c] sm:$0xf]
    %v3739 = vunpack.c.l.b16 %v3352
    %v3740 = vunpack.c.l.b16 %v3362
    %v3741 = vunpack.c.l.b16 %v3376
    %v3742 = vunpack.c.l.b16 %v3386
    %v3743 = vunpack.c.l.b16 %v3400
    %v3744 = vunpack.c.l.b16 %v3410
    %v3745 = vunpack.c.l.b16 %v3424
    %v3746 = vunpack.c.l.b16 %v3434
    %v3747 = vunpack.c.l.b16 %v3448
    %v3748 = vunpack.c.l.b16 %v3458
    %v3749 = vunpack.c.l.b16 %v3472
    %v3750 = vunpack.c.l.b16 %v3482
    %v3751 = vunpack.c.l.b16 %v3496
    %v3752 = vunpack.c.l.b16 %v3506
    %v3753 = vunpack.c.l.b16 %v3520
    %v3754 = vunpack.c.l.b16 %v3530
    %v3755 = vunpack.c.l.b16 %v3544
    %v3756 = vunpack.c.l.b16 %v3554
    %v3757 = vunpack.c.l.b16 %v3568
    %v3758 = vunpack.c.l.b16 %v3578
    %v3759 = vunpack.c.l.b16 %v3592
    %v3760 = vunpack.c.l.b16 %v3602
    %v3761 = vunpack.c.l.b16 %v3616
    %v3762 = vunpack.c.l.b16 %v3626
    %v3763 = vunpack.c.l.b16 %v3640
    %v3764 = vunpack.c.l.b16 %v3650
    %v3765 = vunpack.c.l.b16 %v3664
    %v3766 = vunpack.c.l.b16 %v3674
    %v3767 = vunpack.c.l.b16 %v3688
    %v3768 = vunpack.c.l.b16 %v3698
    %v3769 = vunpack.c.l.b16 %v3712
    %v3770 = vunpack.c.l.b16 %v3722
    %v3771 = vpack.c.b16 %v3740, %v3739
    %v3772 = vpack.c.b16 %v3742, %v3741
    %v3773 = vpack.c.b16 %v3744, %v3743
    %v3774 = vpack.c.b16 %v3746, %v3745
    %v3775 = vpack.c.b16 %v3748, %v3747
    %v3776 = vpack.c.b16 %v3750, %v3749
    %v3777 = vpack.c.b16 %v3752, %v3751
    %v3778 = vpack.c.b16 %v3754, %v3753
    %v3779 = vpack.c.b16 %v3756, %v3755
    %v3780 = vpack.c.b16 %v3758, %v3757
    %v3781 = vpack.c.b16 %v3760, %v3759
    %v3782 = vpack.c.b16 %v3762, %v3761
    %v3783 = vpack.c.b16 %v3764, %v3763
    %v3784 = vpack.c.b16 %v3766, %v3765
    %v3785 = vpack.c.b16 %v3768, %v3767
    %v3786 = vpack.c.b16 %v3770, %v3769
    %v3819 = vunpack.c.l.b16 %v3723
    %v3820 = vunpack.c.l.b16 %v3724
    %v3821 = vunpack.c.l.b16 %v3725
    %v3822 = vunpack.c.l.b16 %v3726
    %v3823 = vunpack.c.l.b16 %v3727
    %v3824 = vunpack.c.l.b16 %v3728
    %v3825 = vunpack.c.l.b16 %v3729
    %v3826 = vunpack.c.l.b16 %v3730
    %v3827 = vunpack.c.l.b16 %v3731
    %v3828 = vunpack.c.l.b16 %v3732
    %v3829 = vunpack.c.l.b16 %v3733
    %v3830 = vunpack.c.l.b16 %v3734
    %v3831 = vunpack.c.l.b16 %v3735
    %v3832 = vunpack.c.l.b16 %v3736
    %v3833 = vunpack.c.l.b16 %v3737
    %v3834 = vunpack.c.l.b16 %v3738
    %v3835 = vpack.c.b16 %v3820, %v3819
    %v3836 = vpack.c.b16 %v3822, %v3821
    %v3837 = vpack.c.b16 %v3824, %v3823
    %v3838 = vpack.c.b16 %v3826, %v3825
    %v3839 = vpack.c.b16 %v3828, %v3827
    %v3840 = vpack.c.b16 %v3830, %v3829
    %v3841 = vpack.c.b16 %v3832, %v3831
    %v3842 = vpack.c.b16 %v3834, %v3833
    %3851 = vmatprep.subr.bf16.mxu0 0
    %3852 = vmatpush1.bf16.msra.mxu0 %v3835
    %3853 = vmatprep.subr.bf16.mxu0 0
    %3854 = vmatpush1.bf16.msra.mxu0 %v3836
    %3855 = vmatprep.subr.bf16.mxu0 0
    %3856 = vmatpush1.bf16.msra.mxu0 %v3837
    %3857 = vmatprep.subr.bf16.mxu0 0
    %3858 = vmatpush1.bf16.msra.mxu0 %v3838
    %3859 = vmatprep.subr.bf16.mxu0 0
    %3860 = vmatpush1.bf16.msra.mxu0 %v3839
    %3861 = vmatprep.subr.bf16.mxu0 0
    %3862 = vmatpush1.bf16.msra.mxu0 %v3840
    %3863 = vmatprep.subr.bf16.mxu0 0
    %3864 = vmatpush1.bf16.msra.mxu0 %v3841
    %3865 = vmatprep.subr.bf16.mxu0 0
    %3866 = vmatpush1.bf16.msra.mxu0 %v3842
    %3867 = vmatprep.subr.bf16.mxu0 0
    %3868 = vmatpush1.bf16.msra.mxu0 0
    %3869 = vmatprep.subr.bf16.mxu0 0
    %3870 = vmatpush1.bf16.msra.mxu0 0
    %3871 = vmatprep.subr.bf16.mxu0 0
    %3872 = vmatpush1.bf16.msra.mxu0 0
    %3873 = vmatprep.subr.bf16.mxu0 0
    %3874 = vmatpush1.bf16.msra.mxu0 0
    %3875 = vmatprep.subr.bf16.mxu0 0
    %3876 = vmatpush1.bf16.msra.mxu0 0
    %3877 = vmatprep.subr.bf16.mxu0 0
    %3878 = vmatpush1.bf16.msra.mxu0 0
    %3879 = vmatprep.subr.bf16.mxu0 0
    %3880 = vmatpush1.bf16.msra.mxu0 0
    %3881 = vmatprep.subr.bf16.mxu0 0
    %3882 = vmatpush1.bf16.msra.mxu0 0
    %3883 = vmatprep.mubr.bf16.mxu0 0
    %3884 = vmatmul.mubr.bf16.gmra.mrb[0].mxu0 %v3771
    %v3885 = vpop.f32.mrb[0].mxu0
    %v3886 = vadd.f32 0.0, %v3885
    %v3887 = vpop.f32.mrb[0].mxu0
    %v3888 = vpop.f32.mrb[0].mxu0
    %v3889 = vadd.f32 0.0, %v3888
    %v3890 = vpop.f32.mrb[0].mxu0
    %3891 = vmatprep.mubr.bf16.mxu0 0
    %3892 = vmatmul.mubr.bf16.gmra.mrb[0].mxu0 %v3772
    %v3893 = vpop.f32.mrb[0].mxu0
    %v3894 = vadd.f32 0.0, %v3893
    %v3895 = vpop.f32.mrb[0].mxu0
    %v3896 = vpop.f32.mrb[0].mxu0
    %v3897 = vadd.f32 0.0, %v3896
    %v3898 = vpop.f32.mrb[0].mxu0
    %3899 = vmatprep.mubr.bf16.mxu0 0
    %3900 = vmatmul.mubr.bf16.gmra.mrb[0].mxu0 %v3773
    %v3901 = vpop.f32.mrb[0].mxu0
    %v3902 = vadd.f32 0.0, %v3901
    %v3903 = vpop.f32.mrb[0].mxu0
    %v3904 = vpop.f32.mrb[0].mxu0
    %v3905 = vadd.f32 0.0, %v3904
    %v3906 = vpop.f32.mrb[0].mxu0
    %3907 = vmatprep.mubr.bf16.mxu0 0
    %3908 = vmatmul.mubr.bf16.gmra.mrb[0].mxu0 %v3774
    %v3909 = vpop.f32.mrb[0].mxu0
    %v3910 = vadd.f32 0.0, %v3909
    %v3911 = vpop.f32.mrb[0].mxu0
    %v3912 = vpop.f32.mrb[0].mxu0
    %v3913 = vadd.f32 0.0, %v3912
    %v3914 = vpop.f32.mrb[0].mxu0
    %3915 = vmatprep.mubr.bf16.mxu0 0
    %3916 = vmatmul.mubr.bf16.gmra.mrb[0].mxu0 %v3775
    %v3917 = vpop.f32.mrb[0].mxu0
    %v3918 = vadd.f32 0.0, %v3917
    %v3919 = vpop.f32.mrb[0].mxu0
    %v3920 = vpop.f32.mrb[0].mxu0
    %v3921 = vadd.f32 0.0, %v3920
    %v3922 = vpop.f32.mrb[0].mxu0
    %3923 = vmatprep.mubr.bf16.mxu0 0
    %3924 = vmatmul.mubr.bf16.gmra.mrb[0].mxu0 %v3776
    %v3925 = vpop.f32.mrb[0].mxu0
    %v3926 = vadd.f32 0.0, %v3925
    %v3927 = vpop.f32.mrb[0].mxu0
    %v3928 = vpop.f32.mrb[0].mxu0
    %v3929 = vadd.f32 0.0, %v3928
    %v3930 = vpop.f32.mrb[0].mxu0
    %3931 = vmatprep.mubr.bf16.mxu0 0
    %3932 = vmatmul.mubr.bf16.gmra.mrb[0].mxu0 %v3777
    %v3933 = vpop.f32.mrb[0].mxu0
    %v3934 = vadd.f32 0.0, %v3933
    %v3935 = vpop.f32.mrb[0].mxu0
    %v3936 = vpop.f32.mrb[0].mxu0
    %v3937 = vadd.f32 0.0, %v3936
    %v3938 = vpop.f32.mrb[0].mxu0
    %3939 = vmatprep.mubr.bf16.mxu0 0
    %3940 = vmatmul.mubr.bf16.gmra.mrb[0].mxu0 %v3778
    %v3941 = vpop.f32.mrb[0].mxu0
    %v3942 = vadd.f32 0.0, %v3941
    %v3943 = vpop.f32.mrb[0].mxu0
    %v3944 = vpop.f32.mrb[0].mxu0
    %v3945 = vadd.f32 0.0, %v3944
    %v3946 = vpop.f32.mrb[0].mxu0
    %3947 = vmatprep.mubr.bf16.mxu0 0
    %3948 = vmatmul.mubr.bf16.gmra.mrb[0].mxu0 %v3779
    %v3949 = vpop.f32.mrb[0].mxu0
    %v3950 = vadd.f32 0.0, %v3949
    %v3951 = vpop.f32.mrb[0].mxu0
    %v3952 = vpop.f32.mrb[0].mxu0
    %v3953 = vadd.f32 0.0, %v3952
    %v3954 = vpop.f32.mrb[0].mxu0
    %3955 = vmatprep.mubr.bf16.mxu0 0
    %3956 = vmatmul.mubr.bf16.gmra.mrb[0].mxu0 %v3780
    %v3957 = vpop.f32.mrb[0].mxu0
    %v3958 = vadd.f32 0.0, %v3957
    %v3959 = vpop.f32.mrb[0].mxu0
    %v3960 = vpop.f32.mrb[0].mxu0
    %v3961 = vadd.f32 0.0, %v3960
    %v3962 = vpop.f32.mrb[0].mxu0
    %3963 = vmatprep.mubr.bf16.mxu0 0
    %3964 = vmatmul.mubr.bf16.gmra.mrb[0].mxu0 %v3781
    %v3965 = vpop.f32.mrb[0].mxu0
    %v3966 = vadd.f32 0.0, %v3965
    %v3967 = vpop.f32.mrb[0].mxu0
    %v3968 = vpop.f32.mrb[0].mxu0
    %v3969 = vadd.f32 0.0, %v3968
    %v3970 = vpop.f32.mrb[0].mxu0
    %3971 = vmatprep.mubr.bf16.mxu0 0
    %3972 = vmatmul.mubr.bf16.gmra.mrb[0].mxu0 %v3782
    %v3973 = vpop.f32.mrb[0].mxu0
    %v3974 = vadd.f32 0.0, %v3973
    %v3975 = vpop.f32.mrb[0].mxu0
    %v3976 = vpop.f32.mrb[0].mxu0
    %v3977 = vadd.f32 0.0, %v3976
    %v3978 = vpop.f32.mrb[0].mxu0
    %3979 = vmatprep.mubr.bf16.mxu0 0
    %3980 = vmatmul.mubr.bf16.gmra.mrb[0].mxu0 %v3783
    %v3981 = vpop.f32.mrb[0].mxu0
    %v3982 = vadd.f32 0.0, %v3981
    %v3983 = vpop.f32.mrb[0].mxu0
    %v3984 = vpop.f32.mrb[0].mxu0
    %v3985 = vadd.f32 0.0, %v3984
    %v3986 = vpop.f32.mrb[0].mxu0
    %3987 = vmatprep.mubr.bf16.mxu0 0
    %3988 = vmatmul.mubr.bf16.gmra.mrb[0].mxu0 %v3784
    %v3989 = vpop.f32.mrb[0].mxu0
    %v3990 = vadd.f32 0.0, %v3989
    %v3991 = vpop.f32.mrb[0].mxu0
    %v3992 = vpop.f32.mrb[0].mxu0
    %v3993 = vadd.f32 0.0, %v3992
    %v3994 = vpop.f32.mrb[0].mxu0
    %3995 = vmatprep.mubr.bf16.mxu0 0
    %3996 = vmatmul.mubr.bf16.gmra.mrb[0].mxu0 %v3785
    %v3997 = vpop.f32.mrb[0].mxu0
    %v3998 = vadd.f32 0.0, %v3997
    %v3999 = vpop.f32.mrb[0].mxu0
    %v4000 = vpop.f32.mrb[0].mxu0
    %v4001 = vadd.f32 0.0, %v4000
    %v4002 = vpop.f32.mrb[0].mxu0
    %4003 = vmatprep.mubr.bf16.mxu0 0
    %4004 = vmatmul.mubr.bf16.gmra.mrb[0].mxu0 %v3786
    %v4005 = vpop.f32.mrb[0].mxu0
    %v4006 = vadd.f32 0.0, %v4005
    %v4007 = vpop.f32.mrb[0].mxu0
    %v4008 = vpop.f32.mrb[0].mxu0
    %v4009 = vadd.f32 0.0, %v4008
    %v4010 = vpop.f32.mrb[0].mxu0
    %4011 = vdwg.mxu0
    %v4012 = vadd.f32 %v3259, %v3886
    %v4013 = vadd.f32 %v3260, %v3889
    %v4014 = vadd.f32 %v3261, %v3894
    %v4015 = vadd.f32 %v3262, %v3897
    %v4016 = vadd.f32 %v3263, %v3902
    %v4017 = vadd.f32 %v3264, %v3905
    %v4018 = vadd.f32 %v3265, %v3910
    %v4019 = vadd.f32 %v3266, %v3913
    %v4020 = vadd.f32 %v3267, %v3918
    %v4021 = vadd.f32 %v3268, %v3921
    %v4022 = vadd.f32 %v3269, %v3926
    %v4023 = vadd.f32 %v3270, %v3929
    %v4024 = vadd.f32 %v3271, %v3934
    %v4025 = vadd.f32 %v3272, %v3937
    %v4026 = vadd.f32 %v3273, %v3942
    %v4027 = vadd.f32 %v3274, %v3945
    %v4028 = vadd.f32 %v3275, %v3950
    %v4029 = vadd.f32 %v3276, %v3953
    %v4030 = vadd.f32 %v3277, %v3958
    %v4031 = vadd.f32 %v3278, %v3961
    %v4032 = vadd.f32 %v3279, %v3966
    %v4033 = vadd.f32 %v3280, %v3969
    %v4034 = vadd.f32 %v3281, %v3974
    %v4035 = vadd.f32 %v3282, %v3977
    %v4036 = vadd.f32 %v3283, %v3982
    %v4037 = vadd.f32 %v3284, %v3985
    %v4038 = vadd.f32 %v3285, %v3990
    %v4039 = vadd.f32 %v3286, %v3993
    %v4040 = vadd.f32 %v3287, %v3998
    %v4041 = vadd.f32 %v3288, %v4001
    %v4042 = vadd.f32 %v3289, %v4006
    %v4043 = vadd.f32 %v3290, %v4009
    %v4044 = vld [vmem:[%s1262] sm:$0xe]
    %v4045 = vld [vmem:[%s1262 + $0xc] sm:$0xe]
    %v4046 = vld [vmem:[%s1262 + $0x18] sm:$0xe]
    %v4047 = vld [vmem:[%s1262 + $0x24] sm:$0xe]
    %v4048 = vld [vmem:[%s1262 + $0x30] sm:$0xe]
    %v4049 = vld [vmem:[%s1262 + $0x3c] sm:$0xe]
    %v4050 = vld [vmem:[%s1262 + $0x48] sm:$0xe]
    %v4051 = vld [vmem:[%s1262 + $0x54] sm:$0xe]
    %v4052 = vld [vmem:[%s1262 + $0x60] sm:$0xe]
    %v4053 = vld [vmem:[%s1262 + $0x6c] sm:$0xe]
    %v4054 = vld [vmem:[%s1262 + $0x78] sm:$0xe]
    %v4055 = vld [vmem:[%s1262 + $0x84] sm:$0xe]
    %v4056 = vld [vmem:[%s1262 + $0x90] sm:$0xe]
    %v4057 = vld [vmem:[%s1262 + $0x9c] sm:$0xe]
    %v4058 = vld [vmem:[%s1262 + $0xa8] sm:$0xe]
    %v4059 = vld [vmem:[%s1262 + $0xb4] sm:$0xe]
    %v4108 = vrot.slane %v4044, 5
    %v4109 = vrot.slane %v4108, 4
    %v4110 = vrot.slane %v3292, 5
    %v4111 = vsel %vm2472, %v4109, %v4110
    %v4112 = vrot.slane %v4110, 4
    %v4113 = vrot.slane %v3293, 5
    %v4114 = vsel %vm2472, %v4112, %v4113
    %v4115 = vrot.slane %v4045, 5
    %v4116 = vrot.slane %v4115, 4
    %v4117 = vrot.slane %v3295, 5
    %v4118 = vsel %vm2472, %v4116, %v4117
    %v4119 = vrot.slane %v4117, 4
    %v4120 = vrot.slane %v3296, 5
    %v4121 = vsel %vm2472, %v4119, %v4120
    %v4122 = vrot.slane %v4046, 5
    %v4123 = vrot.slane %v4122, 4
    %v4124 = vrot.slane %v3298, 5
    %v4125 = vsel %vm2472, %v4123, %v4124
    %v4126 = vrot.slane %v4124, 4
    %v4127 = vrot.slane %v3299, 5
    %v4128 = vsel %vm2472, %v4126, %v4127
    %v4129 = vrot.slane %v4047, 5
    %v4130 = vrot.slane %v4129, 4
    %v4131 = vrot.slane %v3301, 5
    %v4132 = vsel %vm2472, %v4130, %v4131
    %v4133 = vrot.slane %v4131, 4
    %v4134 = vrot.slane %v3302, 5
    %v4135 = vsel %vm2472, %v4133, %v4134
    %v4136 = vrot.slane %v4048, 5
    %v4137 = vrot.slane %v4136, 4
    %v4138 = vrot.slane %v3304, 5
    %v4139 = vsel %vm2472, %v4137, %v4138
    %v4140 = vrot.slane %v4138, 4
    %v4141 = vrot.slane %v3305, 5
    %v4142 = vsel %vm2472, %v4140, %v4141
    %v4143 = vrot.slane %v4049, 5
    %v4144 = vrot.slane %v4143, 4
    %v4145 = vrot.slane %v3307, 5
    %v4146 = vsel %vm2472, %v4144, %v4145
    %v4147 = vrot.slane %v4145, 4
    %v4148 = vrot.slane %v3308, 5
    %v4149 = vsel %vm2472, %v4147, %v4148
    %v4150 = vrot.slane %v4050, 5
    %v4151 = vrot.slane %v4150, 4
    %v4152 = vrot.slane %v3310, 5
    %v4153 = vsel %vm2472, %v4151, %v4152
    %v4154 = vrot.slane %v4152, 4
    %v4155 = vrot.slane %v3311, 5
    %v4156 = vsel %vm2472, %v4154, %v4155
    %v4157 = vrot.slane %v4051, 5
    %v4158 = vrot.slane %v4157, 4
    %v4159 = vrot.slane %v3313, 5
    %v4160 = vsel %vm2472, %v4158, %v4159
    %v4161 = vrot.slane %v4159, 4
    %v4162 = vrot.slane %v3314, 5
    %v4163 = vsel %vm2472, %v4161, %v4162
    %v4164 = vrot.slane %v4052, 5
    %v4165 = vrot.slane %v4164, 4
    %v4166 = vrot.slane %v3316, 5
    %v4167 = vsel %vm2472, %v4165, %v4166
    %v4168 = vrot.slane %v4166, 4
    %v4169 = vrot.slane %v3317, 5
    %v4170 = vsel %vm2472, %v4168, %v4169
    %v4171 = vrot.slane %v4053, 5
    %v4172 = vrot.slane %v4171, 4
    %v4173 = vrot.slane %v3319, 5
    %v4174 = vsel %vm2472, %v4172, %v4173
    %v4175 = vrot.slane %v4173, 4
    %v4176 = vrot.slane %v3320, 5
    %v4177 = vsel %vm2472, %v4175, %v4176
    %v4178 = vrot.slane %v4054, 5
    %v4179 = vrot.slane %v4178, 4
    %v4180 = vrot.slane %v3322, 5
    %v4181 = vsel %vm2472, %v4179, %v4180
    %v4182 = vrot.slane %v4180, 4
    %v4183 = vrot.slane %v3323, 5
    %v4184 = vsel %vm2472, %v4182, %v4183
    %v4185 = vrot.slane %v4055, 5
    %v4186 = vrot.slane %v4185, 4
    %v4187 = vrot.slane %v3325, 5
    %v4188 = vsel %vm2472, %v4186, %v4187
    %v4189 = vrot.slane %v4187, 4
    %v4190 = vrot.slane %v3326, 5
    %v4191 = vsel %vm2472, %v4189, %v4190
    %v4192 = vrot.slane %v4056, 5
    %v4193 = vrot.slane %v4192, 4
    %v4194 = vrot.slane %v3328, 5
    %v4195 = vsel %vm2472, %v4193, %v4194
    %v4196 = vrot.slane %v4194, 4
    %v4197 = vrot.slane %v3329, 5
    %v4198 = vsel %vm2472, %v4196, %v4197
    %v4199 = vrot.slane %v4057, 5
    %v4200 = vrot.slane %v4199, 4
    %v4201 = vrot.slane %v3331, 5
    %v4202 = vsel %vm2472, %v4200, %v4201
    %v4203 = vrot.slane %v4201, 4
    %v4204 = vrot.slane %v3332, 5
    %v4205 = vsel %vm2472, %v4203, %v4204
    %v4206 = vrot.slane %v4058, 5
    %v4207 = vrot.slane %v4206, 4
    %v4208 = vrot.slane %v3334, 5
    %v4209 = vsel %vm2472, %v4207, %v4208
    %v4210 = vrot.slane %v4208, 4
    %v4211 = vrot.slane %v3335, 5
    %v4212 = vsel %vm2472, %v4210, %v4211
    %v4213 = vrot.slane %v4059, 5
    %v4214 = vrot.slane %v4213, 4
    %v4215 = vrot.slane %v3337, 5
    %v4216 = vsel %vm2472, %v4214, %v4215
    %v4217 = vrot.slane %v4215, 4
    %v4218 = vrot.slane %v3338, 5
    %v4219 = vsel %vm2472, %v4217, %v4218
    %v4220 = vld [vmem:[%s3 + $0x140] sm:$0xf]
    %v4221 = vld [vmem:[%s3 + $0x144] sm:$0xf]
    %v4222 = vld [vmem:[%s3 + $0x148] sm:$0xf]
    %v4223 = vld [vmem:[%s3 + $0x14c] sm:$0xf]
    %v4224 = vld [vmem:[%s3 + $0x150] sm:$0xf]
    %v4225 = vld [vmem:[%s3 + $0x154] sm:$0xf]
    %v4226 = vld [vmem:[%s3 + $0x158] sm:$0xf]
    %v4227 = vld [vmem:[%s3 + $0x15c] sm:$0xf]
    %v4228 = vld [vmem:[%s3 + $0x160] sm:$0xf]
    %v4229 = vld [vmem:[%s3 + $0x164] sm:$0xf]
    %v4230 = vld [vmem:[%s3 + $0x168] sm:$0xf]
    %v4231 = vld [vmem:[%s3 + $0x16c] sm:$0xf]
    %v4232 = vld [vmem:[%s3 + $0x170] sm:$0xf]
    %v4233 = vld [vmem:[%s3 + $0x174] sm:$0xf]
    %v4234 = vld [vmem:[%s3 + $0x178] sm:$0xf]
    %v4235 = vld [vmem:[%s3 + $0x17c] sm:$0xf]
    %v4236 = vunpack.c.l.b16 %v4111
    %v4237 = vunpack.c.l.b16 %v4114
    %v4238 = vunpack.c.l.b16 %v4118
    %v4239 = vunpack.c.l.b16 %v4121
    %v4240 = vunpack.c.l.b16 %v4125
    %v4241 = vunpack.c.l.b16 %v4128
    %v4242 = vunpack.c.l.b16 %v4132
    %v4243 = vunpack.c.l.b16 %v4135
    %v4244 = vunpack.c.l.b16 %v4139
    %v4245 = vunpack.c.l.b16 %v4142
    %v4246 = vunpack.c.l.b16 %v4146
    %v4247 = vunpack.c.l.b16 %v4149
    %v4248 = vunpack.c.l.b16 %v4153
    %v4249 = vunpack.c.l.b16 %v4156
    %v4250 = vunpack.c.l.b16 %v4160
    %v4251 = vunpack.c.l.b16 %v4163
    %v4252 = vunpack.c.l.b16 %v4167
    %v4253 = vunpack.c.l.b16 %v4170
    %v4254 = vunpack.c.l.b16 %v4174
    %v4255 = vunpack.c.l.b16 %v4177
    %v4256 = vunpack.c.l.b16 %v4181
    %v4257 = vunpack.c.l.b16 %v4184
    %v4258 = vunpack.c.l.b16 %v4188
    %v4259 = vunpack.c.l.b16 %v4191
    %v4260 = vunpack.c.l.b16 %v4195
    %v4261 = vunpack.c.l.b16 %v4198
    %v4262 = vunpack.c.l.b16 %v4202
    %v4263 = vunpack.c.l.b16 %v4205
    %v4264 = vunpack.c.l.b16 %v4209
    %v4265 = vunpack.c.l.b16 %v4212
    %v4266 = vunpack.c.l.b16 %v4216
    %v4267 = vunpack.c.l.b16 %v4219
    %v4268 = vpack.c.b16 %v4237, %v4236
    %v4269 = vpack.c.b16 %v4239, %v4238
    %v4270 = vpack.c.b16 %v4241, %v4240
    %v4271 = vpack.c.b16 %v4243, %v4242
    %v4272 = vpack.c.b16 %v4245, %v4244
    %v4273 = vpack.c.b16 %v4247, %v4246
    %v4274 = vpack.c.b16 %v4249, %v4248
    %v4275 = vpack.c.b16 %v4251, %v4250
    %v4276 = vpack.c.b16 %v4253, %v4252
    %v4277 = vpack.c.b16 %v4255, %v4254
    %v4278 = vpack.c.b16 %v4257, %v4256
    %v4279 = vpack.c.b16 %v4259, %v4258
    %v4280 = vpack.c.b16 %v4261, %v4260
    %v4281 = vpack.c.b16 %v4263, %v4262
    %v4282 = vpack.c.b16 %v4265, %v4264
    %v4283 = vpack.c.b16 %v4267, %v4266
    %v4316 = vunpack.c.l.b16 %v4220
    %v4317 = vunpack.c.l.b16 %v4221
    %v4318 = vunpack.c.l.b16 %v4222
    %v4319 = vunpack.c.l.b16 %v4223
    %v4320 = vunpack.c.l.b16 %v4224
    %v4321 = vunpack.c.l.b16 %v4225
    %v4322 = vunpack.c.l.b16 %v4226
    %v4323 = vunpack.c.l.b16 %v4227
    %v4324 = vunpack.c.l.b16 %v4228
    %v4325 = vunpack.c.l.b16 %v4229
    %v4326 = vunpack.c.l.b16 %v4230
    %v4327 = vunpack.c.l.b16 %v4231
    %v4328 = vunpack.c.l.b16 %v4232
    %v4329 = vunpack.c.l.b16 %v4233
    %v4330 = vunpack.c.l.b16 %v4234
    %v4331 = vunpack.c.l.b16 %v4235
    %v4332 = vpack.c.b16 %v4317, %v4316
    %v4333 = vpack.c.b16 %v4319, %v4318
    %v4334 = vpack.c.b16 %v4321, %v4320
    %v4335 = vpack.c.b16 %v4323, %v4322
    %v4336 = vpack.c.b16 %v4325, %v4324
    %v4337 = vpack.c.b16 %v4327, %v4326
    %v4338 = vpack.c.b16 %v4329, %v4328
    %v4339 = vpack.c.b16 %v4331, %v4330
    %4348 = vmatprep.subr.bf16.mxu0 0
    %4349 = vmatpush1.bf16.msra.mxu0 %v4332
    %4350 = vmatprep.subr.bf16.mxu0 0
    %4351 = vmatpush1.bf16.msra.mxu0 %v4333
    %4352 = vmatprep.subr.bf16.mxu0 0
    %4353 = vmatpush1.bf16.msra.mxu0 %v4334
    %4354 = vmatprep.subr.bf16.mxu0 0
    %4355 = vmatpush1.bf16.msra.mxu0 %v4335
    %4356 = vmatprep.subr.bf16.mxu0 0
    %4357 = vmatpush1.bf16.msra.mxu0 %v4336
    %4358 = vmatprep.subr.bf16.mxu0 0
    %4359 = vmatpush1.bf16.msra.mxu0 %v4337
    %4360 = vmatprep.subr.bf16.mxu0 0
    %4361 = vmatpush1.bf16.msra.mxu0 %v4338
    %4362 = vmatprep.subr.bf16.mxu0 0
    %4363 = vmatpush1.bf16.msra.mxu0 %v4339
    %4364 = vmatprep.subr.bf16.mxu0 0
    %4365 = vmatpush1.bf16.msra.mxu0 0
    %4366 = vmatprep.subr.bf16.mxu0 0
    %4367 = vmatpush1.bf16.msra.mxu0 0
    %4368 = vmatprep.subr.bf16.mxu0 0
    %4369 = vmatpush1.bf16.msra.mxu0 0
    %4370 = vmatprep.subr.bf16.mxu0 0
    %4371 = vmatpush1.bf16.msra.mxu0 0
    %4372 = vmatprep.subr.bf16.mxu0 0
    %4373 = vmatpush1.bf16.msra.mxu0 0
    %4374 = vmatprep.subr.bf16.mxu0 0
    %4375 = vmatpush1.bf16.msra.mxu0 0
    %4376 = vmatprep.subr.bf16.mxu0 0
    %4377 = vmatpush1.bf16.msra.mxu0 0
    %4378 = vmatprep.subr.bf16.mxu0 0
    %4379 = vmatpush1.bf16.msra.mxu0 0
    %4380 = vmatprep.mubr.bf16.mxu0 0
    %4381 = vmatmul.mubr.bf16.gmra.mrb[0].mxu0 %v4268
    %v4382 = vpop.f32.mrb[0].mxu0
    %v4383 = vadd.f32 0.0, %v4382
    %v4384 = vpop.f32.mrb[0].mxu0
    %v4385 = vpop.f32.mrb[0].mxu0
    %v4386 = vadd.f32 0.0, %v4385
    %v4387 = vpop.f32.mrb[0].mxu0
    %4388 = vmatprep.mubr.bf16.mxu0 0
    %4389 = vmatmul.mubr.bf16.gmra.mrb[0].mxu0 %v4269
    %v4390 = vpop.f32.mrb[0].mxu0
    %v4391 = vadd.f32 0.0, %v4390
    %v4392 = vpop.f32.mrb[0].mxu0
    %v4393 = vpop.f32.mrb[0].mxu0
    %v4394 = vadd.f32 0.0, %v4393
    %v4395 = vpop.f32.mrb[0].mxu0
    %4396 = vmatprep.mubr.bf16.mxu0 0
    %4397 = vmatmul.mubr.bf16.gmra.mrb[0].mxu0 %v4270
    %v4398 = vpop.f32.mrb[0].mxu0
    %v4399 = vadd.f32 0.0, %v4398
    %v4400 = vpop.f32.mrb[0].mxu0
    %v4401 = vpop.f32.mrb[0].mxu0
    %v4402 = vadd.f32 0.0, %v4401
    %v4403 = vpop.f32.mrb[0].mxu0
    %4404 = vmatprep.mubr.bf16.mxu0 0
    %4405 = vmatmul.mubr.bf16.gmra.mrb[0].mxu0 %v4271
    %v4406 = vpop.f32.mrb[0].mxu0
    %v4407 = vadd.f32 0.0, %v4406
    %v4408 = vpop.f32.mrb[0].mxu0
    %v4409 = vpop.f32.mrb[0].mxu0
    %v4410 = vadd.f32 0.0, %v4409
    %v4411 = vpop.f32.mrb[0].mxu0
    %4412 = vmatprep.mubr.bf16.mxu0 0
    %4413 = vmatmul.mubr.bf16.gmra.mrb[0].mxu0 %v4272
    %v4414 = vpop.f32.mrb[0].mxu0
    %v4415 = vadd.f32 0.0, %v4414
    %v4416 = vpop.f32.mrb[0].mxu0
    %v4417 = vpop.f32.mrb[0].mxu0
    %v4418 = vadd.f32 0.0, %v4417
    %v4419 = vpop.f32.mrb[0].mxu0
    %4420 = vmatprep.mubr.bf16.mxu0 0
    %4421 = vmatmul.mubr.bf16.gmra.mrb[0].mxu0 %v4273
    %v4422 = vpop.f32.mrb[0].mxu0
    %v4423 = vadd.f32 0.0, %v4422
    %v4424 = vpop.f32.mrb[0].mxu0
    %v4425 = vpop.f32.mrb[0].mxu0
    %v4426 = vadd.f32 0.0, %v4425
    %v4427 = vpop.f32.mrb[0].mxu0
    %4428 = vmatprep.mubr.bf16.mxu0 0
    %4429 = vmatmul.mubr.bf16.gmra.mrb[0].mxu0 %v4274
    %v4430 = vpop.f32.mrb[0].mxu0
    %v4431 = vadd.f32 0.0, %v4430
    %v4432 = vpop.f32.mrb[0].mxu0
    %v4433 = vpop.f32.mrb[0].mxu0
    %v4434 = vadd.f32 0.0, %v4433
    %v4435 = vpop.f32.mrb[0].mxu0
    %4436 = vmatprep.mubr.bf16.mxu0 0
    %4437 = vmatmul.mubr.bf16.gmra.mrb[0].mxu0 %v4275
    %v4438 = vpop.f32.mrb[0].mxu0
    %v4439 = vadd.f32 0.0, %v4438
    %v4440 = vpop.f32.mrb[0].mxu0
    %v4441 = vpop.f32.mrb[0].mxu0
    %v4442 = vadd.f32 0.0, %v4441
    %v4443 = vpop.f32.mrb[0].mxu0
    %4444 = vmatprep.mubr.bf16.mxu0 0
    %4445 = vmatmul.mubr.bf16.gmra.mrb[0].mxu0 %v4276
    %v4446 = vpop.f32.mrb[0].mxu0
    %v4447 = vadd.f32 0.0, %v4446
    %v4448 = vpop.f32.mrb[0].mxu0
    %v4449 = vpop.f32.mrb[0].mxu0
    %v4450 = vadd.f32 0.0, %v4449
    %v4451 = vpop.f32.mrb[0].mxu0
    %4452 = vmatprep.mubr.bf16.mxu0 0
    %4453 = vmatmul.mubr.bf16.gmra.mrb[0].mxu0 %v4277
    %v4454 = vpop.f32.mrb[0].mxu0
    %v4455 = vadd.f32 0.0, %v4454
    %v4456 = vpop.f32.mrb[0].mxu0
    %v4457 = vpop.f32.mrb[0].mxu0
    %v4458 = vadd.f32 0.0, %v4457
    %v4459 = vpop.f32.mrb[0].mxu0
    %4460 = vmatprep.mubr.bf16.mxu0 0
    %4461 = vmatmul.mubr.bf16.gmra.mrb[0].mxu0 %v4278
    %v4462 = vpop.f32.mrb[0].mxu0
    %v4463 = vadd.f32 0.0, %v4462
    %v4464 = vpop.f32.mrb[0].mxu0
    %v4465 = vpop.f32.mrb[0].mxu0
    %v4466 = vadd.f32 0.0, %v4465
    %v4467 = vpop.f32.mrb[0].mxu0
    %4468 = vmatprep.mubr.bf16.mxu0 0
    %4469 = vmatmul.mubr.bf16.gmra.mrb[0].mxu0 %v4279
    %v4470 = vpop.f32.mrb[0].mxu0
    %v4471 = vadd.f32 0.0, %v4470
    %v4472 = vpop.f32.mrb[0].mxu0
    %v4473 = vpop.f32.mrb[0].mxu0
    %v4474 = vadd.f32 0.0, %v4473
    %v4475 = vpop.f32.mrb[0].mxu0
    %4476 = vmatprep.mubr.bf16.mxu0 0
    %4477 = vmatmul.mubr.bf16.gmra.mrb[0].mxu0 %v4280
    %v4478 = vpop.f32.mrb[0].mxu0
    %v4479 = vadd.f32 0.0, %v4478
    %v4480 = vpop.f32.mrb[0].mxu0
    %v4481 = vpop.f32.mrb[0].mxu0
    %v4482 = vadd.f32 0.0, %v4481
    %v4483 = vpop.f32.mrb[0].mxu0
    %4484 = vmatprep.mubr.bf16.mxu0 0
    %4485 = vmatmul.mubr.bf16.gmra.mrb[0].mxu0 %v4281
    %v4486 = vpop.f32.mrb[0].mxu0
    %v4487 = vadd.f32 0.0, %v4486
    %v4488 = vpop.f32.mrb[0].mxu0
    %v4489 = vpop.f32.mrb[0].mxu0
    %v4490 = vadd.f32 0.0, %v4489
    %v4491 = vpop.f32.mrb[0].mxu0
    %4492 = vmatprep.mubr.bf16.mxu0 0
    %4493 = vmatmul.mubr.bf16.gmra.mrb[0].mxu0 %v4282
    %v4494 = vpop.f32.mrb[0].mxu0
    %v4495 = vadd.f32 0.0, %v4494
    %v4496 = vpop.f32.mrb[0].mxu0
    %v4497 = vpop.f32.mrb[0].mxu0
    %v4498 = vadd.f32 0.0, %v4497
    %v4499 = vpop.f32.mrb[0].mxu0
    %4500 = vmatprep.mubr.bf16.mxu0 0
    %4501 = vmatmul.mubr.bf16.gmra.mrb[0].mxu0 %v4283
    %v4502 = vpop.f32.mrb[0].mxu0
    %v4503 = vadd.f32 0.0, %v4502
    %v4504 = vpop.f32.mrb[0].mxu0
    %v4505 = vpop.f32.mrb[0].mxu0
    %v4506 = vadd.f32 0.0, %v4505
    %v4507 = vpop.f32.mrb[0].mxu0
    %4508 = vdwg.mxu0
    %v4509 = vadd.f32 %v4012, %v4383
    %v4510 = vadd.f32 %v4013, %v4386
    %v4511 = vadd.f32 %v4014, %v4391
    %v4512 = vadd.f32 %v4015, %v4394
    %v4513 = vadd.f32 %v4016, %v4399
    %v4514 = vadd.f32 %v4017, %v4402
    %v4515 = vadd.f32 %v4018, %v4407
    %v4516 = vadd.f32 %v4019, %v4410
    %v4517 = vadd.f32 %v4020, %v4415
    %v4518 = vadd.f32 %v4021, %v4418
    %v4519 = vadd.f32 %v4022, %v4423
    %v4520 = vadd.f32 %v4023, %v4426
    %v4521 = vadd.f32 %v4024, %v4431
    %v4522 = vadd.f32 %v4025, %v4434
    %v4523 = vadd.f32 %v4026, %v4439
    %v4524 = vadd.f32 %v4027, %v4442
    %v4525 = vadd.f32 %v4028, %v4447
    %v4526 = vadd.f32 %v4029, %v4450
    %v4527 = vadd.f32 %v4030, %v4455
    %v4528 = vadd.f32 %v4031, %v4458
    %v4529 = vadd.f32 %v4032, %v4463
    %v4530 = vadd.f32 %v4033, %v4466
    %v4531 = vadd.f32 %v4034, %v4471
    %v4532 = vadd.f32 %v4035, %v4474
    %v4533 = vadd.f32 %v4036, %v4479
    %v4534 = vadd.f32 %v4037, %v4482
    %v4535 = vadd.f32 %v4038, %v4487
    %v4536 = vadd.f32 %v4039, %v4490
    %v4537 = vadd.f32 %v4040, %v4495
    %v4538 = vadd.f32 %v4041, %v4498
    %v4539 = vadd.f32 %v4042, %v4503
    %v4540 = vadd.f32 %v4043, %v4506
    %s4541 = scalar_lea.vmem [#allocation2], 24
    %v4542 = vld [vmem:[%s4541] sm:$0xf]
    %v4543 = vld [vmem:[%s4541 + $0x4] sm:$0xf]
    %v4544 = vld [vmem:[%s4541 + $0xc] sm:$0xf]
    %v4545 = vld [vmem:[%s4541 + $0x10] sm:$0xf]
    %v4546 = vld [vmem:[%s4541 + $0x18] sm:$0xf]
    %v4547 = vld [vmem:[%s4541 + $0x1c] sm:$0xf]
    %v4548 = vld [vmem:[%s4541 + $0x24] sm:$0xf]
    %v4549 = vld [vmem:[%s4541 + $0x28] sm:$0xf]
    %v4550 = vld [vmem:[%s4541 + $0x30] sm:$0xf]
    %v4551 = vld [vmem:[%s4541 + $0x34] sm:$0xf]
    %v4552 = vld [vmem:[%s4541 + $0x3c] sm:$0xf]
    %v4553 = vld [vmem:[%s4541 + $0x40] sm:$0xf]
    %v4554 = vld [vmem:[%s4541 + $0x48] sm:$0xf]
    %v4555 = vld [vmem:[%s4541 + $0x4c] sm:$0xf]
    %v4556 = vld [vmem:[%s4541 + $0x54] sm:$0xf]
    %v4557 = vld [vmem:[%s4541 + $0x58] sm:$0xf]
    %v4558 = vld [vmem:[%s4541 + $0x60] sm:$0xf]
    %v4559 = vld [vmem:[%s4541 + $0x64] sm:$0xf]
    %v4560 = vld [vmem:[%s4541 + $0x6c] sm:$0xf]
    %v4561 = vld [vmem:[%s4541 + $0x70] sm:$0xf]
    %v4562 = vld [vmem:[%s4541 + $0x78] sm:$0xf]
    %v4563 = vld [vmem:[%s4541 + $0x7c] sm:$0xf]
    %v4564 = vld [vmem:[%s4541 + $0x84] sm:$0xf]
    %v4565 = vld [vmem:[%s4541 + $0x88] sm:$0xf]
    %v4566 = vld [vmem:[%s4541 + $0x90] sm:$0xf]
    %v4567 = vld [vmem:[%s4541 + $0x94] sm:$0xf]
    %v4568 = vld [vmem:[%s4541 + $0x9c] sm:$0xf]
    %v4569 = vld [vmem:[%s4541 + $0xa0] sm:$0xf]
    %v4570 = vld [vmem:[%s4541 + $0xa8] sm:$0xf]
    %v4571 = vld [vmem:[%s4541 + $0xac] sm:$0xf]
    %v4572 = vld [vmem:[%s4541 + $0xb4] sm:$0xf]
    %v4573 = vld [vmem:[%s4541 + $0xb8] sm:$0xf]
    %v4574 = vld [vmem:[%s3 + $0x180] sm:$0xf]
    %v4575 = vld [vmem:[%s3 + $0x184] sm:$0xf]
    %v4576 = vld [vmem:[%s3 + $0x188] sm:$0xf]
    %v4577 = vld [vmem:[%s3 + $0x18c] sm:$0xf]
    %v4578 = vld [vmem:[%s3 + $0x190] sm:$0xf]
    %v4579 = vld [vmem:[%s3 + $0x194] sm:$0xf]
    %v4580 = vld [vmem:[%s3 + $0x198] sm:$0xf]
    %v4581 = vld [vmem:[%s3 + $0x19c] sm:$0xf]
    %v4582 = vld [vmem:[%s3 + $0x1a0] sm:$0xf]
    %v4583 = vld [vmem:[%s3 + $0x1a4] sm:$0xf]
    %v4584 = vld [vmem:[%s3 + $0x1a8] sm:$0xf]
    %v4585 = vld [vmem:[%s3 + $0x1ac] sm:$0xf]
    %v4586 = vld [vmem:[%s3 + $0x1b0] sm:$0xf]
    %v4587 = vld [vmem:[%s3 + $0x1b4] sm:$0xf]
    %v4588 = vld [vmem:[%s3 + $0x1b8] sm:$0xf]
    %v4589 = vld [vmem:[%s3 + $0x1bc] sm:$0xf]
    %v4622 = vunpack.c.l.b16 %v4542
    %v4623 = vunpack.c.l.b16 %v4543
    %v4624 = vunpack.c.l.b16 %v4544
    %v4625 = vunpack.c.l.b16 %v4545
    %v4626 = vunpack.c.l.b16 %v4546
    %v4627 = vunpack.c.l.b16 %v4547
    %v4628 = vunpack.c.l.b16 %v4548
    %v4629 = vunpack.c.l.b16 %v4549
    %v4630 = vunpack.c.l.b16 %v4550
    %v4631 = vunpack.c.l.b16 %v4551
    %v4632 = vunpack.c.l.b16 %v4552
    %v4633 = vunpack.c.l.b16 %v4553
    %v4634 = vunpack.c.l.b16 %v4554
    %v4635 = vunpack.c.l.b16 %v4555
    %v4636 = vunpack.c.l.b16 %v4556
    %v4637 = vunpack.c.l.b16 %v4557
    %v4638 = vunpack.c.l.b16 %v4558
    %v4639 = vunpack.c.l.b16 %v4559
    %v4640 = vunpack.c.l.b16 %v4560
    %v4641 = vunpack.c.l.b16 %v4561
    %v4642 = vunpack.c.l.b16 %v4562
    %v4643 = vunpack.c.l.b16 %v4563
    %v4644 = vunpack.c.l.b16 %v4564
    %v4645 = vunpack.c.l.b16 %v4565
    %v4646 = vunpack.c.l.b16 %v4566
    %v4647 = vunpack.c.l.b16 %v4567
    %v4648 = vunpack.c.l.b16 %v4568
    %v4649 = vunpack.c.l.b16 %v4569
    %v4650 = vunpack.c.l.b16 %v4570
    %v4651 = vunpack.c.l.b16 %v4571
    %v4652 = vunpack.c.l.b16 %v4572
    %v4653 = vunpack.c.l.b16 %v4573
    %v4654 = vpack.c.b16 %v4623, %v4622
    %v4655 = vpack.c.b16 %v4625, %v4624
    %v4656 = vpack.c.b16 %v4627, %v4626
    %v4657 = vpack.c.b16 %v4629, %v4628
    %v4658 = vpack.c.b16 %v4631, %v4630
    %v4659 = vpack.c.b16 %v4633, %v4632
    %v4660 = vpack.c.b16 %v4635, %v4634
    %v4661 = vpack.c.b16 %v4637, %v4636
    %v4662 = vpack.c.b16 %v4639, %v4638
    %v4663 = vpack.c.b16 %v4641, %v4640
    %v4664 = vpack.c.b16 %v4643, %v4642
    %v4665 = vpack.c.b16 %v4645, %v4644
    %v4666 = vpack.c.b16 %v4647, %v4646
    %v4667 = vpack.c.b16 %v4649, %v4648
    %v4668 = vpack.c.b16 %v4651, %v4650
    %v4669 = vpack.c.b16 %v4653, %v4652
    %v4702 = vunpack.c.l.b16 %v4574
    %v4703 = vunpack.c.l.b16 %v4575
    %v4704 = vunpack.c.l.b16 %v4576
    %v4705 = vunpack.c.l.b16 %v4577
    %v4706 = vunpack.c.l.b16 %v4578
    %v4707 = vunpack.c.l.b16 %v4579
    %v4708 = vunpack.c.l.b16 %v4580
    %v4709 = vunpack.c.l.b16 %v4581
    %v4710 = vunpack.c.l.b16 %v4582
    %v4711 = vunpack.c.l.b16 %v4583
    %v4712 = vunpack.c.l.b16 %v4584
    %v4713 = vunpack.c.l.b16 %v4585
    %v4714 = vunpack.c.l.b16 %v4586
    %v4715 = vunpack.c.l.b16 %v4587
    %v4716 = vunpack.c.l.b16 %v4588
    %v4717 = vunpack.c.l.b16 %v4589
    %v4718 = vpack.c.b16 %v4703, %v4702
    %v4719 = vpack.c.b16 %v4705, %v4704
    %v4720 = vpack.c.b16 %v4707, %v4706
    %v4721 = vpack.c.b16 %v4709, %v4708
    %v4722 = vpack.c.b16 %v4711, %v4710
    %v4723 = vpack.c.b16 %v4713, %v4712
    %v4724 = vpack.c.b16 %v4715, %v4714
    %v4725 = vpack.c.b16 %v4717, %v4716
    %4734 = vmatprep.subr.bf16.mxu0 0
    %4735 = vmatpush1.bf16.msra.mxu0 %v4718
    %4736 = vmatprep.subr.bf16.mxu0 0
    %4737 = vmatpush1.bf16.msra.mxu0 %v4719
    %4738 = vmatprep.subr.bf16.mxu0 0
    %4739 = vmatpush1.bf16.msra.mxu0 %v4720
    %4740 = vmatprep.subr.bf16.mxu0 0
    %4741 = vmatpush1.bf16.msra.mxu0 %v4721
    %4742 = vmatprep.subr.bf16.mxu0 0
    %4743 = vmatpush1.bf16.msra.mxu0 %v4722
    %4744 = vmatprep.subr.bf16.mxu0 0
    %4745 = vmatpush1.bf16.msra.mxu0 %v4723
    %4746 = vmatprep.subr.bf16.mxu0 0
    %4747 = vmatpush1.bf16.msra.mxu0 %v4724
    %4748 = vmatprep.subr.bf16.mxu0 0
    %4749 = vmatpush1.bf16.msra.mxu0 %v4725
    %4750 = vmatprep.subr.bf16.mxu0 0
    %4751 = vmatpush1.bf16.msra.mxu0 0
    %4752 = vmatprep.subr.bf16.mxu0 0
    %4753 = vmatpush1.bf16.msra.mxu0 0
    %4754 = vmatprep.subr.bf16.mxu0 0
    %4755 = vmatpush1.bf16.msra.mxu0 0
    %4756 = vmatprep.subr.bf16.mxu0 0
    %4757 = vmatpush1.bf16.msra.mxu0 0
    %4758 = vmatprep.subr.bf16.mxu0 0
    %4759 = vmatpush1.bf16.msra.mxu0 0
    %4760 = vmatprep.subr.bf16.mxu0 0
    %4761 = vmatpush1.bf16.msra.mxu0 0
    %4762 = vmatprep.subr.bf16.mxu0 0
    %4763 = vmatpush1.bf16.msra.mxu0 0
    %4764 = vmatprep.subr.bf16.mxu0 0
    %4765 = vmatpush1.bf16.msra.mxu0 0
    %4766 = vmatprep.mubr.bf16.mxu0 0
    %4767 = vmatmul.mubr.bf16.gmra.mrb[0].mxu0 %v4654
    %v4768 = vpop.f32.mrb[0].mxu0
    %v4769 = vadd.f32 0.0, %v4768
    %v4770 = vpop.f32.mrb[0].mxu0
    %v4771 = vpop.f32.mrb[0].mxu0
    %v4772 = vadd.f32 0.0, %v4771
    %v4773 = vpop.f32.mrb[0].mxu0
    %4774 = vmatprep.mubr.bf16.mxu0 0
    %4775 = vmatmul.mubr.bf16.gmra.mrb[0].mxu0 %v4655
    %v4776 = vpop.f32.mrb[0].mxu0
    %v4777 = vadd.f32 0.0, %v4776
    %v4778 = vpop.f32.mrb[0].mxu0
    %v4779 = vpop.f32.mrb[0].mxu0
    %v4780 = vadd.f32 0.0, %v4779
    %v4781 = vpop.f32.mrb[0].mxu0
    %4782 = vmatprep.mubr.bf16.mxu0 0
    %4783 = vmatmul.mubr.bf16.gmra.mrb[0].mxu0 %v4656
    %v4784 = vpop.f32.mrb[0].mxu0
    %v4785 = vadd.f32 0.0, %v4784
    %v4786 = vpop.f32.mrb[0].mxu0
    %v4787 = vpop.f32.mrb[0].mxu0
    %v4788 = vadd.f32 0.0, %v4787
    %v4789 = vpop.f32.mrb[0].mxu0
    %4790 = vmatprep.mubr.bf16.mxu0 0
    %4791 = vmatmul.mubr.bf16.gmra.mrb[0].mxu0 %v4657
    %v4792 = vpop.f32.mrb[0].mxu0
    %v4793 = vadd.f32 0.0, %v4792
    %v4794 = vpop.f32.mrb[0].mxu0
    %v4795 = vpop.f32.mrb[0].mxu0
    %v4796 = vadd.f32 0.0, %v4795
    %v4797 = vpop.f32.mrb[0].mxu0
    %4798 = vmatprep.mubr.bf16.mxu0 0
    %4799 = vmatmul.mubr.bf16.gmra.mrb[0].mxu0 %v4658
    %v4800 = vpop.f32.mrb[0].mxu0
    %v4801 = vadd.f32 0.0, %v4800
    %v4802 = vpop.f32.mrb[0].mxu0
    %v4803 = vpop.f32.mrb[0].mxu0
    %v4804 = vadd.f32 0.0, %v4803
    %v4805 = vpop.f32.mrb[0].mxu0
    %4806 = vmatprep.mubr.bf16.mxu0 0
    %4807 = vmatmul.mubr.bf16.gmra.mrb[0].mxu0 %v4659
    %v4808 = vpop.f32.mrb[0].mxu0
    %v4809 = vadd.f32 0.0, %v4808
    %v4810 = vpop.f32.mrb[0].mxu0
    %v4811 = vpop.f32.mrb[0].mxu0
    %v4812 = vadd.f32 0.0, %v4811
    %v4813 = vpop.f32.mrb[0].mxu0
    %4814 = vmatprep.mubr.bf16.mxu0 0
    %4815 = vmatmul.mubr.bf16.gmra.mrb[0].mxu0 %v4660
    %v4816 = vpop.f32.mrb[0].mxu0
    %v4817 = vadd.f32 0.0, %v4816
    %v4818 = vpop.f32.mrb[0].mxu0
    %v4819 = vpop.f32.mrb[0].mxu0
    %v4820 = vadd.f32 0.0, %v4819
    %v4821 = vpop.f32.mrb[0].mxu0
    %4822 = vmatprep.mubr.bf16.mxu0 0
    %4823 = vmatmul.mubr.bf16.gmra.mrb[0].mxu0 %v4661
    %v4824 = vpop.f32.mrb[0].mxu0
    %v4825 = vadd.f32 0.0, %v4824
    %v4826 = vpop.f32.mrb[0].mxu0
    %v4827 = vpop.f32.mrb[0].mxu0
    %v4828 = vadd.f32 0.0, %v4827
    %v4829 = vpop.f32.mrb[0].mxu0
    %4830 = vmatprep.mubr.bf16.mxu0 0
    %4831 = vmatmul.mubr.bf16.gmra.mrb[0].mxu0 %v4662
    %v4832 = vpop.f32.mrb[0].mxu0
    %v4833 = vadd.f32 0.0, %v4832
    %v4834 = vpop.f32.mrb[0].mxu0
    %v4835 = vpop.f32.mrb[0].mxu0
    %v4836 = vadd.f32 0.0, %v4835
    %v4837 = vpop.f32.mrb[0].mxu0
    %4838 = vmatprep.mubr.bf16.mxu0 0
    %4839 = vmatmul.mubr.bf16.gmra.mrb[0].mxu0 %v4663
    %v4840 = vpop.f32.mrb[0].mxu0
    %v4841 = vadd.f32 0.0, %v4840
    %v4842 = vpop.f32.mrb[0].mxu0
    %v4843 = vpop.f32.mrb[0].mxu0
    %v4844 = vadd.f32 0.0, %v4843
    %v4845 = vpop.f32.mrb[0].mxu0
    %4846 = vmatprep.mubr.bf16.mxu0 0
    %4847 = vmatmul.mubr.bf16.gmra.mrb[0].mxu0 %v4664
    %v4848 = vpop.f32.mrb[0].mxu0
    %v4849 = vadd.f32 0.0, %v4848
    %v4850 = vpop.f32.mrb[0].mxu0
    %v4851 = vpop.f32.mrb[0].mxu0
    %v4852 = vadd.f32 0.0, %v4851
    %v4853 = vpop.f32.mrb[0].mxu0
    %4854 = vmatprep.mubr.bf16.mxu0 0
    %4855 = vmatmul.mubr.bf16.gmra.mrb[0].mxu0 %v4665
    %v4856 = vpop.f32.mrb[0].mxu0
    %v4857 = vadd.f32 0.0, %v4856
    %v4858 = vpop.f32.mrb[0].mxu0
    %v4859 = vpop.f32.mrb[0].mxu0
    %v4860 = vadd.f32 0.0, %v4859
    %v4861 = vpop.f32.mrb[0].mxu0
    %4862 = vmatprep.mubr.bf16.mxu0 0
    %4863 = vmatmul.mubr.bf16.gmra.mrb[0].mxu0 %v4666
    %v4864 = vpop.f32.mrb[0].mxu0
    %v4865 = vadd.f32 0.0, %v4864
    %v4866 = vpop.f32.mrb[0].mxu0
    %v4867 = vpop.f32.mrb[0].mxu0
    %v4868 = vadd.f32 0.0, %v4867
    %v4869 = vpop.f32.mrb[0].mxu0
    %4870 = vmatprep.mubr.bf16.mxu0 0
    %4871 = vmatmul.mubr.bf16.gmra.mrb[0].mxu0 %v4667
    %v4872 = vpop.f32.mrb[0].mxu0
    %v4873 = vadd.f32 0.0, %v4872
    %v4874 = vpop.f32.mrb[0].mxu0
    %v4875 = vpop.f32.mrb[0].mxu0
    %v4876 = vadd.f32 0.0, %v4875
    %v4877 = vpop.f32.mrb[0].mxu0
    %4878 = vmatprep.mubr.bf16.mxu0 0
    %4879 = vmatmul.mubr.bf16.gmra.mrb[0].mxu0 %v4668
    %v4880 = vpop.f32.mrb[0].mxu0
    %v4881 = vadd.f32 0.0, %v4880
    %v4882 = vpop.f32.mrb[0].mxu0
    %v4883 = vpop.f32.mrb[0].mxu0
    %v4884 = vadd.f32 0.0, %v4883
    %v4885 = vpop.f32.mrb[0].mxu0
    %4886 = vmatprep.mubr.bf16.mxu0 0
    %4887 = vmatmul.mubr.bf16.gmra.mrb[0].mxu0 %v4669
    %v4888 = vpop.f32.mrb[0].mxu0
    %v4889 = vadd.f32 0.0, %v4888
    %v4890 = vpop.f32.mrb[0].mxu0
    %v4891 = vpop.f32.mrb[0].mxu0
    %v4892 = vadd.f32 0.0, %v4891
    %v4893 = vpop.f32.mrb[0].mxu0
    %4894 = vdwg.mxu0
    %v4895 = vadd.f32 %v4509, %v4769
    %v4896 = vadd.f32 %v4510, %v4772
    %v4897 = vadd.f32 %v4511, %v4777
    %v4898 = vadd.f32 %v4512, %v4780
    %v4899 = vadd.f32 %v4513, %v4785
    %v4900 = vadd.f32 %v4514, %v4788
    %v4901 = vadd.f32 %v4515, %v4793
    %v4902 = vadd.f32 %v4516, %v4796
    %v4903 = vadd.f32 %v4517, %v4801
    %v4904 = vadd.f32 %v4518, %v4804
    %v4905 = vadd.f32 %v4519, %v4809
    %v4906 = vadd.f32 %v4520, %v4812
    %v4907 = vadd.f32 %v4521, %v4817
    %v4908 = vadd.f32 %v4522, %v4820
    %v4909 = vadd.f32 %v4523, %v4825
    %v4910 = vadd.f32 %v4524, %v4828
    %v4911 = vadd.f32 %v4525, %v4833
    %v4912 = vadd.f32 %v4526, %v4836
    %v4913 = vadd.f32 %v4527, %v4841
    %v4914 = vadd.f32 %v4528, %v4844
    %v4915 = vadd.f32 %v4529, %v4849
    %v4916 = vadd.f32 %v4530, %v4852
    %v4917 = vadd.f32 %v4531, %v4857
    %v4918 = vadd.f32 %v4532, %v4860
    %v4919 = vadd.f32 %v4533, %v4865
    %v4920 = vadd.f32 %v4534, %v4868
    %v4921 = vadd.f32 %v4535, %v4873
    %v4922 = vadd.f32 %v4536, %v4876
    %v4923 = vadd.f32 %v4537, %v4881
    %v4924 = vadd.f32 %v4538, %v4884
    %v4925 = vadd.f32 %v4539, %v4889
    %v4926 = vadd.f32 %v4540, %v4892
    %v4927 = vld [vmem:[%s4541] sm:$0xf]
    %v4928 = vld [vmem:[%s4541 + $0x4] sm:$0xf]
    %v4929 = vld [vmem:[%s4541 + $0x8] sm:$0x1]
    %v4930 = vld [vmem:[%s4541 + $0xc] sm:$0xf]
    %v4931 = vld [vmem:[%s4541 + $0x10] sm:$0xf]
    %v4932 = vld [vmem:[%s4541 + $0x14] sm:$0x1]
    %v4933 = vld [vmem:[%s4541 + $0x18] sm:$0xf]
    %v4934 = vld [vmem:[%s4541 + $0x1c] sm:$0xf]
    %v4935 = vld [vmem:[%s4541 + $0x20] sm:$0x1]
    %v4936 = vld [vmem:[%s4541 + $0x24] sm:$0xf]
    %v4937 = vld [vmem:[%s4541 + $0x28] sm:$0xf]
    %v4938 = vld [vmem:[%s4541 + $0x2c] sm:$0x1]
    %v4939 = vld [vmem:[%s4541 + $0x30] sm:$0xf]
    %v4940 = vld [vmem:[%s4541 + $0x34] sm:$0xf]
    %v4941 = vld [vmem:[%s4541 + $0x38] sm:$0x1]
    %v4942 = vld [vmem:[%s4541 + $0x3c] sm:$0xf]
    %v4943 = vld [vmem:[%s4541 + $0x40] sm:$0xf]
    %v4944 = vld [vmem:[%s4541 + $0x44] sm:$0x1]
    %v4945 = vld [vmem:[%s4541 + $0x48] sm:$0xf]
    %v4946 = vld [vmem:[%s4541 + $0x4c] sm:$0xf]
    %v4947 = vld [vmem:[%s4541 + $0x50] sm:$0x1]
    %v4948 = vld [vmem:[%s4541 + $0x54] sm:$0xf]
    %v4949 = vld [vmem:[%s4541 + $0x58] sm:$0xf]
    %v4950 = vld [vmem:[%s4541 + $0x5c] sm:$0x1]
    %v4951 = vld [vmem:[%s4541 + $0x60] sm:$0xf]
    %v4952 = vld [vmem:[%s4541 + $0x64] sm:$0xf]
    %v4953 = vld [vmem:[%s4541 + $0x68] sm:$0x1]
    %v4954 = vld [vmem:[%s4541 + $0x6c] sm:$0xf]
    %v4955 = vld [vmem:[%s4541 + $0x70] sm:$0xf]
    %v4956 = vld [vmem:[%s4541 + $0x74] sm:$0x1]
    %v4957 = vld [vmem:[%s4541 + $0x78] sm:$0xf]
    %v4958 = vld [vmem:[%s4541 + $0x7c] sm:$0xf]
    %v4959 = vld [vmem:[%s4541 + $0x80] sm:$0x1]
    %v4960 = vld [vmem:[%s4541 + $0x84] sm:$0xf]
    %v4961 = vld [vmem:[%s4541 + $0x88] sm:$0xf]
    %v4962 = vld [vmem:[%s4541 + $0x8c] sm:$0x1]
    %v4963 = vld [vmem:[%s4541 + $0x90] sm:$0xf]
    %v4964 = vld [vmem:[%s4541 + $0x94] sm:$0xf]
    %v4965 = vld [vmem:[%s4541 + $0x98] sm:$0x1]
    %v4966 = vld [vmem:[%s4541 + $0x9c] sm:$0xf]
    %v4967 = vld [vmem:[%s4541 + $0xa0] sm:$0xf]
    %v4968 = vld [vmem:[%s4541 + $0xa4] sm:$0x1]
    %v4969 = vld [vmem:[%s4541 + $0xa8] sm:$0xf]
    %v4970 = vld [vmem:[%s4541 + $0xac] sm:$0xf]
    %v4971 = vld [vmem:[%s4541 + $0xb0] sm:$0x1]
    %v4972 = vld [vmem:[%s4541 + $0xb4] sm:$0xf]
    %v4973 = vld [vmem:[%s4541 + $0xb8] sm:$0xf]
    %v4974 = vld [vmem:[%s4541 + $0xbc] sm:$0x1]
    %v4976 = vshrl.u32 %v4927, 16
    %v4978 = vrot.slane %v4976, 4
    %v4979 = vshll.u32 %v4927, 16
    %v4981 = vrot.slane %v4979, 5
    %v4982 = vor.u32 %v4978, %v4981
    %v4983 = vrot.slane %v4982, 4
    %v4985 = vshll.u32 %v4928, 16
    %v4987 = vrot.slane %v4985, 5
    %v4988 = vsel %vm1443, %v4983, %v4987
    %v4989 = vshrl.u32 %v4928, 16
    %v4991 = vrot.slane %v4989, 4
    %v4992 = vor.u32 %v4991, %v4987
    %v4993 = vrot.slane %v4992, 4
    %v4995 = vshll.u32 %v4929, 16
    %v4997 = vrot.slane %v4995, 5
    %v4998 = vsel %vm1443, %v4993, %v4997
    %v5000 = vshrl.u32 %v4930, 16
    %v5002 = vrot.slane %v5000, 4
    %v5003 = vshll.u32 %v4930, 16
    %v5005 = vrot.slane %v5003, 5
    %v5006 = vor.u32 %v5002, %v5005
    %v5007 = vrot.slane %v5006, 4
    %v5009 = vshll.u32 %v4931, 16
    %v5011 = vrot.slane %v5009, 5
    %v5012 = vsel %vm1443, %v5007, %v5011
    %v5013 = vshrl.u32 %v4931, 16
    %v5015 = vrot.slane %v5013, 4
    %v5016 = vor.u32 %v5015, %v5011
    %v5017 = vrot.slane %v5016, 4
    %v5019 = vshll.u32 %v4932, 16
    %v5021 = vrot.slane %v5019, 5
    %v5022 = vsel %vm1443, %v5017, %v5021
    %v5024 = vshrl.u32 %v4933, 16
    %v5026 = vrot.slane %v5024, 4
    %v5027 = vshll.u32 %v4933, 16
    %v5029 = vrot.slane %v5027, 5
    %v5030 = vor.u32 %v5026, %v5029
    %v5031 = vrot.slane %v5030, 4
    %v5033 = vshll.u32 %v4934, 16
    %v5035 = vrot.slane %v5033, 5
    %v5036 = vsel %vm1443, %v5031, %v5035
    %v5037 = vshrl.u32 %v4934, 16
    %v5039 = vrot.slane %v5037, 4
    %v5040 = vor.u32 %v5039, %v5035
    %v5041 = vrot.slane %v5040, 4
    %v5043 = vshll.u32 %v4935, 16
    %v5045 = vrot.slane %v5043, 5
    %v5046 = vsel %vm1443, %v5041, %v5045
    %v5048 = vshrl.u32 %v4936, 16
    %v5050 = vrot.slane %v5048, 4
    %v5051 = vshll.u32 %v4936, 16
    %v5053 = vrot.slane %v5051, 5
    %v5054 = vor.u32 %v5050, %v5053
    %v5055 = vrot.slane %v5054, 4
    %v5057 = vshll.u32 %v4937, 16
    %v5059 = vrot.slane %v5057, 5
    %v5060 = vsel %vm1443, %v5055, %v5059
    %v5061 = vshrl.u32 %v4937, 16
    %v5063 = vrot.slane %v5061, 4
    %v5064 = vor.u32 %v5063, %v5059
    %v5065 = vrot.slane %v5064, 4
    %v5067 = vshll.u32 %v4938, 16
    %v5069 = vrot.slane %v5067, 5
    %v5070 = vsel %vm1443, %v5065, %v5069
    %v5072 = vshrl.u32 %v4939, 16
    %v5074 = vrot.slane %v5072, 4
    %v5075 = vshll.u32 %v4939, 16
    %v5077 = vrot.slane %v5075, 5
    %v5078 = vor.u32 %v5074, %v5077
    %v5079 = vrot.slane %v5078, 4
    %v5081 = vshll.u32 %v4940, 16
    %v5083 = vrot.slane %v5081, 5
    %v5084 = vsel %vm1443, %v5079, %v5083
    %v5085 = vshrl.u32 %v4940, 16
    %v5087 = vrot.slane %v5085, 4
    %v5088 = vor.u32 %v5087, %v5083
    %v5089 = vrot.slane %v5088, 4
    %v5091 = vshll.u32 %v4941, 16
    %v5093 = vrot.slane %v5091, 5
    %v5094 = vsel %vm1443, %v5089, %v5093
    %v5096 = vshrl.u32 %v4942, 16
    %v5098 = vrot.slane %v5096, 4
    %v5099 = vshll.u32 %v4942, 16
    %v5101 = vrot.slane %v5099, 5
    %v5102 = vor.u32 %v5098, %v5101
    %v5103 = vrot.slane %v5102, 4
    %v5105 = vshll.u32 %v4943, 16
    %v5107 = vrot.slane %v5105, 5
    %v5108 = vsel %vm1443, %v5103, %v5107
    %v5109 = vshrl.u32 %v4943, 16
    %v5111 = vrot.slane %v5109, 4
    %v5112 = vor.u32 %v5111, %v5107
    %v5113 = vrot.slane %v5112, 4
    %v5115 = vshll.u32 %v4944, 16
    %v5117 = vrot.slane %v5115, 5
    %v5118 = vsel %vm1443, %v5113, %v5117
    %v5120 = vshrl.u32 %v4945, 16
    %v5122 = vrot.slane %v5120, 4
    %v5123 = vshll.u32 %v4945, 16
    %v5125 = vrot.slane %v5123, 5
    %v5126 = vor.u32 %v5122, %v5125
    %v5127 = vrot.slane %v5126, 4
    %v5129 = vshll.u32 %v4946, 16
    %v5131 = vrot.slane %v5129, 5
    %v5132 = vsel %vm1443, %v5127, %v5131
    %v5133 = vshrl.u32 %v4946, 16
    %v5135 = vrot.slane %v5133, 4
    %v5136 = vor.u32 %v5135, %v5131
    %v5137 = vrot.slane %v5136, 4
    %v5139 = vshll.u32 %v4947, 16
    %v5141 = vrot.slane %v5139, 5
    %v5142 = vsel %vm1443, %v5137, %v5141
    %v5144 = vshrl.u32 %v4948, 16
    %v5146 = vrot.slane %v5144, 4
    %v5147 = vshll.u32 %v4948, 16
    %v5149 = vrot.slane %v5147, 5
    %v5150 = vor.u32 %v5146, %v5149
    %v5151 = vrot.slane %v5150, 4
    %v5153 = vshll.u32 %v4949, 16
    %v5155 = vrot.slane %v5153, 5
    %v5156 = vsel %vm1443, %v5151, %v5155
    %v5157 = vshrl.u32 %v4949, 16
    %v5159 = vrot.slane %v5157, 4
    %v5160 = vor.u32 %v5159, %v5155
    %v5161 = vrot.slane %v5160, 4
    %v5163 = vshll.u32 %v4950, 16
    %v5165 = vrot.slane %v5163, 5
    %v5166 = vsel %vm1443, %v5161, %v5165
    %v5168 = vshrl.u32 %v4951, 16
    %v5170 = vrot.slane %v5168, 4
    %v5171 = vshll.u32 %v4951, 16
    %v5173 = vrot.slane %v5171, 5
    %v5174 = vor.u32 %v5170, %v5173
    %v5175 = vrot.slane %v5174, 4
    %v5177 = vshll.u32 %v4952, 16
    %v5179 = vrot.slane %v5177, 5
    %v5180 = vsel %vm1443, %v5175, %v5179
    %v5181 = vshrl.u32 %v4952, 16
    %v5183 = vrot.slane %v5181, 4
    %v5184 = vor.u32 %v5183, %v5179
    %v5185 = vrot.slane %v5184, 4
    %v5187 = vshll.u32 %v4953, 16
    %v5189 = vrot.slane %v5187, 5
    %v5190 = vsel %vm1443, %v5185, %v5189
    %v5192 = vshrl.u32 %v4954, 16
    %v5194 = vrot.slane %v5192, 4
    %v5195 = vshll.u32 %v4954, 16
    %v5197 = vrot.slane %v5195, 5
    %v5198 = vor.u32 %v5194, %v5197
    %v5199 = vrot.slane %v5198, 4
    %v5201 = vshll.u32 %v4955, 16
    %v5203 = vrot.slane %v5201, 5
    %v5204 = vsel %vm1443, %v5199, %v5203
    %v5205 = vshrl.u32 %v4955, 16
    %v5207 = vrot.slane %v5205, 4
    %v5208 = vor.u32 %v5207, %v5203
    %v5209 = vrot.slane %v5208, 4
    %v5211 = vshll.u32 %v4956, 16
    %v5213 = vrot.slane %v5211, 5
    %v5214 = vsel %vm1443, %v5209, %v5213
    %v5216 = vshrl.u32 %v4957, 16
    %v5218 = vrot.slane %v5216, 4
    %v5219 = vshll.u32 %v4957, 16
    %v5221 = vrot.slane %v5219, 5
    %v5222 = vor.u32 %v5218, %v5221
    %v5223 = vrot.slane %v5222, 4
    %v5225 = vshll.u32 %v4958, 16
    %v5227 = vrot.slane %v5225, 5
    %v5228 = vsel %vm1443, %v5223, %v5227
    %v5229 = vshrl.u32 %v4958, 16
    %v5231 = vrot.slane %v5229, 4
    %v5232 = vor.u32 %v5231, %v5227
    %v5233 = vrot.slane %v5232, 4
    %v5235 = vshll.u32 %v4959, 16
    %v5237 = vrot.slane %v5235, 5
    %v5238 = vsel %vm1443, %v5233, %v5237
    %v5240 = vshrl.u32 %v4960, 16
    %v5242 = vrot.slane %v5240, 4
    %v5243 = vshll.u32 %v4960, 16
    %v5245 = vrot.slane %v5243, 5
    %v5246 = vor.u32 %v5242, %v5245
    %v5247 = vrot.slane %v5246, 4
    %v5249 = vshll.u32 %v4961, 16
    %v5251 = vrot.slane %v5249, 5
    %v5252 = vsel %vm1443, %v5247, %v5251
    %v5253 = vshrl.u32 %v4961, 16
    %v5255 = vrot.slane %v5253, 4
    %v5256 = vor.u32 %v5255, %v5251
    %v5257 = vrot.slane %v5256, 4
    %v5259 = vshll.u32 %v4962, 16
    %v5261 = vrot.slane %v5259, 5
    %v5262 = vsel %vm1443, %v5257, %v5261
    %v5264 = vshrl.u32 %v4963, 16
    %v5266 = vrot.slane %v5264, 4
    %v5267 = vshll.u32 %v4963, 16
    %v5269 = vrot.slane %v5267, 5
    %v5270 = vor.u32 %v5266, %v5269
    %v5271 = vrot.slane %v5270, 4
    %v5273 = vshll.u32 %v4964, 16
    %v5275 = vrot.slane %v5273, 5
    %v5276 = vsel %vm1443, %v5271, %v5275
    %v5277 = vshrl.u32 %v4964, 16
    %v5279 = vrot.slane %v5277, 4
    %v5280 = vor.u32 %v5279, %v5275
    %v5281 = vrot.slane %v5280, 4
    %v5283 = vshll.u32 %v4965, 16
    %v5285 = vrot.slane %v5283, 5
    %v5286 = vsel %vm1443, %v5281, %v5285
    %v5288 = vshrl.u32 %v4966, 16
    %v5290 = vrot.slane %v5288, 4
    %v5291 = vshll.u32 %v4966, 16
    %v5293 = vrot.slane %v5291, 5
    %v5294 = vor.u32 %v5290, %v5293
    %v5295 = vrot.slane %v5294, 4
    %v5297 = vshll.u32 %v4967, 16
    %v5299 = vrot.slane %v5297, 5
    %v5300 = vsel %vm1443, %v5295, %v5299
    %v5301 = vshrl.u32 %v4967, 16
    %v5303 = vrot.slane %v5301, 4
    %v5304 = vor.u32 %v5303, %v5299
    %v5305 = vrot.slane %v5304, 4
    %v5307 = vshll.u32 %v4968, 16
    %v5309 = vrot.slane %v5307, 5
    %v5310 = vsel %vm1443, %v5305, %v5309
    %v5312 = vshrl.u32 %v4969, 16
    %v5314 = vrot.slane %v5312, 4
    %v5315 = vshll.u32 %v4969, 16
    %v5317 = vrot.slane %v5315, 5
    %v5318 = vor.u32 %v5314, %v5317
    %v5319 = vrot.slane %v5318, 4
    %v5321 = vshll.u32 %v4970, 16
    %v5323 = vrot.slane %v5321, 5
    %v5324 = vsel %vm1443, %v5319, %v5323
    %v5325 = vshrl.u32 %v4970, 16
    %v5327 = vrot.slane %v5325, 4
    %v5328 = vor.u32 %v5327, %v5323
    %v5329 = vrot.slane %v5328, 4
    %v5331 = vshll.u32 %v4971, 16
    %v5333 = vrot.slane %v5331, 5
    %v5334 = vsel %vm1443, %v5329, %v5333
    %v5336 = vshrl.u32 %v4972, 16
    %v5338 = vrot.slane %v5336, 4
    %v5339 = vshll.u32 %v4972, 16
    %v5341 = vrot.slane %v5339, 5
    %v5342 = vor.u32 %v5338, %v5341
    %v5343 = vrot.slane %v5342, 4
    %v5345 = vshll.u32 %v4973, 16
    %v5347 = vrot.slane %v5345, 5
    %v5348 = vsel %vm1443, %v5343, %v5347
    %v5349 = vshrl.u32 %v4973, 16
    %v5351 = vrot.slane %v5349, 4
    %v5352 = vor.u32 %v5351, %v5347
    %v5353 = vrot.slane %v5352, 4
    %v5355 = vshll.u32 %v4974, 16
    %v5357 = vrot.slane %v5355, 5
    %v5358 = vsel %vm1443, %v5353, %v5357
    %v5359 = vld [vmem:[%s3 + $0x1c0] sm:$0xf]
    %v5360 = vld [vmem:[%s3 + $0x1c4] sm:$0xf]
    %v5361 = vld [vmem:[%s3 + $0x1c8] sm:$0xf]
    %v5362 = vld [vmem:[%s3 + $0x1cc] sm:$0xf]
    %v5363 = vld [vmem:[%s3 + $0x1d0] sm:$0xf]
    %v5364 = vld [vmem:[%s3 + $0x1d4] sm:$0xf]
    %v5365 = vld [vmem:[%s3 + $0x1d8] sm:$0xf]
    %v5366 = vld [vmem:[%s3 + $0x1dc] sm:$0xf]
    %v5367 = vld [vmem:[%s3 + $0x1e0] sm:$0xf]
    %v5368 = vld [vmem:[%s3 + $0x1e4] sm:$0xf]
    %v5369 = vld [vmem:[%s3 + $0x1e8] sm:$0xf]
    %v5370 = vld [vmem:[%s3 + $0x1ec] sm:$0xf]
    %v5371 = vld [vmem:[%s3 + $0x1f0] sm:$0xf]
    %v5372 = vld [vmem:[%s3 + $0x1f4] sm:$0xf]
    %v5373 = vld [vmem:[%s3 + $0x1f8] sm:$0xf]
    %v5374 = vld [vmem:[%s3 + $0x1fc] sm:$0xf]
    %v5375 = vunpack.c.l.b16 %v4988
    %v5376 = vunpack.c.l.b16 %v4998
    %v5377 = vunpack.c.l.b16 %v5012
    %v5378 = vunpack.c.l.b16 %v5022
    %v5379 = vunpack.c.l.b16 %v5036
    %v5380 = vunpack.c.l.b16 %v5046
    %v5381 = vunpack.c.l.b16 %v5060
    %v5382 = vunpack.c.l.b16 %v5070
    %v5383 = vunpack.c.l.b16 %v5084
    %v5384 = vunpack.c.l.b16 %v5094
    %v5385 = vunpack.c.l.b16 %v5108
    %v5386 = vunpack.c.l.b16 %v5118
    %v5387 = vunpack.c.l.b16 %v5132
    %v5388 = vunpack.c.l.b16 %v5142
    %v5389 = vunpack.c.l.b16 %v5156
    %v5390 = vunpack.c.l.b16 %v5166
    %v5391 = vunpack.c.l.b16 %v5180
    %v5392 = vunpack.c.l.b16 %v5190
    %v5393 = vunpack.c.l.b16 %v5204
    %v5394 = vunpack.c.l.b16 %v5214
    %v5395 = vunpack.c.l.b16 %v5228
    %v5396 = vunpack.c.l.b16 %v5238
    %v5397 = vunpack.c.l.b16 %v5252
    %v5398 = vunpack.c.l.b16 %v5262
    %v5399 = vunpack.c.l.b16 %v5276
    %v5400 = vunpack.c.l.b16 %v5286
    %v5401 = vunpack.c.l.b16 %v5300
    %v5402 = vunpack.c.l.b16 %v5310
    %v5403 = vunpack.c.l.b16 %v5324
    %v5404 = vunpack.c.l.b16 %v5334
    %v5405 = vunpack.c.l.b16 %v5348
    %v5406 = vunpack.c.l.b16 %v5358
    %v5407 = vpack.c.b16 %v5376, %v5375
    %v5408 = vpack.c.b16 %v5378, %v5377
    %v5409 = vpack.c.b16 %v5380, %v5379
    %v5410 = vpack.c.b16 %v5382, %v5381
    %v5411 = vpack.c.b16 %v5384, %v5383
    %v5412 = vpack.c.b16 %v5386, %v5385
    %v5413 = vpack.c.b16 %v5388, %v5387
    %v5414 = vpack.c.b16 %v5390, %v5389
    %v5415 = vpack.c.b16 %v5392, %v5391
    %v5416 = vpack.c.b16 %v5394, %v5393
    %v5417 = vpack.c.b16 %v5396, %v5395
    %v5418 = vpack.c.b16 %v5398, %v5397
    %v5419 = vpack.c.b16 %v5400, %v5399
    %v5420 = vpack.c.b16 %v5402, %v5401
    %v5421 = vpack.c.b16 %v5404, %v5403
    %v5422 = vpack.c.b16 %v5406, %v5405
    %v5455 = vunpack.c.l.b16 %v5359
    %v5456 = vunpack.c.l.b16 %v5360
    %v5457 = vunpack.c.l.b16 %v5361
    %v5458 = vunpack.c.l.b16 %v5362
    %v5459 = vunpack.c.l.b16 %v5363
    %v5460 = vunpack.c.l.b16 %v5364
    %v5461 = vunpack.c.l.b16 %v5365
    %v5462 = vunpack.c.l.b16 %v5366
    %v5463 = vunpack.c.l.b16 %v5367
    %v5464 = vunpack.c.l.b16 %v5368
    %v5465 = vunpack.c.l.b16 %v5369
    %v5466 = vunpack.c.l.b16 %v5370
    %v5467 = vunpack.c.l.b16 %v5371
    %v5468 = vunpack.c.l.b16 %v5372
    %v5469 = vunpack.c.l.b16 %v5373
    %v5470 = vunpack.c.l.b16 %v5374
    %v5471 = vpack.c.b16 %v5456, %v5455
    %v5472 = vpack.c.b16 %v5458, %v5457
    %v5473 = vpack.c.b16 %v5460, %v5459
    %v5474 = vpack.c.b16 %v5462, %v5461
    %v5475 = vpack.c.b16 %v5464, %v5463
    %v5476 = vpack.c.b16 %v5466, %v5465
    %v5477 = vpack.c.b16 %v5468, %v5467
    %v5478 = vpack.c.b16 %v5470, %v5469
    %5487 = vmatprep.subr.bf16.mxu0 0
    %5488 = vmatpush1.bf16.msra.mxu0 %v5471
    %5489 = vmatprep.subr.bf16.mxu0 0
    %5490 = vmatpush1.bf16.msra.mxu0 %v5472
    %5491 = vmatprep.subr.bf16.mxu0 0
    %5492 = vmatpush1.bf16.msra.mxu0 %v5473
    %5493 = vmatprep.subr.bf16.mxu0 0
    %5494 = vmatpush1.bf16.msra.mxu0 %v5474
    %5495 = vmatprep.subr.bf16.mxu0 0
    %5496 = vmatpush1.bf16.msra.mxu0 %v5475
    %5497 = vmatprep.subr.bf16.mxu0 0
    %5498 = vmatpush1.bf16.msra.mxu0 %v5476
    %5499 = vmatprep.subr.bf16.mxu0 0
    %5500 = vmatpush1.bf16.msra.mxu0 %v5477
    %5501 = vmatprep.subr.bf16.mxu0 0
    %5502 = vmatpush1.bf16.msra.mxu0 %v5478
    %5503 = vmatprep.subr.bf16.mxu0 0
    %5504 = vmatpush1.bf16.msra.mxu0 0
    %5505 = vmatprep.subr.bf16.mxu0 0
    %5506 = vmatpush1.bf16.msra.mxu0 0
    %5507 = vmatprep.subr.bf16.mxu0 0
    %5508 = vmatpush1.bf16.msra.mxu0 0
    %5509 = vmatprep.subr.bf16.mxu0 0
    %5510 = vmatpush1.bf16.msra.mxu0 0
    %5511 = vmatprep.subr.bf16.mxu0 0
    %5512 = vmatpush1.bf16.msra.mxu0 0
    %5513 = vmatprep.subr.bf16.mxu0 0
    %5514 = vmatpush1.bf16.msra.mxu0 0
    %5515 = vmatprep.subr.bf16.mxu0 0
    %5516 = vmatpush1.bf16.msra.mxu0 0
    %5517 = vmatprep.subr.bf16.mxu0 0
    %5518 = vmatpush1.bf16.msra.mxu0 0
    %5519 = vmatprep.mubr.bf16.mxu0 0
    %5520 = vmatmul.mubr.bf16.gmra.mrb[0].mxu0 %v5407
    %v5521 = vpop.f32.mrb[0].mxu0
    %v5522 = vadd.f32 0.0, %v5521
    %v5523 = vpop.f32.mrb[0].mxu0
    %v5524 = vpop.f32.mrb[0].mxu0
    %v5525 = vadd.f32 0.0, %v5524
    %v5526 = vpop.f32.mrb[0].mxu0
    %5527 = vmatprep.mubr.bf16.mxu0 0
    %5528 = vmatmul.mubr.bf16.gmra.mrb[0].mxu0 %v5408
    %v5529 = vpop.f32.mrb[0].mxu0
    %v5530 = vadd.f32 0.0, %v5529
    %v5531 = vpop.f32.mrb[0].mxu0
    %v5532 = vpop.f32.mrb[0].mxu0
    %v5533 = vadd.f32 0.0, %v5532
    %v5534 = vpop.f32.mrb[0].mxu0
    %5535 = vmatprep.mubr.bf16.mxu0 0
    %5536 = vmatmul.mubr.bf16.gmra.mrb[0].mxu0 %v5409
    %v5537 = vpop.f32.mrb[0].mxu0
    %v5538 = vadd.f32 0.0, %v5537
    %v5539 = vpop.f32.mrb[0].mxu0
    %v5540 = vpop.f32.mrb[0].mxu0
    %v5541 = vadd.f32 0.0, %v5540
    %v5542 = vpop.f32.mrb[0].mxu0
    %5543 = vmatprep.mubr.bf16.mxu0 0
    %5544 = vmatmul.mubr.bf16.gmra.mrb[0].mxu0 %v5410
    %v5545 = vpop.f32.mrb[0].mxu0
    %v5546 = vadd.f32 0.0, %v5545
    %v5547 = vpop.f32.mrb[0].mxu0
    %v5548 = vpop.f32.mrb[0].mxu0
    %v5549 = vadd.f32 0.0, %v5548
    %v5550 = vpop.f32.mrb[0].mxu0
    %5551 = vmatprep.mubr.bf16.mxu0 0
    %5552 = vmatmul.mubr.bf16.gmra.mrb[0].mxu0 %v5411
    %v5553 = vpop.f32.mrb[0].mxu0
    %v5554 = vadd.f32 0.0, %v5553
    %v5555 = vpop.f32.mrb[0].mxu0
    %v5556 = vpop.f32.mrb[0].mxu0
    %v5557 = vadd.f32 0.0, %v5556
    %v5558 = vpop.f32.mrb[0].mxu0
    %5559 = vmatprep.mubr.bf16.mxu0 0
    %5560 = vmatmul.mubr.bf16.gmra.mrb[0].mxu0 %v5412
    %v5561 = vpop.f32.mrb[0].mxu0
    %v5562 = vadd.f32 0.0, %v5561
    %v5563 = vpop.f32.mrb[0].mxu0
    %v5564 = vpop.f32.mrb[0].mxu0
    %v5565 = vadd.f32 0.0, %v5564
    %v5566 = vpop.f32.mrb[0].mxu0
    %5567 = vmatprep.mubr.bf16.mxu0 0
    %5568 = vmatmul.mubr.bf16.gmra.mrb[0].mxu0 %v5413
    %v5569 = vpop.f32.mrb[0].mxu0
    %v5570 = vadd.f32 0.0, %v5569
    %v5571 = vpop.f32.mrb[0].mxu0
    %v5572 = vpop.f32.mrb[0].mxu0
    %v5573 = vadd.f32 0.0, %v5572
    %v5574 = vpop.f32.mrb[0].mxu0
    %5575 = vmatprep.mubr.bf16.mxu0 0
    %5576 = vmatmul.mubr.bf16.gmra.mrb[0].mxu0 %v5414
    %v5577 = vpop.f32.mrb[0].mxu0
    %v5578 = vadd.f32 0.0, %v5577
    %v5579 = vpop.f32.mrb[0].mxu0
    %v5580 = vpop.f32.mrb[0].mxu0
    %v5581 = vadd.f32 0.0, %v5580
    %v5582 = vpop.f32.mrb[0].mxu0
    %5583 = vmatprep.mubr.bf16.mxu0 0
    %5584 = vmatmul.mubr.bf16.gmra.mrb[0].mxu0 %v5415
    %v5585 = vpop.f32.mrb[0].mxu0
    %v5586 = vadd.f32 0.0, %v5585
    %v5587 = vpop.f32.mrb[0].mxu0
    %v5588 = vpop.f32.mrb[0].mxu0
    %v5589 = vadd.f32 0.0, %v5588
    %v5590 = vpop.f32.mrb[0].mxu0
    %5591 = vmatprep.mubr.bf16.mxu0 0
    %5592 = vmatmul.mubr.bf16.gmra.mrb[0].mxu0 %v5416
    %v5593 = vpop.f32.mrb[0].mxu0
    %v5594 = vadd.f32 0.0, %v5593
    %v5595 = vpop.f32.mrb[0].mxu0
    %v5596 = vpop.f32.mrb[0].mxu0
    %v5597 = vadd.f32 0.0, %v5596
    %v5598 = vpop.f32.mrb[0].mxu0
    %5599 = vmatprep.mubr.bf16.mxu0 0
    %5600 = vmatmul.mubr.bf16.gmra.mrb[0].mxu0 %v5417
    %v5601 = vpop.f32.mrb[0].mxu0
    %v5602 = vadd.f32 0.0, %v5601
    %v5603 = vpop.f32.mrb[0].mxu0
    %v5604 = vpop.f32.mrb[0].mxu0
    %v5605 = vadd.f32 0.0, %v5604
    %v5606 = vpop.f32.mrb[0].mxu0
    %5607 = vmatprep.mubr.bf16.mxu0 0
    %5608 = vmatmul.mubr.bf16.gmra.mrb[0].mxu0 %v5418
    %v5609 = vpop.f32.mrb[0].mxu0
    %v5610 = vadd.f32 0.0, %v5609
    %v5611 = vpop.f32.mrb[0].mxu0
    %v5612 = vpop.f32.mrb[0].mxu0
    %v5613 = vadd.f32 0.0, %v5612
    %v5614 = vpop.f32.mrb[0].mxu0
    %5615 = vmatprep.mubr.bf16.mxu0 0
    %5616 = vmatmul.mubr.bf16.gmra.mrb[0].mxu0 %v5419
    %v5617 = vpop.f32.mrb[0].mxu0
    %v5618 = vadd.f32 0.0, %v5617
    %v5619 = vpop.f32.mrb[0].mxu0
    %v5620 = vpop.f32.mrb[0].mxu0
    %v5621 = vadd.f32 0.0, %v5620
    %v5622 = vpop.f32.mrb[0].mxu0
    %5623 = vmatprep.mubr.bf16.mxu0 0
    %5624 = vmatmul.mubr.bf16.gmra.mrb[0].mxu0 %v5420
    %v5625 = vpop.f32.mrb[0].mxu0
    %v5626 = vadd.f32 0.0, %v5625
    %v5627 = vpop.f32.mrb[0].mxu0
    %v5628 = vpop.f32.mrb[0].mxu0
    %v5629 = vadd.f32 0.0, %v5628
    %v5630 = vpop.f32.mrb[0].mxu0
    %5631 = vmatprep.mubr.bf16.mxu0 0
    %5632 = vmatmul.mubr.bf16.gmra.mrb[0].mxu0 %v5421
    %v5633 = vpop.f32.mrb[0].mxu0
    %v5634 = vadd.f32 0.0, %v5633
    %v5635 = vpop.f32.mrb[0].mxu0
    %v5636 = vpop.f32.mrb[0].mxu0
    %v5637 = vadd.f32 0.0, %v5636
    %v5638 = vpop.f32.mrb[0].mxu0
    %5639 = vmatprep.mubr.bf16.mxu0 0
    %5640 = vmatmul.mubr.bf16.gmra.mrb[0].mxu0 %v5422
    %v5641 = vpop.f32.mrb[0].mxu0
    %v5642 = vadd.f32 0.0, %v5641
    %v5643 = vpop.f32.mrb[0].mxu0
    %v5644 = vpop.f32.mrb[0].mxu0
    %v5645 = vadd.f32 0.0, %v5644
    %v5646 = vpop.f32.mrb[0].mxu0
    %5647 = vdwg.mxu0
    %v5648 = vadd.f32 %v4895, %v5522
    %v5649 = vadd.f32 %v4896, %v5525
    %v5650 = vadd.f32 %v4897, %v5530
    %v5651 = vadd.f32 %v4898, %v5533
    %v5652 = vadd.f32 %v4899, %v5538
    %v5653 = vadd.f32 %v4900, %v5541
    %v5654 = vadd.f32 %v4901, %v5546
    %v5655 = vadd.f32 %v4902, %v5549
    %v5656 = vadd.f32 %v4903, %v5554
    %v5657 = vadd.f32 %v4904, %v5557
    %v5658 = vadd.f32 %v4905, %v5562
    %v5659 = vadd.f32 %v4906, %v5565
    %v5660 = vadd.f32 %v4907, %v5570
    %v5661 = vadd.f32 %v4908, %v5573
    %v5662 = vadd.f32 %v4909, %v5578
    %v5663 = vadd.f32 %v4910, %v5581
    %v5664 = vadd.f32 %v4911, %v5586
    %v5665 = vadd.f32 %v4912, %v5589
    %v5666 = vadd.f32 %v4913, %v5594
    %v5667 = vadd.f32 %v4914, %v5597
    %v5668 = vadd.f32 %v4915, %v5602
    %v5669 = vadd.f32 %v4916, %v5605
    %v5670 = vadd.f32 %v4917, %v5610
    %v5671 = vadd.f32 %v4918, %v5613
    %v5672 = vadd.f32 %v4919, %v5618
    %v5673 = vadd.f32 %v4920, %v5621
    %v5674 = vadd.f32 %v4921, %v5626
    %v5675 = vadd.f32 %v4922, %v5629
    %v5676 = vadd.f32 %v4923, %v5634
    %v5677 = vadd.f32 %v4924, %v5637
    %v5678 = vadd.f32 %v4925, %v5642
    %v5679 = vadd.f32 %v4926, %v5645
    %v5680 = vld [vmem:[%s4541] sm:$0xe]
    %v5681 = vld [vmem:[%s4541 + $0xc] sm:$0xe]
    %v5682 = vld [vmem:[%s4541 + $0x18] sm:$0xe]
    %v5683 = vld [vmem:[%s4541 + $0x24] sm:$0xe]
    %v5684 = vld [vmem:[%s4541 + $0x30] sm:$0xe]
    %v5685 = vld [vmem:[%s4541 + $0x3c] sm:$0xe]
    %v5686 = vld [vmem:[%s4541 + $0x48] sm:$0xe]
    %v5687 = vld [vmem:[%s4541 + $0x54] sm:$0xe]
    %v5688 = vld [vmem:[%s4541 + $0x60] sm:$0xe]
    %v5689 = vld [vmem:[%s4541 + $0x6c] sm:$0xe]
    %v5690 = vld [vmem:[%s4541 + $0x78] sm:$0xe]
    %v5691 = vld [vmem:[%s4541 + $0x84] sm:$0xe]
    %v5692 = vld [vmem:[%s4541 + $0x90] sm:$0xe]
    %v5693 = vld [vmem:[%s4541 + $0x9c] sm:$0xe]
    %v5694 = vld [vmem:[%s4541 + $0xa8] sm:$0xe]
    %v5695 = vld [vmem:[%s4541 + $0xb4] sm:$0xe]
    %v5744 = vrot.slane %v5680, 5
    %v5745 = vrot.slane %v5744, 4
    %v5746 = vrot.slane %v4928, 5
    %v5747 = vsel %vm2472, %v5745, %v5746
    %v5748 = vrot.slane %v5746, 4
    %v5749 = vrot.slane %v4929, 5
    %v5750 = vsel %vm2472, %v5748, %v5749
    %v5751 = vrot.slane %v5681, 5
    %v5752 = vrot.slane %v5751, 4
    %v5753 = vrot.slane %v4931, 5
    %v5754 = vsel %vm2472, %v5752, %v5753
    %v5755 = vrot.slane %v5753, 4
    %v5756 = vrot.slane %v4932, 5
    %v5757 = vsel %vm2472, %v5755, %v5756
    %v5758 = vrot.slane %v5682, 5
    %v5759 = vrot.slane %v5758, 4
    %v5760 = vrot.slane %v4934, 5
    %v5761 = vsel %vm2472, %v5759, %v5760
    %v5762 = vrot.slane %v5760, 4
    %v5763 = vrot.slane %v4935, 5
    %v5764 = vsel %vm2472, %v5762, %v5763
    %v5765 = vrot.slane %v5683, 5
    %v5766 = vrot.slane %v5765, 4
    %v5767 = vrot.slane %v4937, 5
    %v5768 = vsel %vm2472, %v5766, %v5767
    %v5769 = vrot.slane %v5767, 4
    %v5770 = vrot.slane %v4938, 5
    %v5771 = vsel %vm2472, %v5769, %v5770
    %v5772 = vrot.slane %v5684, 5
    %v5773 = vrot.slane %v5772, 4
    %v5774 = vrot.slane %v4940, 5
    %v5775 = vsel %vm2472, %v5773, %v5774
    %v5776 = vrot.slane %v5774, 4
    %v5777 = vrot.slane %v4941, 5
    %v5778 = vsel %vm2472, %v5776, %v5777
    %v5779 = vrot.slane %v5685, 5
    %v5780 = vrot.slane %v5779, 4
    %v5781 = vrot.slane %v4943, 5
    %v5782 = vsel %vm2472, %v5780, %v5781
    %v5783 = vrot.slane %v5781, 4
    %v5784 = vrot.slane %v4944, 5
    %v5785 = vsel %vm2472, %v5783, %v5784
    %v5786 = vrot.slane %v5686, 5
    %v5787 = vrot.slane %v5786, 4
    %v5788 = vrot.slane %v4946, 5
    %v5789 = vsel %vm2472, %v5787, %v5788
    %v5790 = vrot.slane %v5788, 4
    %v5791 = vrot.slane %v4947, 5
    %v5792 = vsel %vm2472, %v5790, %v5791
    %v5793 = vrot.slane %v5687, 5
    %v5794 = vrot.slane %v5793, 4
    %v5795 = vrot.slane %v4949, 5
    %v5796 = vsel %vm2472, %v5794, %v5795
    %v5797 = vrot.slane %v5795, 4
    %v5798 = vrot.slane %v4950, 5
    %v5799 = vsel %vm2472, %v5797, %v5798
    %v5800 = vrot.slane %v5688, 5
    %v5801 = vrot.slane %v5800, 4
    %v5802 = vrot.slane %v4952, 5
    %v5803 = vsel %vm2472, %v5801, %v5802
    %v5804 = vrot.slane %v5802, 4
    %v5805 = vrot.slane %v4953, 5
    %v5806 = vsel %vm2472, %v5804, %v5805
    %v5807 = vrot.slane %v5689, 5
    %v5808 = vrot.slane %v5807, 4
    %v5809 = vrot.slane %v4955, 5
    %v5810 = vsel %vm2472, %v5808, %v5809
    %v5811 = vrot.slane %v5809, 4
    %v5812 = vrot.slane %v4956, 5
    %v5813 = vsel %vm2472, %v5811, %v5812
    %v5814 = vrot.slane %v5690, 5
    %v5815 = vrot.slane %v5814, 4
    %v5816 = vrot.slane %v4958, 5
    %v5817 = vsel %vm2472, %v5815, %v5816
    %v5818 = vrot.slane %v5816, 4
    %v5819 = vrot.slane %v4959, 5
    %v5820 = vsel %vm2472, %v5818, %v5819
    %v5821 = vrot.slane %v5691, 5
    %v5822 = vrot.slane %v5821, 4
    %v5823 = vrot.slane %v4961, 5
    %v5824 = vsel %vm2472, %v5822, %v5823
    %v5825 = vrot.slane %v5823, 4
    %v5826 = vrot.slane %v4962, 5
    %v5827 = vsel %vm2472, %v5825, %v5826
    %v5828 = vrot.slane %v5692, 5
    %v5829 = vrot.slane %v5828, 4
    %v5830 = vrot.slane %v4964, 5
    %v5831 = vsel %vm2472, %v5829, %v5830
    %v5832 = vrot.slane %v5830, 4
    %v5833 = vrot.slane %v4965, 5
    %v5834 = vsel %vm2472, %v5832, %v5833
    %v5835 = vrot.slane %v5693, 5
    %v5836 = vrot.slane %v5835, 4
    %v5837 = vrot.slane %v4967, 5
    %v5838 = vsel %vm2472, %v5836, %v5837
    %v5839 = vrot.slane %v5837, 4
    %v5840 = vrot.slane %v4968, 5
    %v5841 = vsel %vm2472, %v5839, %v5840
    %v5842 = vrot.slane %v5694, 5
    %v5843 = vrot.slane %v5842, 4
    %v5844 = vrot.slane %v4970, 5
    %v5845 = vsel %vm2472, %v5843, %v5844
    %v5846 = vrot.slane %v5844, 4
    %v5847 = vrot.slane %v4971, 5
    %v5848 = vsel %vm2472, %v5846, %v5847
    %v5849 = vrot.slane %v5695, 5
    %v5850 = vrot.slane %v5849, 4
    %v5851 = vrot.slane %v4973, 5
    %v5852 = vsel %vm2472, %v5850, %v5851
    %v5853 = vrot.slane %v5851, 4
    %v5854 = vrot.slane %v4974, 5
    %v5855 = vsel %vm2472, %v5853, %v5854
    %v5856 = vld [vmem:[%s3 + $0x200] sm:$0xf]
    %v5857 = vld [vmem:[%s3 + $0x204] sm:$0xf]
    %v5858 = vld [vmem:[%s3 + $0x208] sm:$0xf]
    %v5859 = vld [vmem:[%s3 + $0x20c] sm:$0xf]
    %v5860 = vld [vmem:[%s3 + $0x210] sm:$0xf]
    %v5861 = vld [vmem:[%s3 + $0x214] sm:$0xf]
    %v5862 = vld [vmem:[%s3 + $0x218] sm:$0xf]
    %v5863 = vld [vmem:[%s3 + $0x21c] sm:$0xf]
    %v5864 = vld [vmem:[%s3 + $0x220] sm:$0xf]
    %v5865 = vld [vmem:[%s3 + $0x224] sm:$0xf]
    %v5866 = vld [vmem:[%s3 + $0x228] sm:$0xf]
    %v5867 = vld [vmem:[%s3 + $0x22c] sm:$0xf]
    %v5868 = vld [vmem:[%s3 + $0x230] sm:$0xf]
    %v5869 = vld [vmem:[%s3 + $0x234] sm:$0xf]
    %v5870 = vld [vmem:[%s3 + $0x238] sm:$0xf]
    %v5871 = vld [vmem:[%s3 + $0x23c] sm:$0xf]
    %v5872 = vunpack.c.l.b16 %v5747
    %v5873 = vunpack.c.l.b16 %v5750
    %v5874 = vunpack.c.l.b16 %v5754
    %v5875 = vunpack.c.l.b16 %v5757
    %v5876 = vunpack.c.l.b16 %v5761
    %v5877 = vunpack.c.l.b16 %v5764
    %v5878 = vunpack.c.l.b16 %v5768
    %v5879 = vunpack.c.l.b16 %v5771
    %v5880 = vunpack.c.l.b16 %v5775
    %v5881 = vunpack.c.l.b16 %v5778
    %v5882 = vunpack.c.l.b16 %v5782
    %v5883 = vunpack.c.l.b16 %v5785
    %v5884 = vunpack.c.l.b16 %v5789
    %v5885 = vunpack.c.l.b16 %v5792
    %v5886 = vunpack.c.l.b16 %v5796
    %v5887 = vunpack.c.l.b16 %v5799
    %v5888 = vunpack.c.l.b16 %v5803
    %v5889 = vunpack.c.l.b16 %v5806
    %v5890 = vunpack.c.l.b16 %v5810
    %v5891 = vunpack.c.l.b16 %v5813
    %v5892 = vunpack.c.l.b16 %v5817
    %v5893 = vunpack.c.l.b16 %v5820
    %v5894 = vunpack.c.l.b16 %v5824
    %v5895 = vunpack.c.l.b16 %v5827
    %v5896 = vunpack.c.l.b16 %v5831
    %v5897 = vunpack.c.l.b16 %v5834
    %v5898 = vunpack.c.l.b16 %v5838
    %v5899 = vunpack.c.l.b16 %v5841
    %v5900 = vunpack.c.l.b16 %v5845
    %v5901 = vunpack.c.l.b16 %v5848
    %v5902 = vunpack.c.l.b16 %v5852
    %v5903 = vunpack.c.l.b16 %v5855
    %v5904 = vpack.c.b16 %v5873, %v5872
    %v5905 = vpack.c.b16 %v5875, %v5874
    %v5906 = vpack.c.b16 %v5877, %v5876
    %v5907 = vpack.c.b16 %v5879, %v5878
    %v5908 = vpack.c.b16 %v5881, %v5880
    %v5909 = vpack.c.b16 %v5883, %v5882
    %v5910 = vpack.c.b16 %v5885, %v5884
    %v5911 = vpack.c.b16 %v5887, %v5886
    %v5912 = vpack.c.b16 %v5889, %v5888
    %v5913 = vpack.c.b16 %v5891, %v5890
    %v5914 = vpack.c.b16 %v5893, %v5892
    %v5915 = vpack.c.b16 %v5895, %v5894
    %v5916 = vpack.c.b16 %v5897, %v5896
    %v5917 = vpack.c.b16 %v5899, %v5898
    %v5918 = vpack.c.b16 %v5901, %v5900
    %v5919 = vpack.c.b16 %v5903, %v5902
    %v5952 = vunpack.c.l.b16 %v5856
    %v5953 = vunpack.c.l.b16 %v5857
    %v5954 = vunpack.c.l.b16 %v5858
    %v5955 = vunpack.c.l.b16 %v5859
    %v5956 = vunpack.c.l.b16 %v5860
    %v5957 = vunpack.c.l.b16 %v5861
    %v5958 = vunpack.c.l.b16 %v5862
    %v5959 = vunpack.c.l.b16 %v5863
    %v5960 = vunpack.c.l.b16 %v5864
    %v5961 = vunpack.c.l.b16 %v5865
    %v5962 = vunpack.c.l.b16 %v5866
    %v5963 = vunpack.c.l.b16 %v5867
    %v5964 = vunpack.c.l.b16 %v5868
    %v5965 = vunpack.c.l.b16 %v5869
    %v5966 = vunpack.c.l.b16 %v5870
    %v5967 = vunpack.c.l.b16 %v5871
    %v5968 = vpack.c.b16 %v5953, %v5952
    %v5969 = vpack.c.b16 %v5955, %v5954
    %v5970 = vpack.c.b16 %v5957, %v5956
    %v5971 = vpack.c.b16 %v5959, %v5958
    %v5972 = vpack.c.b16 %v5961, %v5960
    %v5973 = vpack.c.b16 %v5963, %v5962
    %v5974 = vpack.c.b16 %v5965, %v5964
    %v5975 = vpack.c.b16 %v5967, %v5966
    %5984 = vmatprep.subr.bf16.mxu0 0
    %5985 = vmatpush1.bf16.msra.mxu0 %v5968
    %5986 = vmatprep.subr.bf16.mxu0 0
    %5987 = vmatpush1.bf16.msra.mxu0 %v5969
    %5988 = vmatprep.subr.bf16.mxu0 0
    %5989 = vmatpush1.bf16.msra.mxu0 %v5970
    %5990 = vmatprep.subr.bf16.mxu0 0
    %5991 = vmatpush1.bf16.msra.mxu0 %v5971
    %5992 = vmatprep.subr.bf16.mxu0 0
    %5993 = vmatpush1.bf16.msra.mxu0 %v5972
    %5994 = vmatprep.subr.bf16.mxu0 0
    %5995 = vmatpush1.bf16.msra.mxu0 %v5973
    %5996 = vmatprep.subr.bf16.mxu0 0
    %5997 = vmatpush1.bf16.msra.mxu0 %v5974
    %5998 = vmatprep.subr.bf16.mxu0 0
    %5999 = vmatpush1.bf16.msra.mxu0 %v5975
    %6000 = vmatprep.subr.bf16.mxu0 0
    %6001 = vmatpush1.bf16.msra.mxu0 0
    %6002 = vmatprep.subr.bf16.mxu0 0
    %6003 = vmatpush1.bf16.msra.mxu0 0
    %6004 = vmatprep.subr.bf16.mxu0 0
    %6005 = vmatpush1.bf16.msra.mxu0 0
    %6006 = vmatprep.subr.bf16.mxu0 0
    %6007 = vmatpush1.bf16.msra.mxu0 0
    %6008 = vmatprep.subr.bf16.mxu0 0
    %6009 = vmatpush1.bf16.msra.mxu0 0
    %6010 = vmatprep.subr.bf16.mxu0 0
    %6011 = vmatpush1.bf16.msra.mxu0 0
    %6012 = vmatprep.subr.bf16.mxu0 0
    %6013 = vmatpush1.bf16.msra.mxu0 0
    %6014 = vmatprep.subr.bf16.mxu0 0
    %6015 = vmatpush1.bf16.msra.mxu0 0
    %6016 = vmatprep.mubr.bf16.mxu0 0
    %6017 = vmatmul.mubr.bf16.gmra.mrb[0].mxu0 %v5904
    %v6018 = vpop.f32.mrb[0].mxu0
    %v6019 = vadd.f32 0.0, %v6018
    %v6020 = vpop.f32.mrb[0].mxu0
    %v6021 = vpop.f32.mrb[0].mxu0
    %v6022 = vadd.f32 0.0, %v6021
    %v6023 = vpop.f32.mrb[0].mxu0
    %6024 = vmatprep.mubr.bf16.mxu0 0
    %6025 = vmatmul.mubr.bf16.gmra.mrb[0].mxu0 %v5905
    %v6026 = vpop.f32.mrb[0].mxu0
    %v6027 = vadd.f32 0.0, %v6026
    %v6028 = vpop.f32.mrb[0].mxu0
    %v6029 = vpop.f32.mrb[0].mxu0
    %v6030 = vadd.f32 0.0, %v6029
    %v6031 = vpop.f32.mrb[0].mxu0
    %6032 = vmatprep.mubr.bf16.mxu0 0
    %6033 = vmatmul.mubr.bf16.gmra.mrb[0].mxu0 %v5906
    %v6034 = vpop.f32.mrb[0].mxu0
    %v6035 = vadd.f32 0.0, %v6034
    %v6036 = vpop.f32.mrb[0].mxu0
    %v6037 = vpop.f32.mrb[0].mxu0
    %v6038 = vadd.f32 0.0, %v6037
    %v6039 = vpop.f32.mrb[0].mxu0
    %6040 = vmatprep.mubr.bf16.mxu0 0
    %6041 = vmatmul.mubr.bf16.gmra.mrb[0].mxu0 %v5907
    %v6042 = vpop.f32.mrb[0].mxu0
    %v6043 = vadd.f32 0.0, %v6042
    %v6044 = vpop.f32.mrb[0].mxu0
    %v6045 = vpop.f32.mrb[0].mxu0
    %v6046 = vadd.f32 0.0, %v6045
    %v6047 = vpop.f32.mrb[0].mxu0
    %6048 = vmatprep.mubr.bf16.mxu0 0
    %6049 = vmatmul.mubr.bf16.gmra.mrb[0].mxu0 %v5908
    %v6050 = vpop.f32.mrb[0].mxu0
    %v6051 = vadd.f32 0.0, %v6050
    %v6052 = vpop.f32.mrb[0].mxu0
    %v6053 = vpop.f32.mrb[0].mxu0
    %v6054 = vadd.f32 0.0, %v6053
    %v6055 = vpop.f32.mrb[0].mxu0
    %6056 = vmatprep.mubr.bf16.mxu0 0
    %6057 = vmatmul.mubr.bf16.gmra.mrb[0].mxu0 %v5909
    %v6058 = vpop.f32.mrb[0].mxu0
    %v6059 = vadd.f32 0.0, %v6058
    %v6060 = vpop.f32.mrb[0].mxu0
    %v6061 = vpop.f32.mrb[0].mxu0
    %v6062 = vadd.f32 0.0, %v6061
    %v6063 = vpop.f32.mrb[0].mxu0
    %6064 = vmatprep.mubr.bf16.mxu0 0
    %6065 = vmatmul.mubr.bf16.gmra.mrb[0].mxu0 %v5910
    %v6066 = vpop.f32.mrb[0].mxu0
    %v6067 = vadd.f32 0.0, %v6066
    %v6068 = vpop.f32.mrb[0].mxu0
    %v6069 = vpop.f32.mrb[0].mxu0
    %v6070 = vadd.f32 0.0, %v6069
    %v6071 = vpop.f32.mrb[0].mxu0
    %6072 = vmatprep.mubr.bf16.mxu0 0
    %6073 = vmatmul.mubr.bf16.gmra.mrb[0].mxu0 %v5911
    %v6074 = vpop.f32.mrb[0].mxu0
    %v6075 = vadd.f32 0.0, %v6074
    %v6076 = vpop.f32.mrb[0].mxu0
    %v6077 = vpop.f32.mrb[0].mxu0
    %v6078 = vadd.f32 0.0, %v6077
    %v6079 = vpop.f32.mrb[0].mxu0
    %6080 = vmatprep.mubr.bf16.mxu0 0
    %6081 = vmatmul.mubr.bf16.gmra.mrb[0].mxu0 %v5912
    %v6082 = vpop.f32.mrb[0].mxu0
    %v6083 = vadd.f32 0.0, %v6082
    %v6084 = vpop.f32.mrb[0].mxu0
    %v6085 = vpop.f32.mrb[0].mxu0
    %v6086 = vadd.f32 0.0, %v6085
    %v6087 = vpop.f32.mrb[0].mxu0
    %6088 = vmatprep.mubr.bf16.mxu0 0
    %6089 = vmatmul.mubr.bf16.gmra.mrb[0].mxu0 %v5913
    %v6090 = vpop.f32.mrb[0].mxu0
    %v6091 = vadd.f32 0.0, %v6090
    %v6092 = vpop.f32.mrb[0].mxu0
    %v6093 = vpop.f32.mrb[0].mxu0
    %v6094 = vadd.f32 0.0, %v6093
    %v6095 = vpop.f32.mrb[0].mxu0
    %6096 = vmatprep.mubr.bf16.mxu0 0
    %6097 = vmatmul.mubr.bf16.gmra.mrb[0].mxu0 %v5914
    %v6098 = vpop.f32.mrb[0].mxu0
    %v6099 = vadd.f32 0.0, %v6098
    %v6100 = vpop.f32.mrb[0].mxu0
    %v6101 = vpop.f32.mrb[0].mxu0
    %v6102 = vadd.f32 0.0, %v6101
    %v6103 = vpop.f32.mrb[0].mxu0
    %6104 = vmatprep.mubr.bf16.mxu0 0
    %6105 = vmatmul.mubr.bf16.gmra.mrb[0].mxu0 %v5915
    %v6106 = vpop.f32.mrb[0].mxu0
    %v6107 = vadd.f32 0.0, %v6106
    %v6108 = vpop.f32.mrb[0].mxu0
    %v6109 = vpop.f32.mrb[0].mxu0
    %v6110 = vadd.f32 0.0, %v6109
    %v6111 = vpop.f32.mrb[0].mxu0
    %6112 = vmatprep.mubr.bf16.mxu0 0
    %6113 = vmatmul.mubr.bf16.gmra.mrb[0].mxu0 %v5916
    %v6114 = vpop.f32.mrb[0].mxu0
    %v6115 = vadd.f32 0.0, %v6114
    %v6116 = vpop.f32.mrb[0].mxu0
    %v6117 = vpop.f32.mrb[0].mxu0
    %v6118 = vadd.f32 0.0, %v6117
    %v6119 = vpop.f32.mrb[0].mxu0
    %6120 = vmatprep.mubr.bf16.mxu0 0
    %6121 = vmatmul.mubr.bf16.gmra.mrb[0].mxu0 %v5917
    %v6122 = vpop.f32.mrb[0].mxu0
    %v6123 = vadd.f32 0.0, %v6122
    %v6124 = vpop.f32.mrb[0].mxu0
    %v6125 = vpop.f32.mrb[0].mxu0
    %v6126 = vadd.f32 0.0, %v6125
    %v6127 = vpop.f32.mrb[0].mxu0
    %6128 = vmatprep.mubr.bf16.mxu0 0
    %6129 = vmatmul.mubr.bf16.gmra.mrb[0].mxu0 %v5918
    %v6130 = vpop.f32.mrb[0].mxu0
    %v6131 = vadd.f32 0.0, %v6130
    %v6132 = vpop.f32.mrb[0].mxu0
    %v6133 = vpop.f32.mrb[0].mxu0
    %v6134 = vadd.f32 0.0, %v6133
    %v6135 = vpop.f32.mrb[0].mxu0
    %6136 = vmatprep.mubr.bf16.mxu0 0
    %6137 = vmatmul.mubr.bf16.gmra.mrb[0].mxu0 %v5919
    %v6138 = vpop.f32.mrb[0].mxu0
    %v6139 = vadd.f32 0.0, %v6138
    %v6140 = vpop.f32.mrb[0].mxu0
    %v6141 = vpop.f32.mrb[0].mxu0
    %v6142 = vadd.f32 0.0, %v6141
    %v6143 = vpop.f32.mrb[0].mxu0
    %6144 = vdwg.mxu0
    %v6145 = vadd.f32 %v5648, %v6019
    %v6146 = vadd.f32 %v5649, %v6022
    %v6147 = vadd.f32 %v5650, %v6027
    %v6148 = vadd.f32 %v5651, %v6030
    %v6149 = vadd.f32 %v5652, %v6035
    %v6150 = vadd.f32 %v5653, %v6038
    %v6151 = vadd.f32 %v5654, %v6043
    %v6152 = vadd.f32 %v5655, %v6046
    %v6153 = vadd.f32 %v5656, %v6051
    %v6154 = vadd.f32 %v5657, %v6054
    %v6155 = vadd.f32 %v5658, %v6059
    %v6156 = vadd.f32 %v5659, %v6062
    %v6157 = vadd.f32 %v5660, %v6067
    %v6158 = vadd.f32 %v5661, %v6070
    %v6159 = vadd.f32 %v5662, %v6075
    %v6160 = vadd.f32 %v5663, %v6078
    %v6161 = vadd.f32 %v5664, %v6083
    %v6162 = vadd.f32 %v5665, %v6086
    %v6163 = vadd.f32 %v5666, %v6091
    %v6164 = vadd.f32 %v5667, %v6094
    %v6165 = vadd.f32 %v5668, %v6099
    %v6166 = vadd.f32 %v5669, %v6102
    %v6167 = vadd.f32 %v5670, %v6107
    %v6168 = vadd.f32 %v5671, %v6110
    %v6169 = vadd.f32 %v5672, %v6115
    %v6170 = vadd.f32 %v5673, %v6118
    %v6171 = vadd.f32 %v5674, %v6123
    %v6172 = vadd.f32 %v5675, %v6126
    %v6173 = vadd.f32 %v5676, %v6131
    %v6174 = vadd.f32 %v5677, %v6134
    %v6175 = vadd.f32 %v5678, %v6139
    %v6176 = vadd.f32 %v5679, %v6142
    %v6177 = vld [vmem:[%s4] sm:$0x1]
    %v6179 = vlaneseq
    %v6180 = vshrl.u32 %v6179, 7
    %v6181 = vsub.s32 0, %v6180
    %v6182 = vrot.slane %v6177, %v6181
    %v6184 = vadd.f32 %v6145, %v6182
    %v6185 = vadd.f32 %v6146, %v6182
    %v6186 = vadd.f32 %v6147, %v6182
    %v6187 = vadd.f32 %v6148, %v6182
    %v6188 = vadd.f32 %v6149, %v6182
    %v6189 = vadd.f32 %v6150, %v6182
    %v6190 = vadd.f32 %v6151, %v6182
    %v6191 = vadd.f32 %v6152, %v6182
    %v6192 = vadd.f32 %v6153, %v6182
    %v6193 = vadd.f32 %v6154, %v6182
    %v6194 = vadd.f32 %v6155, %v6182
    %v6195 = vadd.f32 %v6156, %v6182
    %v6196 = vadd.f32 %v6157, %v6182
    %v6197 = vadd.f32 %v6158, %v6182
    %v6198 = vadd.f32 %v6159, %v6182
    %v6199 = vadd.f32 %v6160, %v6182
    %v6200 = vadd.f32 %v6161, %v6182
    %v6201 = vadd.f32 %v6162, %v6182
    %v6202 = vadd.f32 %v6163, %v6182
    %v6203 = vadd.f32 %v6164, %v6182
    %v6204 = vadd.f32 %v6165, %v6182
    %v6205 = vadd.f32 %v6166, %v6182
    %v6206 = vadd.f32 %v6167, %v6182
    %v6207 = vadd.f32 %v6168, %v6182
    %v6208 = vadd.f32 %v6169, %v6182
    %v6209 = vadd.f32 %v6170, %v6182
    %v6210 = vadd.f32 %v6171, %v6182
    %v6211 = vadd.f32 %v6172, %v6182
    %v6212 = vadd.f32 %v6173, %v6182
    %v6213 = vadd.f32 %v6174, %v6182
    %v6214 = vadd.f32 %v6175, %v6182
    %v6215 = vadd.f32 %v6176, %v6182
    %v6216 = vmax.f32 %v6184, 0.0
    %v6217 = vmax.f32 %v6185, 0.0
    %v6218 = vmax.f32 %v6186, 0.0
    %v6219 = vmax.f32 %v6187, 0.0
    %v6220 = vmax.f32 %v6188, 0.0
    %v6221 = vmax.f32 %v6189, 0.0
    %v6222 = vmax.f32 %v6190, 0.0
    %v6223 = vmax.f32 %v6191, 0.0
    %v6224 = vmax.f32 %v6192, 0.0
    %v6225 = vmax.f32 %v6193, 0.0
    %v6226 = vmax.f32 %v6194, 0.0
    %v6227 = vmax.f32 %v6195, 0.0
    %v6228 = vmax.f32 %v6196, 0.0
    %v6229 = vmax.f32 %v6197, 0.0
    %v6230 = vmax.f32 %v6198, 0.0
    %v6231 = vmax.f32 %v6199, 0.0
    %v6232 = vmax.f32 %v6200, 0.0
    %v6233 = vmax.f32 %v6201, 0.0
    %v6234 = vmax.f32 %v6202, 0.0
    %v6235 = vmax.f32 %v6203, 0.0
    %v6236 = vmax.f32 %v6204, 0.0
    %v6237 = vmax.f32 %v6205, 0.0
    %v6238 = vmax.f32 %v6206, 0.0
    %v6239 = vmax.f32 %v6207, 0.0
    %v6240 = vmax.f32 %v6208, 0.0
    %v6241 = vmax.f32 %v6209, 0.0
    %v6242 = vmax.f32 %v6210, 0.0
    %v6243 = vmax.f32 %v6211, 0.0
    %v6244 = vmax.f32 %v6212, 0.0
    %v6245 = vmax.f32 %v6213, 0.0
    %v6246 = vmax.f32 %v6214, 0.0
    %v6247 = vmax.f32 %v6215, 0.0
    %v6248 = vadd.f32 %v6216, %v6217
    %v6249 = vadd.f32 %v6248, %v6218
    %v6250 = vadd.f32 %v6249, %v6219
    %v6251 = vadd.f32 %v6250, %v6220
    %v6252 = vadd.f32 %v6251, %v6221
    %v6253 = vadd.f32 %v6252, %v6222
    %v6254 = vadd.f32 %v6253, %v6223
    %v6255 = vadd.f32 %v6254, %v6224
    %v6256 = vadd.f32 %v6255, %v6225
    %v6257 = vadd.f32 %v6256, %v6226
    %v6258 = vadd.f32 %v6257, %v6227
    %v6259 = vadd.f32 %v6258, %v6228
    %v6260 = vadd.f32 %v6259, %v6229
    %v6261 = vadd.f32 %v6260, %v6230
    %v6262 = vadd.f32 %v6261, %v6231
    %v6263 = vadd.f32 %v6262, %v6232
    %v6264 = vadd.f32 %v6263, %v6233
    %v6265 = vadd.f32 %v6264, %v6234
    %v6266 = vadd.f32 %v6265, %v6235
    %v6267 = vadd.f32 %v6266, %v6236
    %v6268 = vadd.f32 %v6267, %v6237
    %v6269 = vadd.f32 %v6268, %v6238
    %v6270 = vadd.f32 %v6269, %v6239
    %v6271 = vadd.f32 %v6270, %v6240
    %v6272 = vadd.f32 %v6271, %v6241
    %v6273 = vadd.f32 %v6272, %v6242
    %v6274 = vadd.f32 %v6273, %v6243
    %v6275 = vadd.f32 %v6274, %v6244
    %v6276 = vadd.f32 %v6275, %v6245
    %v6277 = vadd.f32 %v6276, %v6246
    %v6278 = vadd.f32 %v6277, %v6247
    %v6279 = vrot.slane %v6278, 4
    %v6280 = vadd.f32 %v6278, %v6279
    %v6281 = vrot.slane %v6280, 2
    %v6282 = vadd.f32 %v6280, %v6281
    %v6283 = vrot.slane %v6282, 1
    %v6284 = vadd.f32 %v6282, %v6283
    %v6285 = vmul.f32 %v6284, 0.00390625
    %v6286 = vpack.c.bf16 %v6285, %v6285
    %v6287 = vld [vmem:[%s5] sm:$0xf]
    %v6288 = vld [vmem:[%s5 + $0x4] sm:$0xf]
    %v6289 = vld [vmem:[%s5 + $0x8] sm:$0xf]
    %v6290 = vld [vmem:[%s5 + $0xc] sm:$0xf]
    %v6291 = vld [vmem:[%s5 + $0x10] sm:$0xf]
    %v6292 = vld [vmem:[%s5 + $0x14] sm:$0xf]
    %v6293 = vld [vmem:[%s5 + $0x18] sm:$0xf]
    %v6294 = vld [vmem:[%s5 + $0x1c] sm:$0xf]
    %v6295 = vld [vmem:[%s5 + $0x20] sm:$0xf]
    %v6296 = vld [vmem:[%s5 + $0x24] sm:$0xf]
    %v6297 = vld [vmem:[%s5 + $0x28] sm:$0xf]
    %v6298 = vld [vmem:[%s5 + $0x2c] sm:$0xf]
    %v6299 = vld [vmem:[%s5 + $0x30] sm:$0xf]
    %v6300 = vld [vmem:[%s5 + $0x34] sm:$0xf]
    %v6301 = vld [vmem:[%s5 + $0x38] sm:$0xf]
    %v6302 = vld [vmem:[%s5 + $0x3c] sm:$0xf]
    %v6303 = vld [vmem:[%s6] sm:$0x1]
    %v6320 = vunpack.c.l.b16 %v6287
    %v6321 = vunpack.c.l.b16 %v6288
    %v6322 = vunpack.c.l.b16 %v6289
    %v6323 = vunpack.c.l.b16 %v6290
    %v6324 = vunpack.c.l.b16 %v6291
    %v6325 = vunpack.c.l.b16 %v6292
    %v6326 = vunpack.c.l.b16 %v6293
    %v6327 = vunpack.c.l.b16 %v6294
    %v6328 = vunpack.c.l.b16 %v6295
    %v6329 = vunpack.c.l.b16 %v6296
    %v6330 = vunpack.c.l.b16 %v6297
    %v6331 = vunpack.c.l.b16 %v6298
    %v6332 = vunpack.c.l.b16 %v6299
    %v6333 = vunpack.c.l.b16 %v6300
    %v6334 = vunpack.c.l.b16 %v6301
    %v6335 = vunpack.c.l.b16 %v6302
    %v6336 = vpack.c.b16 %v6321, %v6320
    %v6337 = vpack.c.b16 %v6323, %v6322
    %v6338 = vpack.c.b16 %v6325, %v6324
    %v6339 = vpack.c.b16 %v6327, %v6326
    %v6340 = vpack.c.b16 %v6329, %v6328
    %v6341 = vpack.c.b16 %v6331, %v6330
    %v6342 = vpack.c.b16 %v6333, %v6332
    %v6343 = vpack.c.b16 %v6335, %v6334
    %6352 = vmatprep.subr.bf16.mxu0 0
    %6353 = vmatpush1.bf16.msra.mxu0 %v6336
    %6354 = vmatprep.subr.bf16.mxu0 0
    %6355 = vmatpush1.bf16.msra.mxu0 %v6337
    %6356 = vmatprep.subr.bf16.mxu0 0
    %6357 = vmatpush1.bf16.msra.mxu0 %v6338
    %6358 = vmatprep.subr.bf16.mxu0 0
    %6359 = vmatpush1.bf16.msra.mxu0 %v6339
    %6360 = vmatprep.subr.bf16.mxu0 0
    %6361 = vmatpush1.bf16.msra.mxu0 %v6340
    %6362 = vmatprep.subr.bf16.mxu0 0
    %6363 = vmatpush1.bf16.msra.mxu0 %v6341
    %6364 = vmatprep.subr.bf16.mxu0 0
    %6365 = vmatpush1.bf16.msra.mxu0 %v6342
    %6366 = vmatprep.subr.bf16.mxu0 0
    %6367 = vmatpush1.bf16.msra.mxu0 %v6343
    %6368 = vmatprep.subr.bf16.mxu0 0
    %6369 = vmatpush1.bf16.msra.mxu0 0
    %6370 = vmatprep.subr.bf16.mxu0 0
    %6371 = vmatpush1.bf16.msra.mxu0 0
    %6372 = vmatprep.subr.bf16.mxu0 0
    %6373 = vmatpush1.bf16.msra.mxu0 0
    %6374 = vmatprep.subr.bf16.mxu0 0
    %6375 = vmatpush1.bf16.msra.mxu0 0
    %6376 = vmatprep.subr.bf16.mxu0 0
    %6377 = vmatpush1.bf16.msra.mxu0 0
    %6378 = vmatprep.subr.bf16.mxu0 0
    %6379 = vmatpush1.bf16.msra.mxu0 0
    %6380 = vmatprep.subr.bf16.mxu0 0
    %6381 = vmatpush1.bf16.msra.mxu0 0
    %6382 = vmatprep.subr.bf16.mxu0 0
    %6383 = vmatpush1.bf16.msra.mxu0 0
    %6384 = vmatprep.mubr.bf16.mxu0 0
    %6385 = vmatmul.mubr.bf16.gmra.mrb[0].mxu0 %v6286
    %v6386 = vpop.f32.mrb[0].mxu0
    %v6387 = vadd.f32 %v6303, %v6386
    %v6388 = vpop.f32.mrb[0].mxu0
    %v6389 = vpop.f32.mrb[0].mxu0
    %v6390 = vpop.f32.mrb[0].mxu0
    %6391 = vdwg.mxu0
    %6392 = vst [vmem:[#allocation3] sm:$0x1] %v6387
    %v6409 = vunpack.c.l.b16 %v844
    %v6410 = vunpack.c.h.b16 %v844
    %v6411 = vunpack.c.l.b16 %v845
    %v6412 = vunpack.c.h.b16 %v845
    %v6413 = vunpack.c.l.b16 %v846
    %v6414 = vunpack.c.h.b16 %v846
    %v6415 = vunpack.c.l.b16 %v847
    %v6416 = vunpack.c.h.b16 %v847
    %v6417 = vunpack.c.l.b16 %v848
    %v6418 = vunpack.c.h.b16 %v848
    %v6419 = vunpack.c.l.b16 %v849
    %v6420 = vunpack.c.h.b16 %v849
    %v6421 = vunpack.c.l.b16 %v850
    %v6422 = vunpack.c.h.b16 %v850
    %v6423 = vunpack.c.l.b16 %v851
    %v6424 = vunpack.c.h.b16 %v851
    %v6425 = vunpack.c.l.b16 %v852
    %v6426 = vunpack.c.h.b16 %v852
    %v6427 = vunpack.c.l.b16 %v853
    %v6428 = vunpack.c.h.b16 %v853
    %v6429 = vunpack.c.l.b16 %v854
    %v6430 = vunpack.c.h.b16 %v854
    %v6431 = vunpack.c.l.b16 %v855
    %v6432 = vunpack.c.h.b16 %v855
    %v6433 = vunpack.c.l.b16 %v856
    %v6434 = vunpack.c.h.b16 %v856
    %v6435 = vunpack.c.l.b16 %v857
    %v6436 = vunpack.c.h.b16 %v857
    %v6437 = vunpack.c.l.b16 %v858
    %v6438 = vunpack.c.h.b16 %v858
    %v6439 = vunpack.c.l.b16 %v859
    %v6440 = vunpack.c.h.b16 %v859
    %v6441 = vpack.c.b16 %v6409, %v6409
    %v6442 = vpack.c.b16 %v6410, %v6410
    %v6443 = vpack.c.b16 %v6411, %v6411
    %v6444 = vpack.c.b16 %v6412, %v6412
    %v6445 = vpack.c.b16 %v6413, %v6413
    %v6446 = vpack.c.b16 %v6414, %v6414
    %v6447 = vpack.c.b16 %v6415, %v6415
    %v6448 = vpack.c.b16 %v6416, %v6416
    %v6449 = vpack.c.b16 %v6417, %v6417
    %v6450 = vpack.c.b16 %v6418, %v6418
    %v6451 = vpack.c.b16 %v6419, %v6419
    %v6452 = vpack.c.b16 %v6420, %v6420
    %v6453 = vpack.c.b16 %v6421, %v6421
    %v6454 = vpack.c.b16 %v6422, %v6422
    %v6455 = vpack.c.b16 %v6423, %v6423
    %v6456 = vpack.c.b16 %v6424, %v6424
    %v6457 = vpack.c.b16 %v6425, %v6425
    %v6458 = vpack.c.b16 %v6426, %v6426
    %v6459 = vpack.c.b16 %v6427, %v6427
    %v6460 = vpack.c.b16 %v6428, %v6428
    %v6461 = vpack.c.b16 %v6429, %v6429
    %v6462 = vpack.c.b16 %v6430, %v6430
    %v6463 = vpack.c.b16 %v6431, %v6431
    %v6464 = vpack.c.b16 %v6432, %v6432
    %v6465 = vpack.c.b16 %v6433, %v6433
    %v6466 = vpack.c.b16 %v6434, %v6434
    %v6467 = vpack.c.b16 %v6435, %v6435
    %v6468 = vpack.c.b16 %v6436, %v6436
    %v6469 = vpack.c.b16 %v6437, %v6437
    %v6470 = vpack.c.b16 %v6438, %v6438
    %v6471 = vpack.c.b16 %v6439, %v6439
    %v6472 = vpack.c.b16 %v6440, %v6440
    %v6474 = vshrl.u32 %v6441, 16
    %v6476 = vrot.slane %v6474, 7
    %v6477 = vshll.u32 %v6441, 16
    %v6479 = vor.u32 %v6476, %v6477
    %v6480 = vrot.slane %v6476, 4
    %v6482 = vshrl.u32 %v6442, 16
    %v6484 = vrot.slane %v6482, 7
    %v6485 = vshll.u32 %v6442, 16
    %v6487 = vor.u32 %v6484, %v6485
    %v6488 = vsel %vm941, %v6480, %v6487
    %v6489 = vrot.slane %v6484, 4
    %v6491 = vshrl.u32 %v6443, 16
    %v6493 = vrot.slane %v6491, 7
    %v6494 = vshll.u32 %v6443, 16
    %v6496 = vor.u32 %v6493, %v6494
    %v6497 = vrot.slane %v6493, 4
    %v6499 = vshrl.u32 %v6444, 16
    %v6501 = vrot.slane %v6499, 7
    %v6502 = vshll.u32 %v6444, 16
    %v6504 = vor.u32 %v6501, %v6502
    %v6505 = vsel %vm941, %v6497, %v6504
    %v6506 = vrot.slane %v6501, 4
    %v6508 = vshrl.u32 %v6445, 16
    %v6510 = vrot.slane %v6508, 7
    %v6511 = vshll.u32 %v6445, 16
    %v6513 = vor.u32 %v6510, %v6511
    %v6514 = vrot.slane %v6510, 4
    %v6516 = vshrl.u32 %v6446, 16
    %v6518 = vrot.slane %v6516, 7
    %v6519 = vshll.u32 %v6446, 16
    %v6521 = vor.u32 %v6518, %v6519
    %v6522 = vsel %vm941, %v6514, %v6521
    %v6523 = vrot.slane %v6518, 4
    %v6525 = vshrl.u32 %v6447, 16
    %v6527 = vrot.slane %v6525, 7
    %v6528 = vshll.u32 %v6447, 16
    %v6530 = vor.u32 %v6527, %v6528
    %v6531 = vrot.slane %v6527, 4
    %v6533 = vshrl.u32 %v6448, 16
    %v6535 = vrot.slane %v6533, 7
    %v6536 = vshll.u32 %v6448, 16
    %v6538 = vor.u32 %v6535, %v6536
    %v6539 = vsel %vm941, %v6531, %v6538
    %v6540 = vrot.slane %v6535, 4
    %v6542 = vshrl.u32 %v6449, 16
    %v6544 = vrot.slane %v6542, 7
    %v6545 = vshll.u32 %v6449, 16
    %v6547 = vor.u32 %v6544, %v6545
    %v6548 = vrot.slane %v6544, 4
    %v6550 = vshrl.u32 %v6450, 16
    %v6552 = vrot.slane %v6550, 7
    %v6553 = vshll.u32 %v6450, 16
    %v6555 = vor.u32 %v6552, %v6553
    %v6556 = vsel %vm941, %v6548, %v6555
    %v6557 = vrot.slane %v6552, 4
    %v6559 = vshrl.u32 %v6451, 16
    %v6561 = vrot.slane %v6559, 7
    %v6562 = vshll.u32 %v6451, 16
    %v6564 = vor.u32 %v6561, %v6562
    %v6565 = vrot.slane %v6561, 4
    %v6567 = vshrl.u32 %v6452, 16
    %v6569 = vrot.slane %v6567, 7
    %v6570 = vshll.u32 %v6452, 16
    %v6572 = vor.u32 %v6569, %v6570
    %v6573 = vsel %vm941, %v6565, %v6572
    %v6574 = vrot.slane %v6569, 4
    %v6576 = vshrl.u32 %v6453, 16
    %v6578 = vrot.slane %v6576, 7
    %v6579 = vshll.u32 %v6453, 16
    %v6581 = vor.u32 %v6578, %v6579
    %v6582 = vrot.slane %v6578, 4
    %v6584 = vshrl.u32 %v6454, 16
    %v6586 = vrot.slane %v6584, 7
    %v6587 = vshll.u32 %v6454, 16
    %v6589 = vor.u32 %v6586, %v6587
    %v6590 = vsel %vm941, %v6582, %v6589
    %v6591 = vrot.slane %v6586, 4
    %v6593 = vshrl.u32 %v6455, 16
    %v6595 = vrot.slane %v6593, 7
    %v6596 = vshll.u32 %v6455, 16
    %v6598 = vor.u32 %v6595, %v6596
    %v6599 = vrot.slane %v6595, 4
    %v6601 = vshrl.u32 %v6456, 16
    %v6603 = vrot.slane %v6601, 7
    %v6604 = vshll.u32 %v6456, 16
    %v6606 = vor.u32 %v6603, %v6604
    %v6607 = vsel %vm941, %v6599, %v6606
    %v6608 = vrot.slane %v6603, 4
    %v6610 = vshrl.u32 %v6457, 16
    %v6612 = vrot.slane %v6610, 7
    %v6613 = vshll.u32 %v6457, 16
    %v6615 = vor.u32 %v6612, %v6613
    %v6616 = vrot.slane %v6612, 4
    %v6618 = vshrl.u32 %v6458, 16
    %v6620 = vrot.slane %v6618, 7
    %v6621 = vshll.u32 %v6458, 16
    %v6623 = vor.u32 %v6620, %v6621
    %v6624 = vsel %vm941, %v6616, %v6623
    %v6625 = vrot.slane %v6620, 4
    %v6627 = vshrl.u32 %v6459, 16
    %v6629 = vrot.slane %v6627, 7
    %v6630 = vshll.u32 %v6459, 16
    %v6632 = vor.u32 %v6629, %v6630
    %v6633 = vrot.slane %v6629, 4
    %v6635 = vshrl.u32 %v6460, 16
    %v6637 = vrot.slane %v6635, 7
    %v6638 = vshll.u32 %v6460, 16
    %v6640 = vor.u32 %v6637, %v6638
    %v6641 = vsel %vm941, %v6633, %v6640
    %v6642 = vrot.slane %v6637, 4
    %v6644 = vshrl.u32 %v6461, 16
    %v6646 = vrot.slane %v6644, 7
    %v6647 = vshll.u32 %v6461, 16
    %v6649 = vor.u32 %v6646, %v6647
    %v6650 = vrot.slane %v6646, 4
    %v6652 = vshrl.u32 %v6462, 16
    %v6654 = vrot.slane %v6652, 7
    %v6655 = vshll.u32 %v6462, 16
    %v6657 = vor.u32 %v6654, %v6655
    %v6658 = vsel %vm941, %v6650, %v6657
    %v6659 = vrot.slane %v6654, 4
    %v6661 = vshrl.u32 %v6463, 16
    %v6663 = vrot.slane %v6661, 7
    %v6664 = vshll.u32 %v6463, 16
    %v6666 = vor.u32 %v6663, %v6664
    %v6667 = vrot.slane %v6663, 4
    %v6669 = vshrl.u32 %v6464, 16
    %v6671 = vrot.slane %v6669, 7
    %v6672 = vshll.u32 %v6464, 16
    %v6674 = vor.u32 %v6671, %v6672
    %v6675 = vsel %vm941, %v6667, %v6674
    %v6676 = vrot.slane %v6671, 4
    %v6678 = vshrl.u32 %v6465, 16
    %v6680 = vrot.slane %v6678, 7
    %v6681 = vshll.u32 %v6465, 16
    %v6683 = vor.u32 %v6680, %v6681
    %v6684 = vrot.slane %v6680, 4
    %v6686 = vshrl.u32 %v6466, 16
    %v6688 = vrot.slane %v6686, 7
    %v6689 = vshll.u32 %v6466, 16
    %v6691 = vor.u32 %v6688, %v6689
    %v6692 = vsel %vm941, %v6684, %v6691
    %v6693 = vrot.slane %v6688, 4
    %v6695 = vshrl.u32 %v6467, 16
    %v6697 = vrot.slane %v6695, 7
    %v6698 = vshll.u32 %v6467, 16
    %v6700 = vor.u32 %v6697, %v6698
    %v6701 = vrot.slane %v6697, 4
    %v6703 = vshrl.u32 %v6468, 16
    %v6705 = vrot.slane %v6703, 7
    %v6706 = vshll.u32 %v6468, 16
    %v6708 = vor.u32 %v6705, %v6706
    %v6709 = vsel %vm941, %v6701, %v6708
    %v6710 = vrot.slane %v6705, 4
    %v6712 = vshrl.u32 %v6469, 16
    %v6714 = vrot.slane %v6712, 7
    %v6715 = vshll.u32 %v6469, 16
    %v6717 = vor.u32 %v6714, %v6715
    %v6718 = vrot.slane %v6714, 4
    %v6720 = vshrl.u32 %v6470, 16
    %v6722 = vrot.slane %v6720, 7
    %v6723 = vshll.u32 %v6470, 16
    %v6725 = vor.u32 %v6722, %v6723
    %v6726 = vsel %vm941, %v6718, %v6725
    %v6727 = vrot.slane %v6722, 4
    %v6729 = vshrl.u32 %v6471, 16
    %v6731 = vrot.slane %v6729, 7
    %v6732 = vshll.u32 %v6471, 16
    %v6734 = vor.u32 %v6731, %v6732
    %v6735 = vrot.slane %v6731, 4
    %v6737 = vshrl.u32 %v6472, 16
    %v6739 = vrot.slane %v6737, 7
    %v6740 = vshll.u32 %v6472, 16
    %v6742 = vor.u32 %v6739, %v6740
    %v6743 = vsel %vm941, %v6735, %v6742
    %v6744 = vrot.slane %v6739, 4
    %v6793 = vld [vmem:[%s1262] sm:$0xf]
    %v6794 = vsel %vm1264, %v6479, %v6793
    %6795 = vst [vmem:[%s1262] sm:$0xf] %v6794
    %6796 = vst [vmem:[%s1262 + $0x4] sm:$0xf] %v6488
    %v6797 = vld [vmem:[%s1262 + $0x8] sm:$0x1]
    %v6798 = vsel %vm37, %v6489, %v6797
    %6799 = vst [vmem:[%s1262 + $0x8] sm:$0x1] %v6798
    %v6800 = vld [vmem:[%s1262 + $0xc] sm:$0xf]
    %v6801 = vsel %vm1264, %v6496, %v6800
    %6802 = vst [vmem:[%s1262 + $0xc] sm:$0xf] %v6801
    %6803 = vst [vmem:[%s1262 + $0x10] sm:$0xf] %v6505
    %v6804 = vld [vmem:[%s1262 + $0x14] sm:$0x1]
    %v6805 = vsel %vm37, %v6506, %v6804
    %6806 = vst [vmem:[%s1262 + $0x14] sm:$0x1] %v6805
    %v6807 = vld [vmem:[%s1262 + $0x18] sm:$0xf]
    %v6808 = vsel %vm1264, %v6513, %v6807
    %6809 = vst [vmem:[%s1262 + $0x18] sm:$0xf] %v6808
    %6810 = vst [vmem:[%s1262 + $0x1c] sm:$0xf] %v6522
    %v6811 = vld [vmem:[%s1262 + $0x20] sm:$0x1]
    %v6812 = vsel %vm37, %v6523, %v6811
    %6813 = vst [vmem:[%s1262 + $0x20] sm:$0x1] %v6812
    %v6814 = vld [vmem:[%s1262 + $0x24] sm:$0xf]
    %v6815 = vsel %vm1264, %v6530, %v6814
    %6816 = vst [vmem:[%s1262 + $0x24] sm:$0xf] %v6815
    %6817 = vst [vmem:[%s1262 + $0x28] sm:$0xf] %v6539
    %v6818 = vld [vmem:[%s1262 + $0x2c] sm:$0x1]
    %v6819 = vsel %vm37, %v6540, %v6818
    %6820 = vst [vmem:[%s1262 + $0x2c] sm:$0x1] %v6819
    %v6821 = vld [vmem:[%s1262 + $0x30] sm:$0xf]
    %v6822 = vsel %vm1264, %v6547, %v6821
    %6823 = vst [vmem:[%s1262 + $0x30] sm:$0xf] %v6822
    %6824 = vst [vmem:[%s1262 + $0x34] sm:$0xf] %v6556
    %v6825 = vld [vmem:[%s1262 + $0x38] sm:$0x1]
    %v6826 = vsel %vm37, %v6557, %v6825
    %6827 = vst [vmem:[%s1262 + $0x38] sm:$0x1] %v6826
    %v6828 = vld [vmem:[%s1262 + $0x3c] sm:$0xf]
    %v6829 = vsel %vm1264, %v6564, %v6828
    %6830 = vst [vmem:[%s1262 + $0x3c] sm:$0xf] %v6829
    %6831 = vst [vmem:[%s1262 + $0x40] sm:$0xf] %v6573
    %v6832 = vld [vmem:[%s1262 + $0x44] sm:$0x1]
    %v6833 = vsel %vm37, %v6574, %v6832
    %6834 = vst [vmem:[%s1262 + $0x44] sm:$0x1] %v6833
    %v6835 = vld [vmem:[%s1262 + $0x48] sm:$0xf]
    %v6836 = vsel %vm1264, %v6581, %v6835
    %6837 = vst [vmem:[%s1262 + $0x48] sm:$0xf] %v6836
    %6838 = vst [vmem:[%s1262 + $0x4c] sm:$0xf] %v6590
    %v6839 = vld [vmem:[%s1262 + $0x50] sm:$0x1]
    %v6840 = vsel %vm37, %v6591, %v6839
    %6841 = vst [vmem:[%s1262 + $0x50] sm:$0x1] %v6840
    %v6842 = vld [vmem:[%s1262 + $0x54] sm:$0xf]
    %v6843 = vsel %vm1264, %v6598, %v6842
    %6844 = vst [vmem:[%s1262 + $0x54] sm:$0xf] %v6843
    %6845 = vst [vmem:[%s1262 + $0x58] sm:$0xf] %v6607
    %v6846 = vld [vmem:[%s1262 + $0x5c] sm:$0x1]
    %v6847 = vsel %vm37, %v6608, %v6846
    %6848 = vst [vmem:[%s1262 + $0x5c] sm:$0x1] %v6847
    %v6849 = vld [vmem:[%s1262 + $0x60] sm:$0xf]
    %v6850 = vsel %vm1264, %v6615, %v6849
    %6851 = vst [vmem:[%s1262 + $0x60] sm:$0xf] %v6850
    %6852 = vst [vmem:[%s1262 + $0x64] sm:$0xf] %v6624
    %v6853 = vld [vmem:[%s1262 + $0x68] sm:$0x1]
    %v6854 = vsel %vm37, %v6625, %v6853
    %6855 = vst [vmem:[%s1262 + $0x68] sm:$0x1] %v6854
    %v6856 = vld [vmem:[%s1262 + $0x6c] sm:$0xf]
    %v6857 = vsel %vm1264, %v6632, %v6856
    %6858 = vst [vmem:[%s1262 + $0x6c] sm:$0xf] %v6857
    %6859 = vst [vmem:[%s1262 + $0x70] sm:$0xf] %v6641
    %v6860 = vld [vmem:[%s1262 + $0x74] sm:$0x1]
    %v6861 = vsel %vm37, %v6642, %v6860
    %6862 = vst [vmem:[%s1262 + $0x74] sm:$0x1] %v6861
    %v6863 = vld [vmem:[%s1262 + $0x78] sm:$0xf]
    %v6864 = vsel %vm1264, %v6649, %v6863
    %6865 = vst [vmem:[%s1262 + $0x78] sm:$0xf] %v6864
    %6866 = vst [vmem:[%s1262 + $0x7c] sm:$0xf] %v6658
    %v6867 = vld [vmem:[%s1262 + $0x80] sm:$0x1]
    %v6868 = vsel %vm37, %v6659, %v6867
    %6869 = vst [vmem:[%s1262 + $0x80] sm:$0x1] %v6868
    %v6870 = vld [vmem:[%s1262 + $0x84] sm:$0xf]
    %v6871 = vsel %vm1264, %v6666, %v6870
    %6872 = vst [vmem:[%s1262 + $0x84] sm:$0xf] %v6871
    %6873 = vst [vmem:[%s1262 + $0x88] sm:$0xf] %v6675
    %v6874 = vld [vmem:[%s1262 + $0x8c] sm:$0x1]
    %v6875 = vsel %vm37, %v6676, %v6874
    %6876 = vst [vmem:[%s1262 + $0x8c] sm:$0x1] %v6875
    %v6877 = vld [vmem:[%s1262 + $0x90] sm:$0xf]
    %v6878 = vsel %vm1264, %v6683, %v6877
    %6879 = vst [vmem:[%s1262 + $0x90] sm:$0xf] %v6878
    %6880 = vst [vmem:[%s1262 + $0x94] sm:$0xf] %v6692
    %v6881 = vld [vmem:[%s1262 + $0x98] sm:$0x1]
    %v6882 = vsel %vm37, %v6693, %v6881
    %6883 = vst [vmem:[%s1262 + $0x98] sm:$0x1] %v6882
    %v6884 = vld [vmem:[%s1262 + $0x9c] sm:$0xf]
    %v6885 = vsel %vm1264, %v6700, %v6884
    %6886 = vst [vmem:[%s1262 + $0x9c] sm:$0xf] %v6885
    %6887 = vst [vmem:[%s1262 + $0xa0] sm:$0xf] %v6709
    %v6888 = vld [vmem:[%s1262 + $0xa4] sm:$0x1]
    %v6889 = vsel %vm37, %v6710, %v6888
    %6890 = vst [vmem:[%s1262 + $0xa4] sm:$0x1] %v6889
    %v6891 = vld [vmem:[%s1262 + $0xa8] sm:$0xf]
    %v6892 = vsel %vm1264, %v6717, %v6891
    %6893 = vst [vmem:[%s1262 + $0xa8] sm:$0xf] %v6892
    %6894 = vst [vmem:[%s1262 + $0xac] sm:$0xf] %v6726
    %v6895 = vld [vmem:[%s1262 + $0xb0] sm:$0x1]
    %v6896 = vsel %vm37, %v6727, %v6895
    %6897 = vst [vmem:[%s1262 + $0xb0] sm:$0x1] %v6896
    %v6898 = vld [vmem:[%s1262 + $0xb4] sm:$0xf]
    %v6899 = vsel %vm1264, %v6734, %v6898
    %6900 = vst [vmem:[%s1262 + $0xb4] sm:$0xf] %v6899
    %6901 = vst [vmem:[%s1262 + $0xb8] sm:$0xf] %v6743
    %v6902 = vld [vmem:[%s1262 + $0xbc] sm:$0x1]
    %v6903 = vsel %vm37, %v6744, %v6902
    %6904 = vst [vmem:[%s1262 + $0xbc] sm:$0x1] %v6903
    %v6905 = vld [vmem:[#allocation2] sm:$0xf]
    %v6906 = vld [vmem:[#allocation2 + $0x4] sm:$0xf]
    %v6907 = vld [vmem:[#allocation2 + $0xc] sm:$0xf]
    %v6908 = vld [vmem:[#allocation2 + $0x10] sm:$0xf]
    %v6909 = vld [vmem:[#allocation2 + $0x18] sm:$0xf]
    %v6910 = vld [vmem:[#allocation2 + $0x1c] sm:$0xf]
    %v6911 = vld [vmem:[#allocation2 + $0x24] sm:$0xf]
    %v6912 = vld [vmem:[#allocation2 + $0x28] sm:$0xf]
    %v6913 = vld [vmem:[#allocation2 + $0x30] sm:$0xf]
    %v6914 = vld [vmem:[#allocation2 + $0x34] sm:$0xf]
    %v6915 = vld [vmem:[#allocation2 + $0x3c] sm:$0xf]
    %v6916 = vld [vmem:[#allocation2 + $0x40] sm:$0xf]
    %v6917 = vld [vmem:[#allocation2 + $0x48] sm:$0xf]
    %v6918 = vld [vmem:[#allocation2 + $0x4c] sm:$0xf]
    %v6919 = vld [vmem:[#allocation2 + $0x54] sm:$0xf]
    %v6920 = vld [vmem:[#allocation2 + $0x58] sm:$0xf]
    %v6921 = vld [vmem:[#allocation2 + $0x60] sm:$0xf]
    %v6922 = vld [vmem:[#allocation2 + $0x64] sm:$0xf]
    %v6923 = vld [vmem:[#allocation2 + $0x6c] sm:$0xf]
    %v6924 = vld [vmem:[#allocation2 + $0x70] sm:$0xf]
    %v6925 = vld [vmem:[#allocation2 + $0x78] sm:$0xf]
    %v6926 = vld [vmem:[#allocation2 + $0x7c] sm:$0xf]
    %v6927 = vld [vmem:[#allocation2 + $0x84] sm:$0xf]
    %v6928 = vld [vmem:[#allocation2 + $0x88] sm:$0xf]
    %v6929 = vld [vmem:[#allocation2 + $0x90] sm:$0xf]
    %v6930 = vld [vmem:[#allocation2 + $0x94] sm:$0xf]
    %v6931 = vld [vmem:[#allocation2 + $0x9c] sm:$0xf]
    %v6932 = vld [vmem:[#allocation2 + $0xa0] sm:$0xf]
    %v6933 = vld [vmem:[#allocation2 + $0xa8] sm:$0xf]
    %v6934 = vld [vmem:[#allocation2 + $0xac] sm:$0xf]
    %v6935 = vld [vmem:[#allocation2 + $0xb4] sm:$0xf]
    %v6936 = vld [vmem:[#allocation2 + $0xb8] sm:$0xf]
    %v6937 = vld [vmem:[%s3] sm:$0xf]
    %v6938 = vld [vmem:[%s3 + $0x4] sm:$0xf]
    %v6939 = vld [vmem:[%s3 + $0x8] sm:$0xf]
    %v6940 = vld [vmem:[%s3 + $0xc] sm:$0xf]
    %v6941 = vld [vmem:[%s3 + $0x10] sm:$0xf]
    %v6942 = vld [vmem:[%s3 + $0x14] sm:$0xf]
    %v6943 = vld [vmem:[%s3 + $0x18] sm:$0xf]
    %v6944 = vld [vmem:[%s3 + $0x1c] sm:$0xf]
    %v6945 = vld [vmem:[%s3 + $0x20] sm:$0xf]
    %v6946 = vld [vmem:[%s3 + $0x24] sm:$0xf]
    %v6947 = vld [vmem:[%s3 + $0x28] sm:$0xf]
    %v6948 = vld [vmem:[%s3 + $0x2c] sm:$0xf]
    %v6949 = vld [vmem:[%s3 + $0x30] sm:$0xf]
    %v6950 = vld [vmem:[%s3 + $0x34] sm:$0xf]
    %v6951 = vld [vmem:[%s3 + $0x38] sm:$0xf]
    %v6952 = vld [vmem:[%s3 + $0x3c] sm:$0xf]
    %v6953 = vld [vmem:[#allocation2 + $0x8] sm:$0x1]
    %v6954 = vld [vmem:[#allocation2 + $0x14] sm:$0x1]
    %v6955 = vld [vmem:[#allocation2 + $0x20] sm:$0x1]
    %v6956 = vld [vmem:[#allocation2 + $0x2c] sm:$0x1]
    %v6957 = vld [vmem:[#allocation2 + $0x38] sm:$0x1]
    %v6958 = vld [vmem:[#allocation2 + $0x44] sm:$0x1]
    %v6959 = vld [vmem:[#allocation2 + $0x50] sm:$0x1]
    %v6960 = vld [vmem:[#allocation2 + $0x5c] sm:$0x1]
    %v6961 = vld [vmem:[#allocation2 + $0x68] sm:$0x1]
    %v6962 = vld [vmem:[#allocation2 + $0x74] sm:$0x1]
    %v6963 = vld [vmem:[#allocation2 + $0x80] sm:$0x1]
    %v6964 = vld [vmem:[#allocation2 + $0x8c] sm:$0x1]
    %v6965 = vld [vmem:[#allocation2 + $0x98] sm:$0x1]
    %v6966 = vld [vmem:[#allocation2 + $0xa4] sm:$0x1]
    %v6967 = vld [vmem:[#allocation2 + $0xb0] sm:$0x1]
    %v6968 = vld [vmem:[#allocation2 + $0xbc] sm:$0x1]
    %v6970 = vshrl.u32 %v6905, 16
    %v6972 = vrot.slane %v6970, 4
    %v6973 = vshll.u32 %v6905, 16
    %v6975 = vrot.slane %v6973, 5
    %v6976 = vor.u32 %v6972, %v6975
    %v6977 = vrot.slane %v6976, 4
    %v6979 = vshll.u32 %v6906, 16
    %v6981 = vrot.slane %v6979, 5
    %v6982 = vsel %vm1443, %v6977, %v6981
    %v6983 = vshrl.u32 %v6906, 16
    %v6985 = vrot.slane %v6983, 4
    %v6986 = vor.u32 %v6985, %v6981
    %v6987 = vrot.slane %v6986, 4
    %v6989 = vshll.u32 %v6953, 16
    %v6991 = vrot.slane %v6989, 5
    %v6992 = vsel %vm1443, %v6987, %v6991
    %v6994 = vshrl.u32 %v6907, 16
    %v6996 = vrot.slane %v6994, 4
    %v6997 = vshll.u32 %v6907, 16
    %v6999 = vrot.slane %v6997, 5
    %v7000 = vor.u32 %v6996, %v6999
    %v7001 = vrot.slane %v7000, 4
    %v7003 = vshll.u32 %v6908, 16
    %v7005 = vrot.slane %v7003, 5
    %v7006 = vsel %vm1443, %v7001, %v7005
    %v7007 = vshrl.u32 %v6908, 16
    %v7009 = vrot.slane %v7007, 4
    %v7010 = vor.u32 %v7009, %v7005
    %v7011 = vrot.slane %v7010, 4
    %v7013 = vshll.u32 %v6954, 16
    %v7015 = vrot.slane %v7013, 5
    %v7016 = vsel %vm1443, %v7011, %v7015
    %v7018 = vshrl.u32 %v6909, 16
    %v7020 = vrot.slane %v7018, 4
    %v7021 = vshll.u32 %v6909, 16
    %v7023 = vrot.slane %v7021, 5
    %v7024 = vor.u32 %v7020, %v7023
    %v7025 = vrot.slane %v7024, 4
    %v7027 = vshll.u32 %v6910, 16
    %v7029 = vrot.slane %v7027, 5
    %v7030 = vsel %vm1443, %v7025, %v7029
    %v7031 = vshrl.u32 %v6910, 16
    %v7033 = vrot.slane %v7031, 4
    %v7034 = vor.u32 %v7033, %v7029
    %v7035 = vrot.slane %v7034, 4
    %v7037 = vshll.u32 %v6955, 16
    %v7039 = vrot.slane %v7037, 5
    %v7040 = vsel %vm1443, %v7035, %v7039
    %v7042 = vshrl.u32 %v6911, 16
    %v7044 = vrot.slane %v7042, 4
    %v7045 = vshll.u32 %v6911, 16
    %v7047 = vrot.slane %v7045, 5
    %v7048 = vor.u32 %v7044, %v7047
    %v7049 = vrot.slane %v7048, 4
    %v7051 = vshll.u32 %v6912, 16
    %v7053 = vrot.slane %v7051, 5
    %v7054 = vsel %vm1443, %v7049, %v7053
    %v7055 = vshrl.u32 %v6912, 16
    %v7057 = vrot.slane %v7055, 4
    %v7058 = vor.u32 %v7057, %v7053
    %v7059 = vrot.slane %v7058, 4
    %v7061 = vshll.u32 %v6956, 16
    %v7063 = vrot.slane %v7061, 5
    %v7064 = vsel %vm1443, %v7059, %v7063
    %v7066 = vshrl.u32 %v6913, 16
    %v7068 = vrot.slane %v7066, 4
    %v7069 = vshll.u32 %v6913, 16
    %v7071 = vrot.slane %v7069, 5
    %v7072 = vor.u32 %v7068, %v7071
    %v7073 = vrot.slane %v7072, 4
    %v7075 = vshll.u32 %v6914, 16
    %v7077 = vrot.slane %v7075, 5
    %v7078 = vsel %vm1443, %v7073, %v7077
    %v7079 = vshrl.u32 %v6914, 16
    %v7081 = vrot.slane %v7079, 4
    %v7082 = vor.u32 %v7081, %v7077
    %v7083 = vrot.slane %v7082, 4
    %v7085 = vshll.u32 %v6957, 16
    %v7087 = vrot.slane %v7085, 5
    %v7088 = vsel %vm1443, %v7083, %v7087
    %v7090 = vshrl.u32 %v6915, 16
    %v7092 = vrot.slane %v7090, 4
    %v7093 = vshll.u32 %v6915, 16
    %v7095 = vrot.slane %v7093, 5
    %v7096 = vor.u32 %v7092, %v7095
    %v7097 = vrot.slane %v7096, 4
    %v7099 = vshll.u32 %v6916, 16
    %v7101 = vrot.slane %v7099, 5
    %v7102 = vsel %vm1443, %v7097, %v7101
    %v7103 = vshrl.u32 %v6916, 16
    %v7105 = vrot.slane %v7103, 4
    %v7106 = vor.u32 %v7105, %v7101
    %v7107 = vrot.slane %v7106, 4
    %v7109 = vshll.u32 %v6958, 16
    %v7111 = vrot.slane %v7109, 5
    %v7112 = vsel %vm1443, %v7107, %v7111
    %v7114 = vshrl.u32 %v6917, 16
    %v7116 = vrot.slane %v7114, 4
    %v7117 = vshll.u32 %v6917, 16
    %v7119 = vrot.slane %v7117, 5
    %v7120 = vor.u32 %v7116, %v7119
    %v7121 = vrot.slane %v7120, 4
    %v7123 = vshll.u32 %v6918, 16
    %v7125 = vrot.slane %v7123, 5
    %v7126 = vsel %vm1443, %v7121, %v7125
    %v7127 = vshrl.u32 %v6918, 16
    %v7129 = vrot.slane %v7127, 4
    %v7130 = vor.u32 %v7129, %v7125
    %v7131 = vrot.slane %v7130, 4
    %v7133 = vshll.u32 %v6959, 16
    %v7135 = vrot.slane %v7133, 5
    %v7136 = vsel %vm1443, %v7131, %v7135
    %v7138 = vshrl.u32 %v6919, 16
    %v7140 = vrot.slane %v7138, 4
    %v7141 = vshll.u32 %v6919, 16
    %v7143 = vrot.slane %v7141, 5
    %v7144 = vor.u32 %v7140, %v7143
    %v7145 = vrot.slane %v7144, 4
    %v7147 = vshll.u32 %v6920, 16
    %v7149 = vrot.slane %v7147, 5
    %v7150 = vsel %vm1443, %v7145, %v7149
    %v7151 = vshrl.u32 %v6920, 16
    %v7153 = vrot.slane %v7151, 4
    %v7154 = vor.u32 %v7153, %v7149
    %v7155 = vrot.slane %v7154, 4
    %v7157 = vshll.u32 %v6960, 16
    %v7159 = vrot.slane %v7157, 5
    %v7160 = vsel %vm1443, %v7155, %v7159
    %v7162 = vshrl.u32 %v6921, 16
    %v7164 = vrot.slane %v7162, 4
    %v7165 = vshll.u32 %v6921, 16
    %v7167 = vrot.slane %v7165, 5
    %v7168 = vor.u32 %v7164, %v7167
    %v7169 = vrot.slane %v7168, 4
    %v7171 = vshll.u32 %v6922, 16
    %v7173 = vrot.slane %v7171, 5
    %v7174 = vsel %vm1443, %v7169, %v7173
    %v7175 = vshrl.u32 %v6922, 16
    %v7177 = vrot.slane %v7175, 4
    %v7178 = vor.u32 %v7177, %v7173
    %v7179 = vrot.slane %v7178, 4
    %v7181 = vshll.u32 %v6961, 16
    %v7183 = vrot.slane %v7181, 5
    %v7184 = vsel %vm1443, %v7179, %v7183
    %v7186 = vshrl.u32 %v6923, 16
    %v7188 = vrot.slane %v7186, 4
    %v7189 = vshll.u32 %v6923, 16
    %v7191 = vrot.slane %v7189, 5
    %v7192 = vor.u32 %v7188, %v7191
    %v7193 = vrot.slane %v7192, 4
    %v7195 = vshll.u32 %v6924, 16
    %v7197 = vrot.slane %v7195, 5
    %v7198 = vsel %vm1443, %v7193, %v7197
    %v7199 = vshrl.u32 %v6924, 16
    %v7201 = vrot.slane %v7199, 4
    %v7202 = vor.u32 %v7201, %v7197
    %v7203 = vrot.slane %v7202, 4
    %v7205 = vshll.u32 %v6962, 16
    %v7207 = vrot.slane %v7205, 5
    %v7208 = vsel %vm1443, %v7203, %v7207
    %v7210 = vshrl.u32 %v6925, 16
    %v7212 = vrot.slane %v7210, 4
    %v7213 = vshll.u32 %v6925, 16
    %v7215 = vrot.slane %v7213, 5
    %v7216 = vor.u32 %v7212, %v7215
    %v7217 = vrot.slane %v7216, 4
    %v7219 = vshll.u32 %v6926, 16
    %v7221 = vrot.slane %v7219, 5
    %v7222 = vsel %vm1443, %v7217, %v7221
    %v7223 = vshrl.u32 %v6926, 16
    %v7225 = vrot.slane %v7223, 4
    %v7226 = vor.u32 %v7225, %v7221
    %v7227 = vrot.slane %v7226, 4
    %v7229 = vshll.u32 %v6963, 16
    %v7231 = vrot.slane %v7229, 5
    %v7232 = vsel %vm1443, %v7227, %v7231
    %v7234 = vshrl.u32 %v6927, 16
    %v7236 = vrot.slane %v7234, 4
    %v7237 = vshll.u32 %v6927, 16
    %v7239 = vrot.slane %v7237, 5
    %v7240 = vor.u32 %v7236, %v7239
    %v7241 = vrot.slane %v7240, 4
    %v7243 = vshll.u32 %v6928, 16
    %v7245 = vrot.slane %v7243, 5
    %v7246 = vsel %vm1443, %v7241, %v7245
    %v7247 = vshrl.u32 %v6928, 16
    %v7249 = vrot.slane %v7247, 4
    %v7250 = vor.u32 %v7249, %v7245
    %v7251 = vrot.slane %v7250, 4
    %v7253 = vshll.u32 %v6964, 16
    %v7255 = vrot.slane %v7253, 5
    %v7256 = vsel %vm1443, %v7251, %v7255
    %v7258 = vshrl.u32 %v6929, 16
    %v7260 = vrot.slane %v7258, 4
    %v7261 = vshll.u32 %v6929, 16
    %v7263 = vrot.slane %v7261, 5
    %v7264 = vor.u32 %v7260, %v7263
    %v7265 = vrot.slane %v7264, 4
    %v7267 = vshll.u32 %v6930, 16
    %v7269 = vrot.slane %v7267, 5
    %v7270 = vsel %vm1443, %v7265, %v7269
    %v7271 = vshrl.u32 %v6930, 16
    %v7273 = vrot.slane %v7271, 4
    %v7274 = vor.u32 %v7273, %v7269
    %v7275 = vrot.slane %v7274, 4
    %v7277 = vshll.u32 %v6965, 16
    %v7279 = vrot.slane %v7277, 5
    %v7280 = vsel %vm1443, %v7275, %v7279
    %v7282 = vshrl.u32 %v6931, 16
    %v7284 = vrot.slane %v7282, 4
    %v7285 = vshll.u32 %v6931, 16
    %v7287 = vrot.slane %v7285, 5
    %v7288 = vor.u32 %v7284, %v7287
    %v7289 = vrot.slane %v7288, 4
    %v7291 = vshll.u32 %v6932, 16
    %v7293 = vrot.slane %v7291, 5
    %v7294 = vsel %vm1443, %v7289, %v7293
    %v7295 = vshrl.u32 %v6932, 16
    %v7297 = vrot.slane %v7295, 4
    %v7298 = vor.u32 %v7297, %v7293
    %v7299 = vrot.slane %v7298, 4
    %v7301 = vshll.u32 %v6966, 16
    %v7303 = vrot.slane %v7301, 5
    %v7304 = vsel %vm1443, %v7299, %v7303
    %v7306 = vshrl.u32 %v6933, 16
    %v7308 = vrot.slane %v7306, 4
    %v7309 = vshll.u32 %v6933, 16
    %v7311 = vrot.slane %v7309, 5
    %v7312 = vor.u32 %v7308, %v7311
    %v7313 = vrot.slane %v7312, 4
    %v7315 = vshll.u32 %v6934, 16
    %v7317 = vrot.slane %v7315, 5
    %v7318 = vsel %vm1443, %v7313, %v7317
    %v7319 = vshrl.u32 %v6934, 16
    %v7321 = vrot.slane %v7319, 4
    %v7322 = vor.u32 %v7321, %v7317
    %v7323 = vrot.slane %v7322, 4
    %v7325 = vshll.u32 %v6967, 16
    %v7327 = vrot.slane %v7325, 5
    %v7328 = vsel %vm1443, %v7323, %v7327
    %v7330 = vshrl.u32 %v6935, 16
    %v7332 = vrot.slane %v7330, 4
    %v7333 = vshll.u32 %v6935, 16
    %v7335 = vrot.slane %v7333, 5
    %v7336 = vor.u32 %v7332, %v7335
    %v7337 = vrot.slane %v7336, 4
    %v7339 = vshll.u32 %v6936, 16
    %v7341 = vrot.slane %v7339, 5
    %v7342 = vsel %vm1443, %v7337, %v7341
    %v7343 = vshrl.u32 %v6936, 16
    %v7345 = vrot.slane %v7343, 4
    %v7346 = vor.u32 %v7345, %v7341
    %v7347 = vrot.slane %v7346, 4
    %v7349 = vshll.u32 %v6968, 16
    %v7351 = vrot.slane %v7349, 5
    %v7352 = vsel %vm1443, %v7347, %v7351
    %v7353 = vld [vmem:[%s3 + $0x40] sm:$0xf]
    %v7354 = vld [vmem:[%s3 + $0x44] sm:$0xf]
    %v7355 = vld [vmem:[%s3 + $0x48] sm:$0xf]
    %v7356 = vld [vmem:[%s3 + $0x4c] sm:$0xf]
    %v7357 = vld [vmem:[%s3 + $0x50] sm:$0xf]
    %v7358 = vld [vmem:[%s3 + $0x54] sm:$0xf]
    %v7359 = vld [vmem:[%s3 + $0x58] sm:$0xf]
    %v7360 = vld [vmem:[%s3 + $0x5c] sm:$0xf]
    %v7361 = vld [vmem:[%s3 + $0x60] sm:$0xf]
    %v7362 = vld [vmem:[%s3 + $0x64] sm:$0xf]
    %v7363 = vld [vmem:[%s3 + $0x68] sm:$0xf]
    %v7364 = vld [vmem:[%s3 + $0x6c] sm:$0xf]
    %v7365 = vld [vmem:[%s3 + $0x70] sm:$0xf]
    %v7366 = vld [vmem:[%s3 + $0x74] sm:$0xf]
    %v7367 = vld [vmem:[%s3 + $0x78] sm:$0xf]
    %v7368 = vld [vmem:[%s3 + $0x7c] sm:$0xf]
    %v7369 = vunpack.c.l.b16 %v6982
    %v7370 = vunpack.c.l.b16 %v6992
    %v7371 = vunpack.c.l.b16 %v7006
    %v7372 = vunpack.c.l.b16 %v7016
    %v7373 = vunpack.c.l.b16 %v7030
    %v7374 = vunpack.c.l.b16 %v7040
    %v7375 = vunpack.c.l.b16 %v7054
    %v7376 = vunpack.c.l.b16 %v7064
    %v7377 = vunpack.c.l.b16 %v7078
    %v7378 = vunpack.c.l.b16 %v7088
    %v7379 = vunpack.c.l.b16 %v7102
    %v7380 = vunpack.c.l.b16 %v7112
    %v7381 = vunpack.c.l.b16 %v7126
    %v7382 = vunpack.c.l.b16 %v7136
    %v7383 = vunpack.c.l.b16 %v7150
    %v7384 = vunpack.c.l.b16 %v7160
    %v7385 = vunpack.c.l.b16 %v7174
    %v7386 = vunpack.c.l.b16 %v7184
    %v7387 = vunpack.c.l.b16 %v7198
    %v7388 = vunpack.c.l.b16 %v7208
    %v7389 = vunpack.c.l.b16 %v7222
    %v7390 = vunpack.c.l.b16 %v7232
    %v7391 = vunpack.c.l.b16 %v7246
    %v7392 = vunpack.c.l.b16 %v7256
    %v7393 = vunpack.c.l.b16 %v7270
    %v7394 = vunpack.c.l.b16 %v7280
    %v7395 = vunpack.c.l.b16 %v7294
    %v7396 = vunpack.c.l.b16 %v7304
    %v7397 = vunpack.c.l.b16 %v7318
    %v7398 = vunpack.c.l.b16 %v7328
    %v7399 = vunpack.c.l.b16 %v7342
    %v7400 = vunpack.c.l.b16 %v7352
    %v7401 = vpack.c.b16 %v7370, %v7369
    %v7402 = vpack.c.b16 %v7372, %v7371
    %v7403 = vpack.c.b16 %v7374, %v7373
    %v7404 = vpack.c.b16 %v7376, %v7375
    %v7405 = vpack.c.b16 %v7378, %v7377
    %v7406 = vpack.c.b16 %v7380, %v7379
    %v7407 = vpack.c.b16 %v7382, %v7381
    %v7408 = vpack.c.b16 %v7384, %v7383
    %v7409 = vpack.c.b16 %v7386, %v7385
    %v7410 = vpack.c.b16 %v7388, %v7387
    %v7411 = vpack.c.b16 %v7390, %v7389
    %v7412 = vpack.c.b16 %v7392, %v7391
    %v7413 = vpack.c.b16 %v7394, %v7393
    %v7414 = vpack.c.b16 %v7396, %v7395
    %v7415 = vpack.c.b16 %v7398, %v7397
    %v7416 = vpack.c.b16 %v7400, %v7399
    %v7449 = vunpack.c.l.b16 %v7353
    %v7450 = vunpack.c.l.b16 %v7354
    %v7451 = vunpack.c.l.b16 %v7355
    %v7452 = vunpack.c.l.b16 %v7356
    %v7453 = vunpack.c.l.b16 %v7357
    %v7454 = vunpack.c.l.b16 %v7358
    %v7455 = vunpack.c.l.b16 %v7359
    %v7456 = vunpack.c.l.b16 %v7360
    %v7457 = vunpack.c.l.b16 %v7361
    %v7458 = vunpack.c.l.b16 %v7362
    %v7459 = vunpack.c.l.b16 %v7363
    %v7460 = vunpack.c.l.b16 %v7364
    %v7461 = vunpack.c.l.b16 %v7365
    %v7462 = vunpack.c.l.b16 %v7366
    %v7463 = vunpack.c.l.b16 %v7367
    %v7464 = vunpack.c.l.b16 %v7368
    %v7465 = vpack.c.b16 %v7450, %v7449
    %v7466 = vpack.c.b16 %v7452, %v7451
    %v7467 = vpack.c.b16 %v7454, %v7453
    %v7468 = vpack.c.b16 %v7456, %v7455
    %v7469 = vpack.c.b16 %v7458, %v7457
    %v7470 = vpack.c.b16 %v7460, %v7459
    %v7471 = vpack.c.b16 %v7462, %v7461
    %v7472 = vpack.c.b16 %v7464, %v7463
    %7481 = vmatprep.subr.bf16.mxu0 0
    %7482 = vmatpush1.bf16.msra.mxu0 %v7465
    %7483 = vmatprep.subr.bf16.mxu0 0
    %7484 = vmatpush1.bf16.msra.mxu0 %v7466
    %7485 = vmatprep.subr.bf16.mxu0 0
    %7486 = vmatpush1.bf16.msra.mxu0 %v7467
    %7487 = vmatprep.subr.bf16.mxu0 0
    %7488 = vmatpush1.bf16.msra.mxu0 %v7468
    %7489 = vmatprep.subr.bf16.mxu0 0
    %7490 = vmatpush1.bf16.msra.mxu0 %v7469
    %7491 = vmatprep.subr.bf16.mxu0 0
    %7492 = vmatpush1.bf16.msra.mxu0 %v7470
    %7493 = vmatprep.subr.bf16.mxu0 0
    %7494 = vmatpush1.bf16.msra.mxu0 %v7471
    %7495 = vmatprep.subr.bf16.mxu0 0
    %7496 = vmatpush1.bf16.msra.mxu0 %v7472
    %7497 = vmatprep.subr.bf16.mxu0 0
    %7498 = vmatpush1.bf16.msra.mxu0 0
    %7499 = vmatprep.subr.bf16.mxu0 0
    %7500 = vmatpush1.bf16.msra.mxu0 0
    %7501 = vmatprep.subr.bf16.mxu0 0
    %7502 = vmatpush1.bf16.msra.mxu0 0
    %7503 = vmatprep.subr.bf16.mxu0 0
    %7504 = vmatpush1.bf16.msra.mxu0 0
    %7505 = vmatprep.subr.bf16.mxu0 0
    %7506 = vmatpush1.bf16.msra.mxu0 0
    %7507 = vmatprep.subr.bf16.mxu0 0
    %7508 = vmatpush1.bf16.msra.mxu0 0
    %7509 = vmatprep.subr.bf16.mxu0 0
    %7510 = vmatpush1.bf16.msra.mxu0 0
    %7511 = vmatprep.subr.bf16.mxu0 0
    %7512 = vmatpush1.bf16.msra.mxu0 0
    %7513 = vmatprep.mubr.bf16.mxu0 0
    %7514 = vmatmul.mubr.bf16.gmra.mrb[0].mxu0 %v7401
    %v7515 = vpop.f32.mrb[0].mxu0
    %v7516 = vadd.f32 0.0, %v7515
    %v7517 = vpop.f32.mrb[0].mxu0
    %v7518 = vpop.f32.mrb[0].mxu0
    %v7519 = vadd.f32 0.0, %v7518
    %v7520 = vpop.f32.mrb[0].mxu0
    %7521 = vmatprep.mubr.bf16.mxu0 0
    %7522 = vmatmul.mubr.bf16.gmra.mrb[0].mxu0 %v7402
    %v7523 = vpop.f32.mrb[0].mxu0
    %v7524 = vadd.f32 0.0, %v7523
    %v7525 = vpop.f32.mrb[0].mxu0
    %v7526 = vpop.f32.mrb[0].mxu0
    %v7527 = vadd.f32 0.0, %v7526
    %v7528 = vpop.f32.mrb[0].mxu0
    %7529 = vmatprep.mubr.bf16.mxu0 0
    %7530 = vmatmul.mubr.bf16.gmra.mrb[0].mxu0 %v7403
    %v7531 = vpop.f32.mrb[0].mxu0
    %v7532 = vadd.f32 0.0, %v7531
    %v7533 = vpop.f32.mrb[0].mxu0
    %v7534 = vpop.f32.mrb[0].mxu0
    %v7535 = vadd.f32 0.0, %v7534
    %v7536 = vpop.f32.mrb[0].mxu0
    %7537 = vmatprep.mubr.bf16.mxu0 0
    %7538 = vmatmul.mubr.bf16.gmra.mrb[0].mxu0 %v7404
    %v7539 = vpop.f32.mrb[0].mxu0
    %v7540 = vadd.f32 0.0, %v7539
    %v7541 = vpop.f32.mrb[0].mxu0
    %v7542 = vpop.f32.mrb[0].mxu0
    %v7543 = vadd.f32 0.0, %v7542
    %v7544 = vpop.f32.mrb[0].mxu0
    %7545 = vmatprep.mubr.bf16.mxu0 0
    %7546 = vmatmul.mubr.bf16.gmra.mrb[0].mxu0 %v7405
    %v7547 = vpop.f32.mrb[0].mxu0
    %v7548 = vadd.f32 0.0, %v7547
    %v7549 = vpop.f32.mrb[0].mxu0
    %v7550 = vpop.f32.mrb[0].mxu0
    %v7551 = vadd.f32 0.0, %v7550
    %v7552 = vpop.f32.mrb[0].mxu0
    %7553 = vmatprep.mubr.bf16.mxu0 0
    %7554 = vmatmul.mubr.bf16.gmra.mrb[0].mxu0 %v7406
    %v7555 = vpop.f32.mrb[0].mxu0
    %v7556 = vadd.f32 0.0, %v7555
    %v7557 = vpop.f32.mrb[0].mxu0
    %v7558 = vpop.f32.mrb[0].mxu0
    %v7559 = vadd.f32 0.0, %v7558
    %v7560 = vpop.f32.mrb[0].mxu0
    %7561 = vmatprep.mubr.bf16.mxu0 0
    %7562 = vmatmul.mubr.bf16.gmra.mrb[0].mxu0 %v7407
    %v7563 = vpop.f32.mrb[0].mxu0
    %v7564 = vadd.f32 0.0, %v7563
    %v7565 = vpop.f32.mrb[0].mxu0
    %v7566 = vpop.f32.mrb[0].mxu0
    %v7567 = vadd.f32 0.0, %v7566
    %v7568 = vpop.f32.mrb[0].mxu0
    %7569 = vmatprep.mubr.bf16.mxu0 0
    %7570 = vmatmul.mubr.bf16.gmra.mrb[0].mxu0 %v7408
    %v7571 = vpop.f32.mrb[0].mxu0
    %v7572 = vadd.f32 0.0, %v7571
    %v7573 = vpop.f32.mrb[0].mxu0
    %v7574 = vpop.f32.mrb[0].mxu0
    %v7575 = vadd.f32 0.0, %v7574
    %v7576 = vpop.f32.mrb[0].mxu0
    %7577 = vmatprep.mubr.bf16.mxu0 0
    %7578 = vmatmul.mubr.bf16.gmra.mrb[0].mxu0 %v7409
    %v7579 = vpop.f32.mrb[0].mxu0
    %v7580 = vadd.f32 0.0, %v7579
    %v7581 = vpop.f32.mrb[0].mxu0
    %v7582 = vpop.f32.mrb[0].mxu0
    %v7583 = vadd.f32 0.0, %v7582
    %v7584 = vpop.f32.mrb[0].mxu0
    %7585 = vmatprep.mubr.bf16.mxu0 0
    %7586 = vmatmul.mubr.bf16.gmra.mrb[0].mxu0 %v7410
    %v7587 = vpop.f32.mrb[0].mxu0
    %v7588 = vadd.f32 0.0, %v7587
    %v7589 = vpop.f32.mrb[0].mxu0
    %v7590 = vpop.f32.mrb[0].mxu0
    %v7591 = vadd.f32 0.0, %v7590
    %v7592 = vpop.f32.mrb[0].mxu0
    %7593 = vmatprep.mubr.bf16.mxu0 0
    %7594 = vmatmul.mubr.bf16.gmra.mrb[0].mxu0 %v7411
    %v7595 = vpop.f32.mrb[0].mxu0
    %v7596 = vadd.f32 0.0, %v7595
    %v7597 = vpop.f32.mrb[0].mxu0
    %v7598 = vpop.f32.mrb[0].mxu0
    %v7599 = vadd.f32 0.0, %v7598
    %v7600 = vpop.f32.mrb[0].mxu0
    %7601 = vmatprep.mubr.bf16.mxu0 0
    %7602 = vmatmul.mubr.bf16.gmra.mrb[0].mxu0 %v7412
    %v7603 = vpop.f32.mrb[0].mxu0
    %v7604 = vadd.f32 0.0, %v7603
    %v7605 = vpop.f32.mrb[0].mxu0
    %v7606 = vpop.f32.mrb[0].mxu0
    %v7607 = vadd.f32 0.0, %v7606
    %v7608 = vpop.f32.mrb[0].mxu0
    %7609 = vmatprep.mubr.bf16.mxu0 0
    %7610 = vmatmul.mubr.bf16.gmra.mrb[0].mxu0 %v7413
    %v7611 = vpop.f32.mrb[0].mxu0
    %v7612 = vadd.f32 0.0, %v7611
    %v7613 = vpop.f32.mrb[0].mxu0
    %v7614 = vpop.f32.mrb[0].mxu0
    %v7615 = vadd.f32 0.0, %v7614
    %v7616 = vpop.f32.mrb[0].mxu0
    %7617 = vmatprep.mubr.bf16.mxu0 0
    %7618 = vmatmul.mubr.bf16.gmra.mrb[0].mxu0 %v7414
    %v7619 = vpop.f32.mrb[0].mxu0
    %v7620 = vadd.f32 0.0, %v7619
    %v7621 = vpop.f32.mrb[0].mxu0
    %v7622 = vpop.f32.mrb[0].mxu0
    %v7623 = vadd.f32 0.0, %v7622
    %v7624 = vpop.f32.mrb[0].mxu0
    %7625 = vmatprep.mubr.bf16.mxu0 0
    %7626 = vmatmul.mubr.bf16.gmra.mrb[0].mxu0 %v7415
    %v7627 = vpop.f32.mrb[0].mxu0
    %v7628 = vadd.f32 0.0, %v7627
    %v7629 = vpop.f32.mrb[0].mxu0
    %v7630 = vpop.f32.mrb[0].mxu0
    %v7631 = vadd.f32 0.0, %v7630
    %v7632 = vpop.f32.mrb[0].mxu0
    %7633 = vmatprep.mubr.bf16.mxu0 0
    %7634 = vmatmul.mubr.bf16.gmra.mrb[0].mxu0 %v7416
    %v7635 = vpop.f32.mrb[0].mxu0
    %v7636 = vadd.f32 0.0, %v7635
    %v7637 = vpop.f32.mrb[0].mxu0
    %v7638 = vpop.f32.mrb[0].mxu0
    %v7639 = vadd.f32 0.0, %v7638
    %v7640 = vpop.f32.mrb[0].mxu0
    %7641 = vdwg.mxu0
    %v7674 = vunpack.c.l.b16 %v6905
    %v7675 = vunpack.c.l.b16 %v6906
    %v7676 = vunpack.c.l.b16 %v6907
    %v7677 = vunpack.c.l.b16 %v6908
    %v7678 = vunpack.c.l.b16 %v6909
    %v7679 = vunpack.c.l.b16 %v6910
    %v7680 = vunpack.c.l.b16 %v6911
    %v7681 = vunpack.c.l.b16 %v6912
    %v7682 = vunpack.c.l.b16 %v6913
    %v7683 = vunpack.c.l.b16 %v6914
    %v7684 = vunpack.c.l.b16 %v6915
    %v7685 = vunpack.c.l.b16 %v6916
    %v7686 = vunpack.c.l.b16 %v6917
    %v7687 = vunpack.c.l.b16 %v6918
    %v7688 = vunpack.c.l.b16 %v6919
    %v7689 = vunpack.c.l.b16 %v6920
    %v7690 = vunpack.c.l.b16 %v6921
    %v7691 = vunpack.c.l.b16 %v6922
    %v7692 = vunpack.c.l.b16 %v6923
    %v7693 = vunpack.c.l.b16 %v6924
    %v7694 = vunpack.c.l.b16 %v6925
    %v7695 = vunpack.c.l.b16 %v6926
    %v7696 = vunpack.c.l.b16 %v6927
    %v7697 = vunpack.c.l.b16 %v6928
    %v7698 = vunpack.c.l.b16 %v6929
    %v7699 = vunpack.c.l.b16 %v6930
    %v7700 = vunpack.c.l.b16 %v6931
    %v7701 = vunpack.c.l.b16 %v6932
    %v7702 = vunpack.c.l.b16 %v6933
    %v7703 = vunpack.c.l.b16 %v6934
    %v7704 = vunpack.c.l.b16 %v6935
    %v7705 = vunpack.c.l.b16 %v6936
    %v7706 = vpack.c.b16 %v7675, %v7674
    %v7707 = vpack.c.b16 %v7677, %v7676
    %v7708 = vpack.c.b16 %v7679, %v7678
    %v7709 = vpack.c.b16 %v7681, %v7680
    %v7710 = vpack.c.b16 %v7683, %v7682
    %v7711 = vpack.c.b16 %v7685, %v7684
    %v7712 = vpack.c.b16 %v7687, %v7686
    %v7713 = vpack.c.b16 %v7689, %v7688
    %v7714 = vpack.c.b16 %v7691, %v7690
    %v7715 = vpack.c.b16 %v7693, %v7692
    %v7716 = vpack.c.b16 %v7695, %v7694
    %v7717 = vpack.c.b16 %v7697, %v7696
    %v7718 = vpack.c.b16 %v7699, %v7698
    %v7719 = vpack.c.b16 %v7701, %v7700
    %v7720 = vpack.c.b16 %v7703, %v7702
    %v7721 = vpack.c.b16 %v7705, %v7704
    %v7754 = vunpack.c.l.b16 %v6937
    %v7755 = vunpack.c.l.b16 %v6938
    %v7756 = vunpack.c.l.b16 %v6939
    %v7757 = vunpack.c.l.b16 %v6940
    %v7758 = vunpack.c.l.b16 %v6941
    %v7759 = vunpack.c.l.b16 %v6942
    %v7760 = vunpack.c.l.b16 %v6943
    %v7761 = vunpack.c.l.b16 %v6944
    %v7762 = vunpack.c.l.b16 %v6945
    %v7763 = vunpack.c.l.b16 %v6946
    %v7764 = vunpack.c.l.b16 %v6947
    %v7765 = vunpack.c.l.b16 %v6948
    %v7766 = vunpack.c.l.b16 %v6949
    %v7767 = vunpack.c.l.b16 %v6950
    %v7768 = vunpack.c.l.b16 %v6951
    %v7769 = vunpack.c.l.b16 %v6952
    %v7770 = vpack.c.b16 %v7755, %v7754
    %v7771 = vpack.c.b16 %v7757, %v7756
    %v7772 = vpack.c.b16 %v7759, %v7758
    %v7773 = vpack.c.b16 %v7761, %v7760
    %v7774 = vpack.c.b16 %v7763, %v7762
    %v7775 = vpack.c.b16 %v7765, %v7764
    %v7776 = vpack.c.b16 %v7767, %v7766
    %v7777 = vpack.c.b16 %v7769, %v7768
    %7786 = vmatprep.subr.bf16.mxu0 0
    %7787 = vmatpush1.bf16.msra.mxu0 %v7770
    %7788 = vmatprep.subr.bf16.mxu0 0
    %7789 = vmatpush1.bf16.msra.mxu0 %v7771
    %7790 = vmatprep.subr.bf16.mxu0 0
    %7791 = vmatpush1.bf16.msra.mxu0 %v7772
    %7792 = vmatprep.subr.bf16.mxu0 0
    %7793 = vmatpush1.bf16.msra.mxu0 %v7773
    %7794 = vmatprep.subr.bf16.mxu0 0
    %7795 = vmatpush1.bf16.msra.mxu0 %v7774
    %7796 = vmatprep.subr.bf16.mxu0 0
    %7797 = vmatpush1.bf16.msra.mxu0 %v7775
    %7798 = vmatprep.subr.bf16.mxu0 0
    %7799 = vmatpush1.bf16.msra.mxu0 %v7776
    %7800 = vmatprep.subr.bf16.mxu0 0
    %7801 = vmatpush1.bf16.msra.mxu0 %v7777
    %7802 = vmatprep.subr.bf16.mxu0 0
    %7803 = vmatpush1.bf16.msra.mxu0 0
    %7804 = vmatprep.subr.bf16.mxu0 0
    %7805 = vmatpush1.bf16.msra.mxu0 0
    %7806 = vmatprep.subr.bf16.mxu0 0
    %7807 = vmatpush1.bf16.msra.mxu0 0
    %7808 = vmatprep.subr.bf16.mxu0 0
    %7809 = vmatpush1.bf16.msra.mxu0 0
    %7810 = vmatprep.subr.bf16.mxu0 0
    %7811 = vmatpush1.bf16.msra.mxu0 0
    %7812 = vmatprep.subr.bf16.mxu0 0
    %7813 = vmatpush1.bf16.msra.mxu0 0
    %7814 = vmatprep.subr.bf16.mxu0 0
    %7815 = vmatpush1.bf16.msra.mxu0 0
    %7816 = vmatprep.subr.bf16.mxu0 0
    %7817 = vmatpush1.bf16.msra.mxu0 0
    %7818 = vmatprep.mubr.bf16.mxu0 0
    %7819 = vmatmul.mubr.bf16.gmra.mrb[0].mxu0 %v7706
    %v7820 = vpop.f32.mrb[0].mxu0
    %v7821 = vadd.f32 %v7516, %v7820
    %v7822 = vpop.f32.mrb[0].mxu0
    %v7823 = vpop.f32.mrb[0].mxu0
    %v7824 = vadd.f32 %v7519, %v7823
    %v7825 = vpop.f32.mrb[0].mxu0
    %7826 = vmatprep.mubr.bf16.mxu0 0
    %7827 = vmatmul.mubr.bf16.gmra.mrb[0].mxu0 %v7707
    %v7828 = vpop.f32.mrb[0].mxu0
    %v7829 = vadd.f32 %v7524, %v7828
    %v7830 = vpop.f32.mrb[0].mxu0
    %v7831 = vpop.f32.mrb[0].mxu0
    %v7832 = vadd.f32 %v7527, %v7831
    %v7833 = vpop.f32.mrb[0].mxu0
    %7834 = vmatprep.mubr.bf16.mxu0 0
    %7835 = vmatmul.mubr.bf16.gmra.mrb[0].mxu0 %v7708
    %v7836 = vpop.f32.mrb[0].mxu0
    %v7837 = vadd.f32 %v7532, %v7836
    %v7838 = vpop.f32.mrb[0].mxu0
    %v7839 = vpop.f32.mrb[0].mxu0
    %v7840 = vadd.f32 %v7535, %v7839
    %v7841 = vpop.f32.mrb[0].mxu0
    %7842 = vmatprep.mubr.bf16.mxu0 0
    %7843 = vmatmul.mubr.bf16.gmra.mrb[0].mxu0 %v7709
    %v7844 = vpop.f32.mrb[0].mxu0
    %v7845 = vadd.f32 %v7540, %v7844
    %v7846 = vpop.f32.mrb[0].mxu0
    %v7847 = vpop.f32.mrb[0].mxu0
    %v7848 = vadd.f32 %v7543, %v7847
    %v7849 = vpop.f32.mrb[0].mxu0
    %7850 = vmatprep.mubr.bf16.mxu0 0
    %7851 = vmatmul.mubr.bf16.gmra.mrb[0].mxu0 %v7710
    %v7852 = vpop.f32.mrb[0].mxu0
    %v7853 = vadd.f32 %v7548, %v7852
    %v7854 = vpop.f32.mrb[0].mxu0
    %v7855 = vpop.f32.mrb[0].mxu0
    %v7856 = vadd.f32 %v7551, %v7855
    %v7857 = vpop.f32.mrb[0].mxu0
    %7858 = vmatprep.mubr.bf16.mxu0 0
    %7859 = vmatmul.mubr.bf16.gmra.mrb[0].mxu0 %v7711
    %v7860 = vpop.f32.mrb[0].mxu0
    %v7861 = vadd.f32 %v7556, %v7860
    %v7862 = vpop.f32.mrb[0].mxu0
    %v7863 = vpop.f32.mrb[0].mxu0
    %v7864 = vadd.f32 %v7559, %v7863
    %v7865 = vpop.f32.mrb[0].mxu0
    %7866 = vmatprep.mubr.bf16.mxu0 0
    %7867 = vmatmul.mubr.bf16.gmra.mrb[0].mxu0 %v7712
    %v7868 = vpop.f32.mrb[0].mxu0
    %v7869 = vadd.f32 %v7564, %v7868
    %v7870 = vpop.f32.mrb[0].mxu0
    %v7871 = vpop.f32.mrb[0].mxu0
    %v7872 = vadd.f32 %v7567, %v7871
    %v7873 = vpop.f32.mrb[0].mxu0
    %7874 = vmatprep.mubr.bf16.mxu0 0
    %7875 = vmatmul.mubr.bf16.gmra.mrb[0].mxu0 %v7713
    %v7876 = vpop.f32.mrb[0].mxu0
    %v7877 = vadd.f32 %v7572, %v7876
    %v7878 = vpop.f32.mrb[0].mxu0
    %v7879 = vpop.f32.mrb[0].mxu0
    %v7880 = vadd.f32 %v7575, %v7879
    %v7881 = vpop.f32.mrb[0].mxu0
    %7882 = vmatprep.mubr.bf16.mxu0 0
    %7883 = vmatmul.mubr.bf16.gmra.mrb[0].mxu0 %v7714
    %v7884 = vpop.f32.mrb[0].mxu0
    %v7885 = vadd.f32 %v7580, %v7884
    %v7886 = vpop.f32.mrb[0].mxu0
    %v7887 = vpop.f32.mrb[0].mxu0
    %v7888 = vadd.f32 %v7583, %v7887
    %v7889 = vpop.f32.mrb[0].mxu0
    %7890 = vmatprep.mubr.bf16.mxu0 0
    %7891 = vmatmul.mubr.bf16.gmra.mrb[0].mxu0 %v7715
    %v7892 = vpop.f32.mrb[0].mxu0
    %v7893 = vadd.f32 %v7588, %v7892
    %v7894 = vpop.f32.mrb[0].mxu0
    %v7895 = vpop.f32.mrb[0].mxu0
    %v7896 = vadd.f32 %v7591, %v7895
    %v7897 = vpop.f32.mrb[0].mxu0
    %7898 = vmatprep.mubr.bf16.mxu0 0
    %7899 = vmatmul.mubr.bf16.gmra.mrb[0].mxu0 %v7716
    %v7900 = vpop.f32.mrb[0].mxu0
    %v7901 = vadd.f32 %v7596, %v7900
    %v7902 = vpop.f32.mrb[0].mxu0
    %v7903 = vpop.f32.mrb[0].mxu0
    %v7904 = vadd.f32 %v7599, %v7903
    %v7905 = vpop.f32.mrb[0].mxu0
    %7906 = vmatprep.mubr.bf16.mxu0 0
    %7907 = vmatmul.mubr.bf16.gmra.mrb[0].mxu0 %v7717
    %v7908 = vpop.f32.mrb[0].mxu0
    %v7909 = vadd.f32 %v7604, %v7908
    %v7910 = vpop.f32.mrb[0].mxu0
    %v7911 = vpop.f32.mrb[0].mxu0
    %v7912 = vadd.f32 %v7607, %v7911
    %v7913 = vpop.f32.mrb[0].mxu0
    %7914 = vmatprep.mubr.bf16.mxu0 0
    %7915 = vmatmul.mubr.bf16.gmra.mrb[0].mxu0 %v7718
    %v7916 = vpop.f32.mrb[0].mxu0
    %v7917 = vadd.f32 %v7612, %v7916
    %v7918 = vpop.f32.mrb[0].mxu0
    %v7919 = vpop.f32.mrb[0].mxu0
    %v7920 = vadd.f32 %v7615, %v7919
    %v7921 = vpop.f32.mrb[0].mxu0
    %7922 = vmatprep.mubr.bf16.mxu0 0
    %7923 = vmatmul.mubr.bf16.gmra.mrb[0].mxu0 %v7719
    %v7924 = vpop.f32.mrb[0].mxu0
    %v7925 = vadd.f32 %v7620, %v7924
    %v7926 = vpop.f32.mrb[0].mxu0
    %v7927 = vpop.f32.mrb[0].mxu0
    %v7928 = vadd.f32 %v7623, %v7927
    %v7929 = vpop.f32.mrb[0].mxu0
    %7930 = vmatprep.mubr.bf16.mxu0 0
    %7931 = vmatmul.mubr.bf16.gmra.mrb[0].mxu0 %v7720
    %v7932 = vpop.f32.mrb[0].mxu0
    %v7933 = vadd.f32 %v7628, %v7932
    %v7934 = vpop.f32.mrb[0].mxu0
    %v7935 = vpop.f32.mrb[0].mxu0
    %v7936 = vadd.f32 %v7631, %v7935
    %v7937 = vpop.f32.mrb[0].mxu0
    %7938 = vmatprep.mubr.bf16.mxu0 0
    %7939 = vmatmul.mubr.bf16.gmra.mrb[0].mxu0 %v7721
    %v7940 = vpop.f32.mrb[0].mxu0
    %v7941 = vadd.f32 %v7636, %v7940
    %v7942 = vpop.f32.mrb[0].mxu0
    %v7943 = vpop.f32.mrb[0].mxu0
    %v7944 = vadd.f32 %v7639, %v7943
    %v7945 = vpop.f32.mrb[0].mxu0
    %7946 = vdwg.mxu0
    %v7947 = vld [vmem:[#allocation2] sm:$0xe]
    %v7948 = vld [vmem:[#allocation2 + $0xc] sm:$0xe]
    %v7949 = vld [vmem:[#allocation2 + $0x18] sm:$0xe]
    %v7950 = vld [vmem:[#allocation2 + $0x24] sm:$0xe]
    %v7951 = vld [vmem:[#allocation2 + $0x30] sm:$0xe]
    %v7952 = vld [vmem:[#allocation2 + $0x3c] sm:$0xe]
    %v7953 = vld [vmem:[#allocation2 + $0x48] sm:$0xe]
    %v7954 = vld [vmem:[#allocation2 + $0x54] sm:$0xe]
    %v7955 = vld [vmem:[#allocation2 + $0x60] sm:$0xe]
    %v7956 = vld [vmem:[#allocation2 + $0x6c] sm:$0xe]
    %v7957 = vld [vmem:[#allocation2 + $0x78] sm:$0xe]
    %v7958 = vld [vmem:[#allocation2 + $0x84] sm:$0xe]
    %v7959 = vld [vmem:[#allocation2 + $0x90] sm:$0xe]
    %v7960 = vld [vmem:[#allocation2 + $0x9c] sm:$0xe]
    %v7961 = vld [vmem:[#allocation2 + $0xa8] sm:$0xe]
    %v7962 = vld [vmem:[#allocation2 + $0xb4] sm:$0xe]
    %v7995 = vrot.slane %v7947, 5
    %v7996 = vrot.slane %v7995, 4
    %v7997 = vrot.slane %v6906, 5
    %v7998 = vsel %vm2472, %v7996, %v7997
    %v7999 = vrot.slane %v7997, 4
    %v8000 = vrot.slane %v6953, 5
    %v8001 = vsel %vm2472, %v7999, %v8000
    %v8002 = vrot.slane %v7948, 5
    %v8003 = vrot.slane %v8002, 4
    %v8004 = vrot.slane %v6908, 5
    %v8005 = vsel %vm2472, %v8003, %v8004
    %v8006 = vrot.slane %v8004, 4
    %v8007 = vrot.slane %v6954, 5
    %v8008 = vsel %vm2472, %v8006, %v8007
    %v8009 = vrot.slane %v7949, 5
    %v8010 = vrot.slane %v8009, 4
    %v8011 = vrot.slane %v6910, 5
    %v8012 = vsel %vm2472, %v8010, %v8011
    %v8013 = vrot.slane %v8011, 4
    %v8014 = vrot.slane %v6955, 5
    %v8015 = vsel %vm2472, %v8013, %v8014
    %v8016 = vrot.slane %v7950, 5
    %v8017 = vrot.slane %v8016, 4
    %v8018 = vrot.slane %v6912, 5
    %v8019 = vsel %vm2472, %v8017, %v8018
    %v8020 = vrot.slane %v8018, 4
    %v8021 = vrot.slane %v6956, 5
    %v8022 = vsel %vm2472, %v8020, %v8021
    %v8023 = vrot.slane %v7951, 5
    %v8024 = vrot.slane %v8023, 4
    %v8025 = vrot.slane %v6914, 5
    %v8026 = vsel %vm2472, %v8024, %v8025
    %v8027 = vrot.slane %v8025, 4
    %v8028 = vrot.slane %v6957, 5
    %v8029 = vsel %vm2472, %v8027, %v8028
    %v8030 = vrot.slane %v7952, 5
    %v8031 = vrot.slane %v8030, 4
    %v8032 = vrot.slane %v6916, 5
    %v8033 = vsel %vm2472, %v8031, %v8032
    %v8034 = vrot.slane %v8032, 4
    %v8035 = vrot.slane %v6958, 5
    %v8036 = vsel %vm2472, %v8034, %v8035
    %v8037 = vrot.slane %v7953, 5
    %v8038 = vrot.slane %v8037, 4
    %v8039 = vrot.slane %v6918, 5
    %v8040 = vsel %vm2472, %v8038, %v8039
    %v8041 = vrot.slane %v8039, 4
    %v8042 = vrot.slane %v6959, 5
    %v8043 = vsel %vm2472, %v8041, %v8042
    %v8044 = vrot.slane %v7954, 5
    %v8045 = vrot.slane %v8044, 4
    %v8046 = vrot.slane %v6920, 5
    %v8047 = vsel %vm2472, %v8045, %v8046
    %v8048 = vrot.slane %v8046, 4
    %v8049 = vrot.slane %v6960, 5
    %v8050 = vsel %vm2472, %v8048, %v8049
    %v8051 = vrot.slane %v7955, 5
    %v8052 = vrot.slane %v8051, 4
    %v8053 = vrot.slane %v6922, 5
    %v8054 = vsel %vm2472, %v8052, %v8053
    %v8055 = vrot.slane %v8053, 4
    %v8056 = vrot.slane %v6961, 5
    %v8057 = vsel %vm2472, %v8055, %v8056
    %v8058 = vrot.slane %v7956, 5
    %v8059 = vrot.slane %v8058, 4
    %v8060 = vrot.slane %v6924, 5
    %v8061 = vsel %vm2472, %v8059, %v8060
    %v8062 = vrot.slane %v8060, 4
    %v8063 = vrot.slane %v6962, 5
    %v8064 = vsel %vm2472, %v8062, %v8063
    %v8065 = vrot.slane %v7957, 5
    %v8066 = vrot.slane %v8065, 4
    %v8067 = vrot.slane %v6926, 5
    %v8068 = vsel %vm2472, %v8066, %v8067
    %v8069 = vrot.slane %v8067, 4
    %v8070 = vrot.slane %v6963, 5
    %v8071 = vsel %vm2472, %v8069, %v8070
    %v8072 = vrot.slane %v7958, 5
    %v8073 = vrot.slane %v8072, 4
    %v8074 = vrot.slane %v6928, 5
    %v8075 = vsel %vm2472, %v8073, %v8074
    %v8076 = vrot.slane %v8074, 4
    %v8077 = vrot.slane %v6964, 5
    %v8078 = vsel %vm2472, %v8076, %v8077
    %v8079 = vrot.slane %v7959, 5
    %v8080 = vrot.slane %v8079, 4
    %v8081 = vrot.slane %v6930, 5
    %v8082 = vsel %vm2472, %v8080, %v8081
    %v8083 = vrot.slane %v8081, 4
    %v8084 = vrot.slane %v6965, 5
    %v8085 = vsel %vm2472, %v8083, %v8084
    %v8086 = vrot.slane %v7960, 5
    %v8087 = vrot.slane %v8086, 4
    %v8088 = vrot.slane %v6932, 5
    %v8089 = vsel %vm2472, %v8087, %v8088
    %v8090 = vrot.slane %v8088, 4
    %v8091 = vrot.slane %v6966, 5
    %v8092 = vsel %vm2472, %v8090, %v8091
    %v8093 = vrot.slane %v7961, 5
    %v8094 = vrot.slane %v8093, 4
    %v8095 = vrot.slane %v6934, 5
    %v8096 = vsel %vm2472, %v8094, %v8095
    %v8097 = vrot.slane %v8095, 4
    %v8098 = vrot.slane %v6967, 5
    %v8099 = vsel %vm2472, %v8097, %v8098
    %v8100 = vrot.slane %v7962, 5
    %v8101 = vrot.slane %v8100, 4
    %v8102 = vrot.slane %v6936, 5
    %v8103 = vsel %vm2472, %v8101, %v8102
    %v8104 = vrot.slane %v8102, 4
    %v8105 = vrot.slane %v6968, 5
    %v8106 = vsel %vm2472, %v8104, %v8105
    %v8107 = vld [vmem:[%s3 + $0x80] sm:$0xf]
    %v8108 = vld [vmem:[%s3 + $0x84] sm:$0xf]
    %v8109 = vld [vmem:[%s3 + $0x88] sm:$0xf]
    %v8110 = vld [vmem:[%s3 + $0x8c] sm:$0xf]
    %v8111 = vld [vmem:[%s3 + $0x90] sm:$0xf]
    %v8112 = vld [vmem:[%s3 + $0x94] sm:$0xf]
    %v8113 = vld [vmem:[%s3 + $0x98] sm:$0xf]
    %v8114 = vld [vmem:[%s3 + $0x9c] sm:$0xf]
    %v8115 = vld [vmem:[%s3 + $0xa0] sm:$0xf]
    %v8116 = vld [vmem:[%s3 + $0xa4] sm:$0xf]
    %v8117 = vld [vmem:[%s3 + $0xa8] sm:$0xf]
    %v8118 = vld [vmem:[%s3 + $0xac] sm:$0xf]
    %v8119 = vld [vmem:[%s3 + $0xb0] sm:$0xf]
    %v8120 = vld [vmem:[%s3 + $0xb4] sm:$0xf]
    %v8121 = vld [vmem:[%s3 + $0xb8] sm:$0xf]
    %v8122 = vld [vmem:[%s3 + $0xbc] sm:$0xf]
    %v8123 = vunpack.c.l.b16 %v7998
    %v8124 = vunpack.c.l.b16 %v8001
    %v8125 = vunpack.c.l.b16 %v8005
    %v8126 = vunpack.c.l.b16 %v8008
    %v8127 = vunpack.c.l.b16 %v8012
    %v8128 = vunpack.c.l.b16 %v8015
    %v8129 = vunpack.c.l.b16 %v8019
    %v8130 = vunpack.c.l.b16 %v8022
    %v8131 = vunpack.c.l.b16 %v8026
    %v8132 = vunpack.c.l.b16 %v8029
    %v8133 = vunpack.c.l.b16 %v8033
    %v8134 = vunpack.c.l.b16 %v8036
    %v8135 = vunpack.c.l.b16 %v8040
    %v8136 = vunpack.c.l.b16 %v8043
    %v8137 = vunpack.c.l.b16 %v8047
    %v8138 = vunpack.c.l.b16 %v8050
    %v8139 = vunpack.c.l.b16 %v8054
    %v8140 = vunpack.c.l.b16 %v8057
    %v8141 = vunpack.c.l.b16 %v8061
    %v8142 = vunpack.c.l.b16 %v8064
    %v8143 = vunpack.c.l.b16 %v8068
    %v8144 = vunpack.c.l.b16 %v8071
    %v8145 = vunpack.c.l.b16 %v8075
    %v8146 = vunpack.c.l.b16 %v8078
    %v8147 = vunpack.c.l.b16 %v8082
    %v8148 = vunpack.c.l.b16 %v8085
    %v8149 = vunpack.c.l.b16 %v8089
    %v8150 = vunpack.c.l.b16 %v8092
    %v8151 = vunpack.c.l.b16 %v8096
    %v8152 = vunpack.c.l.b16 %v8099
    %v8153 = vunpack.c.l.b16 %v8103
    %v8154 = vunpack.c.l.b16 %v8106
    %v8155 = vpack.c.b16 %v8124, %v8123
    %v8156 = vpack.c.b16 %v8126, %v8125
    %v8157 = vpack.c.b16 %v8128, %v8127
    %v8158 = vpack.c.b16 %v8130, %v8129
    %v8159 = vpack.c.b16 %v8132, %v8131
    %v8160 = vpack.c.b16 %v8134, %v8133
    %v8161 = vpack.c.b16 %v8136, %v8135
    %v8162 = vpack.c.b16 %v8138, %v8137
    %v8163 = vpack.c.b16 %v8140, %v8139
    %v8164 = vpack.c.b16 %v8142, %v8141
    %v8165 = vpack.c.b16 %v8144, %v8143
    %v8166 = vpack.c.b16 %v8146, %v8145
    %v8167 = vpack.c.b16 %v8148, %v8147
    %v8168 = vpack.c.b16 %v8150, %v8149
    %v8169 = vpack.c.b16 %v8152, %v8151
    %v8170 = vpack.c.b16 %v8154, %v8153
    %v8203 = vunpack.c.l.b16 %v8107
    %v8204 = vunpack.c.l.b16 %v8108
    %v8205 = vunpack.c.l.b16 %v8109
    %v8206 = vunpack.c.l.b16 %v8110
    %v8207 = vunpack.c.l.b16 %v8111
    %v8208 = vunpack.c.l.b16 %v8112
    %v8209 = vunpack.c.l.b16 %v8113
    %v8210 = vunpack.c.l.b16 %v8114
    %v8211 = vunpack.c.l.b16 %v8115
    %v8212 = vunpack.c.l.b16 %v8116
    %v8213 = vunpack.c.l.b16 %v8117
    %v8214 = vunpack.c.l.b16 %v8118
    %v8215 = vunpack.c.l.b16 %v8119
    %v8216 = vunpack.c.l.b16 %v8120
    %v8217 = vunpack.c.l.b16 %v8121
    %v8218 = vunpack.c.l.b16 %v8122
    %v8219 = vpack.c.b16 %v8204, %v8203
    %v8220 = vpack.c.b16 %v8206, %v8205
    %v8221 = vpack.c.b16 %v8208, %v8207
    %v8222 = vpack.c.b16 %v8210, %v8209
    %v8223 = vpack.c.b16 %v8212, %v8211
    %v8224 = vpack.c.b16 %v8214, %v8213
    %v8225 = vpack.c.b16 %v8216, %v8215
    %v8226 = vpack.c.b16 %v8218, %v8217
    %8235 = vmatprep.subr.bf16.mxu0 0
    %8236 = vmatpush1.bf16.msra.mxu0 %v8219
    %8237 = vmatprep.subr.bf16.mxu0 0
    %8238 = vmatpush1.bf16.msra.mxu0 %v8220
    %8239 = vmatprep.subr.bf16.mxu0 0
    %8240 = vmatpush1.bf16.msra.mxu0 %v8221
    %8241 = vmatprep.subr.bf16.mxu0 0
    %8242 = vmatpush1.bf16.msra.mxu0 %v8222
    %8243 = vmatprep.subr.bf16.mxu0 0
    %8244 = vmatpush1.bf16.msra.mxu0 %v8223
    %8245 = vmatprep.subr.bf16.mxu0 0
    %8246 = vmatpush1.bf16.msra.mxu0 %v8224
    %8247 = vmatprep.subr.bf16.mxu0 0
    %8248 = vmatpush1.bf16.msra.mxu0 %v8225
    %8249 = vmatprep.subr.bf16.mxu0 0
    %8250 = vmatpush1.bf16.msra.mxu0 %v8226
    %8251 = vmatprep.subr.bf16.mxu0 0
    %8252 = vmatpush1.bf16.msra.mxu0 0
    %8253 = vmatprep.subr.bf16.mxu0 0
    %8254 = vmatpush1.bf16.msra.mxu0 0
    %8255 = vmatprep.subr.bf16.mxu0 0
    %8256 = vmatpush1.bf16.msra.mxu0 0
    %8257 = vmatprep.subr.bf16.mxu0 0
    %8258 = vmatpush1.bf16.msra.mxu0 0
    %8259 = vmatprep.subr.bf16.mxu0 0
    %8260 = vmatpush1.bf16.msra.mxu0 0
    %8261 = vmatprep.subr.bf16.mxu0 0
    %8262 = vmatpush1.bf16.msra.mxu0 0
    %8263 = vmatprep.subr.bf16.mxu0 0
    %8264 = vmatpush1.bf16.msra.mxu0 0
    %8265 = vmatprep.subr.bf16.mxu0 0
    %8266 = vmatpush1.bf16.msra.mxu0 0
    %8267 = vmatprep.mubr.bf16.mxu0 0
    %8268 = vmatmul.mubr.bf16.gmra.mrb[0].mxu0 %v8155
    %v8269 = vpop.f32.mrb[0].mxu0
    %v8270 = vadd.f32 0.0, %v8269
    %v8271 = vpop.f32.mrb[0].mxu0
    %v8272 = vpop.f32.mrb[0].mxu0
    %v8273 = vadd.f32 0.0, %v8272
    %v8274 = vpop.f32.mrb[0].mxu0
    %8275 = vmatprep.mubr.bf16.mxu0 0
    %8276 = vmatmul.mubr.bf16.gmra.mrb[0].mxu0 %v8156
    %v8277 = vpop.f32.mrb[0].mxu0
    %v8278 = vadd.f32 0.0, %v8277
    %v8279 = vpop.f32.mrb[0].mxu0
    %v8280 = vpop.f32.mrb[0].mxu0
    %v8281 = vadd.f32 0.0, %v8280
    %v8282 = vpop.f32.mrb[0].mxu0
    %8283 = vmatprep.mubr.bf16.mxu0 0
    %8284 = vmatmul.mubr.bf16.gmra.mrb[0].mxu0 %v8157
    %v8285 = vpop.f32.mrb[0].mxu0
    %v8286 = vadd.f32 0.0, %v8285
    %v8287 = vpop.f32.mrb[0].mxu0
    %v8288 = vpop.f32.mrb[0].mxu0
    %v8289 = vadd.f32 0.0, %v8288
    %v8290 = vpop.f32.mrb[0].mxu0
    %8291 = vmatprep.mubr.bf16.mxu0 0
    %8292 = vmatmul.mubr.bf16.gmra.mrb[0].mxu0 %v8158
    %v8293 = vpop.f32.mrb[0].mxu0
    %v8294 = vadd.f32 0.0, %v8293
    %v8295 = vpop.f32.mrb[0].mxu0
    %v8296 = vpop.f32.mrb[0].mxu0
    %v8297 = vadd.f32 0.0, %v8296
    %v8298 = vpop.f32.mrb[0].mxu0
    %8299 = vmatprep.mubr.bf16.mxu0 0
    %8300 = vmatmul.mubr.bf16.gmra.mrb[0].mxu0 %v8159
    %v8301 = vpop.f32.mrb[0].mxu0
    %v8302 = vadd.f32 0.0, %v8301
    %v8303 = vpop.f32.mrb[0].mxu0
    %v8304 = vpop.f32.mrb[0].mxu0
    %v8305 = vadd.f32 0.0, %v8304
    %v8306 = vpop.f32.mrb[0].mxu0
    %8307 = vmatprep.mubr.bf16.mxu0 0
    %8308 = vmatmul.mubr.bf16.gmra.mrb[0].mxu0 %v8160
    %v8309 = vpop.f32.mrb[0].mxu0
    %v8310 = vadd.f32 0.0, %v8309
    %v8311 = vpop.f32.mrb[0].mxu0
    %v8312 = vpop.f32.mrb[0].mxu0
    %v8313 = vadd.f32 0.0, %v8312
    %v8314 = vpop.f32.mrb[0].mxu0
    %8315 = vmatprep.mubr.bf16.mxu0 0
    %8316 = vmatmul.mubr.bf16.gmra.mrb[0].mxu0 %v8161
    %v8317 = vpop.f32.mrb[0].mxu0
    %v8318 = vadd.f32 0.0, %v8317
    %v8319 = vpop.f32.mrb[0].mxu0
    %v8320 = vpop.f32.mrb[0].mxu0
    %v8321 = vadd.f32 0.0, %v8320
    %v8322 = vpop.f32.mrb[0].mxu0
    %8323 = vmatprep.mubr.bf16.mxu0 0
    %8324 = vmatmul.mubr.bf16.gmra.mrb[0].mxu0 %v8162
    %v8325 = vpop.f32.mrb[0].mxu0
    %v8326 = vadd.f32 0.0, %v8325
    %v8327 = vpop.f32.mrb[0].mxu0
    %v8328 = vpop.f32.mrb[0].mxu0
    %v8329 = vadd.f32 0.0, %v8328
    %v8330 = vpop.f32.mrb[0].mxu0
    %8331 = vmatprep.mubr.bf16.mxu0 0
    %8332 = vmatmul.mubr.bf16.gmra.mrb[0].mxu0 %v8163
    %v8333 = vpop.f32.mrb[0].mxu0
    %v8334 = vadd.f32 0.0, %v8333
    %v8335 = vpop.f32.mrb[0].mxu0
    %v8336 = vpop.f32.mrb[0].mxu0
    %v8337 = vadd.f32 0.0, %v8336
    %v8338 = vpop.f32.mrb[0].mxu0
    %8339 = vmatprep.mubr.bf16.mxu0 0
    %8340 = vmatmul.mubr.bf16.gmra.mrb[0].mxu0 %v8164
    %v8341 = vpop.f32.mrb[0].mxu0
    %v8342 = vadd.f32 0.0, %v8341
    %v8343 = vpop.f32.mrb[0].mxu0
    %v8344 = vpop.f32.mrb[0].mxu0
    %v8345 = vadd.f32 0.0, %v8344
    %v8346 = vpop.f32.mrb[0].mxu0
    %8347 = vmatprep.mubr.bf16.mxu0 0
    %8348 = vmatmul.mubr.bf16.gmra.mrb[0].mxu0 %v8165
    %v8349 = vpop.f32.mrb[0].mxu0
    %v8350 = vadd.f32 0.0, %v8349
    %v8351 = vpop.f32.mrb[0].mxu0
    %v8352 = vpop.f32.mrb[0].mxu0
    %v8353 = vadd.f32 0.0, %v8352
    %v8354 = vpop.f32.mrb[0].mxu0
    %8355 = vmatprep.mubr.bf16.mxu0 0
    %8356 = vmatmul.mubr.bf16.gmra.mrb[0].mxu0 %v8166
    %v8357 = vpop.f32.mrb[0].mxu0
    %v8358 = vadd.f32 0.0, %v8357
    %v8359 = vpop.f32.mrb[0].mxu0
    %v8360 = vpop.f32.mrb[0].mxu0
    %v8361 = vadd.f32 0.0, %v8360
    %v8362 = vpop.f32.mrb[0].mxu0
    %8363 = vmatprep.mubr.bf16.mxu0 0
    %8364 = vmatmul.mubr.bf16.gmra.mrb[0].mxu0 %v8167
    %v8365 = vpop.f32.mrb[0].mxu0
    %v8366 = vadd.f32 0.0, %v8365
    %v8367 = vpop.f32.mrb[0].mxu0
    %v8368 = vpop.f32.mrb[0].mxu0
    %v8369 = vadd.f32 0.0, %v8368
    %v8370 = vpop.f32.mrb[0].mxu0
    %8371 = vmatprep.mubr.bf16.mxu0 0
    %8372 = vmatmul.mubr.bf16.gmra.mrb[0].mxu0 %v8168
    %v8373 = vpop.f32.mrb[0].mxu0
    %v8374 = vadd.f32 0.0, %v8373
    %v8375 = vpop.f32.mrb[0].mxu0
    %v8376 = vpop.f32.mrb[0].mxu0
    %v8377 = vadd.f32 0.0, %v8376
    %v8378 = vpop.f32.mrb[0].mxu0
    %8379 = vmatprep.mubr.bf16.mxu0 0
    %8380 = vmatmul.mubr.bf16.gmra.mrb[0].mxu0 %v8169
    %v8381 = vpop.f32.mrb[0].mxu0
    %v8382 = vadd.f32 0.0, %v8381
    %v8383 = vpop.f32.mrb[0].mxu0
    %v8384 = vpop.f32.mrb[0].mxu0
    %v8385 = vadd.f32 0.0, %v8384
    %v8386 = vpop.f32.mrb[0].mxu0
    %8387 = vmatprep.mubr.bf16.mxu0 0
    %8388 = vmatmul.mubr.bf16.gmra.mrb[0].mxu0 %v8170
    %v8389 = vpop.f32.mrb[0].mxu0
    %v8390 = vadd.f32 0.0, %v8389
    %v8391 = vpop.f32.mrb[0].mxu0
    %v8392 = vpop.f32.mrb[0].mxu0
    %v8393 = vadd.f32 0.0, %v8392
    %v8394 = vpop.f32.mrb[0].mxu0
    %8395 = vdwg.mxu0
    %v8396 = vadd.f32 %v7821, %v8270
    %v8397 = vadd.f32 %v7824, %v8273
    %v8398 = vadd.f32 %v7829, %v8278
    %v8399 = vadd.f32 %v7832, %v8281
    %v8400 = vadd.f32 %v7837, %v8286
    %v8401 = vadd.f32 %v7840, %v8289
    %v8402 = vadd.f32 %v7845, %v8294
    %v8403 = vadd.f32 %v7848, %v8297
    %v8404 = vadd.f32 %v7853, %v8302
    %v8405 = vadd.f32 %v7856, %v8305
    %v8406 = vadd.f32 %v7861, %v8310
    %v8407 = vadd.f32 %v7864, %v8313
    %v8408 = vadd.f32 %v7869, %v8318
    %v8409 = vadd.f32 %v7872, %v8321
    %v8410 = vadd.f32 %v7877, %v8326
    %v8411 = vadd.f32 %v7880, %v8329
    %v8412 = vadd.f32 %v7885, %v8334
    %v8413 = vadd.f32 %v7888, %v8337
    %v8414 = vadd.f32 %v7893, %v8342
    %v8415 = vadd.f32 %v7896, %v8345
    %v8416 = vadd.f32 %v7901, %v8350
    %v8417 = vadd.f32 %v7904, %v8353
    %v8418 = vadd.f32 %v7909, %v8358
    %v8419 = vadd.f32 %v7912, %v8361
    %v8420 = vadd.f32 %v7917, %v8366
    %v8421 = vadd.f32 %v7920, %v8369
    %v8422 = vadd.f32 %v7925, %v8374
    %v8423 = vadd.f32 %v7928, %v8377
    %v8424 = vadd.f32 %v7933, %v8382
    %v8425 = vadd.f32 %v7936, %v8385
    %v8426 = vadd.f32 %v7941, %v8390
    %v8427 = vadd.f32 %v7944, %v8393
    %v8428 = vld [vmem:[%s1262] sm:$0xf]
    %v8429 = vld [vmem:[%s1262 + $0x4] sm:$0xf]
    %v8430 = vld [vmem:[%s1262 + $0xc] sm:$0xf]
    %v8431 = vld [vmem:[%s1262 + $0x10] sm:$0xf]
    %v8432 = vld [vmem:[%s1262 + $0x18] sm:$0xf]
    %v8433 = vld [vmem:[%s1262 + $0x1c] sm:$0xf]
    %v8434 = vld [vmem:[%s1262 + $0x24] sm:$0xf]
    %v8435 = vld [vmem:[%s1262 + $0x28] sm:$0xf]
    %v8436 = vld [vmem:[%s1262 + $0x30] sm:$0xf]
    %v8437 = vld [vmem:[%s1262 + $0x34] sm:$0xf]
    %v8438 = vld [vmem:[%s1262 + $0x3c] sm:$0xf]
    %v8439 = vld [vmem:[%s1262 + $0x40] sm:$0xf]
    %v8440 = vld [vmem:[%s1262 + $0x48] sm:$0xf]
    %v8441 = vld [vmem:[%s1262 + $0x4c] sm:$0xf]
    %v8442 = vld [vmem:[%s1262 + $0x54] sm:$0xf]
    %v8443 = vld [vmem:[%s1262 + $0x58] sm:$0xf]
    %v8444 = vld [vmem:[%s1262 + $0x60] sm:$0xf]
    %v8445 = vld [vmem:[%s1262 + $0x64] sm:$0xf]
    %v8446 = vld [vmem:[%s1262 + $0x6c] sm:$0xf]
    %v8447 = vld [vmem:[%s1262 + $0x70] sm:$0xf]
    %v8448 = vld [vmem:[%s1262 + $0x78] sm:$0xf]
    %v8449 = vld [vmem:[%s1262 + $0x7c] sm:$0xf]
    %v8450 = vld [vmem:[%s1262 + $0x84] sm:$0xf]
    %v8451 = vld [vmem:[%s1262 + $0x88] sm:$0xf]
    %v8452 = vld [vmem:[%s1262 + $0x90] sm:$0xf]
    %v8453 = vld [vmem:[%s1262 + $0x94] sm:$0xf]
    %v8454 = vld [vmem:[%s1262 + $0x9c] sm:$0xf]
    %v8455 = vld [vmem:[%s1262 + $0xa0] sm:$0xf]
    %v8456 = vld [vmem:[%s1262 + $0xa8] sm:$0xf]
    %v8457 = vld [vmem:[%s1262 + $0xac] sm:$0xf]
    %v8458 = vld [vmem:[%s1262 + $0xb4] sm:$0xf]
    %v8459 = vld [vmem:[%s1262 + $0xb8] sm:$0xf]
    %v8460 = vld [vmem:[%s3 + $0xc0] sm:$0xf]
    %v8461 = vld [vmem:[%s3 + $0xc4] sm:$0xf]
    %v8462 = vld [vmem:[%s3 + $0xc8] sm:$0xf]
    %v8463 = vld [vmem:[%s3 + $0xcc] sm:$0xf]
    %v8464 = vld [vmem:[%s3 + $0xd0] sm:$0xf]
    %v8465 = vld [vmem:[%s3 + $0xd4] sm:$0xf]
    %v8466 = vld [vmem:[%s3 + $0xd8] sm:$0xf]
    %v8467 = vld [vmem:[%s3 + $0xdc] sm:$0xf]
    %v8468 = vld [vmem:[%s3 + $0xe0] sm:$0xf]
    %v8469 = vld [vmem:[%s3 + $0xe4] sm:$0xf]
    %v8470 = vld [vmem:[%s3 + $0xe8] sm:$0xf]
    %v8471 = vld [vmem:[%s3 + $0xec] sm:$0xf]
    %v8472 = vld [vmem:[%s3 + $0xf0] sm:$0xf]
    %v8473 = vld [vmem:[%s3 + $0xf4] sm:$0xf]
    %v8474 = vld [vmem:[%s3 + $0xf8] sm:$0xf]
    %v8475 = vld [vmem:[%s3 + $0xfc] sm:$0xf]
    %v8508 = vunpack.c.l.b16 %v8428
    %v8509 = vunpack.c.l.b16 %v8429
    %v8510 = vunpack.c.l.b16 %v8430
    %v8511 = vunpack.c.l.b16 %v8431
    %v8512 = vunpack.c.l.b16 %v8432
    %v8513 = vunpack.c.l.b16 %v8433
    %v8514 = vunpack.c.l.b16 %v8434
    %v8515 = vunpack.c.l.b16 %v8435
    %v8516 = vunpack.c.l.b16 %v8436
    %v8517 = vunpack.c.l.b16 %v8437
    %v8518 = vunpack.c.l.b16 %v8438
    %v8519 = vunpack.c.l.b16 %v8439
    %v8520 = vunpack.c.l.b16 %v8440
    %v8521 = vunpack.c.l.b16 %v8441
    %v8522 = vunpack.c.l.b16 %v8442
    %v8523 = vunpack.c.l.b16 %v8443
    %v8524 = vunpack.c.l.b16 %v8444
    %v8525 = vunpack.c.l.b16 %v8445
    %v8526 = vunpack.c.l.b16 %v8446
    %v8527 = vunpack.c.l.b16 %v8447
    %v8528 = vunpack.c.l.b16 %v8448
    %v8529 = vunpack.c.l.b16 %v8449
    %v8530 = vunpack.c.l.b16 %v8450
    %v8531 = vunpack.c.l.b16 %v8451
    %v8532 = vunpack.c.l.b16 %v8452
    %v8533 = vunpack.c.l.b16 %v8453
    %v8534 = vunpack.c.l.b16 %v8454
    %v8535 = vunpack.c.l.b16 %v8455
    %v8536 = vunpack.c.l.b16 %v8456
    %v8537 = vunpack.c.l.b16 %v8457
    %v8538 = vunpack.c.l.b16 %v8458
    %v8539 = vunpack.c.l.b16 %v8459
    %v8540 = vpack.c.b16 %v8509, %v8508
    %v8541 = vpack.c.b16 %v8511, %v8510
    %v8542 = vpack.c.b16 %v8513, %v8512
    %v8543 = vpack.c.b16 %v8515, %v8514
    %v8544 = vpack.c.b16 %v8517, %v8516
    %v8545 = vpack.c.b16 %v8519, %v8518
    %v8546 = vpack.c.b16 %v8521, %v8520
    %v8547 = vpack.c.b16 %v8523, %v8522
    %v8548 = vpack.c.b16 %v8525, %v8524
    %v8549 = vpack.c.b16 %v8527, %v8526
    %v8550 = vpack.c.b16 %v8529, %v8528
    %v8551 = vpack.c.b16 %v8531, %v8530
    %v8552 = vpack.c.b16 %v8533, %v8532
    %v8553 = vpack.c.b16 %v8535, %v8534
    %v8554 = vpack.c.b16 %v8537, %v8536
    %v8555 = vpack.c.b16 %v8539, %v8538
    %v8588 = vunpack.c.l.b16 %v8460
    %v8589 = vunpack.c.l.b16 %v8461
    %v8590 = vunpack.c.l.b16 %v8462
    %v8591 = vunpack.c.l.b16 %v8463
    %v8592 = vunpack.c.l.b16 %v8464
    %v8593 = vunpack.c.l.b16 %v8465
    %v8594 = vunpack.c.l.b16 %v8466
    %v8595 = vunpack.c.l.b16 %v8467
    %v8596 = vunpack.c.l.b16 %v8468
    %v8597 = vunpack.c.l.b16 %v8469
    %v8598 = vunpack.c.l.b16 %v8470
    %v8599 = vunpack.c.l.b16 %v8471
    %v8600 = vunpack.c.l.b16 %v8472
    %v8601 = vunpack.c.l.b16 %v8473
    %v8602 = vunpack.c.l.b16 %v8474
    %v8603 = vunpack.c.l.b16 %v8475
    %v8604 = vpack.c.b16 %v8589, %v8588
    %v8605 = vpack.c.b16 %v8591, %v8590
    %v8606 = vpack.c.b16 %v8593, %v8592
    %v8607 = vpack.c.b16 %v8595, %v8594
    %v8608 = vpack.c.b16 %v8597, %v8596
    %v8609 = vpack.c.b16 %v8599, %v8598
    %v8610 = vpack.c.b16 %v8601, %v8600
    %v8611 = vpack.c.b16 %v8603, %v8602
    %8620 = vmatprep.subr.bf16.mxu0 0
    %8621 = vmatpush1.bf16.msra.mxu0 %v8604
    %8622 = vmatprep.subr.bf16.mxu0 0
    %8623 = vmatpush1.bf16.msra.mxu0 %v8605
    %8624 = vmatprep.subr.bf16.mxu0 0
    %8625 = vmatpush1.bf16.msra.mxu0 %v8606
    %8626 = vmatprep.subr.bf16.mxu0 0
    %8627 = vmatpush1.bf16.msra.mxu0 %v8607
    %8628 = vmatprep.subr.bf16.mxu0 0
    %8629 = vmatpush1.bf16.msra.mxu0 %v8608
    %8630 = vmatprep.subr.bf16.mxu0 0
    %8631 = vmatpush1.bf16.msra.mxu0 %v8609
    %8632 = vmatprep.subr.bf16.mxu0 0
    %8633 = vmatpush1.bf16.msra.mxu0 %v8610
    %8634 = vmatprep.subr.bf16.mxu0 0
    %8635 = vmatpush1.bf16.msra.mxu0 %v8611
    %8636 = vmatprep.subr.bf16.mxu0 0
    %8637 = vmatpush1.bf16.msra.mxu0 0
    %8638 = vmatprep.subr.bf16.mxu0 0
    %8639 = vmatpush1.bf16.msra.mxu0 0
    %8640 = vmatprep.subr.bf16.mxu0 0
    %8641 = vmatpush1.bf16.msra.mxu0 0
    %8642 = vmatprep.subr.bf16.mxu0 0
    %8643 = vmatpush1.bf16.msra.mxu0 0
    %8644 = vmatprep.subr.bf16.mxu0 0
    %8645 = vmatpush1.bf16.msra.mxu0 0
    %8646 = vmatprep.subr.bf16.mxu0 0
    %8647 = vmatpush1.bf16.msra.mxu0 0
    %8648 = vmatprep.subr.bf16.mxu0 0
    %8649 = vmatpush1.bf16.msra.mxu0 0
    %8650 = vmatprep.subr.bf16.mxu0 0
    %8651 = vmatpush1.bf16.msra.mxu0 0
    %8652 = vmatprep.mubr.bf16.mxu0 0
    %8653 = vmatmul.mubr.bf16.gmra.mrb[0].mxu0 %v8540
    %v8654 = vpop.f32.mrb[0].mxu0
    %v8655 = vadd.f32 0.0, %v8654
    %v8656 = vpop.f32.mrb[0].mxu0
    %v8657 = vpop.f32.mrb[0].mxu0
    %v8658 = vadd.f32 0.0, %v8657
    %v8659 = vpop.f32.mrb[0].mxu0
    %8660 = vmatprep.mubr.bf16.mxu0 0
    %8661 = vmatmul.mubr.bf16.gmra.mrb[0].mxu0 %v8541
    %v8662 = vpop.f32.mrb[0].mxu0
    %v8663 = vadd.f32 0.0, %v8662
    %v8664 = vpop.f32.mrb[0].mxu0
    %v8665 = vpop.f32.mrb[0].mxu0
    %v8666 = vadd.f32 0.0, %v8665
    %v8667 = vpop.f32.mrb[0].mxu0
    %8668 = vmatprep.mubr.bf16.mxu0 0
    %8669 = vmatmul.mubr.bf16.gmra.mrb[0].mxu0 %v8542
    %v8670 = vpop.f32.mrb[0].mxu0
    %v8671 = vadd.f32 0.0, %v8670
    %v8672 = vpop.f32.mrb[0].mxu0
    %v8673 = vpop.f32.mrb[0].mxu0
    %v8674 = vadd.f32 0.0, %v8673
    %v8675 = vpop.f32.mrb[0].mxu0
    %8676 = vmatprep.mubr.bf16.mxu0 0
    %8677 = vmatmul.mubr.bf16.gmra.mrb[0].mxu0 %v8543
    %v8678 = vpop.f32.mrb[0].mxu0
    %v8679 = vadd.f32 0.0, %v8678
    %v8680 = vpop.f32.mrb[0].mxu0
    %v8681 = vpop.f32.mrb[0].mxu0
    %v8682 = vadd.f32 0.0, %v8681
    %v8683 = vpop.f32.mrb[0].mxu0
    %8684 = vmatprep.mubr.bf16.mxu0 0
    %8685 = vmatmul.mubr.bf16.gmra.mrb[0].mxu0 %v8544
    %v8686 = vpop.f32.mrb[0].mxu0
    %v8687 = vadd.f32 0.0, %v8686
    %v8688 = vpop.f32.mrb[0].mxu0
    %v8689 = vpop.f32.mrb[0].mxu0
    %v8690 = vadd.f32 0.0, %v8689
    %v8691 = vpop.f32.mrb[0].mxu0
    %8692 = vmatprep.mubr.bf16.mxu0 0
    %8693 = vmatmul.mubr.bf16.gmra.mrb[0].mxu0 %v8545
    %v8694 = vpop.f32.mrb[0].mxu0
    %v8695 = vadd.f32 0.0, %v8694
    %v8696 = vpop.f32.mrb[0].mxu0
    %v8697 = vpop.f32.mrb[0].mxu0
    %v8698 = vadd.f32 0.0, %v8697
    %v8699 = vpop.f32.mrb[0].mxu0
    %8700 = vmatprep.mubr.bf16.mxu0 0
    %8701 = vmatmul.mubr.bf16.gmra.mrb[0].mxu0 %v8546
    %v8702 = vpop.f32.mrb[0].mxu0
    %v8703 = vadd.f32 0.0, %v8702
    %v8704 = vpop.f32.mrb[0].mxu0
    %v8705 = vpop.f32.mrb[0].mxu0
    %v8706 = vadd.f32 0.0, %v8705
    %v8707 = vpop.f32.mrb[0].mxu0
    %8708 = vmatprep.mubr.bf16.mxu0 0
    %8709 = vmatmul.mubr.bf16.gmra.mrb[0].mxu0 %v8547
    %v8710 = vpop.f32.mrb[0].mxu0
    %v8711 = vadd.f32 0.0, %v8710
    %v8712 = vpop.f32.mrb[0].mxu0
    %v8713 = vpop.f32.mrb[0].mxu0
    %v8714 = vadd.f32 0.0, %v8713
    %v8715 = vpop.f32.mrb[0].mxu0
    %8716 = vmatprep.mubr.bf16.mxu0 0
    %8717 = vmatmul.mubr.bf16.gmra.mrb[0].mxu0 %v8548
    %v8718 = vpop.f32.mrb[0].mxu0
    %v8719 = vadd.f32 0.0, %v8718
    %v8720 = vpop.f32.mrb[0].mxu0
    %v8721 = vpop.f32.mrb[0].mxu0
    %v8722 = vadd.f32 0.0, %v8721
    %v8723 = vpop.f32.mrb[0].mxu0
    %8724 = vmatprep.mubr.bf16.mxu0 0
    %8725 = vmatmul.mubr.bf16.gmra.mrb[0].mxu0 %v8549
    %v8726 = vpop.f32.mrb[0].mxu0
    %v8727 = vadd.f32 0.0, %v8726
    %v8728 = vpop.f32.mrb[0].mxu0
    %v8729 = vpop.f32.mrb[0].mxu0
    %v8730 = vadd.f32 0.0, %v8729
    %v8731 = vpop.f32.mrb[0].mxu0
    %8732 = vmatprep.mubr.bf16.mxu0 0
    %8733 = vmatmul.mubr.bf16.gmra.mrb[0].mxu0 %v8550
    %v8734 = vpop.f32.mrb[0].mxu0
    %v8735 = vadd.f32 0.0, %v8734
    %v8736 = vpop.f32.mrb[0].mxu0
    %v8737 = vpop.f32.mrb[0].mxu0
    %v8738 = vadd.f32 0.0, %v8737
    %v8739 = vpop.f32.mrb[0].mxu0
    %8740 = vmatprep.mubr.bf16.mxu0 0
    %8741 = vmatmul.mubr.bf16.gmra.mrb[0].mxu0 %v8551
    %v8742 = vpop.f32.mrb[0].mxu0
    %v8743 = vadd.f32 0.0, %v8742
    %v8744 = vpop.f32.mrb[0].mxu0
    %v8745 = vpop.f32.mrb[0].mxu0
    %v8746 = vadd.f32 0.0, %v8745
    %v8747 = vpop.f32.mrb[0].mxu0
    %8748 = vmatprep.mubr.bf16.mxu0 0
    %8749 = vmatmul.mubr.bf16.gmra.mrb[0].mxu0 %v8552
    %v8750 = vpop.f32.mrb[0].mxu0
    %v8751 = vadd.f32 0.0, %v8750
    %v8752 = vpop.f32.mrb[0].mxu0
    %v8753 = vpop.f32.mrb[0].mxu0
    %v8754 = vadd.f32 0.0, %v8753
    %v8755 = vpop.f32.mrb[0].mxu0
    %8756 = vmatprep.mubr.bf16.mxu0 0
    %8757 = vmatmul.mubr.bf16.gmra.mrb[0].mxu0 %v8553
    %v8758 = vpop.f32.mrb[0].mxu0
    %v8759 = vadd.f32 0.0, %v8758
    %v8760 = vpop.f32.mrb[0].mxu0
    %v8761 = vpop.f32.mrb[0].mxu0
    %v8762 = vadd.f32 0.0, %v8761
    %v8763 = vpop.f32.mrb[0].mxu0
    %8764 = vmatprep.mubr.bf16.mxu0 0
    %8765 = vmatmul.mubr.bf16.gmra.mrb[0].mxu0 %v8554
    %v8766 = vpop.f32.mrb[0].mxu0
    %v8767 = vadd.f32 0.0, %v8766
    %v8768 = vpop.f32.mrb[0].mxu0
    %v8769 = vpop.f32.mrb[0].mxu0
    %v8770 = vadd.f32 0.0, %v8769
    %v8771 = vpop.f32.mrb[0].mxu0
    %8772 = vmatprep.mubr.bf16.mxu0 0
    %8773 = vmatmul.mubr.bf16.gmra.mrb[0].mxu0 %v8555
    %v8774 = vpop.f32.mrb[0].mxu0
    %v8775 = vadd.f32 0.0, %v8774
    %v8776 = vpop.f32.mrb[0].mxu0
    %v8777 = vpop.f32.mrb[0].mxu0
    %v8778 = vadd.f32 0.0, %v8777
    %v8779 = vpop.f32.mrb[0].mxu0
    %8780 = vdwg.mxu0
    %v8781 = vadd.f32 %v8396, %v8655
    %v8782 = vadd.f32 %v8397, %v8658
    %v8783 = vadd.f32 %v8398, %v8663
    %v8784 = vadd.f32 %v8399, %v8666
    %v8785 = vadd.f32 %v8400, %v8671
    %v8786 = vadd.f32 %v8401, %v8674
    %v8787 = vadd.f32 %v8402, %v8679
    %v8788 = vadd.f32 %v8403, %v8682
    %v8789 = vadd.f32 %v8404, %v8687
    %v8790 = vadd.f32 %v8405, %v8690
    %v8791 = vadd.f32 %v8406, %v8695
    %v8792 = vadd.f32 %v8407, %v8698
    %v8793 = vadd.f32 %v8408, %v8703
    %v8794 = vadd.f32 %v8409, %v8706
    %v8795 = vadd.f32 %v8410, %v8711
    %v8796 = vadd.f32 %v8411, %v8714
    %v8797 = vadd.f32 %v8412, %v8719
    %v8798 = vadd.f32 %v8413, %v8722
    %v8799 = vadd.f32 %v8414, %v8727
    %v8800 = vadd.f32 %v8415, %v8730
    %v8801 = vadd.f32 %v8416, %v8735
    %v8802 = vadd.f32 %v8417, %v8738
    %v8803 = vadd.f32 %v8418, %v8743
    %v8804 = vadd.f32 %v8419, %v8746
    %v8805 = vadd.f32 %v8420, %v8751
    %v8806 = vadd.f32 %v8421, %v8754
    %v8807 = vadd.f32 %v8422, %v8759
    %v8808 = vadd.f32 %v8423, %v8762
    %v8809 = vadd.f32 %v8424, %v8767
    %v8810 = vadd.f32 %v8425, %v8770
    %v8811 = vadd.f32 %v8426, %v8775
    %v8812 = vadd.f32 %v8427, %v8778
    %v8813 = vld [vmem:[%s1262] sm:$0xf]
    %v8814 = vld [vmem:[%s1262 + $0x4] sm:$0xf]
    %v8815 = vld [vmem:[%s1262 + $0x8] sm:$0x1]
    %v8816 = vld [vmem:[%s1262 + $0xc] sm:$0xf]
    %v8817 = vld [vmem:[%s1262 + $0x10] sm:$0xf]
    %v8818 = vld [vmem:[%s1262 + $0x14] sm:$0x1]
    %v8819 = vld [vmem:[%s1262 + $0x18] sm:$0xf]
    %v8820 = vld [vmem:[%s1262 + $0x1c] sm:$0xf]
    %v8821 = vld [vmem:[%s1262 + $0x20] sm:$0x1]
    %v8822 = vld [vmem:[%s1262 + $0x24] sm:$0xf]
    %v8823 = vld [vmem:[%s1262 + $0x28] sm:$0xf]
    %v8824 = vld [vmem:[%s1262 + $0x2c] sm:$0x1]
    %v8825 = vld [vmem:[%s1262 + $0x30] sm:$0xf]
    %v8826 = vld [vmem:[%s1262 + $0x34] sm:$0xf]
    %v8827 = vld [vmem:[%s1262 + $0x38] sm:$0x1]
    %v8828 = vld [vmem:[%s1262 + $0x3c] sm:$0xf]
    %v8829 = vld [vmem:[%s1262 + $0x40] sm:$0xf]
    %v8830 = vld [vmem:[%s1262 + $0x44] sm:$0x1]
    %v8831 = vld [vmem:[%s1262 + $0x48] sm:$0xf]
    %v8832 = vld [vmem:[%s1262 + $0x4c] sm:$0xf]
    %v8833 = vld [vmem:[%s1262 + $0x50] sm:$0x1]
    %v8834 = vld [vmem:[%s1262 + $0x54] sm:$0xf]
    %v8835 = vld [vmem:[%s1262 + $0x58] sm:$0xf]
    %v8836 = vld [vmem:[%s1262 + $0x5c] sm:$0x1]
    %v8837 = vld [vmem:[%s1262 + $0x60] sm:$0xf]
    %v8838 = vld [vmem:[%s1262 + $0x64] sm:$0xf]
    %v8839 = vld [vmem:[%s1262 + $0x68] sm:$0x1]
    %v8840 = vld [vmem:[%s1262 + $0x6c] sm:$0xf]
    %v8841 = vld [vmem:[%s1262 + $0x70] sm:$0xf]
    %v8842 = vld [vmem:[%s1262 + $0x74] sm:$0x1]
    %v8843 = vld [vmem:[%s1262 + $0x78] sm:$0xf]
    %v8844 = vld [vmem:[%s1262 + $0x7c] sm:$0xf]
    %v8845 = vld [vmem:[%s1262 + $0x80] sm:$0x1]
    %v8846 = vld [vmem:[%s1262 + $0x84] sm:$0xf]
    %v8847 = vld [vmem:[%s1262 + $0x88] sm:$0xf]
    %v8848 = vld [vmem:[%s1262 + $0x8c] sm:$0x1]
    %v8849 = vld [vmem:[%s1262 + $0x90] sm:$0xf]
    %v8850 = vld [vmem:[%s1262 + $0x94] sm:$0xf]
    %v8851 = vld [vmem:[%s1262 + $0x98] sm:$0x1]
    %v8852 = vld [vmem:[%s1262 + $0x9c] sm:$0xf]
    %v8853 = vld [vmem:[%s1262 + $0xa0] sm:$0xf]
    %v8854 = vld [vmem:[%s1262 + $0xa4] sm:$0x1]
    %v8855 = vld [vmem:[%s1262 + $0xa8] sm:$0xf]
    %v8856 = vld [vmem:[%s1262 + $0xac] sm:$0xf]
    %v8857 = vld [vmem:[%s1262 + $0xb0] sm:$0x1]
    %v8858 = vld [vmem:[%s1262 + $0xb4] sm:$0xf]
    %v8859 = vld [vmem:[%s1262 + $0xb8] sm:$0xf]
    %v8860 = vld [vmem:[%s1262 + $0xbc] sm:$0x1]
    %v8862 = vshrl.u32 %v8813, 16
    %v8864 = vrot.slane %v8862, 4
    %v8865 = vshll.u32 %v8813, 16
    %v8867 = vrot.slane %v8865, 5
    %v8868 = vor.u32 %v8864, %v8867
    %v8869 = vrot.slane %v8868, 4
    %v8871 = vshll.u32 %v8814, 16
    %v8873 = vrot.slane %v8871, 5
    %v8874 = vsel %vm1443, %v8869, %v8873
    %v8875 = vshrl.u32 %v8814, 16
    %v8877 = vrot.slane %v8875, 4
    %v8878 = vor.u32 %v8877, %v8873
    %v8879 = vrot.slane %v8878, 4
    %v8881 = vshll.u32 %v8815, 16
    %v8883 = vrot.slane %v8881, 5
    %v8884 = vsel %vm1443, %v8879, %v8883
    %v8886 = vshrl.u32 %v8816, 16
    %v8888 = vrot.slane %v8886, 4
    %v8889 = vshll.u32 %v8816, 16
    %v8891 = vrot.slane %v8889, 5
    %v8892 = vor.u32 %v8888, %v8891
    %v8893 = vrot.slane %v8892, 4
    %v8895 = vshll.u32 %v8817, 16
    %v8897 = vrot.slane %v8895, 5
    %v8898 = vsel %vm1443, %v8893, %v8897
    %v8899 = vshrl.u32 %v8817, 16
    %v8901 = vrot.slane %v8899, 4
    %v8902 = vor.u32 %v8901, %v8897
    %v8903 = vrot.slane %v8902, 4
    %v8905 = vshll.u32 %v8818, 16
    %v8907 = vrot.slane %v8905, 5
    %v8908 = vsel %vm1443, %v8903, %v8907
    %v8910 = vshrl.u32 %v8819, 16
    %v8912 = vrot.slane %v8910, 4
    %v8913 = vshll.u32 %v8819, 16
    %v8915 = vrot.slane %v8913, 5
    %v8916 = vor.u32 %v8912, %v8915
    %v8917 = vrot.slane %v8916, 4
    %v8919 = vshll.u32 %v8820, 16
    %v8921 = vrot.slane %v8919, 5
    %v8922 = vsel %vm1443, %v8917, %v8921
    %v8923 = vshrl.u32 %v8820, 16
    %v8925 = vrot.slane %v8923, 4
    %v8926 = vor.u32 %v8925, %v8921
    %v8927 = vrot.slane %v8926, 4
    %v8929 = vshll.u32 %v8821, 16
    %v8931 = vrot.slane %v8929, 5
    %v8932 = vsel %vm1443, %v8927, %v8931
    %v8934 = vshrl.u32 %v8822, 16
    %v8936 = vrot.slane %v8934, 4
    %v8937 = vshll.u32 %v8822, 16
    %v8939 = vrot.slane %v8937, 5
    %v8940 = vor.u32 %v8936, %v8939
    %v8941 = vrot.slane %v8940, 4
    %v8943 = vshll.u32 %v8823, 16
    %v8945 = vrot.slane %v8943, 5
    %v8946 = vsel %vm1443, %v8941, %v8945
    %v8947 = vshrl.u32 %v8823, 16
    %v8949 = vrot.slane %v8947, 4
    %v8950 = vor.u32 %v8949, %v8945
    %v8951 = vrot.slane %v8950, 4
    %v8953 = vshll.u32 %v8824, 16
    %v8955 = vrot.slane %v8953, 5
    %v8956 = vsel %vm1443, %v8951, %v8955
    %v8958 = vshrl.u32 %v8825, 16
    %v8960 = vrot.slane %v8958, 4
    %v8961 = vshll.u32 %v8825, 16
    %v8963 = vrot.slane %v8961, 5
    %v8964 = vor.u32 %v8960, %v8963
    %v8965 = vrot.slane %v8964, 4
    %v8967 = vshll.u32 %v8826, 16
    %v8969 = vrot.slane %v8967, 5
    %v8970 = vsel %vm1443, %v8965, %v8969
    %v8971 = vshrl.u32 %v8826, 16
    %v8973 = vrot.slane %v8971, 4
    %v8974 = vor.u32 %v8973, %v8969
    %v8975 = vrot.slane %v8974, 4
    %v8977 = vshll.u32 %v8827, 16
    %v8979 = vrot.slane %v8977, 5
    %v8980 = vsel %vm1443, %v8975, %v8979
    %v8982 = vshrl.u32 %v8828, 16
    %v8984 = vrot.slane %v8982, 4
    %v8985 = vshll.u32 %v8828, 16
    %v8987 = vrot.slane %v8985, 5
    %v8988 = vor.u32 %v8984, %v8987
    %v8989 = vrot.slane %v8988, 4
    %v8991 = vshll.u32 %v8829, 16
    %v8993 = vrot.slane %v8991, 5
    %v8994 = vsel %vm1443, %v8989, %v8993
    %v8995 = vshrl.u32 %v8829, 16
    %v8997 = vrot.slane %v8995, 4
    %v8998 = vor.u32 %v8997, %v8993
    %v8999 = vrot.slane %v8998, 4
    %v9001 = vshll.u32 %v8830, 16
    %v9003 = vrot.slane %v9001, 5
    %v9004 = vsel %vm1443, %v8999, %v9003
    %v9006 = vshrl.u32 %v8831, 16
    %v9008 = vrot.slane %v9006, 4
    %v9009 = vshll.u32 %v8831, 16
    %v9011 = vrot.slane %v9009, 5
    %v9012 = vor.u32 %v9008, %v9011
    %v9013 = vrot.slane %v9012, 4
    %v9015 = vshll.u32 %v8832, 16
    %v9017 = vrot.slane %v9015, 5
    %v9018 = vsel %vm1443, %v9013, %v9017
    %v9019 = vshrl.u32 %v8832, 16
    %v9021 = vrot.slane %v9019, 4
    %v9022 = vor.u32 %v9021, %v9017
    %v9023 = vrot.slane %v9022, 4
    %v9025 = vshll.u32 %v8833, 16
    %v9027 = vrot.slane %v9025, 5
    %v9028 = vsel %vm1443, %v9023, %v9027
    %v9030 = vshrl.u32 %v8834, 16
    %v9032 = vrot.slane %v9030, 4
    %v9033 = vshll.u32 %v8834, 16
    %v9035 = vrot.slane %v9033, 5
    %v9036 = vor.u32 %v9032, %v9035
    %v9037 = vrot.slane %v9036, 4
    %v9039 = vshll.u32 %v8835, 16
    %v9041 = vrot.slane %v9039, 5
    %v9042 = vsel %vm1443, %v9037, %v9041
    %v9043 = vshrl.u32 %v8835, 16
    %v9045 = vrot.slane %v9043, 4
    %v9046 = vor.u32 %v9045, %v9041
    %v9047 = vrot.slane %v9046, 4
    %v9049 = vshll.u32 %v8836, 16
    %v9051 = vrot.slane %v9049, 5
    %v9052 = vsel %vm1443, %v9047, %v9051
    %v9054 = vshrl.u32 %v8837, 16
    %v9056 = vrot.slane %v9054, 4
    %v9057 = vshll.u32 %v8837, 16
    %v9059 = vrot.slane %v9057, 5
    %v9060 = vor.u32 %v9056, %v9059
    %v9061 = vrot.slane %v9060, 4
    %v9063 = vshll.u32 %v8838, 16
    %v9065 = vrot.slane %v9063, 5
    %v9066 = vsel %vm1443, %v9061, %v9065
    %v9067 = vshrl.u32 %v8838, 16
    %v9069 = vrot.slane %v9067, 4
    %v9070 = vor.u32 %v9069, %v9065
    %v9071 = vrot.slane %v9070, 4
    %v9073 = vshll.u32 %v8839, 16
    %v9075 = vrot.slane %v9073, 5
    %v9076 = vsel %vm1443, %v9071, %v9075
    %v9078 = vshrl.u32 %v8840, 16
    %v9080 = vrot.slane %v9078, 4
    %v9081 = vshll.u32 %v8840, 16
    %v9083 = vrot.slane %v9081, 5
    %v9084 = vor.u32 %v9080, %v9083
    %v9085 = vrot.slane %v9084, 4
    %v9087 = vshll.u32 %v8841, 16
    %v9089 = vrot.slane %v9087, 5
    %v9090 = vsel %vm1443, %v9085, %v9089
    %v9091 = vshrl.u32 %v8841, 16
    %v9093 = vrot.slane %v9091, 4
    %v9094 = vor.u32 %v9093, %v9089
    %v9095 = vrot.slane %v9094, 4
    %v9097 = vshll.u32 %v8842, 16
    %v9099 = vrot.slane %v9097, 5
    %v9100 = vsel %vm1443, %v9095, %v9099
    %v9102 = vshrl.u32 %v8843, 16
    %v9104 = vrot.slane %v9102, 4
    %v9105 = vshll.u32 %v8843, 16
    %v9107 = vrot.slane %v9105, 5
    %v9108 = vor.u32 %v9104, %v9107
    %v9109 = vrot.slane %v9108, 4
    %v9111 = vshll.u32 %v8844, 16
    %v9113 = vrot.slane %v9111, 5
    %v9114 = vsel %vm1443, %v9109, %v9113
    %v9115 = vshrl.u32 %v8844, 16
    %v9117 = vrot.slane %v9115, 4
    %v9118 = vor.u32 %v9117, %v9113
    %v9119 = vrot.slane %v9118, 4
    %v9121 = vshll.u32 %v8845, 16
    %v9123 = vrot.slane %v9121, 5
    %v9124 = vsel %vm1443, %v9119, %v9123
    %v9126 = vshrl.u32 %v8846, 16
    %v9128 = vrot.slane %v9126, 4
    %v9129 = vshll.u32 %v8846, 16
    %v9131 = vrot.slane %v9129, 5
    %v9132 = vor.u32 %v9128, %v9131
    %v9133 = vrot.slane %v9132, 4
    %v9135 = vshll.u32 %v8847, 16
    %v9137 = vrot.slane %v9135, 5
    %v9138 = vsel %vm1443, %v9133, %v9137
    %v9139 = vshrl.u32 %v8847, 16
    %v9141 = vrot.slane %v9139, 4
    %v9142 = vor.u32 %v9141, %v9137
    %v9143 = vrot.slane %v9142, 4
    %v9145 = vshll.u32 %v8848, 16
    %v9147 = vrot.slane %v9145, 5
    %v9148 = vsel %vm1443, %v9143, %v9147
    %v9150 = vshrl.u32 %v8849, 16
    %v9152 = vrot.slane %v9150, 4
    %v9153 = vshll.u32 %v8849, 16
    %v9155 = vrot.slane %v9153, 5
    %v9156 = vor.u32 %v9152, %v9155
    %v9157 = vrot.slane %v9156, 4
    %v9159 = vshll.u32 %v8850, 16
    %v9161 = vrot.slane %v9159, 5
    %v9162 = vsel %vm1443, %v9157, %v9161
    %v9163 = vshrl.u32 %v8850, 16
    %v9165 = vrot.slane %v9163, 4
    %v9166 = vor.u32 %v9165, %v9161
    %v9167 = vrot.slane %v9166, 4
    %v9169 = vshll.u32 %v8851, 16
    %v9171 = vrot.slane %v9169, 5
    %v9172 = vsel %vm1443, %v9167, %v9171
    %v9174 = vshrl.u32 %v8852, 16
    %v9176 = vrot.slane %v9174, 4
    %v9177 = vshll.u32 %v8852, 16
    %v9179 = vrot.slane %v9177, 5
    %v9180 = vor.u32 %v9176, %v9179
    %v9181 = vrot.slane %v9180, 4
    %v9183 = vshll.u32 %v8853, 16
    %v9185 = vrot.slane %v9183, 5
    %v9186 = vsel %vm1443, %v9181, %v9185
    %v9187 = vshrl.u32 %v8853, 16
    %v9189 = vrot.slane %v9187, 4
    %v9190 = vor.u32 %v9189, %v9185
    %v9191 = vrot.slane %v9190, 4
    %v9193 = vshll.u32 %v8854, 16
    %v9195 = vrot.slane %v9193, 5
    %v9196 = vsel %vm1443, %v9191, %v9195
    %v9198 = vshrl.u32 %v8855, 16
    %v9200 = vrot.slane %v9198, 4
    %v9201 = vshll.u32 %v8855, 16
    %v9203 = vrot.slane %v9201, 5
    %v9204 = vor.u32 %v9200, %v9203
    %v9205 = vrot.slane %v9204, 4
    %v9207 = vshll.u32 %v8856, 16
    %v9209 = vrot.slane %v9207, 5
    %v9210 = vsel %vm1443, %v9205, %v9209
    %v9211 = vshrl.u32 %v8856, 16
    %v9213 = vrot.slane %v9211, 4
    %v9214 = vor.u32 %v9213, %v9209
    %v9215 = vrot.slane %v9214, 4
    %v9217 = vshll.u32 %v8857, 16
    %v9219 = vrot.slane %v9217, 5
    %v9220 = vsel %vm1443, %v9215, %v9219
    %v9222 = vshrl.u32 %v8858, 16
    %v9224 = vrot.slane %v9222, 4
    %v9225 = vshll.u32 %v8858, 16
    %v9227 = vrot.slane %v9225, 5
    %v9228 = vor.u32 %v9224, %v9227
    %v9229 = vrot.slane %v9228, 4
    %v9231 = vshll.u32 %v8859, 16
    %v9233 = vrot.slane %v9231, 5
    %v9234 = vsel %vm1443, %v9229, %v9233
    %v9235 = vshrl.u32 %v8859, 16
    %v9237 = vrot.slane %v9235, 4
    %v9238 = vor.u32 %v9237, %v9233
    %v9239 = vrot.slane %v9238, 4
    %v9241 = vshll.u32 %v8860, 16
    %v9243 = vrot.slane %v9241, 5
    %v9244 = vsel %vm1443, %v9239, %v9243
    %v9245 = vld [vmem:[%s3 + $0x100] sm:$0xf]
    %v9246 = vld [vmem:[%s3 + $0x104] sm:$0xf]
    %v9247 = vld [vmem:[%s3 + $0x108] sm:$0xf]
    %v9248 = vld [vmem:[%s3 + $0x10c] sm:$0xf]
    %v9249 = vld [vmem:[%s3 + $0x110] sm:$0xf]
    %v9250 = vld [vmem:[%s3 + $0x114] sm:$0xf]
    %v9251 = vld [vmem:[%s3 + $0x118] sm:$0xf]
    %v9252 = vld [vmem:[%s3 + $0x11c] sm:$0xf]
    %v9253 = vld [vmem:[%s3 + $0x120] sm:$0xf]
    %v9254 = vld [vmem:[%s3 + $0x124] sm:$0xf]
    %v9255 = vld [vmem:[%s3 + $0x128] sm:$0xf]
    %v9256 = vld [vmem:[%s3 + $0x12c] sm:$0xf]
    %v9257 = vld [vmem:[%s3 + $0x130] sm:$0xf]
    %v9258 = vld [vmem:[%s3 + $0x134] sm:$0xf]
    %v9259 = vld [vmem:[%s3 + $0x138] sm:$0xf]
    %v9260 = vld [vmem:[%s3 + $0x13c] sm:$0xf]
    %v9261 = vunpack.c.l.b16 %v8874
    %v9262 = vunpack.c.l.b16 %v8884
    %v9263 = vunpack.c.l.b16 %v8898
    %v9264 = vunpack.c.l.b16 %v8908
    %v9265 = vunpack.c.l.b16 %v8922
    %v9266 = vunpack.c.l.b16 %v8932
    %v9267 = vunpack.c.l.b16 %v8946
    %v9268 = vunpack.c.l.b16 %v8956
    %v9269 = vunpack.c.l.b16 %v8970
    %v9270 = vunpack.c.l.b16 %v8980
    %v9271 = vunpack.c.l.b16 %v8994
    %v9272 = vunpack.c.l.b16 %v9004
    %v9273 = vunpack.c.l.b16 %v9018
    %v9274 = vunpack.c.l.b16 %v9028
    %v9275 = vunpack.c.l.b16 %v9042
    %v9276 = vunpack.c.l.b16 %v9052
    %v9277 = vunpack.c.l.b16 %v9066
    %v9278 = vunpack.c.l.b16 %v9076
    %v9279 = vunpack.c.l.b16 %v9090
    %v9280 = vunpack.c.l.b16 %v9100
    %v9281 = vunpack.c.l.b16 %v9114
    %v9282 = vunpack.c.l.b16 %v9124
    %v9283 = vunpack.c.l.b16 %v9138
    %v9284 = vunpack.c.l.b16 %v9148
    %v9285 = vunpack.c.l.b16 %v9162
    %v9286 = vunpack.c.l.b16 %v9172
    %v9287 = vunpack.c.l.b16 %v9186
    %v9288 = vunpack.c.l.b16 %v9196
    %v9289 = vunpack.c.l.b16 %v9210
    %v9290 = vunpack.c.l.b16 %v9220
    %v9291 = vunpack.c.l.b16 %v9234
    %v9292 = vunpack.c.l.b16 %v9244
    %v9293 = vpack.c.b16 %v9262, %v9261
    %v9294 = vpack.c.b16 %v9264, %v9263
    %v9295 = vpack.c.b16 %v9266, %v9265
    %v9296 = vpack.c.b16 %v9268, %v9267
    %v9297 = vpack.c.b16 %v9270, %v9269
    %v9298 = vpack.c.b16 %v9272, %v9271
    %v9299 = vpack.c.b16 %v9274, %v9273
    %v9300 = vpack.c.b16 %v9276, %v9275
    %v9301 = vpack.c.b16 %v9278, %v9277
    %v9302 = vpack.c.b16 %v9280, %v9279
    %v9303 = vpack.c.b16 %v9282, %v9281
    %v9304 = vpack.c.b16 %v9284, %v9283
    %v9305 = vpack.c.b16 %v9286, %v9285
    %v9306 = vpack.c.b16 %v9288, %v9287
    %v9307 = vpack.c.b16 %v9290, %v9289
    %v9308 = vpack.c.b16 %v9292, %v9291
    %v9341 = vunpack.c.l.b16 %v9245
    %v9342 = vunpack.c.l.b16 %v9246
    %v9343 = vunpack.c.l.b16 %v9247
    %v9344 = vunpack.c.l.b16 %v9248
    %v9345 = vunpack.c.l.b16 %v9249
    %v9346 = vunpack.c.l.b16 %v9250
    %v9347 = vunpack.c.l.b16 %v9251
    %v9348 = vunpack.c.l.b16 %v9252
    %v9349 = vunpack.c.l.b16 %v9253
    %v9350 = vunpack.c.l.b16 %v9254
    %v9351 = vunpack.c.l.b16 %v9255
    %v9352 = vunpack.c.l.b16 %v9256
    %v9353 = vunpack.c.l.b16 %v9257
    %v9354 = vunpack.c.l.b16 %v9258
    %v9355 = vunpack.c.l.b16 %v9259
    %v9356 = vunpack.c.l.b16 %v9260
    %v9357 = vpack.c.b16 %v9342, %v9341
    %v9358 = vpack.c.b16 %v9344, %v9343
    %v9359 = vpack.c.b16 %v9346, %v9345
    %v9360 = vpack.c.b16 %v9348, %v9347
    %v9361 = vpack.c.b16 %v9350, %v9349
    %v9362 = vpack.c.b16 %v9352, %v9351
    %v9363 = vpack.c.b16 %v9354, %v9353
    %v9364 = vpack.c.b16 %v9356, %v9355
    %9373 = vmatprep.subr.bf16.mxu0 0
    %9374 = vmatpush1.bf16.msra.mxu0 %v9357
    %9375 = vmatprep.subr.bf16.mxu0 0
    %9376 = vmatpush1.bf16.msra.mxu0 %v9358
    %9377 = vmatprep.subr.bf16.mxu0 0
    %9378 = vmatpush1.bf16.msra.mxu0 %v9359
    %9379 = vmatprep.subr.bf16.mxu0 0
    %9380 = vmatpush1.bf16.msra.mxu0 %v9360
    %9381 = vmatprep.subr.bf16.mxu0 0
    %9382 = vmatpush1.bf16.msra.mxu0 %v9361
    %9383 = vmatprep.subr.bf16.mxu0 0
    %9384 = vmatpush1.bf16.msra.mxu0 %v9362
    %9385 = vmatprep.subr.bf16.mxu0 0
    %9386 = vmatpush1.bf16.msra.mxu0 %v9363
    %9387 = vmatprep.subr.bf16.mxu0 0
    %9388 = vmatpush1.bf16.msra.mxu0 %v9364
    %9389 = vmatprep.subr.bf16.mxu0 0
    %9390 = vmatpush1.bf16.msra.mxu0 0
    %9391 = vmatprep.subr.bf16.mxu0 0
    %9392 = vmatpush1.bf16.msra.mxu0 0
    %9393 = vmatprep.subr.bf16.mxu0 0
    %9394 = vmatpush1.bf16.msra.mxu0 0
    %9395 = vmatprep.subr.bf16.mxu0 0
    %9396 = vmatpush1.bf16.msra.mxu0 0
    %9397 = vmatprep.subr.bf16.mxu0 0
    %9398 = vmatpush1.bf16.msra.mxu0 0
    %9399 = vmatprep.subr.bf16.mxu0 0
    %9400 = vmatpush1.bf16.msra.mxu0 0
    %9401 = vmatprep.subr.bf16.mxu0 0
    %9402 = vmatpush1.bf16.msra.mxu0 0
    %9403 = vmatprep.subr.bf16.mxu0 0
    %9404 = vmatpush1.bf16.msra.mxu0 0
    %9405 = vmatprep.mubr.bf16.mxu0 0
    %9406 = vmatmul.mubr.bf16.gmra.mrb[0].mxu0 %v9293
    %v9407 = vpop.f32.mrb[0].mxu0
    %v9408 = vadd.f32 0.0, %v9407
    %v9409 = vpop.f32.mrb[0].mxu0
    %v9410 = vpop.f32.mrb[0].mxu0
    %v9411 = vadd.f32 0.0, %v9410
    %v9412 = vpop.f32.mrb[0].mxu0
    %9413 = vmatprep.mubr.bf16.mxu0 0
    %9414 = vmatmul.mubr.bf16.gmra.mrb[0].mxu0 %v9294
    %v9415 = vpop.f32.mrb[0].mxu0
    %v9416 = vadd.f32 0.0, %v9415
    %v9417 = vpop.f32.mrb[0].mxu0
    %v9418 = vpop.f32.mrb[0].mxu0
    %v9419 = vadd.f32 0.0, %v9418
    %v9420 = vpop.f32.mrb[0].mxu0
    %9421 = vmatprep.mubr.bf16.mxu0 0
    %9422 = vmatmul.mubr.bf16.gmra.mrb[0].mxu0 %v9295
    %v9423 = vpop.f32.mrb[0].mxu0
    %v9424 = vadd.f32 0.0, %v9423
    %v9425 = vpop.f32.mrb[0].mxu0
    %v9426 = vpop.f32.mrb[0].mxu0
    %v9427 = vadd.f32 0.0, %v9426
    %v9428 = vpop.f32.mrb[0].mxu0
    %9429 = vmatprep.mubr.bf16.mxu0 0
    %9430 = vmatmul.mubr.bf16.gmra.mrb[0].mxu0 %v9296
    %v9431 = vpop.f32.mrb[0].mxu0
    %v9432 = vadd.f32 0.0, %v9431
    %v9433 = vpop.f32.mrb[0].mxu0
    %v9434 = vpop.f32.mrb[0].mxu0
    %v9435 = vadd.f32 0.0, %v9434
    %v9436 = vpop.f32.mrb[0].mxu0
    %9437 = vmatprep.mubr.bf16.mxu0 0
    %9438 = vmatmul.mubr.bf16.gmra.mrb[0].mxu0 %v9297
    %v9439 = vpop.f32.mrb[0].mxu0
    %v9440 = vadd.f32 0.0, %v9439
    %v9441 = vpop.f32.mrb[0].mxu0
    %v9442 = vpop.f32.mrb[0].mxu0
    %v9443 = vadd.f32 0.0, %v9442
    %v9444 = vpop.f32.mrb[0].mxu0
    %9445 = vmatprep.mubr.bf16.mxu0 0
    %9446 = vmatmul.mubr.bf16.gmra.mrb[0].mxu0 %v9298
    %v9447 = vpop.f32.mrb[0].mxu0
    %v9448 = vadd.f32 0.0, %v9447
    %v9449 = vpop.f32.mrb[0].mxu0
    %v9450 = vpop.f32.mrb[0].mxu0
    %v9451 = vadd.f32 0.0, %v9450
    %v9452 = vpop.f32.mrb[0].mxu0
    %9453 = vmatprep.mubr.bf16.mxu0 0
    %9454 = vmatmul.mubr.bf16.gmra.mrb[0].mxu0 %v9299
    %v9455 = vpop.f32.mrb[0].mxu0
    %v9456 = vadd.f32 0.0, %v9455
    %v9457 = vpop.f32.mrb[0].mxu0
    %v9458 = vpop.f32.mrb[0].mxu0
    %v9459 = vadd.f32 0.0, %v9458
    %v9460 = vpop.f32.mrb[0].mxu0
    %9461 = vmatprep.mubr.bf16.mxu0 0
    %9462 = vmatmul.mubr.bf16.gmra.mrb[0].mxu0 %v9300
    %v9463 = vpop.f32.mrb[0].mxu0
    %v9464 = vadd.f32 0.0, %v9463
    %v9465 = vpop.f32.mrb[0].mxu0
    %v9466 = vpop.f32.mrb[0].mxu0
    %v9467 = vadd.f32 0.0, %v9466
    %v9468 = vpop.f32.mrb[0].mxu0
    %9469 = vmatprep.mubr.bf16.mxu0 0
    %9470 = vmatmul.mubr.bf16.gmra.mrb[0].mxu0 %v9301
    %v9471 = vpop.f32.mrb[0].mxu0
    %v9472 = vadd.f32 0.0, %v9471
    %v9473 = vpop.f32.mrb[0].mxu0
    %v9474 = vpop.f32.mrb[0].mxu0
    %v9475 = vadd.f32 0.0, %v9474
    %v9476 = vpop.f32.mrb[0].mxu0
    %9477 = vmatprep.mubr.bf16.mxu0 0
    %9478 = vmatmul.mubr.bf16.gmra.mrb[0].mxu0 %v9302
    %v9479 = vpop.f32.mrb[0].mxu0
    %v9480 = vadd.f32 0.0, %v9479
    %v9481 = vpop.f32.mrb[0].mxu0
    %v9482 = vpop.f32.mrb[0].mxu0
    %v9483 = vadd.f32 0.0, %v9482
    %v9484 = vpop.f32.mrb[0].mxu0
    %9485 = vmatprep.mubr.bf16.mxu0 0
    %9486 = vmatmul.mubr.bf16.gmra.mrb[0].mxu0 %v9303
    %v9487 = vpop.f32.mrb[0].mxu0
    %v9488 = vadd.f32 0.0, %v9487
    %v9489 = vpop.f32.mrb[0].mxu0
    %v9490 = vpop.f32.mrb[0].mxu0
    %v9491 = vadd.f32 0.0, %v9490
    %v9492 = vpop.f32.mrb[0].mxu0
    %9493 = vmatprep.mubr.bf16.mxu0 0
    %9494 = vmatmul.mubr.bf16.gmra.mrb[0].mxu0 %v9304
    %v9495 = vpop.f32.mrb[0].mxu0
    %v9496 = vadd.f32 0.0, %v9495
    %v9497 = vpop.f32.mrb[0].mxu0
    %v9498 = vpop.f32.mrb[0].mxu0
    %v9499 = vadd.f32 0.0, %v9498
    %v9500 = vpop.f32.mrb[0].mxu0
    %9501 = vmatprep.mubr.bf16.mxu0 0
    %9502 = vmatmul.mubr.bf16.gmra.mrb[0].mxu0 %v9305
    %v9503 = vpop.f32.mrb[0].mxu0
    %v9504 = vadd.f32 0.0, %v9503
    %v9505 = vpop.f32.mrb[0].mxu0
    %v9506 = vpop.f32.mrb[0].mxu0
    %v9507 = vadd.f32 0.0, %v9506
    %v9508 = vpop.f32.mrb[0].mxu0
    %9509 = vmatprep.mubr.bf16.mxu0 0
    %9510 = vmatmul.mubr.bf16.gmra.mrb[0].mxu0 %v9306
    %v9511 = vpop.f32.mrb[0].mxu0
    %v9512 = vadd.f32 0.0, %v9511
    %v9513 = vpop.f32.mrb[0].mxu0
    %v9514 = vpop.f32.mrb[0].mxu0
    %v9515 = vadd.f32 0.0, %v9514
    %v9516 = vpop.f32.mrb[0].mxu0
    %9517 = vmatprep.mubr.bf16.mxu0 0
    %9518 = vmatmul.mubr.bf16.gmra.mrb[0].mxu0 %v9307
    %v9519 = vpop.f32.mrb[0].mxu0
    %v9520 = vadd.f32 0.0, %v9519
    %v9521 = vpop.f32.mrb[0].mxu0
    %v9522 = vpop.f32.mrb[0].mxu0
    %v9523 = vadd.f32 0.0, %v9522
    %v9524 = vpop.f32.mrb[0].mxu0
    %9525 = vmatprep.mubr.bf16.mxu0 0
    %9526 = vmatmul.mubr.bf16.gmra.mrb[0].mxu0 %v9308
    %v9527 = vpop.f32.mrb[0].mxu0
    %v9528 = vadd.f32 0.0, %v9527
    %v9529 = vpop.f32.mrb[0].mxu0
    %v9530 = vpop.f32.mrb[0].mxu0
    %v9531 = vadd.f32 0.0, %v9530
    %v9532 = vpop.f32.mrb[0].mxu0
    %9533 = vdwg.mxu0
    %v9534 = vadd.f32 %v8781, %v9408
    %v9535 = vadd.f32 %v8782, %v9411
    %v9536 = vadd.f32 %v8783, %v9416
    %v9537 = vadd.f32 %v8784, %v9419
    %v9538 = vadd.f32 %v8785, %v9424
    %v9539 = vadd.f32 %v8786, %v9427
    %v9540 = vadd.f32 %v8787, %v9432
    %v9541 = vadd.f32 %v8788, %v9435
    %v9542 = vadd.f32 %v8789, %v9440
    %v9543 = vadd.f32 %v8790, %v9443
    %v9544 = vadd.f32 %v8791, %v9448
    %v9545 = vadd.f32 %v8792, %v9451
    %v9546 = vadd.f32 %v8793, %v9456
    %v9547 = vadd.f32 %v8794, %v9459
    %v9548 = vadd.f32 %v8795, %v9464
    %v9549 = vadd.f32 %v8796, %v9467
    %v9550 = vadd.f32 %v8797, %v9472
    %v9551 = vadd.f32 %v8798, %v9475
    %v9552 = vadd.f32 %v8799, %v9480
    %v9553 = vadd.f32 %v8800, %v9483
    %v9554 = vadd.f32 %v8801, %v9488
    %v9555 = vadd.f32 %v8802, %v9491
    %v9556 = vadd.f32 %v8803, %v9496
    %v9557 = vadd.f32 %v8804, %v9499
    %v9558 = vadd.f32 %v8805, %v9504
    %v9559 = vadd.f32 %v8806, %v9507
    %v9560 = vadd.f32 %v8807, %v9512
    %v9561 = vadd.f32 %v8808, %v9515
    %v9562 = vadd.f32 %v8809, %v9520
    %v9563 = vadd.f32 %v8810, %v9523
    %v9564 = vadd.f32 %v8811, %v9528
    %v9565 = vadd.f32 %v8812, %v9531
    %v9566 = vld [vmem:[%s1262] sm:$0xe]
    %v9567 = vld [vmem:[%s1262 + $0xc] sm:$0xe]
    %v9568 = vld [vmem:[%s1262 + $0x18] sm:$0xe]
    %v9569 = vld [vmem:[%s1262 + $0x24] sm:$0xe]
    %v9570 = vld [vmem:[%s1262 + $0x30] sm:$0xe]
    %v9571 = vld [vmem:[%s1262 + $0x3c] sm:$0xe]
    %v9572 = vld [vmem:[%s1262 + $0x48] sm:$0xe]
    %v9573 = vld [vmem:[%s1262 + $0x54] sm:$0xe]
    %v9574 = vld [vmem:[%s1262 + $0x60] sm:$0xe]
    %v9575 = vld [vmem:[%s1262 + $0x6c] sm:$0xe]
    %v9576 = vld [vmem:[%s1262 + $0x78] sm:$0xe]
    %v9577 = vld [vmem:[%s1262 + $0x84] sm:$0xe]
    %v9578 = vld [vmem:[%s1262 + $0x90] sm:$0xe]
    %v9579 = vld [vmem:[%s1262 + $0x9c] sm:$0xe]
    %v9580 = vld [vmem:[%s1262 + $0xa8] sm:$0xe]
    %v9581 = vld [vmem:[%s1262 + $0xb4] sm:$0xe]
    %v9630 = vrot.slane %v9566, 5
    %v9631 = vrot.slane %v9630, 4
    %v9632 = vrot.slane %v8814, 5
    %v9633 = vsel %vm2472, %v9631, %v9632
    %v9634 = vrot.slane %v9632, 4
    %v9635 = vrot.slane %v8815, 5
    %v9636 = vsel %vm2472, %v9634, %v9635
    %v9637 = vrot.slane %v9567, 5
    %v9638 = vrot.slane %v9637, 4
    %v9639 = vrot.slane %v8817, 5
    %v9640 = vsel %vm2472, %v9638, %v9639
    %v9641 = vrot.slane %v9639, 4
    %v9642 = vrot.slane %v8818, 5
    %v9643 = vsel %vm2472, %v9641, %v9642
    %v9644 = vrot.slane %v9568, 5
    %v9645 = vrot.slane %v9644, 4
    %v9646 = vrot.slane %v8820, 5
    %v9647 = vsel %vm2472, %v9645, %v9646
    %v9648 = vrot.slane %v9646, 4
    %v9649 = vrot.slane %v8821, 5
    %v9650 = vsel %vm2472, %v9648, %v9649
    %v9651 = vrot.slane %v9569, 5
    %v9652 = vrot.slane %v9651, 4
    %v9653 = vrot.slane %v8823, 5
    %v9654 = vsel %vm2472, %v9652, %v9653
    %v9655 = vrot.slane %v9653, 4
    %v9656 = vrot.slane %v8824, 5
    %v9657 = vsel %vm2472, %v9655, %v9656
    %v9658 = vrot.slane %v9570, 5
    %v9659 = vrot.slane %v9658, 4
    %v9660 = vrot.slane %v8826, 5
    %v9661 = vsel %vm2472, %v9659, %v9660
    %v9662 = vrot.slane %v9660, 4
    %v9663 = vrot.slane %v8827, 5
    %v9664 = vsel %vm2472, %v9662, %v9663
    %v9665 = vrot.slane %v9571, 5
    %v9666 = vrot.slane %v9665, 4
    %v9667 = vrot.slane %v8829, 5
    %v9668 = vsel %vm2472, %v9666, %v9667
    %v9669 = vrot.slane %v9667, 4
    %v9670 = vrot.slane %v8830, 5
    %v9671 = vsel %vm2472, %v9669, %v9670
    %v9672 = vrot.slane %v9572, 5
    %v9673 = vrot.slane %v9672, 4
    %v9674 = vrot.slane %v8832, 5
    %v9675 = vsel %vm2472, %v9673, %v9674
    %v9676 = vrot.slane %v9674, 4
    %v9677 = vrot.slane %v8833, 5
    %v9678 = vsel %vm2472, %v9676, %v9677
    %v9679 = vrot.slane %v9573, 5
    %v9680 = vrot.slane %v9679, 4
    %v9681 = vrot.slane %v8835, 5
    %v9682 = vsel %vm2472, %v9680, %v9681
    %v9683 = vrot.slane %v9681, 4
    %v9684 = vrot.slane %v8836, 5
    %v9685 = vsel %vm2472, %v9683, %v9684
    %v9686 = vrot.slane %v9574, 5
    %v9687 = vrot.slane %v9686, 4
    %v9688 = vrot.slane %v8838, 5
    %v9689 = vsel %vm2472, %v9687, %v9688
    %v9690 = vrot.slane %v9688, 4
    %v9691 = vrot.slane %v8839, 5
    %v9692 = vsel %vm2472, %v9690, %v9691
    %v9693 = vrot.slane %v9575, 5
    %v9694 = vrot.slane %v9693, 4
    %v9695 = vrot.slane %v8841, 5
    %v9696 = vsel %vm2472, %v9694, %v9695
    %v9697 = vrot.slane %v9695, 4
    %v9698 = vrot.slane %v8842, 5
    %v9699 = vsel %vm2472, %v9697, %v9698
    %v9700 = vrot.slane %v9576, 5
    %v9701 = vrot.slane %v9700, 4
    %v9702 = vrot.slane %v8844, 5
    %v9703 = vsel %vm2472, %v9701, %v9702
    %v9704 = vrot.slane %v9702, 4
    %v9705 = vrot.slane %v8845, 5
    %v9706 = vsel %vm2472, %v9704, %v9705
    %v9707 = vrot.slane %v9577, 5
    %v9708 = vrot.slane %v9707, 4
    %v9709 = vrot.slane %v8847, 5
    %v9710 = vsel %vm2472, %v9708, %v9709
    %v9711 = vrot.slane %v9709, 4
    %v9712 = vrot.slane %v8848, 5
    %v9713 = vsel %vm2472, %v9711, %v9712
    %v9714 = vrot.slane %v9578, 5
    %v9715 = vrot.slane %v9714, 4
    %v9716 = vrot.slane %v8850, 5
    %v9717 = vsel %vm2472, %v9715, %v9716
    %v9718 = vrot.slane %v9716, 4
    %v9719 = vrot.slane %v8851, 5
    %v9720 = vsel %vm2472, %v9718, %v9719
    %v9721 = vrot.slane %v9579, 5
    %v9722 = vrot.slane %v9721, 4
    %v9723 = vrot.slane %v8853, 5
    %v9724 = vsel %vm2472, %v9722, %v9723
    %v9725 = vrot.slane %v9723, 4
    %v9726 = vrot.slane %v8854, 5
    %v9727 = vsel %vm2472, %v9725, %v9726
    %v9728 = vrot.slane %v9580, 5
    %v9729 = vrot.slane %v9728, 4
    %v9730 = vrot.slane %v8856, 5
    %v9731 = vsel %vm2472, %v9729, %v9730
    %v9732 = vrot.slane %v9730, 4
    %v9733 = vrot.slane %v8857, 5
    %v9734 = vsel %vm2472, %v9732, %v9733
    %v9735 = vrot.slane %v9581, 5
    %v9736 = vrot.slane %v9735, 4
    %v9737 = vrot.slane %v8859, 5
    %v9738 = vsel %vm2472, %v9736, %v9737
    %v9739 = vrot.slane %v9737, 4
    %v9740 = vrot.slane %v8860, 5
    %v9741 = vsel %vm2472, %v9739, %v9740
    %v9742 = vld [vmem:[%s3 + $0x140] sm:$0xf]
    %v9743 = vld [vmem:[%s3 + $0x144] sm:$0xf]
    %v9744 = vld [vmem:[%s3 + $0x148] sm:$0xf]
    %v9745 = vld [vmem:[%s3 + $0x14c] sm:$0xf]
    %v9746 = vld [vmem:[%s3 + $0x150] sm:$0xf]
    %v9747 = vld [vmem:[%s3 + $0x154] sm:$0xf]
    %v9748 = vld [vmem:[%s3 + $0x158] sm:$0xf]
    %v9749 = vld [vmem:[%s3 + $0x15c] sm:$0xf]
    %v9750 = vld [vmem:[%s3 + $0x160] sm:$0xf]
    %v9751 = vld [vmem:[%s3 + $0x164] sm:$0xf]
    %v9752 = vld [vmem:[%s3 + $0x168] sm:$0xf]
    %v9753 = vld [vmem:[%s3 + $0x16c] sm:$0xf]
    %v9754 = vld [vmem:[%s3 + $0x170] sm:$0xf]
    %v9755 = vld [vmem:[%s3 + $0x174] sm:$0xf]
    %v9756 = vld [vmem:[%s3 + $0x178] sm:$0xf]
    %v9757 = vld [vmem:[%s3 + $0x17c] sm:$0xf]
    %v9758 = vunpack.c.l.b16 %v9633
    %v9759 = vunpack.c.l.b16 %v9636
    %v9760 = vunpack.c.l.b16 %v9640
    %v9761 = vunpack.c.l.b16 %v9643
    %v9762 = vunpack.c.l.b16 %v9647
    %v9763 = vunpack.c.l.b16 %v9650
    %v9764 = vunpack.c.l.b16 %v9654
    %v9765 = vunpack.c.l.b16 %v9657
    %v9766 = vunpack.c.l.b16 %v9661
    %v9767 = vunpack.c.l.b16 %v9664
    %v9768 = vunpack.c.l.b16 %v9668
    %v9769 = vunpack.c.l.b16 %v9671
    %v9770 = vunpack.c.l.b16 %v9675
    %v9771 = vunpack.c.l.b16 %v9678
    %v9772 = vunpack.c.l.b16 %v9682
    %v9773 = vunpack.c.l.b16 %v9685
    %v9774 = vunpack.c.l.b16 %v9689
    %v9775 = vunpack.c.l.b16 %v9692
    %v9776 = vunpack.c.l.b16 %v9696
    %v9777 = vunpack.c.l.b16 %v9699
    %v9778 = vunpack.c.l.b16 %v9703
    %v9779 = vunpack.c.l.b16 %v9706
    %v9780 = vunpack.c.l.b16 %v9710
    %v9781 = vunpack.c.l.b16 %v9713
    %v9782 = vunpack.c.l.b16 %v9717
    %v9783 = vunpack.c.l.b16 %v9720
    %v9784 = vunpack.c.l.b16 %v9724
    %v9785 = vunpack.c.l.b16 %v9727
    %v9786 = vunpack.c.l.b16 %v9731
    %v9787 = vunpack.c.l.b16 %v9734
    %v9788 = vunpack.c.l.b16 %v9738
    %v9789 = vunpack.c.l.b16 %v9741
    %v9790 = vpack.c.b16 %v9759, %v9758
    %v9791 = vpack.c.b16 %v9761, %v9760
    %v9792 = vpack.c.b16 %v9763, %v9762
    %v9793 = vpack.c.b16 %v9765, %v9764
    %v9794 = vpack.c.b16 %v9767, %v9766
    %v9795 = vpack.c.b16 %v9769, %v9768
    %v9796 = vpack.c.b16 %v9771, %v9770
    %v9797 = vpack.c.b16 %v9773, %v9772
    %v9798 = vpack.c.b16 %v9775, %v9774
    %v9799 = vpack.c.b16 %v9777, %v9776
    %v9800 = vpack.c.b16 %v9779, %v9778
    %v9801 = vpack.c.b16 %v9781, %v9780
    %v9802 = vpack.c.b16 %v9783, %v9782
    %v9803 = vpack.c.b16 %v9785, %v9784
    %v9804 = vpack.c.b16 %v9787, %v9786
    %v9805 = vpack.c.b16 %v9789, %v9788
    %v9838 = vunpack.c.l.b16 %v9742
    %v9839 = vunpack.c.l.b16 %v9743
    %v9840 = vunpack.c.l.b16 %v9744
    %v9841 = vunpack.c.l.b16 %v9745
    %v9842 = vunpack.c.l.b16 %v9746
    %v9843 = vunpack.c.l.b16 %v9747
    %v9844 = vunpack.c.l.b16 %v9748
    %v9845 = vunpack.c.l.b16 %v9749
    %v9846 = vunpack.c.l.b16 %v9750
    %v9847 = vunpack.c.l.b16 %v9751
    %v9848 = vunpack.c.l.b16 %v9752
    %v9849 = vunpack.c.l.b16 %v9753
    %v9850 = vunpack.c.l.b16 %v9754
    %v9851 = vunpack.c.l.b16 %v9755
    %v9852 = vunpack.c.l.b16 %v9756
    %v9853 = vunpack.c.l.b16 %v9757
    %v9854 = vpack.c.b16 %v9839, %v9838
    %v9855 = vpack.c.b16 %v9841, %v9840
    %v9856 = vpack.c.b16 %v9843, %v9842
    %v9857 = vpack.c.b16 %v9845, %v9844
    %v9858 = vpack.c.b16 %v9847, %v9846
    %v9859 = vpack.c.b16 %v9849, %v9848
    %v9860 = vpack.c.b16 %v9851, %v9850
    %v9861 = vpack.c.b16 %v9853, %v9852
    %9870 = vmatprep.subr.bf16.mxu0 0
    %9871 = vmatpush1.bf16.msra.mxu0 %v9854
    %9872 = vmatprep.subr.bf16.mxu0 0
    %9873 = vmatpush1.bf16.msra.mxu0 %v9855
    %9874 = vmatprep.subr.bf16.mxu0 0
    %9875 = vmatpush1.bf16.msra.mxu0 %v9856
    %9876 = vmatprep.subr.bf16.mxu0 0
    %9877 = vmatpush1.bf16.msra.mxu0 %v9857
    %9878 = vmatprep.subr.bf16.mxu0 0
    %9879 = vmatpush1.bf16.msra.mxu0 %v9858
    %9880 = vmatprep.subr.bf16.mxu0 0
    %9881 = vmatpush1.bf16.msra.mxu0 %v9859
    %9882 = vmatprep.subr.bf16.mxu0 0
    %9883 = vmatpush1.bf16.msra.mxu0 %v9860
    %9884 = vmatprep.subr.bf16.mxu0 0
    %9885 = vmatpush1.bf16.msra.mxu0 %v9861
    %9886 = vmatprep.subr.bf16.mxu0 0
    %9887 = vmatpush1.bf16.msra.mxu0 0
    %9888 = vmatprep.subr.bf16.mxu0 0
    %9889 = vmatpush1.bf16.msra.mxu0 0
    %9890 = vmatprep.subr.bf16.mxu0 0
    %9891 = vmatpush1.bf16.msra.mxu0 0
    %9892 = vmatprep.subr.bf16.mxu0 0
    %9893 = vmatpush1.bf16.msra.mxu0 0
    %9894 = vmatprep.subr.bf16.mxu0 0
    %9895 = vmatpush1.bf16.msra.mxu0 0
    %9896 = vmatprep.subr.bf16.mxu0 0
    %9897 = vmatpush1.bf16.msra.mxu0 0
    %9898 = vmatprep.subr.bf16.mxu0 0
    %9899 = vmatpush1.bf16.msra.mxu0 0
    %9900 = vmatprep.subr.bf16.mxu0 0
    %9901 = vmatpush1.bf16.msra.mxu0 0
    %9902 = vmatprep.mubr.bf16.mxu0 0
    %9903 = vmatmul.mubr.bf16.gmra.mrb[0].mxu0 %v9790
    %v9904 = vpop.f32.mrb[0].mxu0
    %v9905 = vadd.f32 0.0, %v9904
    %v9906 = vpop.f32.mrb[0].mxu0
    %v9907 = vpop.f32.mrb[0].mxu0
    %v9908 = vadd.f32 0.0, %v9907
    %v9909 = vpop.f32.mrb[0].mxu0
    %9910 = vmatprep.mubr.bf16.mxu0 0
    %9911 = vmatmul.mubr.bf16.gmra.mrb[0].mxu0 %v9791
    %v9912 = vpop.f32.mrb[0].mxu0
    %v9913 = vadd.f32 0.0, %v9912
    %v9914 = vpop.f32.mrb[0].mxu0
    %v9915 = vpop.f32.mrb[0].mxu0
    %v9916 = vadd.f32 0.0, %v9915
    %v9917 = vpop.f32.mrb[0].mxu0
    %9918 = vmatprep.mubr.bf16.mxu0 0
    %9919 = vmatmul.mubr.bf16.gmra.mrb[0].mxu0 %v9792
    %v9920 = vpop.f32.mrb[0].mxu0
    %v9921 = vadd.f32 0.0, %v9920
    %v9922 = vpop.f32.mrb[0].mxu0
    %v9923 = vpop.f32.mrb[0].mxu0
    %v9924 = vadd.f32 0.0, %v9923
    %v9925 = vpop.f32.mrb[0].mxu0
    %9926 = vmatprep.mubr.bf16.mxu0 0
    %9927 = vmatmul.mubr.bf16.gmra.mrb[0].mxu0 %v9793
    %v9928 = vpop.f32.mrb[0].mxu0
    %v9929 = vadd.f32 0.0, %v9928
    %v9930 = vpop.f32.mrb[0].mxu0
    %v9931 = vpop.f32.mrb[0].mxu0
    %v9932 = vadd.f32 0.0, %v9931
    %v9933 = vpop.f32.mrb[0].mxu0
    %9934 = vmatprep.mubr.bf16.mxu0 0
    %9935 = vmatmul.mubr.bf16.gmra.mrb[0].mxu0 %v9794
    %v9936 = vpop.f32.mrb[0].mxu0
    %v9937 = vadd.f32 0.0, %v9936
    %v9938 = vpop.f32.mrb[0].mxu0
    %v9939 = vpop.f32.mrb[0].mxu0
    %v9940 = vadd.f32 0.0, %v9939
    %v9941 = vpop.f32.mrb[0].mxu0
    %9942 = vmatprep.mubr.bf16.mxu0 0
    %9943 = vmatmul.mubr.bf16.gmra.mrb[0].mxu0 %v9795
    %v9944 = vpop.f32.mrb[0].mxu0
    %v9945 = vadd.f32 0.0, %v9944
    %v9946 = vpop.f32.mrb[0].mxu0
    %v9947 = vpop.f32.mrb[0].mxu0
    %v9948 = vadd.f32 0.0, %v9947
    %v9949 = vpop.f32.mrb[0].mxu0
    %9950 = vmatprep.mubr.bf16.mxu0 0
    %9951 = vmatmul.mubr.bf16.gmra.mrb[0].mxu0 %v9796
    %v9952 = vpop.f32.mrb[0].mxu0
    %v9953 = vadd.f32 0.0, %v9952
    %v9954 = vpop.f32.mrb[0].mxu0
    %v9955 = vpop.f32.mrb[0].mxu0
    %v9956 = vadd.f32 0.0, %v9955
    %v9957 = vpop.f32.mrb[0].mxu0
    %9958 = vmatprep.mubr.bf16.mxu0 0
    %9959 = vmatmul.mubr.bf16.gmra.mrb[0].mxu0 %v9797
    %v9960 = vpop.f32.mrb[0].mxu0
    %v9961 = vadd.f32 0.0, %v9960
    %v9962 = vpop.f32.mrb[0].mxu0
    %v9963 = vpop.f32.mrb[0].mxu0
    %v9964 = vadd.f32 0.0, %v9963
    %v9965 = vpop.f32.mrb[0].mxu0
    %9966 = vmatprep.mubr.bf16.mxu0 0
    %9967 = vmatmul.mubr.bf16.gmra.mrb[0].mxu0 %v9798
    %v9968 = vpop.f32.mrb[0].mxu0
    %v9969 = vadd.f32 0.0, %v9968
    %v9970 = vpop.f32.mrb[0].mxu0
    %v9971 = vpop.f32.mrb[0].mxu0
    %v9972 = vadd.f32 0.0, %v9971
    %v9973 = vpop.f32.mrb[0].mxu0
    %9974 = vmatprep.mubr.bf16.mxu0 0
    %9975 = vmatmul.mubr.bf16.gmra.mrb[0].mxu0 %v9799
    %v9976 = vpop.f32.mrb[0].mxu0
    %v9977 = vadd.f32 0.0, %v9976
    %v9978 = vpop.f32.mrb[0].mxu0
    %v9979 = vpop.f32.mrb[0].mxu0
    %v9980 = vadd.f32 0.0, %v9979
    %v9981 = vpop.f32.mrb[0].mxu0
    %9982 = vmatprep.mubr.bf16.mxu0 0
    %9983 = vmatmul.mubr.bf16.gmra.mrb[0].mxu0 %v9800
    %v9984 = vpop.f32.mrb[0].mxu0
    %v9985 = vadd.f32 0.0, %v9984
    %v9986 = vpop.f32.mrb[0].mxu0
    %v9987 = vpop.f32.mrb[0].mxu0
    %v9988 = vadd.f32 0.0, %v9987
    %v9989 = vpop.f32.mrb[0].mxu0
    %9990 = vmatprep.mubr.bf16.mxu0 0
    %9991 = vmatmul.mubr.bf16.gmra.mrb[0].mxu0 %v9801
    %v9992 = vpop.f32.mrb[0].mxu0
    %v9993 = vadd.f32 0.0, %v9992
    %v9994 = vpop.f32.mrb[0].mxu0
    %v9995 = vpop.f32.mrb[0].mxu0
    %v9996 = vadd.f32 0.0, %v9995
    %v9997 = vpop.f32.mrb[0].mxu0
    %9998 = vmatprep.mubr.bf16.mxu0 0
    %9999 = vmatmul.mubr.bf16.gmra.mrb[0].mxu0 %v9802
    %v10000 = vpop.f32.mrb[0].mxu0
    %v10001 = vadd.f32 0.0, %v10000
    %v10002 = vpop.f32.mrb[0].mxu0
    %v10003 = vpop.f32.mrb[0].mxu0
    %v10004 = vadd.f32 0.0, %v10003
    %v10005 = vpop.f32.mrb[0].mxu0
    %10006 = vmatprep.mubr.bf16.mxu0 0
    %10007 = vmatmul.mubr.bf16.gmra.mrb[0].mxu0 %v9803
    %v10008 = vpop.f32.mrb[0].mxu0
    %v10009 = vadd.f32 0.0, %v10008
    %v10010 = vpop.f32.mrb[0].mxu0
    %v10011 = vpop.f32.mrb[0].mxu0
    %v10012 = vadd.f32 0.0, %v10011
    %v10013 = vpop.f32.mrb[0].mxu0
    %10014 = vmatprep.mubr.bf16.mxu0 0
    %10015 = vmatmul.mubr.bf16.gmra.mrb[0].mxu0 %v9804
    %v10016 = vpop.f32.mrb[0].mxu0
    %v10017 = vadd.f32 0.0, %v10016
    %v10018 = vpop.f32.mrb[0].mxu0
    %v10019 = vpop.f32.mrb[0].mxu0
    %v10020 = vadd.f32 0.0, %v10019
    %v10021 = vpop.f32.mrb[0].mxu0
    %10022 = vmatprep.mubr.bf16.mxu0 0
    %10023 = vmatmul.mubr.bf16.gmra.mrb[0].mxu0 %v9805
    %v10024 = vpop.f32.mrb[0].mxu0
    %v10025 = vadd.f32 0.0, %v10024
    %v10026 = vpop.f32.mrb[0].mxu0
    %v10027 = vpop.f32.mrb[0].mxu0
    %v10028 = vadd.f32 0.0, %v10027
    %v10029 = vpop.f32.mrb[0].mxu0
    %10030 = vdwg.mxu0
    %v10031 = vadd.f32 %v9534, %v9905
    %v10032 = vadd.f32 %v9535, %v9908
    %v10033 = vadd.f32 %v9536, %v9913
    %v10034 = vadd.f32 %v9537, %v9916
    %v10035 = vadd.f32 %v9538, %v9921
    %v10036 = vadd.f32 %v9539, %v9924
    %v10037 = vadd.f32 %v9540, %v9929
    %v10038 = vadd.f32 %v9541, %v9932
    %v10039 = vadd.f32 %v9542, %v9937
    %v10040 = vadd.f32 %v9543, %v9940
    %v10041 = vadd.f32 %v9544, %v9945
    %v10042 = vadd.f32 %v9545, %v9948
    %v10043 = vadd.f32 %v9546, %v9953
    %v10044 = vadd.f32 %v9547, %v9956
    %v10045 = vadd.f32 %v9548, %v9961
    %v10046 = vadd.f32 %v9549, %v9964
    %v10047 = vadd.f32 %v9550, %v9969
    %v10048 = vadd.f32 %v9551, %v9972
    %v10049 = vadd.f32 %v9552, %v9977
    %v10050 = vadd.f32 %v9553, %v9980
    %v10051 = vadd.f32 %v9554, %v9985
    %v10052 = vadd.f32 %v9555, %v9988
    %v10053 = vadd.f32 %v9556, %v9993
    %v10054 = vadd.f32 %v9557, %v9996
    %v10055 = vadd.f32 %v9558, %v10001
    %v10056 = vadd.f32 %v9559, %v10004
    %v10057 = vadd.f32 %v9560, %v10009
    %v10058 = vadd.f32 %v9561, %v10012
    %v10059 = vadd.f32 %v9562, %v10017
    %v10060 = vadd.f32 %v9563, %v10020
    %v10061 = vadd.f32 %v9564, %v10025
    %v10062 = vadd.f32 %v9565, %v10028
    %v10063 = vld [vmem:[%s4541] sm:$0xf]
    %v10064 = vld [vmem:[%s4541 + $0x4] sm:$0xf]
    %v10065 = vld [vmem:[%s4541 + $0xc] sm:$0xf]
    %v10066 = vld [vmem:[%s4541 + $0x10] sm:$0xf]
    %v10067 = vld [vmem:[%s4541 + $0x18] sm:$0xf]
    %v10068 = vld [vmem:[%s4541 + $0x1c] sm:$0xf]
    %v10069 = vld [vmem:[%s4541 + $0x24] sm:$0xf]
    %v10070 = vld [vmem:[%s4541 + $0x28] sm:$0xf]
    %v10071 = vld [vmem:[%s4541 + $0x30] sm:$0xf]
    %v10072 = vld [vmem:[%s4541 + $0x34] sm:$0xf]
    %v10073 = vld [vmem:[%s4541 + $0x3c] sm:$0xf]
    %v10074 = vld [vmem:[%s4541 + $0x40] sm:$0xf]
    %v10075 = vld [vmem:[%s4541 + $0x48] sm:$0xf]
    %v10076 = vld [vmem:[%s4541 + $0x4c] sm:$0xf]
    %v10077 = vld [vmem:[%s4541 + $0x54] sm:$0xf]
    %v10078 = vld [vmem:[%s4541 + $0x58] sm:$0xf]
    %v10079 = vld [vmem:[%s4541 + $0x60] sm:$0xf]
    %v10080 = vld [vmem:[%s4541 + $0x64] sm:$0xf]
    %v10081 = vld [vmem:[%s4541 + $0x6c] sm:$0xf]
    %v10082 = vld [vmem:[%s4541 + $0x70] sm:$0xf]
    %v10083 = vld [vmem:[%s4541 + $0x78] sm:$0xf]
    %v10084 = vld [vmem:[%s4541 + $0x7c] sm:$0xf]
    %v10085 = vld [vmem:[%s4541 + $0x84] sm:$0xf]
    %v10086 = vld [vmem:[%s4541 + $0x88] sm:$0xf]
    %v10087 = vld [vmem:[%s4541 + $0x90] sm:$0xf]
    %v10088 = vld [vmem:[%s4541 + $0x94] sm:$0xf]
    %v10089 = vld [vmem:[%s4541 + $0x9c] sm:$0xf]
    %v10090 = vld [vmem:[%s4541 + $0xa0] sm:$0xf]
    %v10091 = vld [vmem:[%s4541 + $0xa8] sm:$0xf]
    %v10092 = vld [vmem:[%s4541 + $0xac] sm:$0xf]
    %v10093 = vld [vmem:[%s4541 + $0xb4] sm:$0xf]
    %v10094 = vld [vmem:[%s4541 + $0xb8] sm:$0xf]
    %v10095 = vld [vmem:[%s3 + $0x180] sm:$0xf]
    %v10096 = vld [vmem:[%s3 + $0x184] sm:$0xf]
    %v10097 = vld [vmem:[%s3 + $0x188] sm:$0xf]
    %v10098 = vld [vmem:[%s3 + $0x18c] sm:$0xf]
    %v10099 = vld [vmem:[%s3 + $0x190] sm:$0xf]
    %v10100 = vld [vmem:[%s3 + $0x194] sm:$0xf]
    %v10101 = vld [vmem:[%s3 + $0x198] sm:$0xf]
    %v10102 = vld [vmem:[%s3 + $0x19c] sm:$0xf]
    %v10103 = vld [vmem:[%s3 + $0x1a0] sm:$0xf]
    %v10104 = vld [vmem:[%s3 + $0x1a4] sm:$0xf]
    %v10105 = vld [vmem:[%s3 + $0x1a8] sm:$0xf]
    %v10106 = vld [vmem:[%s3 + $0x1ac] sm:$0xf]
    %v10107 = vld [vmem:[%s3 + $0x1b0] sm:$0xf]
    %v10108 = vld [vmem:[%s3 + $0x1b4] sm:$0xf]
    %v10109 = vld [vmem:[%s3 + $0x1b8] sm:$0xf]
    %v10110 = vld [vmem:[%s3 + $0x1bc] sm:$0xf]
    %v10143 = vunpack.c.l.b16 %v10063
    %v10144 = vunpack.c.l.b16 %v10064
    %v10145 = vunpack.c.l.b16 %v10065
    %v10146 = vunpack.c.l.b16 %v10066
    %v10147 = vunpack.c.l.b16 %v10067
    %v10148 = vunpack.c.l.b16 %v10068
    %v10149 = vunpack.c.l.b16 %v10069
    %v10150 = vunpack.c.l.b16 %v10070
    %v10151 = vunpack.c.l.b16 %v10071
    %v10152 = vunpack.c.l.b16 %v10072
    %v10153 = vunpack.c.l.b16 %v10073
    %v10154 = vunpack.c.l.b16 %v10074
    %v10155 = vunpack.c.l.b16 %v10075
    %v10156 = vunpack.c.l.b16 %v10076
    %v10157 = vunpack.c.l.b16 %v10077
    %v10158 = vunpack.c.l.b16 %v10078
    %v10159 = vunpack.c.l.b16 %v10079
    %v10160 = vunpack.c.l.b16 %v10080
    %v10161 = vunpack.c.l.b16 %v10081
    %v10162 = vunpack.c.l.b16 %v10082
    %v10163 = vunpack.c.l.b16 %v10083
    %v10164 = vunpack.c.l.b16 %v10084
    %v10165 = vunpack.c.l.b16 %v10085
    %v10166 = vunpack.c.l.b16 %v10086
    %v10167 = vunpack.c.l.b16 %v10087
    %v10168 = vunpack.c.l.b16 %v10088
    %v10169 = vunpack.c.l.b16 %v10089
    %v10170 = vunpack.c.l.b16 %v10090
    %v10171 = vunpack.c.l.b16 %v10091
    %v10172 = vunpack.c.l.b16 %v10092
    %v10173 = vunpack.c.l.b16 %v10093
    %v10174 = vunpack.c.l.b16 %v10094
    %v10175 = vpack.c.b16 %v10144, %v10143
    %v10176 = vpack.c.b16 %v10146, %v10145
    %v10177 = vpack.c.b16 %v10148, %v10147
    %v10178 = vpack.c.b16 %v10150, %v10149
    %v10179 = vpack.c.b16 %v10152, %v10151
    %v10180 = vpack.c.b16 %v10154, %v10153
    %v10181 = vpack.c.b16 %v10156, %v10155
    %v10182 = vpack.c.b16 %v10158, %v10157
    %v10183 = vpack.c.b16 %v10160, %v10159
    %v10184 = vpack.c.b16 %v10162, %v10161
    %v10185 = vpack.c.b16 %v10164, %v10163
    %v10186 = vpack.c.b16 %v10166, %v10165
    %v10187 = vpack.c.b16 %v10168, %v10167
    %v10188 = vpack.c.b16 %v10170, %v10169
    %v10189 = vpack.c.b16 %v10172, %v10171
    %v10190 = vpack.c.b16 %v10174, %v10173
    %v10223 = vunpack.c.l.b16 %v10095
    %v10224 = vunpack.c.l.b16 %v10096
    %v10225 = vunpack.c.l.b16 %v10097
    %v10226 = vunpack.c.l.b16 %v10098
    %v10227 = vunpack.c.l.b16 %v10099
    %v10228 = vunpack.c.l.b16 %v10100
    %v10229 = vunpack.c.l.b16 %v10101
    %v10230 = vunpack.c.l.b16 %v10102
    %v10231 = vunpack.c.l.b16 %v10103
    %v10232 = vunpack.c.l.b16 %v10104
    %v10233 = vunpack.c.l.b16 %v10105
    %v10234 = vunpack.c.l.b16 %v10106
    %v10235 = vunpack.c.l.b16 %v10107
    %v10236 = vunpack.c.l.b16 %v10108
    %v10237 = vunpack.c.l.b16 %v10109
    %v10238 = vunpack.c.l.b16 %v10110
    %v10239 = vpack.c.b16 %v10224, %v10223
    %v10240 = vpack.c.b16 %v10226, %v10225
    %v10241 = vpack.c.b16 %v10228, %v10227
    %v10242 = vpack.c.b16 %v10230, %v10229
    %v10243 = vpack.c.b16 %v10232, %v10231
    %v10244 = vpack.c.b16 %v10234, %v10233
    %v10245 = vpack.c.b16 %v10236, %v10235
    %v10246 = vpack.c.b16 %v10238, %v10237
    %10255 = vmatprep.subr.bf16.mxu0 0
    %10256 = vmatpush1.bf16.msra.mxu0 %v10239
    %10257 = vmatprep.subr.bf16.mxu0 0
    %10258 = vmatpush1.bf16.msra.mxu0 %v10240
    %10259 = vmatprep.subr.bf16.mxu0 0
    %10260 = vmatpush1.bf16.msra.mxu0 %v10241
    %10261 = vmatprep.subr.bf16.mxu0 0
    %10262 = vmatpush1.bf16.msra.mxu0 %v10242
    %10263 = vmatprep.subr.bf16.mxu0 0
    %10264 = vmatpush1.bf16.msra.mxu0 %v10243
    %10265 = vmatprep.subr.bf16.mxu0 0
    %10266 = vmatpush1.bf16.msra.mxu0 %v10244
    %10267 = vmatprep.subr.bf16.mxu0 0
    %10268 = vmatpush1.bf16.msra.mxu0 %v10245
    %10269 = vmatprep.subr.bf16.mxu0 0
    %10270 = vmatpush1.bf16.msra.mxu0 %v10246
    %10271 = vmatprep.subr.bf16.mxu0 0
    %10272 = vmatpush1.bf16.msra.mxu0 0
    %10273 = vmatprep.subr.bf16.mxu0 0
    %10274 = vmatpush1.bf16.msra.mxu0 0
    %10275 = vmatprep.subr.bf16.mxu0 0
    %10276 = vmatpush1.bf16.msra.mxu0 0
    %10277 = vmatprep.subr.bf16.mxu0 0
    %10278 = vmatpush1.bf16.msra.mxu0 0
    %10279 = vmatprep.subr.bf16.mxu0 0
    %10280 = vmatpush1.bf16.msra.mxu0 0
    %10281 = vmatprep.subr.bf16.mxu0 0
    %10282 = vmatpush1.bf16.msra.mxu0 0
    %10283 = vmatprep.subr.bf16.mxu0 0
    %10284 = vmatpush1.bf16.msra.mxu0 0
    %10285 = vmatprep.subr.bf16.mxu0 0
    %10286 = vmatpush1.bf16.msra.mxu0 0
    %10287 = vmatprep.mubr.bf16.mxu0 0
    %10288 = vmatmul.mubr.bf16.gmra.mrb[0].mxu0 %v10175
    %v10289 = vpop.f32.mrb[0].mxu0
    %v10290 = vadd.f32 0.0, %v10289
    %v10291 = vpop.f32.mrb[0].mxu0
    %v10292 = vpop.f32.mrb[0].mxu0
    %v10293 = vadd.f32 0.0, %v10292
    %v10294 = vpop.f32.mrb[0].mxu0
    %10295 = vmatprep.mubr.bf16.mxu0 0
    %10296 = vmatmul.mubr.bf16.gmra.mrb[0].mxu0 %v10176
    %v10297 = vpop.f32.mrb[0].mxu0
    %v10298 = vadd.f32 0.0, %v10297
    %v10299 = vpop.f32.mrb[0].mxu0
    %v10300 = vpop.f32.mrb[0].mxu0
    %v10301 = vadd.f32 0.0, %v10300
    %v10302 = vpop.f32.mrb[0].mxu0
    %10303 = vmatprep.mubr.bf16.mxu0 0
    %10304 = vmatmul.mubr.bf16.gmra.mrb[0].mxu0 %v10177
    %v10305 = vpop.f32.mrb[0].mxu0
    %v10306 = vadd.f32 0.0, %v10305
    %v10307 = vpop.f32.mrb[0].mxu0
    %v10308 = vpop.f32.mrb[0].mxu0
    %v10309 = vadd.f32 0.0, %v10308
    %v10310 = vpop.f32.mrb[0].mxu0
    %10311 = vmatprep.mubr.bf16.mxu0 0
    %10312 = vmatmul.mubr.bf16.gmra.mrb[0].mxu0 %v10178
    %v10313 = vpop.f32.mrb[0].mxu0
    %v10314 = vadd.f32 0.0, %v10313
    %v10315 = vpop.f32.mrb[0].mxu0
    %v10316 = vpop.f32.mrb[0].mxu0
    %v10317 = vadd.f32 0.0, %v10316
    %v10318 = vpop.f32.mrb[0].mxu0
    %10319 = vmatprep.mubr.bf16.mxu0 0
    %10320 = vmatmul.mubr.bf16.gmra.mrb[0].mxu0 %v10179
    %v10321 = vpop.f32.mrb[0].mxu0
    %v10322 = vadd.f32 0.0, %v10321
    %v10323 = vpop.f32.mrb[0].mxu0
    %v10324 = vpop.f32.mrb[0].mxu0
    %v10325 = vadd.f32 0.0, %v10324
    %v10326 = vpop.f32.mrb[0].mxu0
    %10327 = vmatprep.mubr.bf16.mxu0 0
    %10328 = vmatmul.mubr.bf16.gmra.mrb[0].mxu0 %v10180
    %v10329 = vpop.f32.mrb[0].mxu0
    %v10330 = vadd.f32 0.0, %v10329
    %v10331 = vpop.f32.mrb[0].mxu0
    %v10332 = vpop.f32.mrb[0].mxu0
    %v10333 = vadd.f32 0.0, %v10332
    %v10334 = vpop.f32.mrb[0].mxu0
    %10335 = vmatprep.mubr.bf16.mxu0 0
    %10336 = vmatmul.mubr.bf16.gmra.mrb[0].mxu0 %v10181
    %v10337 = vpop.f32.mrb[0].mxu0
    %v10338 = vadd.f32 0.0, %v10337
    %v10339 = vpop.f32.mrb[0].mxu0
    %v10340 = vpop.f32.mrb[0].mxu0
    %v10341 = vadd.f32 0.0, %v10340
    %v10342 = vpop.f32.mrb[0].mxu0
    %10343 = vmatprep.mubr.bf16.mxu0 0
    %10344 = vmatmul.mubr.bf16.gmra.mrb[0].mxu0 %v10182
    %v10345 = vpop.f32.mrb[0].mxu0
    %v10346 = vadd.f32 0.0, %v10345
    %v10347 = vpop.f32.mrb[0].mxu0
    %v10348 = vpop.f32.mrb[0].mxu0
    %v10349 = vadd.f32 0.0, %v10348
    %v10350 = vpop.f32.mrb[0].mxu0
    %10351 = vmatprep.mubr.bf16.mxu0 0
    %10352 = vmatmul.mubr.bf16.gmra.mrb[0].mxu0 %v10183
    %v10353 = vpop.f32.mrb[0].mxu0
    %v10354 = vadd.f32 0.0, %v10353
    %v10355 = vpop.f32.mrb[0].mxu0
    %v10356 = vpop.f32.mrb[0].mxu0
    %v10357 = vadd.f32 0.0, %v10356
    %v10358 = vpop.f32.mrb[0].mxu0
    %10359 = vmatprep.mubr.bf16.mxu0 0
    %10360 = vmatmul.mubr.bf16.gmra.mrb[0].mxu0 %v10184
    %v10361 = vpop.f32.mrb[0].mxu0
    %v10362 = vadd.f32 0.0, %v10361
    %v10363 = vpop.f32.mrb[0].mxu0
    %v10364 = vpop.f32.mrb[0].mxu0
    %v10365 = vadd.f32 0.0, %v10364
    %v10366 = vpop.f32.mrb[0].mxu0
    %10367 = vmatprep.mubr.bf16.mxu0 0
    %10368 = vmatmul.mubr.bf16.gmra.mrb[0].mxu0 %v10185
    %v10369 = vpop.f32.mrb[0].mxu0
    %v10370 = vadd.f32 0.0, %v10369
    %v10371 = vpop.f32.mrb[0].mxu0
    %v10372 = vpop.f32.mrb[0].mxu0
    %v10373 = vadd.f32 0.0, %v10372
    %v10374 = vpop.f32.mrb[0].mxu0
    %10375 = vmatprep.mubr.bf16.mxu0 0
    %10376 = vmatmul.mubr.bf16.gmra.mrb[0].mxu0 %v10186
    %v10377 = vpop.f32.mrb[0].mxu0
    %v10378 = vadd.f32 0.0, %v10377
    %v10379 = vpop.f32.mrb[0].mxu0
    %v10380 = vpop.f32.mrb[0].mxu0
    %v10381 = vadd.f32 0.0, %v10380
    %v10382 = vpop.f32.mrb[0].mxu0
    %10383 = vmatprep.mubr.bf16.mxu0 0
    %10384 = vmatmul.mubr.bf16.gmra.mrb[0].mxu0 %v10187
    %v10385 = vpop.f32.mrb[0].mxu0
    %v10386 = vadd.f32 0.0, %v10385
    %v10387 = vpop.f32.mrb[0].mxu0
    %v10388 = vpop.f32.mrb[0].mxu0
    %v10389 = vadd.f32 0.0, %v10388
    %v10390 = vpop.f32.mrb[0].mxu0
    %10391 = vmatprep.mubr.bf16.mxu0 0
    %10392 = vmatmul.mubr.bf16.gmra.mrb[0].mxu0 %v10188
    %v10393 = vpop.f32.mrb[0].mxu0
    %v10394 = vadd.f32 0.0, %v10393
    %v10395 = vpop.f32.mrb[0].mxu0
    %v10396 = vpop.f32.mrb[0].mxu0
    %v10397 = vadd.f32 0.0, %v10396
    %v10398 = vpop.f32.mrb[0].mxu0
    %10399 = vmatprep.mubr.bf16.mxu0 0
    %10400 = vmatmul.mubr.bf16.gmra.mrb[0].mxu0 %v10189
    %v10401 = vpop.f32.mrb[0].mxu0
    %v10402 = vadd.f32 0.0, %v10401
    %v10403 = vpop.f32.mrb[0].mxu0
    %v10404 = vpop.f32.mrb[0].mxu0
    %v10405 = vadd.f32 0.0, %v10404
    %v10406 = vpop.f32.mrb[0].mxu0
    %10407 = vmatprep.mubr.bf16.mxu0 0
    %10408 = vmatmul.mubr.bf16.gmra.mrb[0].mxu0 %v10190
    %v10409 = vpop.f32.mrb[0].mxu0
    %v10410 = vadd.f32 0.0, %v10409
    %v10411 = vpop.f32.mrb[0].mxu0
    %v10412 = vpop.f32.mrb[0].mxu0
    %v10413 = vadd.f32 0.0, %v10412
    %v10414 = vpop.f32.mrb[0].mxu0
    %10415 = vdwg.mxu0
    %v10416 = vadd.f32 %v10031, %v10290
    %v10417 = vadd.f32 %v10032, %v10293
    %v10418 = vadd.f32 %v10033, %v10298
    %v10419 = vadd.f32 %v10034, %v10301
    %v10420 = vadd.f32 %v10035, %v10306
    %v10421 = vadd.f32 %v10036, %v10309
    %v10422 = vadd.f32 %v10037, %v10314
    %v10423 = vadd.f32 %v10038, %v10317
    %v10424 = vadd.f32 %v10039, %v10322
    %v10425 = vadd.f32 %v10040, %v10325
    %v10426 = vadd.f32 %v10041, %v10330
    %v10427 = vadd.f32 %v10042, %v10333
    %v10428 = vadd.f32 %v10043, %v10338
    %v10429 = vadd.f32 %v10044, %v10341
    %v10430 = vadd.f32 %v10045, %v10346
    %v10431 = vadd.f32 %v10046, %v10349
    %v10432 = vadd.f32 %v10047, %v10354
    %v10433 = vadd.f32 %v10048, %v10357
    %v10434 = vadd.f32 %v10049, %v10362
    %v10435 = vadd.f32 %v10050, %v10365
    %v10436 = vadd.f32 %v10051, %v10370
    %v10437 = vadd.f32 %v10052, %v10373
    %v10438 = vadd.f32 %v10053, %v10378
    %v10439 = vadd.f32 %v10054, %v10381
    %v10440 = vadd.f32 %v10055, %v10386
    %v10441 = vadd.f32 %v10056, %v10389
    %v10442 = vadd.f32 %v10057, %v10394
    %v10443 = vadd.f32 %v10058, %v10397
    %v10444 = vadd.f32 %v10059, %v10402
    %v10445 = vadd.f32 %v10060, %v10405
    %v10446 = vadd.f32 %v10061, %v10410
    %v10447 = vadd.f32 %v10062, %v10413
    %v10448 = vld [vmem:[%s4541] sm:$0xf]
    %v10449 = vld [vmem:[%s4541 + $0x4] sm:$0xf]
    %v10450 = vld [vmem:[%s4541 + $0x8] sm:$0x1]
    %v10451 = vld [vmem:[%s4541 + $0xc] sm:$0xf]
    %v10452 = vld [vmem:[%s4541 + $0x10] sm:$0xf]
    %v10453 = vld [vmem:[%s4541 + $0x14] sm:$0x1]
    %v10454 = vld [vmem:[%s4541 + $0x18] sm:$0xf]
    %v10455 = vld [vmem:[%s4541 + $0x1c] sm:$0xf]
    %v10456 = vld [vmem:[%s4541 + $0x20] sm:$0x1]
    %v10457 = vld [vmem:[%s4541 + $0x24] sm:$0xf]
    %v10458 = vld [vmem:[%s4541 + $0x28] sm:$0xf]
    %v10459 = vld [vmem:[%s4541 + $0x2c] sm:$0x1]
    %v10460 = vld [vmem:[%s4541 + $0x30] sm:$0xf]
    %v10461 = vld [vmem:[%s4541 + $0x34] sm:$0xf]
    %v10462 = vld [vmem:[%s4541 + $0x38] sm:$0x1]
    %v10463 = vld [vmem:[%s4541 + $0x3c] sm:$0xf]
    %v10464 = vld [vmem:[%s4541 + $0x40] sm:$0xf]
    %v10465 = vld [vmem:[%s4541 + $0x44] sm:$0x1]
    %v10466 = vld [vmem:[%s4541 + $0x48] sm:$0xf]
    %v10467 = vld [vmem:[%s4541 + $0x4c] sm:$0xf]
    %v10468 = vld [vmem:[%s4541 + $0x50] sm:$0x1]
    %v10469 = vld [vmem:[%s4541 + $0x54] sm:$0xf]
    %v10470 = vld [vmem:[%s4541 + $0x58] sm:$0xf]
    %v10471 = vld [vmem:[%s4541 + $0x5c] sm:$0x1]
    %v10472 = vld [vmem:[%s4541 + $0x60] sm:$0xf]
    %v10473 = vld [vmem:[%s4541 + $0x64] sm:$0xf]
    %v10474 = vld [vmem:[%s4541 + $0x68] sm:$0x1]
    %v10475 = vld [vmem:[%s4541 + $0x6c] sm:$0xf]
    %v10476 = vld [vmem:[%s4541 + $0x70] sm:$0xf]
    %v10477 = vld [vmem:[%s4541 + $0x74] sm:$0x1]
    %v10478 = vld [vmem:[%s4541 + $0x78] sm:$0xf]
    %v10479 = vld [vmem:[%s4541 + $0x7c] sm:$0xf]
    %v10480 = vld [vmem:[%s4541 + $0x80] sm:$0x1]
    %v10481 = vld [vmem:[%s4541 + $0x84] sm:$0xf]
    %v10482 = vld [vmem:[%s4541 + $0x88] sm:$0xf]
    %v10483 = vld [vmem:[%s4541 + $0x8c] sm:$0x1]
    %v10484 = vld [vmem:[%s4541 + $0x90] sm:$0xf]
    %v10485 = vld [vmem:[%s4541 + $0x94] sm:$0xf]
    %v10486 = vld [vmem:[%s4541 + $0x98] sm:$0x1]
    %v10487 = vld [vmem:[%s4541 + $0x9c] sm:$0xf]
    %v10488 = vld [vmem:[%s4541 + $0xa0] sm:$0xf]
    %v10489 = vld [vmem:[%s4541 + $0xa4] sm:$0x1]
    %v10490 = vld [vmem:[%s4541 + $0xa8] sm:$0xf]
    %v10491 = vld [vmem:[%s4541 + $0xac] sm:$0xf]
    %v10492 = vld [vmem:[%s4541 + $0xb0] sm:$0x1]
    %v10493 = vld [vmem:[%s4541 + $0xb4] sm:$0xf]
    %v10494 = vld [vmem:[%s4541 + $0xb8] sm:$0xf]
    %v10495 = vld [vmem:[%s4541 + $0xbc] sm:$0x1]
    %v10497 = vshrl.u32 %v10448, 16
    %v10499 = vrot.slane %v10497, 4
    %v10500 = vshll.u32 %v10448, 16
    %v10502 = vrot.slane %v10500, 5
    %v10503 = vor.u32 %v10499, %v10502
    %v10504 = vrot.slane %v10503, 4
    %v10506 = vshll.u32 %v10449, 16
    %v10508 = vrot.slane %v10506, 5
    %v10509 = vsel %vm1443, %v10504, %v10508
    %v10510 = vshrl.u32 %v10449, 16
    %v10512 = vrot.slane %v10510, 4
    %v10513 = vor.u32 %v10512, %v10508
    %v10514 = vrot.slane %v10513, 4
    %v10516 = vshll.u32 %v10450, 16
    %v10518 = vrot.slane %v10516, 5
    %v10519 = vsel %vm1443, %v10514, %v10518
    %v10521 = vshrl.u32 %v10451, 16
    %v10523 = vrot.slane %v10521, 4
    %v10524 = vshll.u32 %v10451, 16
    %v10526 = vrot.slane %v10524, 5
    %v10527 = vor.u32 %v10523, %v10526
    %v10528 = vrot.slane %v10527, 4
    %v10530 = vshll.u32 %v10452, 16
    %v10532 = vrot.slane %v10530, 5
    %v10533 = vsel %vm1443, %v10528, %v10532
    %v10534 = vshrl.u32 %v10452, 16
    %v10536 = vrot.slane %v10534, 4
    %v10537 = vor.u32 %v10536, %v10532
    %v10538 = vrot.slane %v10537, 4
    %v10540 = vshll.u32 %v10453, 16
    %v10542 = vrot.slane %v10540, 5
    %v10543 = vsel %vm1443, %v10538, %v10542
    %v10545 = vshrl.u32 %v10454, 16
    %v10547 = vrot.slane %v10545, 4
    %v10548 = vshll.u32 %v10454, 16
    %v10550 = vrot.slane %v10548, 5
    %v10551 = vor.u32 %v10547, %v10550
    %v10552 = vrot.slane %v10551, 4
    %v10554 = vshll.u32 %v10455, 16
    %v10556 = vrot.slane %v10554, 5
    %v10557 = vsel %vm1443, %v10552, %v10556
    %v10558 = vshrl.u32 %v10455, 16
    %v10560 = vrot.slane %v10558, 4
    %v10561 = vor.u32 %v10560, %v10556
    %v10562 = vrot.slane %v10561, 4
    %v10564 = vshll.u32 %v10456, 16
    %v10566 = vrot.slane %v10564, 5
    %v10567 = vsel %vm1443, %v10562, %v10566
    %v10569 = vshrl.u32 %v10457, 16
    %v10571 = vrot.slane %v10569, 4
    %v10572 = vshll.u32 %v10457, 16
    %v10574 = vrot.slane %v10572, 5
    %v10575 = vor.u32 %v10571, %v10574
    %v10576 = vrot.slane %v10575, 4
    %v10578 = vshll.u32 %v10458, 16
    %v10580 = vrot.slane %v10578, 5
    %v10581 = vsel %vm1443, %v10576, %v10580
    %v10582 = vshrl.u32 %v10458, 16
    %v10584 = vrot.slane %v10582, 4
    %v10585 = vor.u32 %v10584, %v10580
    %v10586 = vrot.slane %v10585, 4
    %v10588 = vshll.u32 %v10459, 16
    %v10590 = vrot.slane %v10588, 5
    %v10591 = vsel %vm1443, %v10586, %v10590
    %v10593 = vshrl.u32 %v10460, 16
    %v10595 = vrot.slane %v10593, 4
    %v10596 = vshll.u32 %v10460, 16
    %v10598 = vrot.slane %v10596, 5
    %v10599 = vor.u32 %v10595, %v10598
    %v10600 = vrot.slane %v10599, 4
    %v10602 = vshll.u32 %v10461, 16
    %v10604 = vrot.slane %v10602, 5
    %v10605 = vsel %vm1443, %v10600, %v10604
    %v10606 = vshrl.u32 %v10461, 16
    %v10608 = vrot.slane %v10606, 4
    %v10609 = vor.u32 %v10608, %v10604
    %v10610 = vrot.slane %v10609, 4
    %v10612 = vshll.u32 %v10462, 16
    %v10614 = vrot.slane %v10612, 5
    %v10615 = vsel %vm1443, %v10610, %v10614
    %v10617 = vshrl.u32 %v10463, 16
    %v10619 = vrot.slane %v10617, 4
    %v10620 = vshll.u32 %v10463, 16
    %v10622 = vrot.slane %v10620, 5
    %v10623 = vor.u32 %v10619, %v10622
    %v10624 = vrot.slane %v10623, 4
    %v10626 = vshll.u32 %v10464, 16
    %v10628 = vrot.slane %v10626, 5
    %v10629 = vsel %vm1443, %v10624, %v10628
    %v10630 = vshrl.u32 %v10464, 16
    %v10632 = vrot.slane %v10630, 4
    %v10633 = vor.u32 %v10632, %v10628
    %v10634 = vrot.slane %v10633, 4
    %v10636 = vshll.u32 %v10465, 16
    %v10638 = vrot.slane %v10636, 5
    %v10639 = vsel %vm1443, %v10634, %v10638
    %v10641 = vshrl.u32 %v10466, 16
    %v10643 = vrot.slane %v10641, 4
    %v10644 = vshll.u32 %v10466, 16
    %v10646 = vrot.slane %v10644, 5
    %v10647 = vor.u32 %v10643, %v10646
    %v10648 = vrot.slane %v10647, 4
    %v10650 = vshll.u32 %v10467, 16
    %v10652 = vrot.slane %v10650, 5
    %v10653 = vsel %vm1443, %v10648, %v10652
    %v10654 = vshrl.u32 %v10467, 16
    %v10656 = vrot.slane %v10654, 4
    %v10657 = vor.u32 %v10656, %v10652
    %v10658 = vrot.slane %v10657, 4
    %v10660 = vshll.u32 %v10468, 16
    %v10662 = vrot.slane %v10660, 5
    %v10663 = vsel %vm1443, %v10658, %v10662
    %v10665 = vshrl.u32 %v10469, 16
    %v10667 = vrot.slane %v10665, 4
    %v10668 = vshll.u32 %v10469, 16
    %v10670 = vrot.slane %v10668, 5
    %v10671 = vor.u32 %v10667, %v10670
    %v10672 = vrot.slane %v10671, 4
    %v10674 = vshll.u32 %v10470, 16
    %v10676 = vrot.slane %v10674, 5
    %v10677 = vsel %vm1443, %v10672, %v10676
    %v10678 = vshrl.u32 %v10470, 16
    %v10680 = vrot.slane %v10678, 4
    %v10681 = vor.u32 %v10680, %v10676
    %v10682 = vrot.slane %v10681, 4
    %v10684 = vshll.u32 %v10471, 16
    %v10686 = vrot.slane %v10684, 5
    %v10687 = vsel %vm1443, %v10682, %v10686
    %v10689 = vshrl.u32 %v10472, 16
    %v10691 = vrot.slane %v10689, 4
    %v10692 = vshll.u32 %v10472, 16
    %v10694 = vrot.slane %v10692, 5
    %v10695 = vor.u32 %v10691, %v10694
    %v10696 = vrot.slane %v10695, 4
    %v10698 = vshll.u32 %v10473, 16
    %v10700 = vrot.slane %v10698, 5
    %v10701 = vsel %vm1443, %v10696, %v10700
    %v10702 = vshrl.u32 %v10473, 16
    %v10704 = vrot.slane %v10702, 4
    %v10705 = vor.u32 %v10704, %v10700
    %v10706 = vrot.slane %v10705, 4
    %v10708 = vshll.u32 %v10474, 16
    %v10710 = vrot.slane %v10708, 5
    %v10711 = vsel %vm1443, %v10706, %v10710
    %v10713 = vshrl.u32 %v10475, 16
    %v10715 = vrot.slane %v10713, 4
    %v10716 = vshll.u32 %v10475, 16
    %v10718 = vrot.slane %v10716, 5
    %v10719 = vor.u32 %v10715, %v10718
    %v10720 = vrot.slane %v10719, 4
    %v10722 = vshll.u32 %v10476, 16
    %v10724 = vrot.slane %v10722, 5
    %v10725 = vsel %vm1443, %v10720, %v10724
    %v10726 = vshrl.u32 %v10476, 16
    %v10728 = vrot.slane %v10726, 4
    %v10729 = vor.u32 %v10728, %v10724
    %v10730 = vrot.slane %v10729, 4
    %v10732 = vshll.u32 %v10477, 16
    %v10734 = vrot.slane %v10732, 5
    %v10735 = vsel %vm1443, %v10730, %v10734
    %v10737 = vshrl.u32 %v10478, 16
    %v10739 = vrot.slane %v10737, 4
    %v10740 = vshll.u32 %v10478, 16
    %v10742 = vrot.slane %v10740, 5
    %v10743 = vor.u32 %v10739, %v10742
    %v10744 = vrot.slane %v10743, 4
    %v10746 = vshll.u32 %v10479, 16
    %v10748 = vrot.slane %v10746, 5
    %v10749 = vsel %vm1443, %v10744, %v10748
    %v10750 = vshrl.u32 %v10479, 16
    %v10752 = vrot.slane %v10750, 4
    %v10753 = vor.u32 %v10752, %v10748
    %v10754 = vrot.slane %v10753, 4
    %v10756 = vshll.u32 %v10480, 16
    %v10758 = vrot.slane %v10756, 5
    %v10759 = vsel %vm1443, %v10754, %v10758
    %v10761 = vshrl.u32 %v10481, 16
    %v10763 = vrot.slane %v10761, 4
    %v10764 = vshll.u32 %v10481, 16
    %v10766 = vrot.slane %v10764, 5
    %v10767 = vor.u32 %v10763, %v10766
    %v10768 = vrot.slane %v10767, 4
    %v10770 = vshll.u32 %v10482, 16
    %v10772 = vrot.slane %v10770, 5
    %v10773 = vsel %vm1443, %v10768, %v10772
    %v10774 = vshrl.u32 %v10482, 16
    %v10776 = vrot.slane %v10774, 4
    %v10777 = vor.u32 %v10776, %v10772
    %v10778 = vrot.slane %v10777, 4
    %v10780 = vshll.u32 %v10483, 16
    %v10782 = vrot.slane %v10780, 5
    %v10783 = vsel %vm1443, %v10778, %v10782
    %v10785 = vshrl.u32 %v10484, 16
    %v10787 = vrot.slane %v10785, 4
    %v10788 = vshll.u32 %v10484, 16
    %v10790 = vrot.slane %v10788, 5
    %v10791 = vor.u32 %v10787, %v10790
    %v10792 = vrot.slane %v10791, 4
    %v10794 = vshll.u32 %v10485, 16
    %v10796 = vrot.slane %v10794, 5
    %v10797 = vsel %vm1443, %v10792, %v10796
    %v10798 = vshrl.u32 %v10485, 16
    %v10800 = vrot.slane %v10798, 4
    %v10801 = vor.u32 %v10800, %v10796
    %v10802 = vrot.slane %v10801, 4
    %v10804 = vshll.u32 %v10486, 16
    %v10806 = vrot.slane %v10804, 5
    %v10807 = vsel %vm1443, %v10802, %v10806
    %v10809 = vshrl.u32 %v10487, 16
    %v10811 = vrot.slane %v10809, 4
    %v10812 = vshll.u32 %v10487, 16
    %v10814 = vrot.slane %v10812, 5
    %v10815 = vor.u32 %v10811, %v10814
    %v10816 = vrot.slane %v10815, 4
    %v10818 = vshll.u32 %v10488, 16
    %v10820 = vrot.slane %v10818, 5
    %v10821 = vsel %vm1443, %v10816, %v10820
    %v10822 = vshrl.u32 %v10488, 16
    %v10824 = vrot.slane %v10822, 4
    %v10825 = vor.u32 %v10824, %v10820
    %v10826 = vrot.slane %v10825, 4
    %v10828 = vshll.u32 %v10489, 16
    %v10830 = vrot.slane %v10828, 5
    %v10831 = vsel %vm1443, %v10826, %v10830
    %v10833 = vshrl.u32 %v10490, 16
    %v10835 = vrot.slane %v10833, 4
    %v10836 = vshll.u32 %v10490, 16
    %v10838 = vrot.slane %v10836, 5
    %v10839 = vor.u32 %v10835, %v10838
    %v10840 = vrot.slane %v10839, 4
    %v10842 = vshll.u32 %v10491, 16
    %v10844 = vrot.slane %v10842, 5
    %v10845 = vsel %vm1443, %v10840, %v10844
    %v10846 = vshrl.u32 %v10491, 16
    %v10848 = vrot.slane %v10846, 4
    %v10849 = vor.u32 %v10848, %v10844
    %v10850 = vrot.slane %v10849, 4
    %v10852 = vshll.u32 %v10492, 16
    %v10854 = vrot.slane %v10852, 5
    %v10855 = vsel %vm1443, %v10850, %v10854
    %v10857 = vshrl.u32 %v10493, 16
    %v10859 = vrot.slane %v10857, 4
    %v10860 = vshll.u32 %v10493, 16
    %v10862 = vrot.slane %v10860, 5
    %v10863 = vor.u32 %v10859, %v10862
    %v10864 = vrot.slane %v10863, 4
    %v10866 = vshll.u32 %v10494, 16
    %v10868 = vrot.slane %v10866, 5
    %v10869 = vsel %vm1443, %v10864, %v10868
    %v10870 = vshrl.u32 %v10494, 16
    %v10872 = vrot.slane %v10870, 4
    %v10873 = vor.u32 %v10872, %v10868
    %v10874 = vrot.slane %v10873, 4
    %v10876 = vshll.u32 %v10495, 16
    %v10878 = vrot.slane %v10876, 5
    %v10879 = vsel %vm1443, %v10874, %v10878
    %v10880 = vld [vmem:[%s3 + $0x1c0] sm:$0xf]
    %v10881 = vld [vmem:[%s3 + $0x1c4] sm:$0xf]
    %v10882 = vld [vmem:[%s3 + $0x1c8] sm:$0xf]
    %v10883 = vld [vmem:[%s3 + $0x1cc] sm:$0xf]
    %v10884 = vld [vmem:[%s3 + $0x1d0] sm:$0xf]
    %v10885 = vld [vmem:[%s3 + $0x1d4] sm:$0xf]
    %v10886 = vld [vmem:[%s3 + $0x1d8] sm:$0xf]
    %v10887 = vld [vmem:[%s3 + $0x1dc] sm:$0xf]
    %v10888 = vld [vmem:[%s3 + $0x1e0] sm:$0xf]
    %v10889 = vld [vmem:[%s3 + $0x1e4] sm:$0xf]
    %v10890 = vld [vmem:[%s3 + $0x1e8] sm:$0xf]
    %v10891 = vld [vmem:[%s3 + $0x1ec] sm:$0xf]
    %v10892 = vld [vmem:[%s3 + $0x1f0] sm:$0xf]
    %v10893 = vld [vmem:[%s3 + $0x1f4] sm:$0xf]
    %v10894 = vld [vmem:[%s3 + $0x1f8] sm:$0xf]
    %v10895 = vld [vmem:[%s3 + $0x1fc] sm:$0xf]
    %v10896 = vunpack.c.l.b16 %v10509
    %v10897 = vunpack.c.l.b16 %v10519
    %v10898 = vunpack.c.l.b16 %v10533
    %v10899 = vunpack.c.l.b16 %v10543
    %v10900 = vunpack.c.l.b16 %v10557
    %v10901 = vunpack.c.l.b16 %v10567
    %v10902 = vunpack.c.l.b16 %v10581
    %v10903 = vunpack.c.l.b16 %v10591
    %v10904 = vunpack.c.l.b16 %v10605
    %v10905 = vunpack.c.l.b16 %v10615
    %v10906 = vunpack.c.l.b16 %v10629
    %v10907 = vunpack.c.l.b16 %v10639
    %v10908 = vunpack.c.l.b16 %v10653
    %v10909 = vunpack.c.l.b16 %v10663
    %v10910 = vunpack.c.l.b16 %v10677
    %v10911 = vunpack.c.l.b16 %v10687
    %v10912 = vunpack.c.l.b16 %v10701
    %v10913 = vunpack.c.l.b16 %v10711
    %v10914 = vunpack.c.l.b16 %v10725
    %v10915 = vunpack.c.l.b16 %v10735
    %v10916 = vunpack.c.l.b16 %v10749
    %v10917 = vunpack.c.l.b16 %v10759
    %v10918 = vunpack.c.l.b16 %v10773
    %v10919 = vunpack.c.l.b16 %v10783
    %v10920 = vunpack.c.l.b16 %v10797
    %v10921 = vunpack.c.l.b16 %v10807
    %v10922 = vunpack.c.l.b16 %v10821
    %v10923 = vunpack.c.l.b16 %v10831
    %v10924 = vunpack.c.l.b16 %v10845
    %v10925 = vunpack.c.l.b16 %v10855
    %v10926 = vunpack.c.l.b16 %v10869
    %v10927 = vunpack.c.l.b16 %v10879
    %v10928 = vpack.c.b16 %v10897, %v10896
    %v10929 = vpack.c.b16 %v10899, %v10898
    %v10930 = vpack.c.b16 %v10901, %v10900
    %v10931 = vpack.c.b16 %v10903, %v10902
    %v10932 = vpack.c.b16 %v10905, %v10904
    %v10933 = vpack.c.b16 %v10907, %v10906
    %v10934 = vpack.c.b16 %v10909, %v10908
    %v10935 = vpack.c.b16 %v10911, %v10910
    %v10936 = vpack.c.b16 %v10913, %v10912
    %v10937 = vpack.c.b16 %v10915, %v10914
    %v10938 = vpack.c.b16 %v10917, %v10916
    %v10939 = vpack.c.b16 %v10919, %v10918
    %v10940 = vpack.c.b16 %v10921, %v10920
    %v10941 = vpack.c.b16 %v10923, %v10922
    %v10942 = vpack.c.b16 %v10925, %v10924
    %v10943 = vpack.c.b16 %v10927, %v10926
    %v10976 = vunpack.c.l.b16 %v10880
    %v10977 = vunpack.c.l.b16 %v10881
    %v10978 = vunpack.c.l.b16 %v10882
    %v10979 = vunpack.c.l.b16 %v10883
    %v10980 = vunpack.c.l.b16 %v10884
    %v10981 = vunpack.c.l.b16 %v10885
    %v10982 = vunpack.c.l.b16 %v10886
    %v10983 = vunpack.c.l.b16 %v10887
    %v10984 = vunpack.c.l.b16 %v10888
    %v10985 = vunpack.c.l.b16 %v10889
    %v10986 = vunpack.c.l.b16 %v10890
    %v10987 = vunpack.c.l.b16 %v10891
    %v10988 = vunpack.c.l.b16 %v10892
    %v10989 = vunpack.c.l.b16 %v10893
    %v10990 = vunpack.c.l.b16 %v10894
    %v10991 = vunpack.c.l.b16 %v10895
    %v10992 = vpack.c.b16 %v10977, %v10976
    %v10993 = vpack.c.b16 %v10979, %v10978
    %v10994 = vpack.c.b16 %v10981, %v10980
    %v10995 = vpack.c.b16 %v10983, %v10982
    %v10996 = vpack.c.b16 %v10985, %v10984
    %v10997 = vpack.c.b16 %v10987, %v10986
    %v10998 = vpack.c.b16 %v10989, %v10988
    %v10999 = vpack.c.b16 %v10991, %v10990
    %11008 = vmatprep.subr.bf16.mxu0 0
    %11009 = vmatpush1.bf16.msra.mxu0 %v10992
    %11010 = vmatprep.subr.bf16.mxu0 0
    %11011 = vmatpush1.bf16.msra.mxu0 %v10993
    %11012 = vmatprep.subr.bf16.mxu0 0
    %11013 = vmatpush1.bf16.msra.mxu0 %v10994
    %11014 = vmatprep.subr.bf16.mxu0 0
    %11015 = vmatpush1.bf16.msra.mxu0 %v10995
    %11016 = vmatprep.subr.bf16.mxu0 0
    %11017 = vmatpush1.bf16.msra.mxu0 %v10996
    %11018 = vmatprep.subr.bf16.mxu0 0
    %11019 = vmatpush1.bf16.msra.mxu0 %v10997
    %11020 = vmatprep.subr.bf16.mxu0 0
    %11021 = vmatpush1.bf16.msra.mxu0 %v10998
    %11022 = vmatprep.subr.bf16.mxu0 0
    %11023 = vmatpush1.bf16.msra.mxu0 %v10999
    %11024 = vmatprep.subr.bf16.mxu0 0
    %11025 = vmatpush1.bf16.msra.mxu0 0
    %11026 = vmatprep.subr.bf16.mxu0 0
    %11027 = vmatpush1.bf16.msra.mxu0 0
    %11028 = vmatprep.subr.bf16.mxu0 0
    %11029 = vmatpush1.bf16.msra.mxu0 0
    %11030 = vmatprep.subr.bf16.mxu0 0
    %11031 = vmatpush1.bf16.msra.mxu0 0
    %11032 = vmatprep.subr.bf16.mxu0 0
    %11033 = vmatpush1.bf16.msra.mxu0 0
    %11034 = vmatprep.subr.bf16.mxu0 0
    %11035 = vmatpush1.bf16.msra.mxu0 0
    %11036 = vmatprep.subr.bf16.mxu0 0
    %11037 = vmatpush1.bf16.msra.mxu0 0
    %11038 = vmatprep.subr.bf16.mxu0 0
    %11039 = vmatpush1.bf16.msra.mxu0 0
    %11040 = vmatprep.mubr.bf16.mxu0 0
    %11041 = vmatmul.mubr.bf16.gmra.mrb[0].mxu0 %v10928
    %v11042 = vpop.f32.mrb[0].mxu0
    %v11043 = vadd.f32 0.0, %v11042
    %v11044 = vpop.f32.mrb[0].mxu0
    %v11045 = vpop.f32.mrb[0].mxu0
    %v11046 = vadd.f32 0.0, %v11045
    %v11047 = vpop.f32.mrb[0].mxu0
    %11048 = vmatprep.mubr.bf16.mxu0 0
    %11049 = vmatmul.mubr.bf16.gmra.mrb[0].mxu0 %v10929
    %v11050 = vpop.f32.mrb[0].mxu0
    %v11051 = vadd.f32 0.0, %v11050
    %v11052 = vpop.f32.mrb[0].mxu0
    %v11053 = vpop.f32.mrb[0].mxu0
    %v11054 = vadd.f32 0.0, %v11053
    %v11055 = vpop.f32.mrb[0].mxu0
    %11056 = vmatprep.mubr.bf16.mxu0 0
    %11057 = vmatmul.mubr.bf16.gmra.mrb[0].mxu0 %v10930
    %v11058 = vpop.f32.mrb[0].mxu0
    %v11059 = vadd.f32 0.0, %v11058
    %v11060 = vpop.f32.mrb[0].mxu0
    %v11061 = vpop.f32.mrb[0].mxu0
    %v11062 = vadd.f32 0.0, %v11061
    %v11063 = vpop.f32.mrb[0].mxu0
    %11064 = vmatprep.mubr.bf16.mxu0 0
    %11065 = vmatmul.mubr.bf16.gmra.mrb[0].mxu0 %v10931
    %v11066 = vpop.f32.mrb[0].mxu0
    %v11067 = vadd.f32 0.0, %v11066
    %v11068 = vpop.f32.mrb[0].mxu0
    %v11069 = vpop.f32.mrb[0].mxu0
    %v11070 = vadd.f32 0.0, %v11069
    %v11071 = vpop.f32.mrb[0].mxu0
    %11072 = vmatprep.mubr.bf16.mxu0 0
    %11073 = vmatmul.mubr.bf16.gmra.mrb[0].mxu0 %v10932
    %v11074 = vpop.f32.mrb[0].mxu0
    %v11075 = vadd.f32 0.0, %v11074
    %v11076 = vpop.f32.mrb[0].mxu0
    %v11077 = vpop.f32.mrb[0].mxu0
    %v11078 = vadd.f32 0.0, %v11077
    %v11079 = vpop.f32.mrb[0].mxu0
    %11080 = vmatprep.mubr.bf16.mxu0 0
    %11081 = vmatmul.mubr.bf16.gmra.mrb[0].mxu0 %v10933
    %v11082 = vpop.f32.mrb[0].mxu0
    %v11083 = vadd.f32 0.0, %v11082
    %v11084 = vpop.f32.mrb[0].mxu0
    %v11085 = vpop.f32.mrb[0].mxu0
    %v11086 = vadd.f32 0.0, %v11085
    %v11087 = vpop.f32.mrb[0].mxu0
    %11088 = vmatprep.mubr.bf16.mxu0 0
    %11089 = vmatmul.mubr.bf16.gmra.mrb[0].mxu0 %v10934
    %v11090 = vpop.f32.mrb[0].mxu0
    %v11091 = vadd.f32 0.0, %v11090
    %v11092 = vpop.f32.mrb[0].mxu0
    %v11093 = vpop.f32.mrb[0].mxu0
    %v11094 = vadd.f32 0.0, %v11093
    %v11095 = vpop.f32.mrb[0].mxu0
    %11096 = vmatprep.mubr.bf16.mxu0 0
    %11097 = vmatmul.mubr.bf16.gmra.mrb[0].mxu0 %v10935
    %v11098 = vpop.f32.mrb[0].mxu0
    %v11099 = vadd.f32 0.0, %v11098
    %v11100 = vpop.f32.mrb[0].mxu0
    %v11101 = vpop.f32.mrb[0].mxu0
    %v11102 = vadd.f32 0.0, %v11101
    %v11103 = vpop.f32.mrb[0].mxu0
    %11104 = vmatprep.mubr.bf16.mxu0 0
    %11105 = vmatmul.mubr.bf16.gmra.mrb[0].mxu0 %v10936
    %v11106 = vpop.f32.mrb[0].mxu0
    %v11107 = vadd.f32 0.0, %v11106
    %v11108 = vpop.f32.mrb[0].mxu0
    %v11109 = vpop.f32.mrb[0].mxu0
    %v11110 = vadd.f32 0.0, %v11109
    %v11111 = vpop.f32.mrb[0].mxu0
    %11112 = vmatprep.mubr.bf16.mxu0 0
    %11113 = vmatmul.mubr.bf16.gmra.mrb[0].mxu0 %v10937
    %v11114 = vpop.f32.mrb[0].mxu0
    %v11115 = vadd.f32 0.0, %v11114
    %v11116 = vpop.f32.mrb[0].mxu0
    %v11117 = vpop.f32.mrb[0].mxu0
    %v11118 = vadd.f32 0.0, %v11117
    %v11119 = vpop.f32.mrb[0].mxu0
    %11120 = vmatprep.mubr.bf16.mxu0 0
    %11121 = vmatmul.mubr.bf16.gmra.mrb[0].mxu0 %v10938
    %v11122 = vpop.f32.mrb[0].mxu0
    %v11123 = vadd.f32 0.0, %v11122
    %v11124 = vpop.f32.mrb[0].mxu0
    %v11125 = vpop.f32.mrb[0].mxu0
    %v11126 = vadd.f32 0.0, %v11125
    %v11127 = vpop.f32.mrb[0].mxu0
    %11128 = vmatprep.mubr.bf16.mxu0 0
    %11129 = vmatmul.mubr.bf16.gmra.mrb[0].mxu0 %v10939
    %v11130 = vpop.f32.mrb[0].mxu0
    %v11131 = vadd.f32 0.0, %v11130
    %v11132 = vpop.f32.mrb[0].mxu0
    %v11133 = vpop.f32.mrb[0].mxu0
    %v11134 = vadd.f32 0.0, %v11133
    %v11135 = vpop.f32.mrb[0].mxu0
    %11136 = vmatprep.mubr.bf16.mxu0 0
    %11137 = vmatmul.mubr.bf16.gmra.mrb[0].mxu0 %v10940
    %v11138 = vpop.f32.mrb[0].mxu0
    %v11139 = vadd.f32 0.0, %v11138
    %v11140 = vpop.f32.mrb[0].mxu0
    %v11141 = vpop.f32.mrb[0].mxu0
    %v11142 = vadd.f32 0.0, %v11141
    %v11143 = vpop.f32.mrb[0].mxu0
    %11144 = vmatprep.mubr.bf16.mxu0 0
    %11145 = vmatmul.mubr.bf16.gmra.mrb[0].mxu0 %v10941
    %v11146 = vpop.f32.mrb[0].mxu0
    %v11147 = vadd.f32 0.0, %v11146
    %v11148 = vpop.f32.mrb[0].mxu0
    %v11149 = vpop.f32.mrb[0].mxu0
    %v11150 = vadd.f32 0.0, %v11149
    %v11151 = vpop.f32.mrb[0].mxu0
    %11152 = vmatprep.mubr.bf16.mxu0 0
    %11153 = vmatmul.mubr.bf16.gmra.mrb[0].mxu0 %v10942
    %v11154 = vpop.f32.mrb[0].mxu0
    %v11155 = vadd.f32 0.0, %v11154
    %v11156 = vpop.f32.mrb[0].mxu0
    %v11157 = vpop.f32.mrb[0].mxu0
    %v11158 = vadd.f32 0.0, %v11157
    %v11159 = vpop.f32.mrb[0].mxu0
    %11160 = vmatprep.mubr.bf16.mxu0 0
    %11161 = vmatmul.mubr.bf16.gmra.mrb[0].mxu0 %v10943
    %v11162 = vpop.f32.mrb[0].mxu0
    %v11163 = vadd.f32 0.0, %v11162
    %v11164 = vpop.f32.mrb[0].mxu0
    %v11165 = vpop.f32.mrb[0].mxu0
    %v11166 = vadd.f32 0.0, %v11165
    %v11167 = vpop.f32.mrb[0].mxu0
    %11168 = vdwg.mxu0
    %v11169 = vadd.f32 %v10416, %v11043
    %v11170 = vadd.f32 %v10417, %v11046
    %v11171 = vadd.f32 %v10418, %v11051
    %v11172 = vadd.f32 %v10419, %v11054
    %v11173 = vadd.f32 %v10420, %v11059
    %v11174 = vadd.f32 %v10421, %v11062
    %v11175 = vadd.f32 %v10422, %v11067
    %v11176 = vadd.f32 %v10423, %v11070
    %v11177 = vadd.f32 %v10424, %v11075
    %v11178 = vadd.f32 %v10425, %v11078
    %v11179 = vadd.f32 %v10426, %v11083
    %v11180 = vadd.f32 %v10427, %v11086
    %v11181 = vadd.f32 %v10428, %v11091
    %v11182 = vadd.f32 %v10429, %v11094
    %v11183 = vadd.f32 %v10430, %v11099
    %v11184 = vadd.f32 %v10431, %v11102
    %v11185 = vadd.f32 %v10432, %v11107
    %v11186 = vadd.f32 %v10433, %v11110
    %v11187 = vadd.f32 %v10434, %v11115
    %v11188 = vadd.f32 %v10435, %v11118
    %v11189 = vadd.f32 %v10436, %v11123
    %v11190 = vadd.f32 %v10437, %v11126
    %v11191 = vadd.f32 %v10438, %v11131
    %v11192 = vadd.f32 %v10439, %v11134
    %v11193 = vadd.f32 %v10440, %v11139
    %v11194 = vadd.f32 %v10441, %v11142
    %v11195 = vadd.f32 %v10442, %v11147
    %v11196 = vadd.f32 %v10443, %v11150
    %v11197 = vadd.f32 %v10444, %v11155
    %v11198 = vadd.f32 %v10445, %v11158
    %v11199 = vadd.f32 %v10446, %v11163
    %v11200 = vadd.f32 %v10447, %v11166
    %v11201 = vld [vmem:[%s4541] sm:$0xe]
    %v11202 = vld [vmem:[%s4541 + $0xc] sm:$0xe]
    %v11203 = vld [vmem:[%s4541 + $0x18] sm:$0xe]
    %v11204 = vld [vmem:[%s4541 + $0x24] sm:$0xe]
    %v11205 = vld [vmem:[%s4541 + $0x30] sm:$0xe]
    %v11206 = vld [vmem:[%s4541 + $0x3c] sm:$0xe]
    %v11207 = vld [vmem:[%s4541 + $0x48] sm:$0xe]
    %v11208 = vld [vmem:[%s4541 + $0x54] sm:$0xe]
    %v11209 = vld [vmem:[%s4541 + $0x60] sm:$0xe]
    %v11210 = vld [vmem:[%s4541 + $0x6c] sm:$0xe]
    %v11211 = vld [vmem:[%s4541 + $0x78] sm:$0xe]
    %v11212 = vld [vmem:[%s4541 + $0x84] sm:$0xe]
    %v11213 = vld [vmem:[%s4541 + $0x90] sm:$0xe]
    %v11214 = vld [vmem:[%s4541 + $0x9c] sm:$0xe]
    %v11215 = vld [vmem:[%s4541 + $0xa8] sm:$0xe]
    %v11216 = vld [vmem:[%s4541 + $0xb4] sm:$0xe]
    %v11265 = vrot.slane %v11201, 5
    %v11266 = vrot.slane %v11265, 4
    %v11267 = vrot.slane %v10449, 5
    %v11268 = vsel %vm2472, %v11266, %v11267
    %v11269 = vrot.slane %v11267, 4
    %v11270 = vrot.slane %v10450, 5
    %v11271 = vsel %vm2472, %v11269, %v11270
    %v11272 = vrot.slane %v11202, 5
    %v11273 = vrot.slane %v11272, 4
    %v11274 = vrot.slane %v10452, 5
    %v11275 = vsel %vm2472, %v11273, %v11274
    %v11276 = vrot.slane %v11274, 4
    %v11277 = vrot.slane %v10453, 5
    %v11278 = vsel %vm2472, %v11276, %v11277
    %v11279 = vrot.slane %v11203, 5
    %v11280 = vrot.slane %v11279, 4
    %v11281 = vrot.slane %v10455, 5
    %v11282 = vsel %vm2472, %v11280, %v11281
    %v11283 = vrot.slane %v11281, 4
    %v11284 = vrot.slane %v10456, 5
    %v11285 = vsel %vm2472, %v11283, %v11284
    %v11286 = vrot.slane %v11204, 5
    %v11287 = vrot.slane %v11286, 4
    %v11288 = vrot.slane %v10458, 5
    %v11289 = vsel %vm2472, %v11287, %v11288
    %v11290 = vrot.slane %v11288, 4
    %v11291 = vrot.slane %v10459, 5
    %v11292 = vsel %vm2472, %v11290, %v11291
    %v11293 = vrot.slane %v11205, 5
    %v11294 = vrot.slane %v11293, 4
    %v11295 = vrot.slane %v10461, 5
    %v11296 = vsel %vm2472, %v11294, %v11295
    %v11297 = vrot.slane %v11295, 4
    %v11298 = vrot.slane %v10462, 5
    %v11299 = vsel %vm2472, %v11297, %v11298
    %v11300 = vrot.slane %v11206, 5
    %v11301 = vrot.slane %v11300, 4
    %v11302 = vrot.slane %v10464, 5
    %v11303 = vsel %vm2472, %v11301, %v11302
    %v11304 = vrot.slane %v11302, 4
    %v11305 = vrot.slane %v10465, 5
    %v11306 = vsel %vm2472, %v11304, %v11305
    %v11307 = vrot.slane %v11207, 5
    %v11308 = vrot.slane %v11307, 4
    %v11309 = vrot.slane %v10467, 5
    %v11310 = vsel %vm2472, %v11308, %v11309
    %v11311 = vrot.slane %v11309, 4
    %v11312 = vrot.slane %v10468, 5
    %v11313 = vsel %vm2472, %v11311, %v11312
    %v11314 = vrot.slane %v11208, 5
    %v11315 = vrot.slane %v11314, 4
    %v11316 = vrot.slane %v10470, 5
    %v11317 = vsel %vm2472, %v11315, %v11316
    %v11318 = vrot.slane %v11316, 4
    %v11319 = vrot.slane %v10471, 5
    %v11320 = vsel %vm2472, %v11318, %v11319
    %v11321 = vrot.slane %v11209, 5
    %v11322 = vrot.slane %v11321, 4
    %v11323 = vrot.slane %v10473, 5
    %v11324 = vsel %vm2472, %v11322, %v11323
    %v11325 = vrot.slane %v11323, 4
    %v11326 = vrot.slane %v10474, 5
    %v11327 = vsel %vm2472, %v11325, %v11326
    %v11328 = vrot.slane %v11210, 5
    %v11329 = vrot.slane %v11328, 4
    %v11330 = vrot.slane %v10476, 5
    %v11331 = vsel %vm2472, %v11329, %v11330
    %v11332 = vrot.slane %v11330, 4
    %v11333 = vrot.slane %v10477, 5
    %v11334 = vsel %vm2472, %v11332, %v11333
    %v11335 = vrot.slane %v11211, 5
    %v11336 = vrot.slane %v11335, 4
    %v11337 = vrot.slane %v10479, 5
    %v11338 = vsel %vm2472, %v11336, %v11337
    %v11339 = vrot.slane %v11337, 4
    %v11340 = vrot.slane %v10480, 5
    %v11341 = vsel %vm2472, %v11339, %v11340
    %v11342 = vrot.slane %v11212, 5
    %v11343 = vrot.slane %v11342, 4
    %v11344 = vrot.slane %v10482, 5
    %v11345 = vsel %vm2472, %v11343, %v11344
    %v11346 = vrot.slane %v11344, 4
    %v11347 = vrot.slane %v10483, 5
    %v11348 = vsel %vm2472, %v11346, %v11347
    %v11349 = vrot.slane %v11213, 5
    %v11350 = vrot.slane %v11349, 4
    %v11351 = vrot.slane %v10485, 5
    %v11352 = vsel %vm2472, %v11350, %v11351
    %v11353 = vrot.slane %v11351, 4
    %v11354 = vrot.slane %v10486, 5
    %v11355 = vsel %vm2472, %v11353, %v11354
    %v11356 = vrot.slane %v11214, 5
    %v11357 = vrot.slane %v11356, 4
    %v11358 = vrot.slane %v10488, 5
    %v11359 = vsel %vm2472, %v11357, %v11358
    %v11360 = vrot.slane %v11358, 4
    %v11361 = vrot.slane %v10489, 5
    %v11362 = vsel %vm2472, %v11360, %v11361
    %v11363 = vrot.slane %v11215, 5
    %v11364 = vrot.slane %v11363, 4
    %v11365 = vrot.slane %v10491, 5
    %v11366 = vsel %vm2472, %v11364, %v11365
    %v11367 = vrot.slane %v11365, 4
    %v11368 = vrot.slane %v10492, 5
    %v11369 = vsel %vm2472, %v11367, %v11368
    %v11370 = vrot.slane %v11216, 5
    %v11371 = vrot.slane %v11370, 4
    %v11372 = vrot.slane %v10494, 5
    %v11373 = vsel %vm2472, %v11371, %v11372
    %v11374 = vrot.slane %v11372, 4
    %v11375 = vrot.slane %v10495, 5
    %v11376 = vsel %vm2472, %v11374, %v11375
    %v11377 = vld [vmem:[%s3 + $0x200] sm:$0xf]
    %v11378 = vld [vmem:[%s3 + $0x204] sm:$0xf]
    %v11379 = vld [vmem:[%s3 + $0x208] sm:$0xf]
    %v11380 = vld [vmem:[%s3 + $0x20c] sm:$0xf]
    %v11381 = vld [vmem:[%s3 + $0x210] sm:$0xf]
    %v11382 = vld [vmem:[%s3 + $0x214] sm:$0xf]
    %v11383 = vld [vmem:[%s3 + $0x218] sm:$0xf]
    %v11384 = vld [vmem:[%s3 + $0x21c] sm:$0xf]
    %v11385 = vld [vmem:[%s3 + $0x220] sm:$0xf]
    %v11386 = vld [vmem:[%s3 + $0x224] sm:$0xf]
    %v11387 = vld [vmem:[%s3 + $0x228] sm:$0xf]
    %v11388 = vld [vmem:[%s3 + $0x22c] sm:$0xf]
    %v11389 = vld [vmem:[%s3 + $0x230] sm:$0xf]
    %v11390 = vld [vmem:[%s3 + $0x234] sm:$0xf]
    %v11391 = vld [vmem:[%s3 + $0x238] sm:$0xf]
    %v11392 = vld [vmem:[%s3 + $0x23c] sm:$0xf]
    %v11393 = vunpack.c.l.b16 %v11268
    %v11394 = vunpack.c.l.b16 %v11271
    %v11395 = vunpack.c.l.b16 %v11275
    %v11396 = vunpack.c.l.b16 %v11278
    %v11397 = vunpack.c.l.b16 %v11282
    %v11398 = vunpack.c.l.b16 %v11285
    %v11399 = vunpack.c.l.b16 %v11289
    %v11400 = vunpack.c.l.b16 %v11292
    %v11401 = vunpack.c.l.b16 %v11296
    %v11402 = vunpack.c.l.b16 %v11299
    %v11403 = vunpack.c.l.b16 %v11303
    %v11404 = vunpack.c.l.b16 %v11306
    %v11405 = vunpack.c.l.b16 %v11310
    %v11406 = vunpack.c.l.b16 %v11313
    %v11407 = vunpack.c.l.b16 %v11317
    %v11408 = vunpack.c.l.b16 %v11320
    %v11409 = vunpack.c.l.b16 %v11324
    %v11410 = vunpack.c.l.b16 %v11327
    %v11411 = vunpack.c.l.b16 %v11331
    %v11412 = vunpack.c.l.b16 %v11334
    %v11413 = vunpack.c.l.b16 %v11338
    %v11414 = vunpack.c.l.b16 %v11341
    %v11415 = vunpack.c.l.b16 %v11345
    %v11416 = vunpack.c.l.b16 %v11348
    %v11417 = vunpack.c.l.b16 %v11352
    %v11418 = vunpack.c.l.b16 %v11355
    %v11419 = vunpack.c.l.b16 %v11359
    %v11420 = vunpack.c.l.b16 %v11362
    %v11421 = vunpack.c.l.b16 %v11366
    %v11422 = vunpack.c.l.b16 %v11369
    %v11423 = vunpack.c.l.b16 %v11373
    %v11424 = vunpack.c.l.b16 %v11376
    %v11425 = vpack.c.b16 %v11394, %v11393
    %v11426 = vpack.c.b16 %v11396, %v11395
    %v11427 = vpack.c.b16 %v11398, %v11397
    %v11428 = vpack.c.b16 %v11400, %v11399
    %v11429 = vpack.c.b16 %v11402, %v11401
    %v11430 = vpack.c.b16 %v11404, %v11403
    %v11431 = vpack.c.b16 %v11406, %v11405
    %v11432 = vpack.c.b16 %v11408, %v11407
    %v11433 = vpack.c.b16 %v11410, %v11409
    %v11434 = vpack.c.b16 %v11412, %v11411
    %v11435 = vpack.c.b16 %v11414, %v11413
    %v11436 = vpack.c.b16 %v11416, %v11415
    %v11437 = vpack.c.b16 %v11418, %v11417
    %v11438 = vpack.c.b16 %v11420, %v11419
    %v11439 = vpack.c.b16 %v11422, %v11421
    %v11440 = vpack.c.b16 %v11424, %v11423
    %v11473 = vunpack.c.l.b16 %v11377
    %v11474 = vunpack.c.l.b16 %v11378
    %v11475 = vunpack.c.l.b16 %v11379
    %v11476 = vunpack.c.l.b16 %v11380
    %v11477 = vunpack.c.l.b16 %v11381
    %v11478 = vunpack.c.l.b16 %v11382
    %v11479 = vunpack.c.l.b16 %v11383
    %v11480 = vunpack.c.l.b16 %v11384
    %v11481 = vunpack.c.l.b16 %v11385
    %v11482 = vunpack.c.l.b16 %v11386
    %v11483 = vunpack.c.l.b16 %v11387
    %v11484 = vunpack.c.l.b16 %v11388
    %v11485 = vunpack.c.l.b16 %v11389
    %v11486 = vunpack.c.l.b16 %v11390
    %v11487 = vunpack.c.l.b16 %v11391
    %v11488 = vunpack.c.l.b16 %v11392
    %v11489 = vpack.c.b16 %v11474, %v11473
    %v11490 = vpack.c.b16 %v11476, %v11475
    %v11491 = vpack.c.b16 %v11478, %v11477
    %v11492 = vpack.c.b16 %v11480, %v11479
    %v11493 = vpack.c.b16 %v11482, %v11481
    %v11494 = vpack.c.b16 %v11484, %v11483
    %v11495 = vpack.c.b16 %v11486, %v11485
    %v11496 = vpack.c.b16 %v11488, %v11487
    %11505 = vmatprep.subr.bf16.mxu0 0
    %11506 = vmatpush1.bf16.msra.mxu0 %v11489
    %11507 = vmatprep.subr.bf16.mxu0 0
    %11508 = vmatpush1.bf16.msra.mxu0 %v11490
    %11509 = vmatprep.subr.bf16.mxu0 0
    %11510 = vmatpush1.bf16.msra.mxu0 %v11491
    %11511 = vmatprep.subr.bf16.mxu0 0
    %11512 = vmatpush1.bf16.msra.mxu0 %v11492
    %11513 = vmatprep.subr.bf16.mxu0 0
    %11514 = vmatpush1.bf16.msra.mxu0 %v11493
    %11515 = vmatprep.subr.bf16.mxu0 0
    %11516 = vmatpush1.bf16.msra.mxu0 %v11494
    %11517 = vmatprep.subr.bf16.mxu0 0
    %11518 = vmatpush1.bf16.msra.mxu0 %v11495
    %11519 = vmatprep.subr.bf16.mxu0 0
    %11520 = vmatpush1.bf16.msra.mxu0 %v11496
    %11521 = vmatprep.subr.bf16.mxu0 0
    %11522 = vmatpush1.bf16.msra.mxu0 0
    %11523 = vmatprep.subr.bf16.mxu0 0
    %11524 = vmatpush1.bf16.msra.mxu0 0
    %11525 = vmatprep.subr.bf16.mxu0 0
    %11526 = vmatpush1.bf16.msra.mxu0 0
    %11527 = vmatprep.subr.bf16.mxu0 0
    %11528 = vmatpush1.bf16.msra.mxu0 0
    %11529 = vmatprep.subr.bf16.mxu0 0
    %11530 = vmatpush1.bf16.msra.mxu0 0
    %11531 = vmatprep.subr.bf16.mxu0 0
    %11532 = vmatpush1.bf16.msra.mxu0 0
    %11533 = vmatprep.subr.bf16.mxu0 0
    %11534 = vmatpush1.bf16.msra.mxu0 0
    %11535 = vmatprep.subr.bf16.mxu0 0
    %11536 = vmatpush1.bf16.msra.mxu0 0
    %11537 = vmatprep.mubr.bf16.mxu0 0
    %11538 = vmatmul.mubr.bf16.gmra.mrb[0].mxu0 %v11425
    %v11539 = vpop.f32.mrb[0].mxu0
    %v11540 = vadd.f32 0.0, %v11539
    %v11541 = vpop.f32.mrb[0].mxu0
    %v11542 = vpop.f32.mrb[0].mxu0
    %v11543 = vadd.f32 0.0, %v11542
    %v11544 = vpop.f32.mrb[0].mxu0
    %11545 = vmatprep.mubr.bf16.mxu0 0
    %11546 = vmatmul.mubr.bf16.gmra.mrb[0].mxu0 %v11426
    %v11547 = vpop.f32.mrb[0].mxu0
    %v11548 = vadd.f32 0.0, %v11547
    %v11549 = vpop.f32.mrb[0].mxu0
    %v11550 = vpop.f32.mrb[0].mxu0
    %v11551 = vadd.f32 0.0, %v11550
    %v11552 = vpop.f32.mrb[0].mxu0
    %11553 = vmatprep.mubr.bf16.mxu0 0
    %11554 = vmatmul.mubr.bf16.gmra.mrb[0].mxu0 %v11427
    %v11555 = vpop.f32.mrb[0].mxu0
    %v11556 = vadd.f32 0.0, %v11555
    %v11557 = vpop.f32.mrb[0].mxu0
    %v11558 = vpop.f32.mrb[0].mxu0
    %v11559 = vadd.f32 0.0, %v11558
    %v11560 = vpop.f32.mrb[0].mxu0
    %11561 = vmatprep.mubr.bf16.mxu0 0
    %11562 = vmatmul.mubr.bf16.gmra.mrb[0].mxu0 %v11428
    %v11563 = vpop.f32.mrb[0].mxu0
    %v11564 = vadd.f32 0.0, %v11563
    %v11565 = vpop.f32.mrb[0].mxu0
    %v11566 = vpop.f32.mrb[0].mxu0
    %v11567 = vadd.f32 0.0, %v11566
    %v11568 = vpop.f32.mrb[0].mxu0
    %11569 = vmatprep.mubr.bf16.mxu0 0
    %11570 = vmatmul.mubr.bf16.gmra.mrb[0].mxu0 %v11429
    %v11571 = vpop.f32.mrb[0].mxu0
    %v11572 = vadd.f32 0.0, %v11571
    %v11573 = vpop.f32.mrb[0].mxu0
    %v11574 = vpop.f32.mrb[0].mxu0
    %v11575 = vadd.f32 0.0, %v11574
    %v11576 = vpop.f32.mrb[0].mxu0
    %11577 = vmatprep.mubr.bf16.mxu0 0
    %11578 = vmatmul.mubr.bf16.gmra.mrb[0].mxu0 %v11430
    %v11579 = vpop.f32.mrb[0].mxu0
    %v11580 = vadd.f32 0.0, %v11579
    %v11581 = vpop.f32.mrb[0].mxu0
    %v11582 = vpop.f32.mrb[0].mxu0
    %v11583 = vadd.f32 0.0, %v11582
    %v11584 = vpop.f32.mrb[0].mxu0
    %11585 = vmatprep.mubr.bf16.mxu0 0
    %11586 = vmatmul.mubr.bf16.gmra.mrb[0].mxu0 %v11431
    %v11587 = vpop.f32.mrb[0].mxu0
    %v11588 = vadd.f32 0.0, %v11587
    %v11589 = vpop.f32.mrb[0].mxu0
    %v11590 = vpop.f32.mrb[0].mxu0
    %v11591 = vadd.f32 0.0, %v11590
    %v11592 = vpop.f32.mrb[0].mxu0
    %11593 = vmatprep.mubr.bf16.mxu0 0
    %11594 = vmatmul.mubr.bf16.gmra.mrb[0].mxu0 %v11432
    %v11595 = vpop.f32.mrb[0].mxu0
    %v11596 = vadd.f32 0.0, %v11595
    %v11597 = vpop.f32.mrb[0].mxu0
    %v11598 = vpop.f32.mrb[0].mxu0
    %v11599 = vadd.f32 0.0, %v11598
    %v11600 = vpop.f32.mrb[0].mxu0
    %11601 = vmatprep.mubr.bf16.mxu0 0
    %11602 = vmatmul.mubr.bf16.gmra.mrb[0].mxu0 %v11433
    %v11603 = vpop.f32.mrb[0].mxu0
    %v11604 = vadd.f32 0.0, %v11603
    %v11605 = vpop.f32.mrb[0].mxu0
    %v11606 = vpop.f32.mrb[0].mxu0
    %v11607 = vadd.f32 0.0, %v11606
    %v11608 = vpop.f32.mrb[0].mxu0
    %11609 = vmatprep.mubr.bf16.mxu0 0
    %11610 = vmatmul.mubr.bf16.gmra.mrb[0].mxu0 %v11434
    %v11611 = vpop.f32.mrb[0].mxu0
    %v11612 = vadd.f32 0.0, %v11611
    %v11613 = vpop.f32.mrb[0].mxu0
    %v11614 = vpop.f32.mrb[0].mxu0
    %v11615 = vadd.f32 0.0, %v11614
    %v11616 = vpop.f32.mrb[0].mxu0
    %11617 = vmatprep.mubr.bf16.mxu0 0
    %11618 = vmatmul.mubr.bf16.gmra.mrb[0].mxu0 %v11435
    %v11619 = vpop.f32.mrb[0].mxu0
    %v11620 = vadd.f32 0.0, %v11619
    %v11621 = vpop.f32.mrb[0].mxu0
    %v11622 = vpop.f32.mrb[0].mxu0
    %v11623 = vadd.f32 0.0, %v11622
    %v11624 = vpop.f32.mrb[0].mxu0
    %11625 = vmatprep.mubr.bf16.mxu0 0
    %11626 = vmatmul.mubr.bf16.gmra.mrb[0].mxu0 %v11436
    %v11627 = vpop.f32.mrb[0].mxu0
    %v11628 = vadd.f32 0.0, %v11627
    %v11629 = vpop.f32.mrb[0].mxu0
    %v11630 = vpop.f32.mrb[0].mxu0
    %v11631 = vadd.f32 0.0, %v11630
    %v11632 = vpop.f32.mrb[0].mxu0
    %11633 = vmatprep.mubr.bf16.mxu0 0
    %11634 = vmatmul.mubr.bf16.gmra.mrb[0].mxu0 %v11437
    %v11635 = vpop.f32.mrb[0].mxu0
    %v11636 = vadd.f32 0.0, %v11635
    %v11637 = vpop.f32.mrb[0].mxu0
    %v11638 = vpop.f32.mrb[0].mxu0
    %v11639 = vadd.f32 0.0, %v11638
    %v11640 = vpop.f32.mrb[0].mxu0
    %11641 = vmatprep.mubr.bf16.mxu0 0
    %11642 = vmatmul.mubr.bf16.gmra.mrb[0].mxu0 %v11438
    %v11643 = vpop.f32.mrb[0].mxu0
    %v11644 = vadd.f32 0.0, %v11643
    %v11645 = vpop.f32.mrb[0].mxu0
    %v11646 = vpop.f32.mrb[0].mxu0
    %v11647 = vadd.f32 0.0, %v11646
    %v11648 = vpop.f32.mrb[0].mxu0
    %11649 = vmatprep.mubr.bf16.mxu0 0
    %11650 = vmatmul.mubr.bf16.gmra.mrb[0].mxu0 %v11439
    %v11651 = vpop.f32.mrb[0].mxu0
    %v11652 = vadd.f32 0.0, %v11651
    %v11653 = vpop.f32.mrb[0].mxu0
    %v11654 = vpop.f32.mrb[0].mxu0
    %v11655 = vadd.f32 0.0, %v11654
    %v11656 = vpop.f32.mrb[0].mxu0
    %11657 = vmatprep.mubr.bf16.mxu0 0
    %11658 = vmatmul.mubr.bf16.gmra.mrb[0].mxu0 %v11440
    %v11659 = vpop.f32.mrb[0].mxu0
    %v11660 = vadd.f32 0.0, %v11659
    %v11661 = vpop.f32.mrb[0].mxu0
    %v11662 = vpop.f32.mrb[0].mxu0
    %v11663 = vadd.f32 0.0, %v11662
    %v11664 = vpop.f32.mrb[0].mxu0
    %11665 = vdwg.mxu0
    %v11666 = vadd.f32 %v11169, %v11540
    %v11667 = vadd.f32 %v11170, %v11543
    %v11668 = vadd.f32 %v11171, %v11548
    %v11669 = vadd.f32 %v11172, %v11551
    %v11670 = vadd.f32 %v11173, %v11556
    %v11671 = vadd.f32 %v11174, %v11559
    %v11672 = vadd.f32 %v11175, %v11564
    %v11673 = vadd.f32 %v11176, %v11567
    %v11674 = vadd.f32 %v11177, %v11572
    %v11675 = vadd.f32 %v11178, %v11575
    %v11676 = vadd.f32 %v11179, %v11580
    %v11677 = vadd.f32 %v11180, %v11583
    %v11678 = vadd.f32 %v11181, %v11588
    %v11679 = vadd.f32 %v11182, %v11591
    %v11680 = vadd.f32 %v11183, %v11596
    %v11681 = vadd.f32 %v11184, %v11599
    %v11682 = vadd.f32 %v11185, %v11604
    %v11683 = vadd.f32 %v11186, %v11607
    %v11684 = vadd.f32 %v11187, %v11612
    %v11685 = vadd.f32 %v11188, %v11615
    %v11686 = vadd.f32 %v11189, %v11620
    %v11687 = vadd.f32 %v11190, %v11623
    %v11688 = vadd.f32 %v11191, %v11628
    %v11689 = vadd.f32 %v11192, %v11631
    %v11690 = vadd.f32 %v11193, %v11636
    %v11691 = vadd.f32 %v11194, %v11639
    %v11692 = vadd.f32 %v11195, %v11644
    %v11693 = vadd.f32 %v11196, %v11647
    %v11694 = vadd.f32 %v11197, %v11652
    %v11695 = vadd.f32 %v11198, %v11655
    %v11696 = vadd.f32 %v11199, %v11660
    %v11697 = vadd.f32 %v11200, %v11663
    %v11698 = vld [vmem:[%s4] sm:$0x1]
    %v11700 = vlaneseq
    %v11701 = vshrl.u32 %v11700, 7
    %v11702 = vsub.s32 0, %v11701
    %v11703 = vrot.slane %v11698, %v11702
    %v11705 = vadd.f32 %v11666, %v11703
    %v11706 = vadd.f32 %v11667, %v11703
    %v11707 = vadd.f32 %v11668, %v11703
    %v11708 = vadd.f32 %v11669, %v11703
    %v11709 = vadd.f32 %v11670, %v11703
    %v11710 = vadd.f32 %v11671, %v11703
    %v11711 = vadd.f32 %v11672, %v11703
    %v11712 = vadd.f32 %v11673, %v11703
    %v11713 = vadd.f32 %v11674, %v11703
    %v11714 = vadd.f32 %v11675, %v11703
    %v11715 = vadd.f32 %v11676, %v11703
    %v11716 = vadd.f32 %v11677, %v11703
    %v11717 = vadd.f32 %v11678, %v11703
    %v11718 = vadd.f32 %v11679, %v11703
    %v11719 = vadd.f32 %v11680, %v11703
    %v11720 = vadd.f32 %v11681, %v11703
    %v11721 = vadd.f32 %v11682, %v11703
    %v11722 = vadd.f32 %v11683, %v11703
    %v11723 = vadd.f32 %v11684, %v11703
    %v11724 = vadd.f32 %v11685, %v11703
    %v11725 = vadd.f32 %v11686, %v11703
    %v11726 = vadd.f32 %v11687, %v11703
    %v11727 = vadd.f32 %v11688, %v11703
    %v11728 = vadd.f32 %v11689, %v11703
    %v11729 = vadd.f32 %v11690, %v11703
    %v11730 = vadd.f32 %v11691, %v11703
    %v11731 = vadd.f32 %v11692, %v11703
    %v11732 = vadd.f32 %v11693, %v11703
    %v11733 = vadd.f32 %v11694, %v11703
    %v11734 = vadd.f32 %v11695, %v11703
    %v11735 = vadd.f32 %v11696, %v11703
    %v11736 = vadd.f32 %v11697, %v11703
    %v11737 = vmax.f32 %v11705, 0.0
    %v11738 = vmax.f32 %v11706, 0.0
    %v11739 = vmax.f32 %v11707, 0.0
    %v11740 = vmax.f32 %v11708, 0.0
    %v11741 = vmax.f32 %v11709, 0.0
    %v11742 = vmax.f32 %v11710, 0.0
    %v11743 = vmax.f32 %v11711, 0.0
    %v11744 = vmax.f32 %v11712, 0.0
    %v11745 = vmax.f32 %v11713, 0.0
    %v11746 = vmax.f32 %v11714, 0.0
    %v11747 = vmax.f32 %v11715, 0.0
    %v11748 = vmax.f32 %v11716, 0.0
    %v11749 = vmax.f32 %v11717, 0.0
    %v11750 = vmax.f32 %v11718, 0.0
    %v11751 = vmax.f32 %v11719, 0.0
    %v11752 = vmax.f32 %v11720, 0.0
    %v11753 = vmax.f32 %v11721, 0.0
    %v11754 = vmax.f32 %v11722, 0.0
    %v11755 = vmax.f32 %v11723, 0.0
    %v11756 = vmax.f32 %v11724, 0.0
    %v11757 = vmax.f32 %v11725, 0.0
    %v11758 = vmax.f32 %v11726, 0.0
    %v11759 = vmax.f32 %v11727, 0.0
    %v11760 = vmax.f32 %v11728, 0.0
    %v11761 = vmax.f32 %v11729, 0.0
    %v11762 = vmax.f32 %v11730, 0.0
    %v11763 = vmax.f32 %v11731, 0.0
    %v11764 = vmax.f32 %v11732, 0.0
    %v11765 = vmax.f32 %v11733, 0.0
    %v11766 = vmax.f32 %v11734, 0.0
    %v11767 = vmax.f32 %v11735, 0.0
    %v11768 = vmax.f32 %v11736, 0.0
    %v11769 = vadd.f32 %v11737, %v11738
    %v11770 = vadd.f32 %v11769, %v11739
    %v11771 = vadd.f32 %v11770, %v11740
    %v11772 = vadd.f32 %v11771, %v11741
    %v11773 = vadd.f32 %v11772, %v11742
    %v11774 = vadd.f32 %v11773, %v11743
    %v11775 = vadd.f32 %v11774, %v11744
    %v11776 = vadd.f32 %v11775, %v11745
    %v11777 = vadd.f32 %v11776, %v11746
    %v11778 = vadd.f32 %v11777, %v11747
    %v11779 = vadd.f32 %v11778, %v11748
    %v11780 = vadd.f32 %v11779, %v11749
    %v11781 = vadd.f32 %v11780, %v11750
    %v11782 = vadd.f32 %v11781, %v11751
    %v11783 = vadd.f32 %v11782, %v11752
    %v11784 = vadd.f32 %v11783, %v11753
    %v11785 = vadd.f32 %v11784, %v11754
    %v11786 = vadd.f32 %v11785, %v11755
    %v11787 = vadd.f32 %v11786, %v11756
    %v11788 = vadd.f32 %v11787, %v11757
    %v11789 = vadd.f32 %v11788, %v11758
    %v11790 = vadd.f32 %v11789, %v11759
    %v11791 = vadd.f32 %v11790, %v11760
    %v11792 = vadd.f32 %v11791, %v11761
    %v11793 = vadd.f32 %v11792, %v11762
    %v11794 = vadd.f32 %v11793, %v11763
    %v11795 = vadd.f32 %v11794, %v11764
    %v11796 = vadd.f32 %v11795, %v11765
    %v11797 = vadd.f32 %v11796, %v11766
    %v11798 = vadd.f32 %v11797, %v11767
    %v11799 = vadd.f32 %v11798, %v11768
    %v11800 = vrot.slane %v11799, 4
    %v11801 = vadd.f32 %v11799, %v11800
    %v11802 = vrot.slane %v11801, 2
    %v11803 = vadd.f32 %v11801, %v11802
    %v11804 = vrot.slane %v11803, 1
    %v11805 = vadd.f32 %v11803, %v11804
    %v11806 = vmul.f32 %v11805, 0.00390625
    %v11807 = vpack.c.bf16 %v11806, %v11806
    %v11808 = vld [vmem:[%s5] sm:$0xf]
    %v11809 = vld [vmem:[%s5 + $0x4] sm:$0xf]
    %v11810 = vld [vmem:[%s5 + $0x8] sm:$0xf]
    %v11811 = vld [vmem:[%s5 + $0xc] sm:$0xf]
    %v11812 = vld [vmem:[%s5 + $0x10] sm:$0xf]
    %v11813 = vld [vmem:[%s5 + $0x14] sm:$0xf]
    %v11814 = vld [vmem:[%s5 + $0x18] sm:$0xf]
    %v11815 = vld [vmem:[%s5 + $0x1c] sm:$0xf]
    %v11816 = vld [vmem:[%s5 + $0x20] sm:$0xf]
    %v11817 = vld [vmem:[%s5 + $0x24] sm:$0xf]
    %v11818 = vld [vmem:[%s5 + $0x28] sm:$0xf]
    %v11819 = vld [vmem:[%s5 + $0x2c] sm:$0xf]
    %v11820 = vld [vmem:[%s5 + $0x30] sm:$0xf]
    %v11821 = vld [vmem:[%s5 + $0x34] sm:$0xf]
    %v11822 = vld [vmem:[%s5 + $0x38] sm:$0xf]
    %v11823 = vld [vmem:[%s5 + $0x3c] sm:$0xf]
    %v11824 = vld [vmem:[%s6] sm:$0x1]
    %v11841 = vunpack.c.l.b16 %v11808
    %v11842 = vunpack.c.l.b16 %v11809
    %v11843 = vunpack.c.l.b16 %v11810
    %v11844 = vunpack.c.l.b16 %v11811
    %v11845 = vunpack.c.l.b16 %v11812
    %v11846 = vunpack.c.l.b16 %v11813
    %v11847 = vunpack.c.l.b16 %v11814
    %v11848 = vunpack.c.l.b16 %v11815
    %v11849 = vunpack.c.l.b16 %v11816
    %v11850 = vunpack.c.l.b16 %v11817
    %v11851 = vunpack.c.l.b16 %v11818
    %v11852 = vunpack.c.l.b16 %v11819
    %v11853 = vunpack.c.l.b16 %v11820
    %v11854 = vunpack.c.l.b16 %v11821
    %v11855 = vunpack.c.l.b16 %v11822
    %v11856 = vunpack.c.l.b16 %v11823
    %v11857 = vpack.c.b16 %v11842, %v11841
    %v11858 = vpack.c.b16 %v11844, %v11843
    %v11859 = vpack.c.b16 %v11846, %v11845
    %v11860 = vpack.c.b16 %v11848, %v11847
    %v11861 = vpack.c.b16 %v11850, %v11849
    %v11862 = vpack.c.b16 %v11852, %v11851
    %v11863 = vpack.c.b16 %v11854, %v11853
    %v11864 = vpack.c.b16 %v11856, %v11855
    %11873 = vmatprep.subr.bf16.mxu0 0
    %11874 = vmatpush1.bf16.msra.mxu0 %v11857
    %11875 = vmatprep.subr.bf16.mxu0 0
    %11876 = vmatpush1.bf16.msra.mxu0 %v11858
    %11877 = vmatprep.subr.bf16.mxu0 0
    %11878 = vmatpush1.bf16.msra.mxu0 %v11859
    %11879 = vmatprep.subr.bf16.mxu0 0
    %11880 = vmatpush1.bf16.msra.mxu0 %v11860
    %11881 = vmatprep.subr.bf16.mxu0 0
    %11882 = vmatpush1.bf16.msra.mxu0 %v11861
    %11883 = vmatprep.subr.bf16.mxu0 0
    %11884 = vmatpush1.bf16.msra.mxu0 %v11862
    %11885 = vmatprep.subr.bf16.mxu0 0
    %11886 = vmatpush1.bf16.msra.mxu0 %v11863
    %11887 = vmatprep.subr.bf16.mxu0 0
    %11888 = vmatpush1.bf16.msra.mxu0 %v11864
    %11889 = vmatprep.subr.bf16.mxu0 0
    %11890 = vmatpush1.bf16.msra.mxu0 0
    %11891 = vmatprep.subr.bf16.mxu0 0
    %11892 = vmatpush1.bf16.msra.mxu0 0
    %11893 = vmatprep.subr.bf16.mxu0 0
    %11894 = vmatpush1.bf16.msra.mxu0 0
    %11895 = vmatprep.subr.bf16.mxu0 0
    %11896 = vmatpush1.bf16.msra.mxu0 0
    %11897 = vmatprep.subr.bf16.mxu0 0
    %11898 = vmatpush1.bf16.msra.mxu0 0
    %11899 = vmatprep.subr.bf16.mxu0 0
    %11900 = vmatpush1.bf16.msra.mxu0 0
    %11901 = vmatprep.subr.bf16.mxu0 0
    %11902 = vmatpush1.bf16.msra.mxu0 0
    %11903 = vmatprep.subr.bf16.mxu0 0
    %11904 = vmatpush1.bf16.msra.mxu0 0
    %11905 = vmatprep.mubr.bf16.mxu0 0
    %11906 = vmatmul.mubr.bf16.gmra.mrb[0].mxu0 %v11807
    %v11907 = vpop.f32.mrb[0].mxu0
    %v11908 = vadd.f32 %v11824, %v11907
    %v11909 = vpop.f32.mrb[0].mxu0
    %v11910 = vpop.f32.mrb[0].mxu0
    %v11911 = vpop.f32.mrb[0].mxu0
    %11912 = vdwg.mxu0
    %s11913 = scalar_lea.vmem [#allocation3], 1
    %11914 = vst [vmem:[%s11913] sm:$0x1] %v11908
    // Predicated region
    $region30: #{ds_classifier_forward.1} parent=1 // pred_check
      _
    $region31: #{ds_classifier_forward.1} parent=1 // pred_check_branch
      %11916 = sbr.rel (0) target = $region33
    $region32: #{ds_classifier_forward.1} parent=1 // pred_region
      %s11918 = ssub.s32 32, 32
      %11919 = vsyncadd [#allocation4], %s11918
      %s11920 = sshll.u32 [#allocation3], 4
      %s11921 = int_to_ptr.vmem [resolvable:$true] %s11920
      %11926 = dma.vmem_to_hbm [thread:$0]  %s11921, 32, %s7, [#allocation4], 16, 16, 1
    $region33: #{ds_classifier_forward.1} parent=1 // pred_fallthru
      _
    // Predicated region
    $region34: #{ds_classifier_forward.1} parent=1 // pred_check
      _
    $region35: #{ds_classifier_forward.1} parent=1 // pred_check_branch
      %11928 = sbr.rel (0) target = $region37
    $region36: #{ds_classifier_forward.1} parent=1 // pred_region
      %11929 = dma.done [#allocation4], 32
    $region37: #{ds_classifier_forward.1} parent=1 // pred_fallthru
      _
    %11930 = vsyncpa [#allocation4], 1

</llo_original>
